<compile_context>
chip_gen: v7x
topology: tpu7x:2x2x1
jax: 0.10.0
libtpu: 0.0.40
codegen_flags: <defaults>
</compile_context>

<pallas_src>
import math
import functools

import jax
import jax.numpy as jnp
from jax.experimental import pallas as pl
from jax.experimental.pallas import tpu as pltpu


# ----------------------------------------------------------------------------
# Fused decoder-block kernel (one grid step == one batch element)
# ----------------------------------------------------------------------------

def _decoder_block_kernel(
    # activations (per-batch blocks) + additive mask bias
    x_ref, key_ref, query_ref, mbias_ref,
    # decoder masked self-attention + LayerNorm
    wq1_ref, wk1_ref, wv1_ref, wo1_ref, bo1_ref, lng_ref, lnb_ref,
    # transformer-block cross-attention (no mask) + LayerNorm1
    wq2_ref, wk2_ref, wv2_ref, wo2_ref, bo2_ref, ln1g_ref, ln1b_ref,
    # feed-forward + LayerNorm2
    w1_ref, b1_ref, w2_ref, b2_ref, ln2g_ref, ln2b_ref,
    # output
    o_ref,
    *, heads):
    S = x_ref.shape[1]
    E = x_ref.shape[2]
    Dh = E // heads
    bf16 = jnp.bfloat16

    def mha(q_in, k_in, v_in, wq_ref, wk_ref, wv_ref, wo_ref, bo_ref, mbias):
        # Batched head projections: one bf16 (S,E)@(E,E) MXU matmul each, f32 accum.
        q = jnp.dot(q_in.astype(bf16), wq_ref[...], preferred_element_type=jnp.float32)
        k = jnp.dot(k_in.astype(bf16), wk_ref[...], preferred_element_type=jnp.float32)
        v = jnp.dot(v_in.astype(bf16), wv_ref[...], preferred_element_type=jnp.float32)
        wo = wo_ref[...]                       # (E, E) bf16, already transposed
        acc = jnp.zeros((S, E), jnp.float32)
        # TODO(synk): for heads >= 8 / S >= 1024 convert this static unroll to a
        # lax.fori_loop (acc carry, pl.ds slices) to bound vreg liveness, and tile KV
        # flash-style so the (S,S) scores never fully materialize.
        for h in range(heads):                 # static unroll; heads is small here
            sl = slice(h * Dh, (h + 1) * Dh)
            qh = q[:, sl]
            kh = k[:, sl]
            vh = v[:, sl]
            # scores = qh @ kh^T (contract last dims; no materialized transpose)
            s = jax.lax.dot_general(
                qh.astype(bf16), kh.astype(bf16), (((1,), (1,)), ((), ())),
                preferred_element_type=jnp.float32)          # (S, S) f32
            if mbias is not None:
                s = s + mbias                                 # additive mask bias
            # softmax in f32; reciprocal goes to the EUP slot
            m = jnp.max(s, axis=-1, keepdims=True)
            e = jnp.exp(s - m)
            p = e * pl.reciprocal(jnp.sum(e, axis=-1, keepdims=True), approx=True)
            oh = jnp.dot(p.astype(bf16), vh.astype(bf16),
                         preferred_element_type=jnp.float32)  # (S, Dh)
            # fc_out folded per head: concat(o_h) @ Wo^T == sum_h o_h @ Wo^T[rows_h]
            acc = acc + jnp.dot(oh.astype(bf16), wo[sl, :],
                                preferred_element_type=jnp.float32)
        return acc + bo_ref[...]               # bias broadcast once (hoisted)

    def add_ln(a, b, g_ref, beta_ref):         # residual add + LayerNorm (f32)
        xx = a + b
        mean = jnp.mean(xx, axis=-1, keepdims=True)
        cent = xx - mean
        var = jnp.mean(cent * cent, axis=-1, keepdims=True)
        return cent * jax.lax.rsqrt(var + 1e-5) * g_ref[...] + beta_ref[...]

    x = x_ref[0]
    k_in = key_ref[0]
    q_in = query_ref[0]
    mbias = mbias_ref[...]                      # hoisted, shared by all heads

    # DecoderBlock: masked self-attention over x, residual + LayerNorm.
    dec_attn = mha(x, x, x, wq1_ref, wk1_ref, wv1_ref, wo1_ref, bo1_ref, mbias)
    value = add_ln(dec_attn, x, lng_ref, lnb_ref)       # dropout -> identity (eval)

    # TransformerBlock: cross-attention (query=query, key=key, value=value), no mask.
    attn2 = mha(q_in, k_in, value, wq2_ref, wk2_ref, wv2_ref, wo2_ref, bo2_ref, None)
    x1 = add_ln(attn2, value, ln1g_ref, ln1b_ref)       # dropout1 -> identity

    # Feed-forward: E -> 4E (ReLU) -> E, then residual + LayerNorm2.
    ff = jnp.dot(x1.astype(bf16), w1_ref[...],
                 preferred_element_type=jnp.float32) + b1_ref[...]
    ff = jnp.maximum(ff, 0.0)
    ff = jnp.dot(ff.astype(bf16), w2_ref[...],
                 preferred_element_type=jnp.float32) + b2_ref[...]
    o_ref[0] = add_ln(ff, x1, ln2g_ref, ln2b_ref)       # dropout2 -> identity


# ----------------------------------------------------------------------------
# Wrapper: one pallas_call for the whole decoder block
# ----------------------------------------------------------------------------

def decoder_block(key, query, x, mask2d, params, heads, single_buffer_weights=True):
    """Mirror of DecoderBlock.forward(key, query, x, mask).

    key/query/x: (B, S, E) float32; mask2d: (S, S) float (1=keep, 0=mask).
    """
    B, S, E = x.shape
    assert E % heads == 0
    # Lane-dense layout: keep E on the 128-lane axis (unmasked vst).
    assert E % 128 == 0, "E must be a multiple of 128 (lane-dense blocks)"
    Dh = E // heads
    scale = 1.0 / math.sqrt(Dh)
    bf16 = jnp.bfloat16

    def bd(w, s=1.0):
        # Per-head (Dh,Dh) weight -> (E,E) block-diagonal of W^T (bf16) so a single
        # x(S,E) @ bd(W) applies the same per-head Linear to every head chunk.
        # TODO(synk): for heads >= 8 & Dh >= 64 benchmark (S*heads,Dh)@(Dh,Dh) instead.
        return (jnp.kron(jnp.eye(heads, dtype=jnp.float32),
                         w.astype(jnp.float32).T) * s).astype(bf16)

    p1 = params["attn"]
    tb = params["tb"]
    p2 = tb["attn"]
    Ef = tb["w1"].shape[0]
    f32 = jnp.float32

    weights = [
        bd(p1["wq"], scale), bd(p1["wk"]), bd(p1["wv"]),
        p1["wo"].T.astype(bf16), p1["bo"].reshape(1, E).astype(f32),
        params["ln_g"].reshape(1, E).astype(f32), params["ln_b"].reshape(1, E).astype(f32),
        bd(p2["wq"], scale), bd(p2["wk"]), bd(p2["wv"]),
        p2["wo"].T.astype(bf16), p2["bo"].reshape(1, E).astype(f32),
        tb["ln1_g"].reshape(1, E).astype(f32), tb["ln1_b"].reshape(1, E).astype(f32),
        tb["w1"].T.astype(bf16), tb["b1"].reshape(1, Ef).astype(f32),
        tb["w2"].T.astype(bf16), tb["b2"].reshape(1, E).astype(f32),
        tb["ln2_g"].reshape(1, E).astype(f32), tb["ln2_b"].reshape(1, E).astype(f32),
    ]

    # Additive mask bias computed once: 0 where keep, -1e30 where masked.
    mask_bias = (mask2d.astype(f32) - 1.0) * 1e30

    def resident_spec(shape):
        # Grid-invariant operand: constant index_map; single-buffered if supported.
        idx = lambda b: (0,) * len(shape)
        if single_buffer_weights:
            return pl.BlockSpec(shape, idx, pipeline_mode=pl.Buffered(1))
        return pl.BlockSpec(shape, idx)

    act_spec = pl.BlockSpec((1, S, E), lambda b: (b, 0, 0))   # double-buffered
    in_specs = [act_spec, act_spec, act_spec, resident_spec((S, S))]
    in_specs += [resident_spec(w.shape) for w in weights]

    weight_bytes = sum(int(w.size) * w.dtype.itemsize for w in weights)

    # Cost estimate (per-batch matmul FLOPs x B; exp count for both attentions).
    flops = B * (16 * S * E * E + 8 * S * S * E + 4 * S * E * Ef)
    transcendentals = B * 2 * heads * S * S
    bytes_accessed = 4 * B * S * E * 4 + S * S * 4 + weight_bytes
    cost = pl.CostEstimate(flops=flops, transcendentals=transcendentals,
                           bytes_accessed=bytes_accessed)

    # Explicit VMEM budget: resident weights + double-buffered activation blocks +
    # per-step intermediates, ~25% headroom (floor 32 MiB, cap 100 MiB).
    act_bytes = 4 * 2 * (S * E * 4)
    scratch_est = (8 * S * E + S * Ef + heads * S * S) * 4
    vmem_limit = min(100 * 1024 * 1024,
                     max(32 * 1024 * 1024,
                         int(1.25 * (weight_bytes + act_bytes + scratch_est + S * S * 4))))

    return pl.pallas_call(
        functools.partial(_decoder_block_kernel, heads=heads),
        out_shape=jax.ShapeDtypeStruct((B, S, E), jnp.float32),
        grid=(B,),
        in_specs=in_specs,
        out_specs=act_spec,
        compiler_params=pltpu.CompilerParams(
            dimension_semantics=("parallel",),
            vmem_limit_bytes=vmem_limit),
        cost_estimate=cost,
    )(x, key, query, mask_bias, *weights)


# ----------------------------------------------------------------------------
# Deterministic parameter init (matches the PyTorch module's parameter set)
# ----------------------------------------------------------------------------

def init_params(rng, embed_dim, heads, expansion_factor):
    Dh = embed_dim // heads
    Ef = expansion_factor * embed_dim
    keys = jax.random.split(rng, 10)

    def w(k, shape):
        return (0.02 * jax.random.normal(k, shape)).astype(jnp.float32)

    def mha_params(k):
        k1, k2, k3, k4 = jax.random.split(k, 4)
        return {
            "wq": w(k1, (Dh, Dh)), "wk": w(k2, (Dh, Dh)), "wv": w(k3, (Dh, Dh)),
            "wo": w(k4, (embed_dim, embed_dim)),
            "bo": jnp.zeros((embed_dim,), jnp.float32),
        }

    return {
        "attn": mha_params(keys[0]),
        "ln_g": jnp.ones((embed_dim,), jnp.float32),
        "ln_b": jnp.zeros((embed_dim,), jnp.float32),
        "tb": {
            "attn": mha_params(keys[1]),
            "ln1_g": jnp.ones((embed_dim,), jnp.float32),
            "ln1_b": jnp.zeros((embed_dim,), jnp.float32),
            "ln2_g": jnp.ones((embed_dim,), jnp.float32),
            "ln2_b": jnp.zeros((embed_dim,), jnp.float32),
            "w1": w(keys[2], (Ef, embed_dim)),
            "b1": jnp.zeros((Ef,), jnp.float32),
            "w2": w(keys[3], (embed_dim, Ef)),
            "b2": jnp.zeros((embed_dim,), jnp.float32),
        },
    }


if __name__ == "__main__":
    # Small shapes consistent with the module; E=128 keeps all blocks lane-dense.
    B, S, E, H, EXP = 2, 8, 128, 4, 4

    rng = jax.random.PRNGKey(0)
    r_k, r_q, r_x, r_p = jax.random.split(rng, 4)

    enc_key = jax.random.normal(r_k, (B, S, E), jnp.float32)
    enc_query = jax.random.normal(r_q, (B, S, E), jnp.float32)
    x = jax.random.normal(r_x, (B, S, E), jnp.float32)
    mask = jnp.tril(jnp.ones((S, S), jnp.float32))  # causal mask (1=keep, 0=mask)

    params = init_params(r_p, E, H, EXP)

    fwd = jax.jit(functools.partial(decoder_block, heads=H))
    try:
        out = fwd(enc_key, enc_query, x, mask, params)
        jax.block_until_ready(out)
    except Exception:
        # Fallback: pl.Buffered(1) unsupported on this build -> default buffering.
        fwd = jax.jit(functools.partial(decoder_block, heads=H,
                                        single_buffer_weights=False))
        out = fwd(enc_key, enc_query, x, mask, params)
        jax.block_until_ready(out)

    assert out.shape == (B, S, E) and out.dtype == jnp.float32
    assert bool(jnp.isfinite(out).all())
    print("KERNEL_OK")
</pallas_src>

<mosaic_0001>
module attributes {stable_mosaic.version = 11 : i64} {
  func.func @_decoder_block_kernel(%arg0: i32, %arg1: memref<1x8x128xf32, #tpu.memory_space<vmem>>, %arg2: memref<1x8x128xf32, #tpu.memory_space<vmem>>, %arg3: memref<1x8x128xf32, #tpu.memory_space<vmem>>, %arg4: memref<8x8xf32, #tpu.memory_space<vmem>>, %arg5: memref<128x128xbf16, #tpu.memory_space<vmem>>, %arg6: memref<128x128xbf16, #tpu.memory_space<vmem>>, %arg7: memref<128x128xbf16, #tpu.memory_space<vmem>>, %arg8: memref<128x128xbf16, #tpu.memory_space<vmem>>, %arg9: memref<1x128xf32, #tpu.memory_space<vmem>>, %arg10: memref<1x128xf32, #tpu.memory_space<vmem>>, %arg11: memref<1x128xf32, #tpu.memory_space<vmem>>, %arg12: memref<128x128xbf16, #tpu.memory_space<vmem>>, %arg13: memref<128x128xbf16, #tpu.memory_space<vmem>>, %arg14: memref<128x128xbf16, #tpu.memory_space<vmem>>, %arg15: memref<128x128xbf16, #tpu.memory_space<vmem>>, %arg16: memref<1x128xf32, #tpu.memory_space<vmem>>, %arg17: memref<1x128xf32, #tpu.memory_space<vmem>>, %arg18: memref<1x128xf32, #tpu.memory_space<vmem>>, %arg19: memref<128x512xbf16, #tpu.memory_space<vmem>>, %arg20: memref<1x512xf32, #tpu.memory_space<vmem>>, %arg21: memref<512x128xbf16, #tpu.memory_space<vmem>>, %arg22: memref<1x128xf32, #tpu.memory_space<vmem>>, %arg23: memref<1x128xf32, #tpu.memory_space<vmem>>, %arg24: memref<1x128xf32, #tpu.memory_space<vmem>>, %arg25: memref<1x8x128xf32, #tpu.memory_space<vmem>>) attributes {dimension_semantics = [#tpu.dimension_semantics<parallel>], iteration_bounds = array<i64: 2>, scalar_prefetch = 0 : i64, scratch_operands = 0 : i64, tpu.core_type = #tpu.core_type<tc>, window_params = [{transform_indices = @transform_0, window_bounds = array<i64: 1, 8, 128>}, {transform_indices = @transform_1, window_bounds = array<i64: 1, 8, 128>}, {transform_indices = @transform_2, window_bounds = array<i64: 1, 8, 128>}, {pipeline_mode = #tpu.pipeline_mode<synchronous>, transform_indices = @transform_3, window_bounds = array<i64: 8, 8>}, {pipeline_mode = #tpu.pipeline_mode<synchronous>, transform_indices = @transform_4, window_bounds = array<i64: 128, 128>}, {pipeline_mode = #tpu.pipeline_mode<synchronous>, transform_indices = @transform_5, window_bounds = array<i64: 128, 128>}, {pipeline_mode = #tpu.pipeline_mode<synchronous>, transform_indices = @transform_6, window_bounds = array<i64: 128, 128>}, {pipeline_mode = #tpu.pipeline_mode<synchronous>, transform_indices = @transform_7, window_bounds = array<i64: 128, 128>}, {pipeline_mode = #tpu.pipeline_mode<synchronous>, transform_indices = @transform_8, window_bounds = array<i64: 1, 128>}, {pipeline_mode = #tpu.pipeline_mode<synchronous>, transform_indices = @transform_9, window_bounds = array<i64: 1, 128>}, {pipeline_mode = #tpu.pipeline_mode<synchronous>, transform_indices = @transform_10, window_bounds = array<i64: 1, 128>}, {pipeline_mode = #tpu.pipeline_mode<synchronous>, transform_indices = @transform_11, window_bounds = array<i64: 128, 128>}, {pipeline_mode = #tpu.pipeline_mode<synchronous>, transform_indices = @transform_12, window_bounds = array<i64: 128, 128>}, {pipeline_mode = #tpu.pipeline_mode<synchronous>, transform_indices = @transform_13, window_bounds = array<i64: 128, 128>}, {pipeline_mode = #tpu.pipeline_mode<synchronous>, transform_indices = @transform_14, window_bounds = array<i64: 128, 128>}, {pipeline_mode = #tpu.pipeline_mode<synchronous>, transform_indices = @transform_15, window_bounds = array<i64: 1, 128>}, {pipeline_mode = #tpu.pipeline_mode<synchronous>, transform_indices = @transform_16, window_bounds = array<i64: 1, 128>}, {pipeline_mode = #tpu.pipeline_mode<synchronous>, transform_indices = @transform_17, window_bounds = array<i64: 1, 128>}, {pipeline_mode = #tpu.pipeline_mode<synchronous>, transform_indices = @transform_18, window_bounds = array<i64: 128, 512>}, {pipeline_mode = #tpu.pipeline_mode<synchronous>, transform_indices = @transform_19, window_bounds = array<i64: 1, 512>}, {pipeline_mode = #tpu.pipeline_mode<synchronous>, transform_indices = @transform_20, window_bounds = array<i64: 512, 128>}, {pipeline_mode = #tpu.pipeline_mode<synchronous>, transform_indices = @transform_21, window_bounds = array<i64: 1, 128>}, {pipeline_mode = #tpu.pipeline_mode<synchronous>, transform_indices = @transform_22, window_bounds = array<i64: 1, 128>}, {pipeline_mode = #tpu.pipeline_mode<synchronous>, transform_indices = @transform_23, window_bounds = array<i64: 1, 128>}, {transform_indices = @transform_24, window_bounds = array<i64: 1, 8, 128>}]} {
    %c0 = arith.constant 0 : index
    %c0_0 = arith.constant 0 : index
    %c0_1 = arith.constant 0 : index
    %0 = vector.load %arg1[%c0, %c0_0, %c0_1] : memref<1x8x128xf32, #tpu.memory_space<vmem>>, vector<1x8x128xf32>
    %1 = vector.shape_cast %0 : vector<1x8x128xf32> to vector<8x128xf32>
    %c0_2 = arith.constant 0 : index
    %c0_3 = arith.constant 0 : index
    %c0_4 = arith.constant 0 : index
    %2 = vector.load %arg2[%c0_2, %c0_3, %c0_4] : memref<1x8x128xf32, #tpu.memory_space<vmem>>, vector<1x8x128xf32>
    %3 = vector.shape_cast %2 : vector<1x8x128xf32> to vector<8x128xf32>
    %c0_5 = arith.constant 0 : index
    %c0_6 = arith.constant 0 : index
    %c0_7 = arith.constant 0 : index
    %4 = vector.load %arg3[%c0_5, %c0_6, %c0_7] : memref<1x8x128xf32, #tpu.memory_space<vmem>>, vector<1x8x128xf32>
    %5 = vector.shape_cast %4 : vector<1x8x128xf32> to vector<8x128xf32>
    %c0_8 = arith.constant 0 : index
    %c0_9 = arith.constant 0 : index
    %6 = vector.load %arg4[%c0_8, %c0_9] : memref<8x8xf32, #tpu.memory_space<vmem>>, vector<8x8xf32>
    %7 = arith.truncf %1 : vector<8x128xf32> to vector<8x128xbf16>
    %c0_10 = arith.constant 0 : index
    %c0_11 = arith.constant 0 : index
    %8 = vector.load %arg5[%c0_10, %c0_11] : memref<128x128xbf16, #tpu.memory_space<vmem>>, vector<128x128xbf16>
    %cst = arith.constant dense<0.000000e+00> : vector<8x128xf32>
    %9 = tpu.matmul %7, %8, %cst {dimension_numbers = #tpu.dot_dimension_numbers<[1], [0], [0], [1], [0, 0, 1, 1], [], []>} : vector<8x128xbf16>, vector<128x128xbf16>, vector<8x128xf32> -> vector<8x128xf32>
    %10 = arith.truncf %1 : vector<8x128xf32> to vector<8x128xbf16>
    %c0_12 = arith.constant 0 : index
    %c0_13 = arith.constant 0 : index
    %11 = vector.load %arg6[%c0_12, %c0_13] : memref<128x128xbf16, #tpu.memory_space<vmem>>, vector<128x128xbf16>
    %cst_14 = arith.constant dense<0.000000e+00> : vector<8x128xf32>
    %12 = tpu.matmul %10, %11, %cst_14 {dimension_numbers = #tpu.dot_dimension_numbers<[1], [0], [0], [1], [0, 0, 1, 1], [], []>} : vector<8x128xbf16>, vector<128x128xbf16>, vector<8x128xf32> -> vector<8x128xf32>
    %13 = arith.truncf %1 : vector<8x128xf32> to vector<8x128xbf16>
    %c0_15 = arith.constant 0 : index
    %c0_16 = arith.constant 0 : index
    %14 = vector.load %arg7[%c0_15, %c0_16] : memref<128x128xbf16, #tpu.memory_space<vmem>>, vector<128x128xbf16>
    %cst_17 = arith.constant dense<0.000000e+00> : vector<8x128xf32>
    %15 = tpu.matmul %13, %14, %cst_17 {dimension_numbers = #tpu.dot_dimension_numbers<[1], [0], [0], [1], [0, 0, 1, 1], [], []>} : vector<8x128xbf16>, vector<128x128xbf16>, vector<8x128xf32> -> vector<8x128xf32>
    %c0_18 = arith.constant 0 : index
    %c0_19 = arith.constant 0 : index
    %16 = vector.load %arg8[%c0_18, %c0_19] : memref<128x128xbf16, #tpu.memory_space<vmem>>, vector<128x128xbf16>
    %cst_20 = arith.constant 0.000000e+00 : f32
    %17 = vector.broadcast %cst_20 : f32 to vector<8x128xf32>
    %18 = vector.extract_strided_slice %9 {offsets = [0, 0], sizes = [8, 32], strides = [1, 1]} : vector<8x128xf32> to vector<8x32xf32>
    %19 = vector.extract_strided_slice %12 {offsets = [0, 0], sizes = [8, 32], strides = [1, 1]} : vector<8x128xf32> to vector<8x32xf32>
    %20 = vector.extract_strided_slice %15 {offsets = [0, 0], sizes = [8, 32], strides = [1, 1]} : vector<8x128xf32> to vector<8x32xf32>
    %21 = arith.truncf %18 : vector<8x32xf32> to vector<8x32xbf16>
    %22 = arith.truncf %19 : vector<8x32xf32> to vector<8x32xbf16>
    %cst_21 = arith.constant dense<0.000000e+00> : vector<8x8xf32>
    %23 = tpu.matmul %21, %22, %cst_21 {dimension_numbers = #tpu.dot_dimension_numbers<[1], [1], [0], [0], [0, 0, 1, 0], [], []>} : vector<8x32xbf16>, vector<8x32xbf16>, vector<8x8xf32> -> vector<8x8xf32>
    %24 = arith.addf %23, %6 : vector<8x8xf32>
    %cst_22 = arith.constant dense<0xFF800000> : vector<8xf32>
    %25 = vector.multi_reduction <maximumf>, %24, %cst_22 [1] : vector<8x8xf32> to vector<8xf32>
    %26 = vector.shape_cast %25 : vector<8xf32> to vector<8x1xf32>
    %27 = vector.broadcast %26 : vector<8x1xf32> to vector<8x8xf32>
    %28 = arith.subf %24, %27 : vector<8x8xf32>
    %29 = math.exp %28 : vector<8x8xf32>
    %cst_23 = arith.constant dense<0.000000e+00> : vector<8xf32>
    %30 = vector.multi_reduction <add>, %29, %cst_23 [1] : vector<8x8xf32> to vector<8xf32>
    %31 = vector.shape_cast %30 : vector<8xf32> to vector<8x1xf32>
    %32 = tpu.reciprocal %31 {approx = true} : vector<8x1xf32> -> vector<8x1xf32>
    %33 = vector.broadcast %32 : vector<8x1xf32> to vector<8x8xf32>
    %34 = arith.mulf %29, %33 : vector<8x8xf32>
    %35 = arith.truncf %34 : vector<8x8xf32> to vector<8x8xbf16>
    %36 = arith.truncf %20 : vector<8x32xf32> to vector<8x32xbf16>
    %cst_24 = arith.constant dense<0.000000e+00> : vector<8x32xf32>
    %37 = tpu.matmul %35, %36, %cst_24 {dimension_numbers = #tpu.dot_dimension_numbers<[1], [0], [0], [1], [0, 0, 1, 1], [], []>} : vector<8x8xbf16>, vector<8x32xbf16>, vector<8x32xf32> -> vector<8x32xf32>
    %38 = arith.truncf %37 : vector<8x32xf32> to vector<8x32xbf16>
    %39 = vector.extract_strided_slice %16 {offsets = [0, 0], sizes = [32, 128], strides = [1, 1]} : vector<128x128xbf16> to vector<32x128xbf16>
    %cst_25 = arith.constant dense<0.000000e+00> : vector<8x128xf32>
    %40 = tpu.matmul %38, %39, %cst_25 {dimension_numbers = #tpu.dot_dimension_numbers<[1], [0], [0], [1], [0, 0, 1, 1], [], []>} : vector<8x32xbf16>, vector<32x128xbf16>, vector<8x128xf32> -> vector<8x128xf32>
    %41 = arith.addf %17, %40 : vector<8x128xf32>
    %42 = vector.extract_strided_slice %9 {offsets = [0, 32], sizes = [8, 32], strides = [1, 1]} : vector<8x128xf32> to vector<8x32xf32>
    %43 = vector.extract_strided_slice %12 {offsets = [0, 32], sizes = [8, 32], strides = [1, 1]} : vector<8x128xf32> to vector<8x32xf32>
    %44 = vector.extract_strided_slice %15 {offsets = [0, 32], sizes = [8, 32], strides = [1, 1]} : vector<8x128xf32> to vector<8x32xf32>
    %45 = arith.truncf %42 : vector<8x32xf32> to vector<8x32xbf16>
    %46 = arith.truncf %43 : vector<8x32xf32> to vector<8x32xbf16>
    %cst_26 = arith.constant dense<0.000000e+00> : vector<8x8xf32>
    %47 = tpu.matmul %45, %46, %cst_26 {dimension_numbers = #tpu.dot_dimension_numbers<[1], [1], [0], [0], [0, 0, 1, 0], [], []>} : vector<8x32xbf16>, vector<8x32xbf16>, vector<8x8xf32> -> vector<8x8xf32>
    %48 = arith.addf %47, %6 : vector<8x8xf32>
    %cst_27 = arith.constant dense<0xFF800000> : vector<8xf32>
    %49 = vector.multi_reduction <maximumf>, %48, %cst_27 [1] : vector<8x8xf32> to vector<8xf32>
    %50 = vector.shape_cast %49 : vector<8xf32> to vector<8x1xf32>
    %51 = vector.broadcast %50 : vector<8x1xf32> to vector<8x8xf32>
    %52 = arith.subf %48, %51 : vector<8x8xf32>
    %53 = math.exp %52 : vector<8x8xf32>
    %cst_28 = arith.constant dense<0.000000e+00> : vector<8xf32>
    %54 = vector.multi_reduction <add>, %53, %cst_28 [1] : vector<8x8xf32> to vector<8xf32>
    %55 = vector.shape_cast %54 : vector<8xf32> to vector<8x1xf32>
    %56 = tpu.reciprocal %55 {approx = true} : vector<8x1xf32> -> vector<8x1xf32>
    %57 = vector.broadcast %56 : vector<8x1xf32> to vector<8x8xf32>
    %58 = arith.mulf %53, %57 : vector<8x8xf32>
    %59 = arith.truncf %58 : vector<8x8xf32> to vector<8x8xbf16>
    %60 = arith.truncf %44 : vector<8x32xf32> to vector<8x32xbf16>
    %cst_29 = arith.constant dense<0.000000e+00> : vector<8x32xf32>
    %61 = tpu.matmul %59, %60, %cst_29 {dimension_numbers = #tpu.dot_dimension_numbers<[1], [0], [0], [1], [0, 0, 1, 1], [], []>} : vector<8x8xbf16>, vector<8x32xbf16>, vector<8x32xf32> -> vector<8x32xf32>
    %62 = arith.truncf %61 : vector<8x32xf32> to vector<8x32xbf16>
    %63 = vector.extract_strided_slice %16 {offsets = [32, 0], sizes = [32, 128], strides = [1, 1]} : vector<128x128xbf16> to vector<32x128xbf16>
    %cst_30 = arith.constant dense<0.000000e+00> : vector<8x128xf32>
    %64 = tpu.matmul %62, %63, %cst_30 {dimension_numbers = #tpu.dot_dimension_numbers<[1], [0], [0], [1], [0, 0, 1, 1], [], []>} : vector<8x32xbf16>, vector<32x128xbf16>, vector<8x128xf32> -> vector<8x128xf32>
    %65 = arith.addf %41, %64 : vector<8x128xf32>
    %66 = vector.extract_strided_slice %9 {offsets = [0, 64], sizes = [8, 32], strides = [1, 1]} : vector<8x128xf32> to vector<8x32xf32>
    %67 = vector.extract_strided_slice %12 {offsets = [0, 64], sizes = [8, 32], strides = [1, 1]} : vector<8x128xf32> to vector<8x32xf32>
    %68 = vector.extract_strided_slice %15 {offsets = [0, 64], sizes = [8, 32], strides = [1, 1]} : vector<8x128xf32> to vector<8x32xf32>
    %69 = arith.truncf %66 : vector<8x32xf32> to vector<8x32xbf16>
    %70 = arith.truncf %67 : vector<8x32xf32> to vector<8x32xbf16>
    %cst_31 = arith.constant dense<0.000000e+00> : vector<8x8xf32>
    %71 = tpu.matmul %69, %70, %cst_31 {dimension_numbers = #tpu.dot_dimension_numbers<[1], [1], [0], [0], [0, 0, 1, 0], [], []>} : vector<8x32xbf16>, vector<8x32xbf16>, vector<8x8xf32> -> vector<8x8xf32>
    %72 = arith.addf %71, %6 : vector<8x8xf32>
    %cst_32 = arith.constant dense<0xFF800000> : vector<8xf32>
    %73 = vector.multi_reduction <maximumf>, %72, %cst_32 [1] : vector<8x8xf32> to vector<8xf32>
    %74 = vector.shape_cast %73 : vector<8xf32> to vector<8x1xf32>
    %75 = vector.broadcast %74 : vector<8x1xf32> to vector<8x8xf32>
    %76 = arith.subf %72, %75 : vector<8x8xf32>
    %77 = math.exp %76 : vector<8x8xf32>
    %cst_33 = arith.constant dense<0.000000e+00> : vector<8xf32>
    %78 = vector.multi_reduction <add>, %77, %cst_33 [1] : vector<8x8xf32> to vector<8xf32>
    %79 = vector.shape_cast %78 : vector<8xf32> to vector<8x1xf32>
    %80 = tpu.reciprocal %79 {approx = true} : vector<8x1xf32> -> vector<8x1xf32>
    %81 = vector.broadcast %80 : vector<8x1xf32> to vector<8x8xf32>
    %82 = arith.mulf %77, %81 : vector<8x8xf32>
    %83 = arith.truncf %82 : vector<8x8xf32> to vector<8x8xbf16>
    %84 = arith.truncf %68 : vector<8x32xf32> to vector<8x32xbf16>
    %cst_34 = arith.constant dense<0.000000e+00> : vector<8x32xf32>
    %85 = tpu.matmul %83, %84, %cst_34 {dimension_numbers = #tpu.dot_dimension_numbers<[1], [0], [0], [1], [0, 0, 1, 1], [], []>} : vector<8x8xbf16>, vector<8x32xbf16>, vector<8x32xf32> -> vector<8x32xf32>
    %86 = arith.truncf %85 : vector<8x32xf32> to vector<8x32xbf16>
    %87 = vector.extract_strided_slice %16 {offsets = [64, 0], sizes = [32, 128], strides = [1, 1]} : vector<128x128xbf16> to vector<32x128xbf16>
    %cst_35 = arith.constant dense<0.000000e+00> : vector<8x128xf32>
    %88 = tpu.matmul %86, %87, %cst_35 {dimension_numbers = #tpu.dot_dimension_numbers<[1], [0], [0], [1], [0, 0, 1, 1], [], []>} : vector<8x32xbf16>, vector<32x128xbf16>, vector<8x128xf32> -> vector<8x128xf32>
    %89 = arith.addf %65, %88 : vector<8x128xf32>
    %90 = vector.extract_strided_slice %9 {offsets = [0, 96], sizes = [8, 32], strides = [1, 1]} : vector<8x128xf32> to vector<8x32xf32>
    %91 = vector.extract_strided_slice %12 {offsets = [0, 96], sizes = [8, 32], strides = [1, 1]} : vector<8x128xf32> to vector<8x32xf32>
    %92 = vector.extract_strided_slice %15 {offsets = [0, 96], sizes = [8, 32], strides = [1, 1]} : vector<8x128xf32> to vector<8x32xf32>
    %93 = arith.truncf %90 : vector<8x32xf32> to vector<8x32xbf16>
    %94 = arith.truncf %91 : vector<8x32xf32> to vector<8x32xbf16>
    %cst_36 = arith.constant dense<0.000000e+00> : vector<8x8xf32>
    %95 = tpu.matmul %93, %94, %cst_36 {dimension_numbers = #tpu.dot_dimension_numbers<[1], [1], [0], [0], [0, 0, 1, 0], [], []>} : vector<8x32xbf16>, vector<8x32xbf16>, vector<8x8xf32> -> vector<8x8xf32>
    %96 = arith.addf %95, %6 : vector<8x8xf32>
    %cst_37 = arith.constant dense<0xFF800000> : vector<8xf32>
    %97 = vector.multi_reduction <maximumf>, %96, %cst_37 [1] : vector<8x8xf32> to vector<8xf32>
    %98 = vector.shape_cast %97 : vector<8xf32> to vector<8x1xf32>
    %99 = vector.broadcast %98 : vector<8x1xf32> to vector<8x8xf32>
    %100 = arith.subf %96, %99 : vector<8x8xf32>
    %101 = math.exp %100 : vector<8x8xf32>
    %cst_38 = arith.constant dense<0.000000e+00> : vector<8xf32>
    %102 = vector.multi_reduction <add>, %101, %cst_38 [1] : vector<8x8xf32> to vector<8xf32>
    %103 = vector.shape_cast %102 : vector<8xf32> to vector<8x1xf32>
    %104 = tpu.reciprocal %103 {approx = true} : vector<8x1xf32> -> vector<8x1xf32>
    %105 = vector.broadcast %104 : vector<8x1xf32> to vector<8x8xf32>
    %106 = arith.mulf %101, %105 : vector<8x8xf32>
    %107 = arith.truncf %106 : vector<8x8xf32> to vector<8x8xbf16>
    %108 = arith.truncf %92 : vector<8x32xf32> to vector<8x32xbf16>
    %cst_39 = arith.constant dense<0.000000e+00> : vector<8x32xf32>
    %109 = tpu.matmul %107, %108, %cst_39 {dimension_numbers = #tpu.dot_dimension_numbers<[1], [0], [0], [1], [0, 0, 1, 1], [], []>} : vector<8x8xbf16>, vector<8x32xbf16>, vector<8x32xf32> -> vector<8x32xf32>
    %110 = arith.truncf %109 : vector<8x32xf32> to vector<8x32xbf16>
    %111 = vector.extract_strided_slice %16 {offsets = [96, 0], sizes = [32, 128], strides = [1, 1]} : vector<128x128xbf16> to vector<32x128xbf16>
    %cst_40 = arith.constant dense<0.000000e+00> : vector<8x128xf32>
    %112 = tpu.matmul %110, %111, %cst_40 {dimension_numbers = #tpu.dot_dimension_numbers<[1], [0], [0], [1], [0, 0, 1, 1], [], []>} : vector<8x32xbf16>, vector<32x128xbf16>, vector<8x128xf32> -> vector<8x128xf32>
    %113 = arith.addf %89, %112 : vector<8x128xf32>
    %c0_41 = arith.constant 0 : index
    %c0_42 = arith.constant 0 : index
    %114 = vector.load %arg9[%c0_41, %c0_42] : memref<1x128xf32, #tpu.memory_space<vmem>>, vector<1x128xf32>
    %115 = vector.broadcast %114 : vector<1x128xf32> to vector<8x128xf32>
    %116 = arith.addf %113, %115 : vector<8x128xf32>
    %117 = arith.addf %116, %1 : vector<8x128xf32>
    %cst_43 = arith.constant dense<0.000000e+00> : vector<8xf32>
    %118 = vector.multi_reduction <add>, %117, %cst_43 [1] : vector<8x128xf32> to vector<8xf32>
    %119 = vector.shape_cast %118 : vector<8xf32> to vector<8x1xf32>
    %cst_44 = arith.constant 1.280000e+02 : f32
    %120 = vector.broadcast %cst_44 : f32 to vector<8x1xf32>
    %121 = arith.divf %119, %120 : vector<8x1xf32>
    %122 = vector.broadcast %121 : vector<8x1xf32> to vector<8x128xf32>
    %123 = arith.subf %117, %122 : vector<8x128xf32>
    %124 = arith.mulf %123, %123 : vector<8x128xf32>
    %cst_45 = arith.constant dense<0.000000e+00> : vector<8xf32>
    %125 = vector.multi_reduction <add>, %124, %cst_45 [1] : vector<8x128xf32> to vector<8xf32>
    %126 = vector.shape_cast %125 : vector<8xf32> to vector<8x1xf32>
    %cst_46 = arith.constant 1.280000e+02 : f32
    %127 = vector.broadcast %cst_46 : f32 to vector<8x1xf32>
    %128 = arith.divf %126, %127 : vector<8x1xf32>
    %cst_47 = arith.constant 9.99999974E-6 : f32
    %129 = vector.broadcast %cst_47 : f32 to vector<8x1xf32>
    %130 = arith.addf %128, %129 : vector<8x1xf32>
    %131 = math.rsqrt %130 : vector<8x1xf32>
    %132 = vector.broadcast %131 : vector<8x1xf32> to vector<8x128xf32>
    %133 = arith.mulf %123, %132 : vector<8x128xf32>
    %c0_48 = arith.constant 0 : index
    %c0_49 = arith.constant 0 : index
    %134 = vector.load %arg10[%c0_48, %c0_49] : memref<1x128xf32, #tpu.memory_space<vmem>>, vector<1x128xf32>
    %135 = vector.broadcast %134 : vector<1x128xf32> to vector<8x128xf32>
    %136 = arith.mulf %133, %135 : vector<8x128xf32>
    %c0_50 = arith.constant 0 : index
    %c0_51 = arith.constant 0 : index
    %137 = vector.load %arg11[%c0_50, %c0_51] : memref<1x128xf32, #tpu.memory_space<vmem>>, vector<1x128xf32>
    %138 = vector.broadcast %137 : vector<1x128xf32> to vector<8x128xf32>
    %139 = arith.addf %136, %138 : vector<8x128xf32>
    %140 = arith.truncf %5 : vector<8x128xf32> to vector<8x128xbf16>
    %c0_52 = arith.constant 0 : index
    %c0_53 = arith.constant 0 : index
    %141 = vector.load %arg12[%c0_52, %c0_53] : memref<128x128xbf16, #tpu.memory_space<vmem>>, vector<128x128xbf16>
    %cst_54 = arith.constant dense<0.000000e+00> : vector<8x128xf32>
    %142 = tpu.matmul %140, %141, %cst_54 {dimension_numbers = #tpu.dot_dimension_numbers<[1], [0], [0], [1], [0, 0, 1, 1], [], []>} : vector<8x128xbf16>, vector<128x128xbf16>, vector<8x128xf32> -> vector<8x128xf32>
    %143 = arith.truncf %3 : vector<8x128xf32> to vector<8x128xbf16>
    %c0_55 = arith.constant 0 : index
    %c0_56 = arith.constant 0 : index
    %144 = vector.load %arg13[%c0_55, %c0_56] : memref<128x128xbf16, #tpu.memory_space<vmem>>, vector<128x128xbf16>
    %cst_57 = arith.constant dense<0.000000e+00> : vector<8x128xf32>
    %145 = tpu.matmul %143, %144, %cst_57 {dimension_numbers = #tpu.dot_dimension_numbers<[1], [0], [0], [1], [0, 0, 1, 1], [], []>} : vector<8x128xbf16>, vector<128x128xbf16>, vector<8x128xf32> -> vector<8x128xf32>
    %146 = arith.truncf %139 : vector<8x128xf32> to vector<8x128xbf16>
    %c0_58 = arith.constant 0 : index
    %c0_59 = arith.constant 0 : index
    %147 = vector.load %arg14[%c0_58, %c0_59] : memref<128x128xbf16, #tpu.memory_space<vmem>>, vector<128x128xbf16>
    %cst_60 = arith.constant dense<0.000000e+00> : vector<8x128xf32>
    %148 = tpu.matmul %146, %147, %cst_60 {dimension_numbers = #tpu.dot_dimension_numbers<[1], [0], [0], [1], [0, 0, 1, 1], [], []>} : vector<8x128xbf16>, vector<128x128xbf16>, vector<8x128xf32> -> vector<8x128xf32>
    %c0_61 = arith.constant 0 : index
    %c0_62 = arith.constant 0 : index
    %149 = vector.load %arg15[%c0_61, %c0_62] : memref<128x128xbf16, #tpu.memory_space<vmem>>, vector<128x128xbf16>
    %cst_63 = arith.constant 0.000000e+00 : f32
    %150 = vector.broadcast %cst_63 : f32 to vector<8x128xf32>
    %151 = vector.extract_strided_slice %142 {offsets = [0, 0], sizes = [8, 32], strides = [1, 1]} : vector<8x128xf32> to vector<8x32xf32>
    %152 = vector.extract_strided_slice %145 {offsets = [0, 0], sizes = [8, 32], strides = [1, 1]} : vector<8x128xf32> to vector<8x32xf32>
    %153 = vector.extract_strided_slice %148 {offsets = [0, 0], sizes = [8, 32], strides = [1, 1]} : vector<8x128xf32> to vector<8x32xf32>
    %154 = arith.truncf %151 : vector<8x32xf32> to vector<8x32xbf16>
    %155 = arith.truncf %152 : vector<8x32xf32> to vector<8x32xbf16>
    %cst_64 = arith.constant dense<0.000000e+00> : vector<8x8xf32>
    %156 = tpu.matmul %154, %155, %cst_64 {dimension_numbers = #tpu.dot_dimension_numbers<[1], [1], [0], [0], [0, 0, 1, 0], [], []>} : vector<8x32xbf16>, vector<8x32xbf16>, vector<8x8xf32> -> vector<8x8xf32>
    %cst_65 = arith.constant dense<0xFF800000> : vector<8xf32>
    %157 = vector.multi_reduction <maximumf>, %156, %cst_65 [1] : vector<8x8xf32> to vector<8xf32>
    %158 = vector.shape_cast %157 : vector<8xf32> to vector<8x1xf32>
    %159 = vector.broadcast %158 : vector<8x1xf32> to vector<8x8xf32>
    %160 = arith.subf %156, %159 : vector<8x8xf32>
    %161 = math.exp %160 : vector<8x8xf32>
    %cst_66 = arith.constant dense<0.000000e+00> : vector<8xf32>
    %162 = vector.multi_reduction <add>, %161, %cst_66 [1] : vector<8x8xf32> to vector<8xf32>
    %163 = vector.shape_cast %162 : vector<8xf32> to vector<8x1xf32>
    %164 = tpu.reciprocal %163 {approx = true} : vector<8x1xf32> -> vector<8x1xf32>
    %165 = vector.broadcast %164 : vector<8x1xf32> to vector<8x8xf32>
    %166 = arith.mulf %161, %165 : vector<8x8xf32>
    %167 = arith.truncf %166 : vector<8x8xf32> to vector<8x8xbf16>
    %168 = arith.truncf %153 : vector<8x32xf32> to vector<8x32xbf16>
    %cst_67 = arith.constant dense<0.000000e+00> : vector<8x32xf32>
    %169 = tpu.matmul %167, %168, %cst_67 {dimension_numbers = #tpu.dot_dimension_numbers<[1], [0], [0], [1], [0, 0, 1, 1], [], []>} : vector<8x8xbf16>, vector<8x32xbf16>, vector<8x32xf32> -> vector<8x32xf32>
    %170 = arith.truncf %169 : vector<8x32xf32> to vector<8x32xbf16>
    %171 = vector.extract_strided_slice %149 {offsets = [0, 0], sizes = [32, 128], strides = [1, 1]} : vector<128x128xbf16> to vector<32x128xbf16>
    %cst_68 = arith.constant dense<0.000000e+00> : vector<8x128xf32>
    %172 = tpu.matmul %170, %171, %cst_68 {dimension_numbers = #tpu.dot_dimension_numbers<[1], [0], [0], [1], [0, 0, 1, 1], [], []>} : vector<8x32xbf16>, vector<32x128xbf16>, vector<8x128xf32> -> vector<8x128xf32>
    %173 = arith.addf %150, %172 : vector<8x128xf32>
    %174 = vector.extract_strided_slice %142 {offsets = [0, 32], sizes = [8, 32], strides = [1, 1]} : vector<8x128xf32> to vector<8x32xf32>
    %175 = vector.extract_strided_slice %145 {offsets = [0, 32], sizes = [8, 32], strides = [1, 1]} : vector<8x128xf32> to vector<8x32xf32>
    %176 = vector.extract_strided_slice %148 {offsets = [0, 32], sizes = [8, 32], strides = [1, 1]} : vector<8x128xf32> to vector<8x32xf32>
    %177 = arith.truncf %174 : vector<8x32xf32> to vector<8x32xbf16>
    %178 = arith.truncf %175 : vector<8x32xf32> to vector<8x32xbf16>
    %cst_69 = arith.constant dense<0.000000e+00> : vector<8x8xf32>
    %179 = tpu.matmul %177, %178, %cst_69 {dimension_numbers = #tpu.dot_dimension_numbers<[1], [1], [0], [0], [0, 0, 1, 0], [], []>} : vector<8x32xbf16>, vector<8x32xbf16>, vector<8x8xf32> -> vector<8x8xf32>
    %cst_70 = arith.constant dense<0xFF800000> : vector<8xf32>
    %180 = vector.multi_reduction <maximumf>, %179, %cst_70 [1] : vector<8x8xf32> to vector<8xf32>
    %181 = vector.shape_cast %180 : vector<8xf32> to vector<8x1xf32>
    %182 = vector.broadcast %181 : vector<8x1xf32> to vector<8x8xf32>
    %183 = arith.subf %179, %182 : vector<8x8xf32>
    %184 = math.exp %183 : vector<8x8xf32>
    %cst_71 = arith.constant dense<0.000000e+00> : vector<8xf32>
    %185 = vector.multi_reduction <add>, %184, %cst_71 [1] : vector<8x8xf32> to vector<8xf32>
    %186 = vector.shape_cast %185 : vector<8xf32> to vector<8x1xf32>
    %187 = tpu.reciprocal %186 {approx = true} : vector<8x1xf32> -> vector<8x1xf32>
    %188 = vector.broadcast %187 : vector<8x1xf32> to vector<8x8xf32>
    %189 = arith.mulf %184, %188 : vector<8x8xf32>
    %190 = arith.truncf %189 : vector<8x8xf32> to vector<8x8xbf16>
    %191 = arith.truncf %176 : vector<8x32xf32> to vector<8x32xbf16>
    %cst_72 = arith.constant dense<0.000000e+00> : vector<8x32xf32>
    %192 = tpu.matmul %190, %191, %cst_72 {dimension_numbers = #tpu.dot_dimension_numbers<[1], [0], [0], [1], [0, 0, 1, 1], [], []>} : vector<8x8xbf16>, vector<8x32xbf16>, vector<8x32xf32> -> vector<8x32xf32>
    %193 = arith.truncf %192 : vector<8x32xf32> to vector<8x32xbf16>
    %194 = vector.extract_strided_slice %149 {offsets = [32, 0], sizes = [32, 128], strides = [1, 1]} : vector<128x128xbf16> to vector<32x128xbf16>
    %cst_73 = arith.constant dense<0.000000e+00> : vector<8x128xf32>
    %195 = tpu.matmul %193, %194, %cst_73 {dimension_numbers = #tpu.dot_dimension_numbers<[1], [0], [0], [1], [0, 0, 1, 1], [], []>} : vector<8x32xbf16>, vector<32x128xbf16>, vector<8x128xf32> -> vector<8x128xf32>
    %196 = arith.addf %173, %195 : vector<8x128xf32>
    %197 = vector.extract_strided_slice %142 {offsets = [0, 64], sizes = [8, 32], strides = [1, 1]} : vector<8x128xf32> to vector<8x32xf32>
    %198 = vector.extract_strided_slice %145 {offsets = [0, 64], sizes = [8, 32], strides = [1, 1]} : vector<8x128xf32> to vector<8x32xf32>
    %199 = vector.extract_strided_slice %148 {offsets = [0, 64], sizes = [8, 32], strides = [1, 1]} : vector<8x128xf32> to vector<8x32xf32>
    %200 = arith.truncf %197 : vector<8x32xf32> to vector<8x32xbf16>
    %201 = arith.truncf %198 : vector<8x32xf32> to vector<8x32xbf16>
    %cst_74 = arith.constant dense<0.000000e+00> : vector<8x8xf32>
    %202 = tpu.matmul %200, %201, %cst_74 {dimension_numbers = #tpu.dot_dimension_numbers<[1], [1], [0], [0], [0, 0, 1, 0], [], []>} : vector<8x32xbf16>, vector<8x32xbf16>, vector<8x8xf32> -> vector<8x8xf32>
    %cst_75 = arith.constant dense<0xFF800000> : vector<8xf32>
    %203 = vector.multi_reduction <maximumf>, %202, %cst_75 [1] : vector<8x8xf32> to vector<8xf32>
    %204 = vector.shape_cast %203 : vector<8xf32> to vector<8x1xf32>
    %205 = vector.broadcast %204 : vector<8x1xf32> to vector<8x8xf32>
    %206 = arith.subf %202, %205 : vector<8x8xf32>
    %207 = math.exp %206 : vector<8x8xf32>
    %cst_76 = arith.constant dense<0.000000e+00> : vector<8xf32>
    %208 = vector.multi_reduction <add>, %207, %cst_76 [1] : vector<8x8xf32> to vector<8xf32>
    %209 = vector.shape_cast %208 : vector<8xf32> to vector<8x1xf32>
    %210 = tpu.reciprocal %209 {approx = true} : vector<8x1xf32> -> vector<8x1xf32>
    %211 = vector.broadcast %210 : vector<8x1xf32> to vector<8x8xf32>
    %212 = arith.mulf %207, %211 : vector<8x8xf32>
    %213 = arith.truncf %212 : vector<8x8xf32> to vector<8x8xbf16>
    %214 = arith.truncf %199 : vector<8x32xf32> to vector<8x32xbf16>
    %cst_77 = arith.constant dense<0.000000e+00> : vector<8x32xf32>
    %215 = tpu.matmul %213, %214, %cst_77 {dimension_numbers = #tpu.dot_dimension_numbers<[1], [0], [0], [1], [0, 0, 1, 1], [], []>} : vector<8x8xbf16>, vector<8x32xbf16>, vector<8x32xf32> -> vector<8x32xf32>
    %216 = arith.truncf %215 : vector<8x32xf32> to vector<8x32xbf16>
    %217 = vector.extract_strided_slice %149 {offsets = [64, 0], sizes = [32, 128], strides = [1, 1]} : vector<128x128xbf16> to vector<32x128xbf16>
    %cst_78 = arith.constant dense<0.000000e+00> : vector<8x128xf32>
    %218 = tpu.matmul %216, %217, %cst_78 {dimension_numbers = #tpu.dot_dimension_numbers<[1], [0], [0], [1], [0, 0, 1, 1], [], []>} : vector<8x32xbf16>, vector<32x128xbf16>, vector<8x128xf32> -> vector<8x128xf32>
    %219 = arith.addf %196, %218 : vector<8x128xf32>
    %220 = vector.extract_strided_slice %142 {offsets = [0, 96], sizes = [8, 32], strides = [1, 1]} : vector<8x128xf32> to vector<8x32xf32>
    %221 = vector.extract_strided_slice %145 {offsets = [0, 96], sizes = [8, 32], strides = [1, 1]} : vector<8x128xf32> to vector<8x32xf32>
    %222 = vector.extract_strided_slice %148 {offsets = [0, 96], sizes = [8, 32], strides = [1, 1]} : vector<8x128xf32> to vector<8x32xf32>
    %223 = arith.truncf %220 : vector<8x32xf32> to vector<8x32xbf16>
    %224 = arith.truncf %221 : vector<8x32xf32> to vector<8x32xbf16>
    %cst_79 = arith.constant dense<0.000000e+00> : vector<8x8xf32>
    %225 = tpu.matmul %223, %224, %cst_79 {dimension_numbers = #tpu.dot_dimension_numbers<[1], [1], [0], [0], [0, 0, 1, 0], [], []>} : vector<8x32xbf16>, vector<8x32xbf16>, vector<8x8xf32> -> vector<8x8xf32>
    %cst_80 = arith.constant dense<0xFF800000> : vector<8xf32>
    %226 = vector.multi_reduction <maximumf>, %225, %cst_80 [1] : vector<8x8xf32> to vector<8xf32>
    %227 = vector.shape_cast %226 : vector<8xf32> to vector<8x1xf32>
    %228 = vector.broadcast %227 : vector<8x1xf32> to vector<8x8xf32>
    %229 = arith.subf %225, %228 : vector<8x8xf32>
    %230 = math.exp %229 : vector<8x8xf32>
    %cst_81 = arith.constant dense<0.000000e+00> : vector<8xf32>
    %231 = vector.multi_reduction <add>, %230, %cst_81 [1] : vector<8x8xf32> to vector<8xf32>
    %232 = vector.shape_cast %231 : vector<8xf32> to vector<8x1xf32>
    %233 = tpu.reciprocal %232 {approx = true} : vector<8x1xf32> -> vector<8x1xf32>
    %234 = vector.broadcast %233 : vector<8x1xf32> to vector<8x8xf32>
    %235 = arith.mulf %230, %234 : vector<8x8xf32>
    %236 = arith.truncf %235 : vector<8x8xf32> to vector<8x8xbf16>
    %237 = arith.truncf %222 : vector<8x32xf32> to vector<8x32xbf16>
    %cst_82 = arith.constant dense<0.000000e+00> : vector<8x32xf32>
    %238 = tpu.matmul %236, %237, %cst_82 {dimension_numbers = #tpu.dot_dimension_numbers<[1], [0], [0], [1], [0, 0, 1, 1], [], []>} : vector<8x8xbf16>, vector<8x32xbf16>, vector<8x32xf32> -> vector<8x32xf32>
    %239 = arith.truncf %238 : vector<8x32xf32> to vector<8x32xbf16>
    %240 = vector.extract_strided_slice %149 {offsets = [96, 0], sizes = [32, 128], strides = [1, 1]} : vector<128x128xbf16> to vector<32x128xbf16>
    %cst_83 = arith.constant dense<0.000000e+00> : vector<8x128xf32>
    %241 = tpu.matmul %239, %240, %cst_83 {dimension_numbers = #tpu.dot_dimension_numbers<[1], [0], [0], [1], [0, 0, 1, 1], [], []>} : vector<8x32xbf16>, vector<32x128xbf16>, vector<8x128xf32> -> vector<8x128xf32>
    %242 = arith.addf %219, %241 : vector<8x128xf32>
    %c0_84 = arith.constant 0 : index
    %c0_85 = arith.constant 0 : index
    %243 = vector.load %arg16[%c0_84, %c0_85] : memref<1x128xf32, #tpu.memory_space<vmem>>, vector<1x128xf32>
    %244 = vector.broadcast %243 : vector<1x128xf32> to vector<8x128xf32>
    %245 = arith.addf %242, %244 : vector<8x128xf32>
    %246 = arith.addf %245, %139 : vector<8x128xf32>
    %cst_86 = arith.constant dense<0.000000e+00> : vector<8xf32>
    %247 = vector.multi_reduction <add>, %246, %cst_86 [1] : vector<8x128xf32> to vector<8xf32>
    %248 = vector.shape_cast %247 : vector<8xf32> to vector<8x1xf32>
    %cst_87 = arith.constant 1.280000e+02 : f32
    %249 = vector.broadcast %cst_87 : f32 to vector<8x1xf32>
    %250 = arith.divf %248, %249 : vector<8x1xf32>
    %251 = vector.broadcast %250 : vector<8x1xf32> to vector<8x128xf32>
    %252 = arith.subf %246, %251 : vector<8x128xf32>
    %253 = arith.mulf %252, %252 : vector<8x128xf32>
    %cst_88 = arith.constant dense<0.000000e+00> : vector<8xf32>
    %254 = vector.multi_reduction <add>, %253, %cst_88 [1] : vector<8x128xf32> to vector<8xf32>
    %255 = vector.shape_cast %254 : vector<8xf32> to vector<8x1xf32>
    %cst_89 = arith.constant 1.280000e+02 : f32
    %256 = vector.broadcast %cst_89 : f32 to vector<8x1xf32>
    %257 = arith.divf %255, %256 : vector<8x1xf32>
    %cst_90 = arith.constant 9.99999974E-6 : f32
    %258 = vector.broadcast %cst_90 : f32 to vector<8x1xf32>
    %259 = arith.addf %257, %258 : vector<8x1xf32>
    %260 = math.rsqrt %259 : vector<8x1xf32>
    %261 = vector.broadcast %260 : vector<8x1xf32> to vector<8x128xf32>
    %262 = arith.mulf %252, %261 : vector<8x128xf32>
    %c0_91 = arith.constant 0 : index
    %c0_92 = arith.constant 0 : index
    %263 = vector.load %arg17[%c0_91, %c0_92] : memref<1x128xf32, #tpu.memory_space<vmem>>, vector<1x128xf32>
    %264 = vector.broadcast %263 : vector<1x128xf32> to vector<8x128xf32>
    %265 = arith.mulf %262, %264 : vector<8x128xf32>
    %c0_93 = arith.constant 0 : index
    %c0_94 = arith.constant 0 : index
    %266 = vector.load %arg18[%c0_93, %c0_94] : memref<1x128xf32, #tpu.memory_space<vmem>>, vector<1x128xf32>
    %267 = vector.broadcast %266 : vector<1x128xf32> to vector<8x128xf32>
    %268 = arith.addf %265, %267 : vector<8x128xf32>
    %269 = arith.truncf %268 : vector<8x128xf32> to vector<8x128xbf16>
    %c0_95 = arith.constant 0 : index
    %c0_96 = arith.constant 0 : index
    %270 = vector.load %arg19[%c0_95, %c0_96] : memref<128x512xbf16, #tpu.memory_space<vmem>>, vector<128x512xbf16>
    %cst_97 = arith.constant dense<0.000000e+00> : vector<8x512xf32>
    %271 = tpu.matmul %269, %270, %cst_97 {dimension_numbers = #tpu.dot_dimension_numbers<[1], [0], [0], [1], [0, 0, 1, 1], [], []>} : vector<8x128xbf16>, vector<128x512xbf16>, vector<8x512xf32> -> vector<8x512xf32>
    %c0_98 = arith.constant 0 : index
    %c0_99 = arith.constant 0 : index
    %272 = vector.load %arg20[%c0_98, %c0_99] : memref<1x512xf32, #tpu.memory_space<vmem>>, vector<1x512xf32>
    %273 = vector.broadcast %272 : vector<1x512xf32> to vector<8x512xf32>
    %274 = arith.addf %271, %273 : vector<8x512xf32>
    %cst_100 = arith.constant 0.000000e+00 : f32
    %275 = vector.broadcast %cst_100 : f32 to vector<8x512xf32>
    %276 = arith.maximumf %274, %275 : vector<8x512xf32>
    %277 = arith.truncf %276 : vector<8x512xf32> to vector<8x512xbf16>
    %c0_101 = arith.constant 0 : index
    %c0_102 = arith.constant 0 : index
    %278 = vector.load %arg21[%c0_101, %c0_102] : memref<512x128xbf16, #tpu.memory_space<vmem>>, vector<512x128xbf16>
    %cst_103 = arith.constant dense<0.000000e+00> : vector<8x128xf32>
    %279 = tpu.matmul %277, %278, %cst_103 {dimension_numbers = #tpu.dot_dimension_numbers<[1], [0], [0], [1], [0, 0, 1, 1], [], []>} : vector<8x512xbf16>, vector<512x128xbf16>, vector<8x128xf32> -> vector<8x128xf32>
    %c0_104 = arith.constant 0 : index
    %c0_105 = arith.constant 0 : index
    %280 = vector.load %arg22[%c0_104, %c0_105] : memref<1x128xf32, #tpu.memory_space<vmem>>, vector<1x128xf32>
    %281 = vector.broadcast %280 : vector<1x128xf32> to vector<8x128xf32>
    %282 = arith.addf %279, %281 : vector<8x128xf32>
    %283 = arith.addf %282, %268 : vector<8x128xf32>
    %cst_106 = arith.constant dense<0.000000e+00> : vector<8xf32>
    %284 = vector.multi_reduction <add>, %283, %cst_106 [1] : vector<8x128xf32> to vector<8xf32>
    %285 = vector.shape_cast %284 : vector<8xf32> to vector<8x1xf32>
    %cst_107 = arith.constant 1.280000e+02 : f32
    %286 = vector.broadcast %cst_107 : f32 to vector<8x1xf32>
    %287 = arith.divf %285, %286 : vector<8x1xf32>
    %288 = vector.broadcast %287 : vector<8x1xf32> to vector<8x128xf32>
    %289 = arith.subf %283, %288 : vector<8x128xf32>
    %290 = arith.mulf %289, %289 : vector<8x128xf32>
    %cst_108 = arith.constant dense<0.000000e+00> : vector<8xf32>
    %291 = vector.multi_reduction <add>, %290, %cst_108 [1] : vector<8x128xf32> to vector<8xf32>
    %292 = vector.shape_cast %291 : vector<8xf32> to vector<8x1xf32>
    %cst_109 = arith.constant 1.280000e+02 : f32
    %293 = vector.broadcast %cst_109 : f32 to vector<8x1xf32>
    %294 = arith.divf %292, %293 : vector<8x1xf32>
    %cst_110 = arith.constant 9.99999974E-6 : f32
    %295 = vector.broadcast %cst_110 : f32 to vector<8x1xf32>
    %296 = arith.addf %294, %295 : vector<8x1xf32>
    %297 = math.rsqrt %296 : vector<8x1xf32>
    %298 = vector.broadcast %297 : vector<8x1xf32> to vector<8x128xf32>
    %299 = arith.mulf %289, %298 : vector<8x128xf32>
    %c0_111 = arith.constant 0 : index
    %c0_112 = arith.constant 0 : index
    %300 = vector.load %arg23[%c0_111, %c0_112] : memref<1x128xf32, #tpu.memory_space<vmem>>, vector<1x128xf32>
    %301 = vector.broadcast %300 : vector<1x128xf32> to vector<8x128xf32>
    %302 = arith.mulf %299, %301 : vector<8x128xf32>
    %c0_113 = arith.constant 0 : index
    %c0_114 = arith.constant 0 : index
    %303 = vector.load %arg24[%c0_113, %c0_114] : memref<1x128xf32, #tpu.memory_space<vmem>>, vector<1x128xf32>
    %304 = vector.broadcast %303 : vector<1x128xf32> to vector<8x128xf32>
    %305 = arith.addf %302, %304 : vector<8x128xf32>
    %c0_115 = arith.constant 0 : index
    %c0_116 = arith.constant 0 : index
    %c0_117 = arith.constant 0 : index
    %306 = vector.load %arg25[%c0_115, %c0_116, %c0_117] : memref<1x8x128xf32, #tpu.memory_space<vmem>>, vector<1x8x128xf32>
    %307 = vector.shape_cast %306 : vector<1x8x128xf32> to vector<8x128xf32>
    %308 = vector.shape_cast %305 : vector<8x128xf32> to vector<1x8x128xf32>
    tpu.vector_store %arg25[%c0_115, %c0_116, %c0_117], %308 {strides = array<i32>} : memref<1x8x128xf32, #tpu.memory_space<vmem>>, vector<1x8x128xf32>,
    return
  }
  func.func @transform_0(%arg0: i32) -> (i32, i32, i32) {
    %c0_i32 = arith.constant 0 : i32
    %c0_i32_0 = arith.constant 0 : i32
    %c0_i32_1 = arith.constant 0 : i32
    return %arg0, %c0_i32, %c0_i32_0 : i32, i32, i32
  }
  func.func @transform_1(%arg0: i32) -> (i32, i32, i32) {
    %c0_i32 = arith.constant 0 : i32
    %c0_i32_0 = arith.constant 0 : i32
    %c0_i32_1 = arith.constant 0 : i32
    return %arg0, %c0_i32, %c0_i32_0 : i32, i32, i32
  }
  func.func @transform_2(%arg0: i32) -> (i32, i32, i32) {
    %c0_i32 = arith.constant 0 : i32
    %c0_i32_0 = arith.constant 0 : i32
    %c0_i32_1 = arith.constant 0 : i32
    return %arg0, %c0_i32, %c0_i32_0 : i32, i32, i32
  }
  func.func @transform_3(%arg0: i32) -> (i32, i32) {
    %c0_i32 = arith.constant 0 : i32
    %c0_i32_0 = arith.constant 0 : i32
    %c0_i32_1 = arith.constant 0 : i32
    return %c0_i32, %c0_i32_0 : i32, i32
  }
  func.func @transform_4(%arg0: i32) -> (i32, i32) {
    %c0_i32 = arith.constant 0 : i32
    %c0_i32_0 = arith.constant 0 : i32
    %c0_i32_1 = arith.constant 0 : i32
    return %c0_i32, %c0_i32_0 : i32, i32
  }
  func.func @transform_5(%arg0: i32) -> (i32, i32) {
    %c0_i32 = arith.constant 0 : i32
    %c0_i32_0 = arith.constant 0 : i32
    %c0_i32_1 = arith.constant 0 : i32
    return %c0_i32, %c0_i32_0 : i32, i32
  }
  func.func @transform_6(%arg0: i32) -> (i32, i32) {
    %c0_i32 = arith.constant 0 : i32
    %c0_i32_0 = arith.constant 0 : i32
    %c0_i32_1 = arith.constant 0 : i32
    return %c0_i32, %c0_i32_0 : i32, i32
  }
  func.func @transform_7(%arg0: i32) -> (i32, i32) {
    %c0_i32 = arith.constant 0 : i32
    %c0_i32_0 = arith.constant 0 : i32
    %c0_i32_1 = arith.constant 0 : i32
    return %c0_i32, %c0_i32_0 : i32, i32
  }
  func.func @transform_8(%arg0: i32) -> (i32, i32) {
    %c0_i32 = arith.constant 0 : i32
    %c0_i32_0 = arith.constant 0 : i32
    %c0_i32_1 = arith.constant 0 : i32
    return %c0_i32, %c0_i32_0 : i32, i32
  }
  func.func @transform_9(%arg0: i32) -> (i32, i32) {
    %c0_i32 = arith.constant 0 : i32
    %c0_i32_0 = arith.constant 0 : i32
    %c0_i32_1 = arith.constant 0 : i32
    return %c0_i32, %c0_i32_0 : i32, i32
  }
  func.func @transform_10(%arg0: i32) -> (i32, i32) {
    %c0_i32 = arith.constant 0 : i32
    %c0_i32_0 = arith.constant 0 : i32
    %c0_i32_1 = arith.constant 0 : i32
    return %c0_i32, %c0_i32_0 : i32, i32
  }
  func.func @transform_11(%arg0: i32) -> (i32, i32) {
    %c0_i32 = arith.constant 0 : i32
    %c0_i32_0 = arith.constant 0 : i32
    %c0_i32_1 = arith.constant 0 : i32
    return %c0_i32, %c0_i32_0 : i32, i32
  }
  func.func @transform_12(%arg0: i32) -> (i32, i32) {
    %c0_i32 = arith.constant 0 : i32
    %c0_i32_0 = arith.constant 0 : i32
    %c0_i32_1 = arith.constant 0 : i32
    return %c0_i32, %c0_i32_0 : i32, i32
  }
  func.func @transform_13(%arg0: i32) -> (i32, i32) {
    %c0_i32 = arith.constant 0 : i32
    %c0_i32_0 = arith.constant 0 : i32
    %c0_i32_1 = arith.constant 0 : i32
    return %c0_i32, %c0_i32_0 : i32, i32
  }
  func.func @transform_14(%arg0: i32) -> (i32, i32) {
    %c0_i32 = arith.constant 0 : i32
    %c0_i32_0 = arith.constant 0 : i32
    %c0_i32_1 = arith.constant 0 : i32
    return %c0_i32, %c0_i32_0 : i32, i32
  }
  func.func @transform_15(%arg0: i32) -> (i32, i32) {
    %c0_i32 = arith.constant 0 : i32
    %c0_i32_0 = arith.constant 0 : i32
    %c0_i32_1 = arith.constant 0 : i32
    return %c0_i32, %c0_i32_0 : i32, i32
  }
  func.func @transform_16(%arg0: i32) -> (i32, i32) {
    %c0_i32 = arith.constant 0 : i32
    %c0_i32_0 = arith.constant 0 : i32
    %c0_i32_1 = arith.constant 0 : i32
    return %c0_i32, %c0_i32_0 : i32, i32
  }
  func.func @transform_17(%arg0: i32) -> (i32, i32) {
    %c0_i32 = arith.constant 0 : i32
    %c0_i32_0 = arith.constant 0 : i32
    %c0_i32_1 = arith.constant 0 : i32
    return %c0_i32, %c0_i32_0 : i32, i32
  }
  func.func @transform_18(%arg0: i32) -> (i32, i32) {
    %c0_i32 = arith.constant 0 : i32
    %c0_i32_0 = arith.constant 0 : i32
    %c0_i32_1 = arith.constant 0 : i32
    return %c0_i32, %c0_i32_0 : i32, i32
  }
  func.func @transform_19(%arg0: i32) -> (i32, i32) {
    %c0_i32 = arith.constant 0 : i32
    %c0_i32_0 = arith.constant 0 : i32
    %c0_i32_1 = arith.constant 0 : i32
    return %c0_i32, %c0_i32_0 : i32, i32
  }
  func.func @transform_20(%arg0: i32) -> (i32, i32) {
    %c0_i32 = arith.constant 0 : i32
    %c0_i32_0 = arith.constant 0 : i32
    %c0_i32_1 = arith.constant 0 : i32
    return %c0_i32, %c0_i32_0 : i32, i32
  }
  func.func @transform_21(%arg0: i32) -> (i32, i32) {
    %c0_i32 = arith.constant 0 : i32
    %c0_i32_0 = arith.constant 0 : i32
    %c0_i32_1 = arith.constant 0 : i32
    return %c0_i32, %c0_i32_0 : i32, i32
  }
  func.func @transform_22(%arg0: i32) -> (i32, i32) {
    %c0_i32 = arith.constant 0 : i32
    %c0_i32_0 = arith.constant 0 : i32
    %c0_i32_1 = arith.constant 0 : i32
    return %c0_i32, %c0_i32_0 : i32, i32
  }
  func.func @transform_23(%arg0: i32) -> (i32, i32) {
    %c0_i32 = arith.constant 0 : i32
    %c0_i32_0 = arith.constant 0 : i32
    %c0_i32_1 = arith.constant 0 : i32
    return %c0_i32, %c0_i32_0 : i32, i32
  }
  func.func @transform_24(%arg0: i32) -> (i32, i32, i32) {
    %c0_i32 = arith.constant 0 : i32
    %c0_i32_0 = arith.constant 0 : i32
    %c0_i32_1 = arith.constant 0 : i32
    return %arg0, %c0_i32, %c0_i32_0 : i32, i32, i32
  }
}

module attributes {stable_mosaic.version = 11 : i64} {
  func.func @_decoder_block_kernel(%arg0: i32, %arg1: memref<1x8x128xf32, #tpu.memory_space<vmem>>, %arg2: memref<1x8x128xf32, #tpu.memory_space<vmem>>, %arg3: memref<1x8x128xf32, #tpu.memory_space<vmem>>, %arg4: memref<8x8xf32, #tpu.memory_space<vmem>>, %arg5: memref<128x128xbf16, #tpu.memory_space<vmem>>, %arg6: memref<128x128xbf16, #tpu.memory_space<vmem>>, %arg7: memref<128x128xbf16, #tpu.memory_space<vmem>>, %arg8: memref<128x128xbf16, #tpu.memory_space<vmem>>, %arg9: memref<1x128xf32, #tpu.memory_space<vmem>>, %arg10: memref<1x128xf32, #tpu.memory_space<vmem>>, %arg11: memref<1x128xf32, #tpu.memory_space<vmem>>, %arg12: memref<128x128xbf16, #tpu.memory_space<vmem>>, %arg13: memref<128x128xbf16, #tpu.memory_space<vmem>>, %arg14: memref<128x128xbf16, #tpu.memory_space<vmem>>, %arg15: memref<128x128xbf16, #tpu.memory_space<vmem>>, %arg16: memref<1x128xf32, #tpu.memory_space<vmem>>, %arg17: memref<1x128xf32, #tpu.memory_space<vmem>>, %arg18: memref<1x128xf32, #tpu.memory_space<vmem>>, %arg19: memref<128x512xbf16, #tpu.memory_space<vmem>>, %arg20: memref<1x512xf32, #tpu.memory_space<vmem>>, %arg21: memref<512x128xbf16, #tpu.memory_space<vmem>>, %arg22: memref<1x128xf32, #tpu.memory_space<vmem>>, %arg23: memref<1x128xf32, #tpu.memory_space<vmem>>, %arg24: memref<1x128xf32, #tpu.memory_space<vmem>>, %arg25: memref<1x8x128xf32, #tpu.memory_space<vmem>>) attributes {dimension_semantics = [#tpu.dimension_semantics<parallel>], iteration_bounds = array<i64: 2>, scalar_prefetch = 0 : i64, scratch_operands = 0 : i64, tpu.core_type = #tpu.core_type<tc>, window_params = [{transform_indices = @transform_0, window_bounds = array<i64: 1, 8, 128>}, {transform_indices = @transform_1, window_bounds = array<i64: 1, 8, 128>}, {transform_indices = @transform_2, window_bounds = array<i64: 1, 8, 128>}, {pipeline_mode = #tpu.pipeline_mode<synchronous>, transform_indices = @transform_3, window_bounds = array<i64: 8, 8>}, {pipeline_mode = #tpu.pipeline_mode<synchronous>, transform_indices = @transform_4, window_bounds = array<i64: 128, 128>}, {pipeline_mode = #tpu.pipeline_mode<synchronous>, transform_indices = @transform_5, window_bounds = array<i64: 128, 128>}, {pipeline_mode = #tpu.pipeline_mode<synchronous>, transform_indices = @transform_6, window_bounds = array<i64: 128, 128>}, {pipeline_mode = #tpu.pipeline_mode<synchronous>, transform_indices = @transform_7, window_bounds = array<i64: 128, 128>}, {pipeline_mode = #tpu.pipeline_mode<synchronous>, transform_indices = @transform_8, window_bounds = array<i64: 1, 128>}, {pipeline_mode = #tpu.pipeline_mode<synchronous>, transform_indices = @transform_9, window_bounds = array<i64: 1, 128>}, {pipeline_mode = #tpu.pipeline_mode<synchronous>, transform_indices = @transform_10, window_bounds = array<i64: 1, 128>}, {pipeline_mode = #tpu.pipeline_mode<synchronous>, transform_indices = @transform_11, window_bounds = array<i64: 128, 128>}, {pipeline_mode = #tpu.pipeline_mode<synchronous>, transform_indices = @transform_12, window_bounds = array<i64: 128, 128>}, {pipeline_mode = #tpu.pipeline_mode<synchronous>, transform_indices = @transform_13, window_bounds = array<i64: 128, 128>}, {pipeline_mode = #tpu.pipeline_mode<synchronous>, transform_indices = @transform_14, window_bounds = array<i64: 128, 128>}, {pipeline_mode = #tpu.pipeline_mode<synchronous>, transform_indices = @transform_15, window_bounds = array<i64: 1, 128>}, {pipeline_mode = #tpu.pipeline_mode<synchronous>, transform_indices = @transform_16, window_bounds = array<i64: 1, 128>}, {pipeline_mode = #tpu.pipeline_mode<synchronous>, transform_indices = @transform_17, window_bounds = array<i64: 1, 128>}, {pipeline_mode = #tpu.pipeline_mode<synchronous>, transform_indices = @transform_18, window_bounds = array<i64: 128, 512>}, {pipeline_mode = #tpu.pipeline_mode<synchronous>, transform_indices = @transform_19, window_bounds = array<i64: 1, 512>}, {pipeline_mode = #tpu.pipeline_mode<synchronous>, transform_indices = @transform_20, window_bounds = array<i64: 512, 128>}, {pipeline_mode = #tpu.pipeline_mode<synchronous>, transform_indices = @transform_21, window_bounds = array<i64: 1, 128>}, {pipeline_mode = #tpu.pipeline_mode<synchronous>, transform_indices = @transform_22, window_bounds = array<i64: 1, 128>}, {pipeline_mode = #tpu.pipeline_mode<synchronous>, transform_indices = @transform_23, window_bounds = array<i64: 1, 128>}, {transform_indices = @transform_24, window_bounds = array<i64: 1, 8, 128>}]} {
    %c0 = arith.constant 0 : index
    %c0_0 = arith.constant 0 : index
    %c0_1 = arith.constant 0 : index
    %0 = vector.load %arg1[%c0, %c0_0, %c0_1] : memref<1x8x128xf32, #tpu.memory_space<vmem>>, vector<1x8x128xf32>
    %1 = vector.shape_cast %0 : vector<1x8x128xf32> to vector<8x128xf32>
    %c0_2 = arith.constant 0 : index
    %c0_3 = arith.constant 0 : index
    %c0_4 = arith.constant 0 : index
    %2 = vector.load %arg2[%c0_2, %c0_3, %c0_4] : memref<1x8x128xf32, #tpu.memory_space<vmem>>, vector<1x8x128xf32>
    %3 = vector.shape_cast %2 : vector<1x8x128xf32> to vector<8x128xf32>
    %c0_5 = arith.constant 0 : index
    %c0_6 = arith.constant 0 : index
    %c0_7 = arith.constant 0 : index
    %4 = vector.load %arg3[%c0_5, %c0_6, %c0_7] : memref<1x8x128xf32, #tpu.memory_space<vmem>>, vector<1x8x128xf32>
    %5 = vector.shape_cast %4 : vector<1x8x128xf32> to vector<8x128xf32>
    %c0_8 = arith.constant 0 : index
    %c0_9 = arith.constant 0 : index
    %6 = vector.load %arg4[%c0_8, %c0_9] : memref<8x8xf32, #tpu.memory_space<vmem>>, vector<8x8xf32>
    %7 = arith.truncf %1 : vector<8x128xf32> to vector<8x128xbf16>
    %c0_10 = arith.constant 0 : index
    %c0_11 = arith.constant 0 : index
    %8 = vector.load %arg5[%c0_10, %c0_11] : memref<128x128xbf16, #tpu.memory_space<vmem>>, vector<128x128xbf16>
    %cst = arith.constant dense<0.000000e+00> : vector<8x128xf32>
    %9 = tpu.matmul %7, %8, %cst {dimension_numbers = #tpu.dot_dimension_numbers<[1], [0], [0], [1], [0, 0, 1, 1], [], []>} : vector<8x128xbf16>, vector<128x128xbf16>, vector<8x128xf32> -> vector<8x128xf32>
    %10 = arith.truncf %1 : vector<8x128xf32> to vector<8x128xbf16>
    %c0_12 = arith.constant 0 : index
    %c0_13 = arith.constant 0 : index
    %11 = vector.load %arg6[%c0_12, %c0_13] : memref<128x128xbf16, #tpu.memory_space<vmem>>, vector<128x128xbf16>
    %cst_14 = arith.constant dense<0.000000e+00> : vector<8x128xf32>
    %12 = tpu.matmul %10, %11, %cst_14 {dimension_numbers = #tpu.dot_dimension_numbers<[1], [0], [0], [1], [0, 0, 1, 1], [], []>} : vector<8x128xbf16>, vector<128x128xbf16>, vector<8x128xf32> -> vector<8x128xf32>
    %13 = arith.truncf %1 : vector<8x128xf32> to vector<8x128xbf16>
    %c0_15 = arith.constant 0 : index
    %c0_16 = arith.constant 0 : index
    %14 = vector.load %arg7[%c0_15, %c0_16] : memref<128x128xbf16, #tpu.memory_space<vmem>>, vector<128x128xbf16>
    %cst_17 = arith.constant dense<0.000000e+00> : vector<8x128xf32>
    %15 = tpu.matmul %13, %14, %cst_17 {dimension_numbers = #tpu.dot_dimension_numbers<[1], [0], [0], [1], [0, 0, 1, 1], [], []>} : vector<8x128xbf16>, vector<128x128xbf16>, vector<8x128xf32> -> vector<8x128xf32>
    %c0_18 = arith.constant 0 : index
    %c0_19 = arith.constant 0 : index
    %16 = vector.load %arg8[%c0_18, %c0_19] : memref<128x128xbf16, #tpu.memory_space<vmem>>, vector<128x128xbf16>
    %cst_20 = arith.constant 0.000000e+00 : f32
    %17 = vector.broadcast %cst_20 : f32 to vector<8x128xf32>
    %18 = vector.extract_strided_slice %9 {offsets = [0, 0], sizes = [8, 32], strides = [1, 1]} : vector<8x128xf32> to vector<8x32xf32>
    %19 = vector.extract_strided_slice %12 {offsets = [0, 0], sizes = [8, 32], strides = [1, 1]} : vector<8x128xf32> to vector<8x32xf32>
    %20 = vector.extract_strided_slice %15 {offsets = [0, 0], sizes = [8, 32], strides = [1, 1]} : vector<8x128xf32> to vector<8x32xf32>
    %21 = arith.truncf %18 : vector<8x32xf32> to vector<8x32xbf16>
    %22 = arith.truncf %19 : vector<8x32xf32> to vector<8x32xbf16>
    %cst_21 = arith.constant dense<0.000000e+00> : vector<8x8xf32>
    %23 = tpu.matmul %21, %22, %cst_21 {dimension_numbers = #tpu.dot_dimension_numbers<[1], [1], [0], [0], [0, 0, 1, 0], [], []>} : vector<8x32xbf16>, vector<8x32xbf16>, vector<8x8xf32> -> vector<8x8xf32>
    %24 = arith.addf %23, %6 : vector<8x8xf32>
    %cst_22 = arith.constant dense<0xFF800000> : vector<8xf32>
    %25 = vector.multi_reduction <maximumf>, %24, %cst_22 [1] : vector<8x8xf32> to vector<8xf32>
    %26 = vector.shape_cast %25 : vector<8xf32> to vector<8x1xf32>
    %27 = vector.broadcast %26 : vector<8x1xf32> to vector<8x8xf32>
    %28 = arith.subf %24, %27 : vector<8x8xf32>
    %29 = math.exp %28 : vector<8x8xf32>
    %cst_23 = arith.constant dense<0.000000e+00> : vector<8xf32>
    %30 = vector.multi_reduction <add>, %29, %cst_23 [1] : vector<8x8xf32> to vector<8xf32>
    %31 = vector.shape_cast %30 : vector<8xf32> to vector<8x1xf32>
    %32 = tpu.reciprocal %31 {approx = true} : vector<8x1xf32> -> vector<8x1xf32>
    %33 = vector.broadcast %32 : vector<8x1xf32> to vector<8x8xf32>
    %34 = arith.mulf %29, %33 : vector<8x8xf32>
    %35 = arith.truncf %34 : vector<8x8xf32> to vector<8x8xbf16>
    %36 = arith.truncf %20 : vector<8x32xf32> to vector<8x32xbf16>
    %cst_24 = arith.constant dense<0.000000e+00> : vector<8x32xf32>
    %37 = tpu.matmul %35, %36, %cst_24 {dimension_numbers = #tpu.dot_dimension_numbers<[1], [0], [0], [1], [0, 0, 1, 1], [], []>} : vector<8x8xbf16>, vector<8x32xbf16>, vector<8x32xf32> -> vector<8x32xf32>
    %38 = arith.truncf %37 : vector<8x32xf32> to vector<8x32xbf16>
    %39 = vector.extract_strided_slice %16 {offsets = [0, 0], sizes = [32, 128], strides = [1, 1]} : vector<128x128xbf16> to vector<32x128xbf16>
    %cst_25 = arith.constant dense<0.000000e+00> : vector<8x128xf32>
    %40 = tpu.matmul %38, %39, %cst_25 {dimension_numbers = #tpu.dot_dimension_numbers<[1], [0], [0], [1], [0, 0, 1, 1], [], []>} : vector<8x32xbf16>, vector<32x128xbf16>, vector<8x128xf32> -> vector<8x128xf32>
    %41 = arith.addf %17, %40 : vector<8x128xf32>
    %42 = vector.extract_strided_slice %9 {offsets = [0, 32], sizes = [8, 32], strides = [1, 1]} : vector<8x128xf32> to vector<8x32xf32>
    %43 = vector.extract_strided_slice %12 {offsets = [0, 32], sizes = [8, 32], strides = [1, 1]} : vector<8x128xf32> to vector<8x32xf32>
    %44 = vector.extract_strided_slice %15 {offsets = [0, 32], sizes = [8, 32], strides = [1, 1]} : vector<8x128xf32> to vector<8x32xf32>
    %45 = arith.truncf %42 : vector<8x32xf32> to vector<8x32xbf16>
    %46 = arith.truncf %43 : vector<8x32xf32> to vector<8x32xbf16>
    %cst_26 = arith.constant dense<0.000000e+00> : vector<8x8xf32>
    %47 = tpu.matmul %45, %46, %cst_26 {dimension_numbers = #tpu.dot_dimension_numbers<[1], [1], [0], [0], [0, 0, 1, 0], [], []>} : vector<8x32xbf16>, vector<8x32xbf16>, vector<8x8xf32> -> vector<8x8xf32>
    %48 = arith.addf %47, %6 : vector<8x8xf32>
    %cst_27 = arith.constant dense<0xFF800000> : vector<8xf32>
    %49 = vector.multi_reduction <maximumf>, %48, %cst_27 [1] : vector<8x8xf32> to vector<8xf32>
    %50 = vector.shape_cast %49 : vector<8xf32> to vector<8x1xf32>
    %51 = vector.broadcast %50 : vector<8x1xf32> to vector<8x8xf32>
    %52 = arith.subf %48, %51 : vector<8x8xf32>
    %53 = math.exp %52 : vector<8x8xf32>
    %cst_28 = arith.constant dense<0.000000e+00> : vector<8xf32>
    %54 = vector.multi_reduction <add>, %53, %cst_28 [1] : vector<8x8xf32> to vector<8xf32>
    %55 = vector.shape_cast %54 : vector<8xf32> to vector<8x1xf32>
    %56 = tpu.reciprocal %55 {approx = true} : vector<8x1xf32> -> vector<8x1xf32>
    %57 = vector.broadcast %56 : vector<8x1xf32> to vector<8x8xf32>
    %58 = arith.mulf %53, %57 : vector<8x8xf32>
    %59 = arith.truncf %58 : vector<8x8xf32> to vector<8x8xbf16>
    %60 = arith.truncf %44 : vector<8x32xf32> to vector<8x32xbf16>
    %cst_29 = arith.constant dense<0.000000e+00> : vector<8x32xf32>
    %61 = tpu.matmul %59, %60, %cst_29 {dimension_numbers = #tpu.dot_dimension_numbers<[1], [0], [0], [1], [0, 0, 1, 1], [], []>} : vector<8x8xbf16>, vector<8x32xbf16>, vector<8x32xf32> -> vector<8x32xf32>
    %62 = arith.truncf %61 : vector<8x32xf32> to vector<8x32xbf16>
    %63 = vector.extract_strided_slice %16 {offsets = [32, 0], sizes = [32, 128], strides = [1, 1]} : vector<128x128xbf16> to vector<32x128xbf16>
    %cst_30 = arith.constant dense<0.000000e+00> : vector<8x128xf32>
    %64 = tpu.matmul %62, %63, %cst_30 {dimension_numbers = #tpu.dot_dimension_numbers<[1], [0], [0], [1], [0, 0, 1, 1], [], []>} : vector<8x32xbf16>, vector<32x128xbf16>, vector<8x128xf32> -> vector<8x128xf32>
    %65 = arith.addf %41, %64 : vector<8x128xf32>
    %66 = vector.extract_strided_slice %9 {offsets = [0, 64], sizes = [8, 32], strides = [1, 1]} : vector<8x128xf32> to vector<8x32xf32>
    %67 = vector.extract_strided_slice %12 {offsets = [0, 64], sizes = [8, 32], strides = [1, 1]} : vector<8x128xf32> to vector<8x32xf32>
    %68 = vector.extract_strided_slice %15 {offsets = [0, 64], sizes = [8, 32], strides = [1, 1]} : vector<8x128xf32> to vector<8x32xf32>
    %69 = arith.truncf %66 : vector<8x32xf32> to vector<8x32xbf16>
    %70 = arith.truncf %67 : vector<8x32xf32> to vector<8x32xbf16>
    %cst_31 = arith.constant dense<0.000000e+00> : vector<8x8xf32>
    %71 = tpu.matmul %69, %70, %cst_31 {dimension_numbers = #tpu.dot_dimension_numbers<[1], [1], [0], [0], [0, 0, 1, 0], [], []>} : vector<8x32xbf16>, vector<8x32xbf16>, vector<8x8xf32> -> vector<8x8xf32>
    %72 = arith.addf %71, %6 : vector<8x8xf32>
    %cst_32 = arith.constant dense<0xFF800000> : vector<8xf32>
    %73 = vector.multi_reduction <maximumf>, %72, %cst_32 [1] : vector<8x8xf32> to vector<8xf32>
    %74 = vector.shape_cast %73 : vector<8xf32> to vector<8x1xf32>
    %75 = vector.broadcast %74 : vector<8x1xf32> to vector<8x8xf32>
    %76 = arith.subf %72, %75 : vector<8x8xf32>
    %77 = math.exp %76 : vector<8x8xf32>
    %cst_33 = arith.constant dense<0.000000e+00> : vector<8xf32>
    %78 = vector.multi_reduction <add>, %77, %cst_33 [1] : vector<8x8xf32> to vector<8xf32>
    %79 = vector.shape_cast %78 : vector<8xf32> to vector<8x1xf32>
    %80 = tpu.reciprocal %79 {approx = true} : vector<8x1xf32> -> vector<8x1xf32>
    %81 = vector.broadcast %80 : vector<8x1xf32> to vector<8x8xf32>
    %82 = arith.mulf %77, %81 : vector<8x8xf32>
    %83 = arith.truncf %82 : vector<8x8xf32> to vector<8x8xbf16>
    %84 = arith.truncf %68 : vector<8x32xf32> to vector<8x32xbf16>
    %cst_34 = arith.constant dense<0.000000e+00> : vector<8x32xf32>
    %85 = tpu.matmul %83, %84, %cst_34 {dimension_numbers = #tpu.dot_dimension_numbers<[1], [0], [0], [1], [0, 0, 1, 1], [], []>} : vector<8x8xbf16>, vector<8x32xbf16>, vector<8x32xf32> -> vector<8x32xf32>
    %86 = arith.truncf %85 : vector<8x32xf32> to vector<8x32xbf16>
    %87 = vector.extract_strided_slice %16 {offsets = [64, 0], sizes = [32, 128], strides = [1, 1]} : vector<128x128xbf16> to vector<32x128xbf16>
    %cst_35 = arith.constant dense<0.000000e+00> : vector<8x128xf32>
    %88 = tpu.matmul %86, %87, %cst_35 {dimension_numbers = #tpu.dot_dimension_numbers<[1], [0], [0], [1], [0, 0, 1, 1], [], []>} : vector<8x32xbf16>, vector<32x128xbf16>, vector<8x128xf32> -> vector<8x128xf32>
    %89 = arith.addf %65, %88 : vector<8x128xf32>
    %90 = vector.extract_strided_slice %9 {offsets = [0, 96], sizes = [8, 32], strides = [1, 1]} : vector<8x128xf32> to vector<8x32xf32>
    %91 = vector.extract_strided_slice %12 {offsets = [0, 96], sizes = [8, 32], strides = [1, 1]} : vector<8x128xf32> to vector<8x32xf32>
    %92 = vector.extract_strided_slice %15 {offsets = [0, 96], sizes = [8, 32], strides = [1, 1]} : vector<8x128xf32> to vector<8x32xf32>
    %93 = arith.truncf %90 : vector<8x32xf32> to vector<8x32xbf16>
    %94 = arith.truncf %91 : vector<8x32xf32> to vector<8x32xbf16>
    %cst_36 = arith.constant dense<0.000000e+00> : vector<8x8xf32>
    %95 = tpu.matmul %93, %94, %cst_36 {dimension_numbers = #tpu.dot_dimension_numbers<[1], [1], [0], [0], [0, 0, 1, 0], [], []>} : vector<8x32xbf16>, vector<8x32xbf16>, vector<8x8xf32> -> vector<8x8xf32>
    %96 = arith.addf %95, %6 : vector<8x8xf32>
    %cst_37 = arith.constant dense<0xFF800000> : vector<8xf32>
    %97 = vector.multi_reduction <maximumf>, %96, %cst_37 [1] : vector<8x8xf32> to vector<8xf32>
    %98 = vector.shape_cast %97 : vector<8xf32> to vector<8x1xf32>
    %99 = vector.broadcast %98 : vector<8x1xf32> to vector<8x8xf32>
    %100 = arith.subf %96, %99 : vector<8x8xf32>
    %101 = math.exp %100 : vector<8x8xf32>
    %cst_38 = arith.constant dense<0.000000e+00> : vector<8xf32>
    %102 = vector.multi_reduction <add>, %101, %cst_38 [1] : vector<8x8xf32> to vector<8xf32>
    %103 = vector.shape_cast %102 : vector<8xf32> to vector<8x1xf32>
    %104 = tpu.reciprocal %103 {approx = true} : vector<8x1xf32> -> vector<8x1xf32>
    %105 = vector.broadcast %104 : vector<8x1xf32> to vector<8x8xf32>
    %106 = arith.mulf %101, %105 : vector<8x8xf32>
    %107 = arith.truncf %106 : vector<8x8xf32> to vector<8x8xbf16>
    %108 = arith.truncf %92 : vector<8x32xf32> to vector<8x32xbf16>
    %cst_39 = arith.constant dense<0.000000e+00> : vector<8x32xf32>
    %109 = tpu.matmul %107, %108, %cst_39 {dimension_numbers = #tpu.dot_dimension_numbers<[1], [0], [0], [1], [0, 0, 1, 1], [], []>} : vector<8x8xbf16>, vector<8x32xbf16>, vector<8x32xf32> -> vector<8x32xf32>
    %110 = arith.truncf %109 : vector<8x32xf32> to vector<8x32xbf16>
    %111 = vector.extract_strided_slice %16 {offsets = [96, 0], sizes = [32, 128], strides = [1, 1]} : vector<128x128xbf16> to vector<32x128xbf16>
    %cst_40 = arith.constant dense<0.000000e+00> : vector<8x128xf32>
    %112 = tpu.matmul %110, %111, %cst_40 {dimension_numbers = #tpu.dot_dimension_numbers<[1], [0], [0], [1], [0, 0, 1, 1], [], []>} : vector<8x32xbf16>, vector<32x128xbf16>, vector<8x128xf32> -> vector<8x128xf32>
    %113 = arith.addf %89, %112 : vector<8x128xf32>
    %c0_41 = arith.constant 0 : index
    %c0_42 = arith.constant 0 : index
    %114 = vector.load %arg9[%c0_41, %c0_42] : memref<1x128xf32, #tpu.memory_space<vmem>>, vector<1x128xf32>
    %115 = vector.broadcast %114 : vector<1x128xf32> to vector<8x128xf32>
    %116 = arith.addf %113, %115 : vector<8x128xf32>
    %117 = arith.addf %116, %1 : vector<8x128xf32>
    %cst_43 = arith.constant dense<0.000000e+00> : vector<8xf32>
    %118 = vector.multi_reduction <add>, %117, %cst_43 [1] : vector<8x128xf32> to vector<8xf32>
    %119 = vector.shape_cast %118 : vector<8xf32> to vector<8x1xf32>
    %cst_44 = arith.constant 1.280000e+02 : f32
    %120 = vector.broadcast %cst_44 : f32 to vector<8x1xf32>
    %121 = arith.divf %119, %120 : vector<8x1xf32>
    %122 = vector.broadcast %121 : vector<8x1xf32> to vector<8x128xf32>
    %123 = arith.subf %117, %122 : vector<8x128xf32>
    %124 = arith.mulf %123, %123 : vector<8x128xf32>
    %cst_45 = arith.constant dense<0.000000e+00> : vector<8xf32>
    %125 = vector.multi_reduction <add>, %124, %cst_45 [1] : vector<8x128xf32> to vector<8xf32>
    %126 = vector.shape_cast %125 : vector<8xf32> to vector<8x1xf32>
    %cst_46 = arith.constant 1.280000e+02 : f32
    %127 = vector.broadcast %cst_46 : f32 to vector<8x1xf32>
    %128 = arith.divf %126, %127 : vector<8x1xf32>
    %cst_47 = arith.constant 9.99999974E-6 : f32
    %129 = vector.broadcast %cst_47 : f32 to vector<8x1xf32>
    %130 = arith.addf %128, %129 : vector<8x1xf32>
    %131 = math.rsqrt %130 : vector<8x1xf32>
    %132 = vector.broadcast %131 : vector<8x1xf32> to vector<8x128xf32>
    %133 = arith.mulf %123, %132 : vector<8x128xf32>
    %c0_48 = arith.constant 0 : index
    %c0_49 = arith.constant 0 : index
    %134 = vector.load %arg10[%c0_48, %c0_49] : memref<1x128xf32, #tpu.memory_space<vmem>>, vector<1x128xf32>
    %135 = vector.broadcast %134 : vector<1x128xf32> to vector<8x128xf32>
    %136 = arith.mulf %133, %135 : vector<8x128xf32>
    %c0_50 = arith.constant 0 : index
    %c0_51 = arith.constant 0 : index
    %137 = vector.load %arg11[%c0_50, %c0_51] : memref<1x128xf32, #tpu.memory_space<vmem>>, vector<1x128xf32>
    %138 = vector.broadcast %137 : vector<1x128xf32> to vector<8x128xf32>
    %139 = arith.addf %136, %138 : vector<8x128xf32>
    %140 = arith.truncf %5 : vector<8x128xf32> to vector<8x128xbf16>
    %c0_52 = arith.constant 0 : index
    %c0_53 = arith.constant 0 : index
    %141 = vector.load %arg12[%c0_52, %c0_53] : memref<128x128xbf16, #tpu.memory_space<vmem>>, vector<128x128xbf16>
    %cst_54 = arith.constant dense<0.000000e+00> : vector<8x128xf32>
    %142 = tpu.matmul %140, %141, %cst_54 {dimension_numbers = #tpu.dot_dimension_numbers<[1], [0], [0], [1], [0, 0, 1, 1], [], []>} : vector<8x128xbf16>, vector<128x128xbf16>, vector<8x128xf32> -> vector<8x128xf32>
    %143 = arith.truncf %3 : vector<8x128xf32> to vector<8x128xbf16>
    %c0_55 = arith.constant 0 : index
    %c0_56 = arith.constant 0 : index
    %144 = vector.load %arg13[%c0_55, %c0_56] : memref<128x128xbf16, #tpu.memory_space<vmem>>, vector<128x128xbf16>
    %cst_57 = arith.constant dense<0.000000e+00> : vector<8x128xf32>
    %145 = tpu.matmul %143, %144, %cst_57 {dimension_numbers = #tpu.dot_dimension_numbers<[1], [0], [0], [1], [0, 0, 1, 1], [], []>} : vector<8x128xbf16>, vector<128x128xbf16>, vector<8x128xf32> -> vector<8x128xf32>
    %146 = arith.truncf %139 : vector<8x128xf32> to vector<8x128xbf16>
    %c0_58 = arith.constant 0 : index
    %c0_59 = arith.constant 0 : index
    %147 = vector.load %arg14[%c0_58, %c0_59] : memref<128x128xbf16, #tpu.memory_space<vmem>>, vector<128x128xbf16>
    %cst_60 = arith.constant dense<0.000000e+00> : vector<8x128xf32>
    %148 = tpu.matmul %146, %147, %cst_60 {dimension_numbers = #tpu.dot_dimension_numbers<[1], [0], [0], [1], [0, 0, 1, 1], [], []>} : vector<8x128xbf16>, vector<128x128xbf16>, vector<8x128xf32> -> vector<8x128xf32>
    %c0_61 = arith.constant 0 : index
    %c0_62 = arith.constant 0 : index
    %149 = vector.load %arg15[%c0_61, %c0_62] : memref<128x128xbf16, #tpu.memory_space<vmem>>, vector<128x128xbf16>
    %cst_63 = arith.constant 0.000000e+00 : f32
    %150 = vector.broadcast %cst_63 : f32 to vector<8x128xf32>
    %151 = vector.extract_strided_slice %142 {offsets = [0, 0], sizes = [8, 32], strides = [1, 1]} : vector<8x128xf32> to vector<8x32xf32>
    %152 = vector.extract_strided_slice %145 {offsets = [0, 0], sizes = [8, 32], strides = [1, 1]} : vector<8x128xf32> to vector<8x32xf32>
    %153 = vector.extract_strided_slice %148 {offsets = [0, 0], sizes = [8, 32], strides = [1, 1]} : vector<8x128xf32> to vector<8x32xf32>
    %154 = arith.truncf %151 : vector<8x32xf32> to vector<8x32xbf16>
    %155 = arith.truncf %152 : vector<8x32xf32> to vector<8x32xbf16>
    %cst_64 = arith.constant dense<0.000000e+00> : vector<8x8xf32>
    %156 = tpu.matmul %154, %155, %cst_64 {dimension_numbers = #tpu.dot_dimension_numbers<[1], [1], [0], [0], [0, 0, 1, 0], [], []>} : vector<8x32xbf16>, vector<8x32xbf16>, vector<8x8xf32> -> vector<8x8xf32>
    %cst_65 = arith.constant dense<0xFF800000> : vector<8xf32>
    %157 = vector.multi_reduction <maximumf>, %156, %cst_65 [1] : vector<8x8xf32> to vector<8xf32>
    %158 = vector.shape_cast %157 : vector<8xf32> to vector<8x1xf32>
    %159 = vector.broadcast %158 : vector<8x1xf32> to vector<8x8xf32>
    %160 = arith.subf %156, %159 : vector<8x8xf32>
    %161 = math.exp %160 : vector<8x8xf32>
    %cst_66 = arith.constant dense<0.000000e+00> : vector<8xf32>
    %162 = vector.multi_reduction <add>, %161, %cst_66 [1] : vector<8x8xf32> to vector<8xf32>
    %163 = vector.shape_cast %162 : vector<8xf32> to vector<8x1xf32>
    %164 = tpu.reciprocal %163 {approx = true} : vector<8x1xf32> -> vector<8x1xf32>
    %165 = vector.broadcast %164 : vector<8x1xf32> to vector<8x8xf32>
    %166 = arith.mulf %161, %165 : vector<8x8xf32>
    %167 = arith.truncf %166 : vector<8x8xf32> to vector<8x8xbf16>
    %168 = arith.truncf %153 : vector<8x32xf32> to vector<8x32xbf16>
    %cst_67 = arith.constant dense<0.000000e+00> : vector<8x32xf32>
    %169 = tpu.matmul %167, %168, %cst_67 {dimension_numbers = #tpu.dot_dimension_numbers<[1], [0], [0], [1], [0, 0, 1, 1], [], []>} : vector<8x8xbf16>, vector<8x32xbf16>, vector<8x32xf32> -> vector<8x32xf32>
    %170 = arith.truncf %169 : vector<8x32xf32> to vector<8x32xbf16>
    %171 = vector.extract_strided_slice %149 {offsets = [0, 0], sizes = [32, 128], strides = [1, 1]} : vector<128x128xbf16> to vector<32x128xbf16>
    %cst_68 = arith.constant dense<0.000000e+00> : vector<8x128xf32>
    %172 = tpu.matmul %170, %171, %cst_68 {dimension_numbers = #tpu.dot_dimension_numbers<[1], [0], [0], [1], [0, 0, 1, 1], [], []>} : vector<8x32xbf16>, vector<32x128xbf16>, vector<8x128xf32> -> vector<8x128xf32>
    %173 = arith.addf %150, %172 : vector<8x128xf32>
    %174 = vector.extract_strided_slice %142 {offsets = [0, 32], sizes = [8, 32], strides = [1, 1]} : vector<8x128xf32> to vector<8x32xf32>
    %175 = vector.extract_strided_slice %145 {offsets = [0, 32], sizes = [8, 32], strides = [1, 1]} : vector<8x128xf32> to vector<8x32xf32>
    %176 = vector.extract_strided_slice %148 {offsets = [0, 32], sizes = [8, 32], strides = [1, 1]} : vector<8x128xf32> to vector<8x32xf32>
    %177 = arith.truncf %174 : vector<8x32xf32> to vector<8x32xbf16>
    %178 = arith.truncf %175 : vector<8x32xf32> to vector<8x32xbf16>
    %cst_69 = arith.constant dense<0.000000e+00> : vector<8x8xf32>
    %179 = tpu.matmul %177, %178, %cst_69 {dimension_numbers = #tpu.dot_dimension_numbers<[1], [1], [0], [0], [0, 0, 1, 0], [], []>} : vector<8x32xbf16>, vector<8x32xbf16>, vector<8x8xf32> -> vector<8x8xf32>
    %cst_70 = arith.constant dense<0xFF800000> : vector<8xf32>
    %180 = vector.multi_reduction <maximumf>, %179, %cst_70 [1] : vector<8x8xf32> to vector<8xf32>
    %181 = vector.shape_cast %180 : vector<8xf32> to vector<8x1xf32>
    %182 = vector.broadcast %181 : vector<8x1xf32> to vector<8x8xf32>
    %183 = arith.subf %179, %182 : vector<8x8xf32>
    %184 = math.exp %183 : vector<8x8xf32>
    %cst_71 = arith.constant dense<0.000000e+00> : vector<8xf32>
    %185 = vector.multi_reduction <add>, %184, %cst_71 [1] : vector<8x8xf32> to vector<8xf32>
    %186 = vector.shape_cast %185 : vector<8xf32> to vector<8x1xf32>
    %187 = tpu.reciprocal %186 {approx = true} : vector<8x1xf32> -> vector<8x1xf32>
    %188 = vector.broadcast %187 : vector<8x1xf32> to vector<8x8xf32>
    %189 = arith.mulf %184, %188 : vector<8x8xf32>
    %190 = arith.truncf %189 : vector<8x8xf32> to vector<8x8xbf16>
    %191 = arith.truncf %176 : vector<8x32xf32> to vector<8x32xbf16>
    %cst_72 = arith.constant dense<0.000000e+00> : vector<8x32xf32>
    %192 = tpu.matmul %190, %191, %cst_72 {dimension_numbers = #tpu.dot_dimension_numbers<[1], [0], [0], [1], [0, 0, 1, 1], [], []>} : vector<8x8xbf16>, vector<8x32xbf16>, vector<8x32xf32> -> vector<8x32xf32>
    %193 = arith.truncf %192 : vector<8x32xf32> to vector<8x32xbf16>
    %194 = vector.extract_strided_slice %149 {offsets = [32, 0], sizes = [32, 128], strides = [1, 1]} : vector<128x128xbf16> to vector<32x128xbf16>
    %cst_73 = arith.constant dense<0.000000e+00> : vector<8x128xf32>
    %195 = tpu.matmul %193, %194, %cst_73 {dimension_numbers = #tpu.dot_dimension_numbers<[1], [0], [0], [1], [0, 0, 1, 1], [], []>} : vector<8x32xbf16>, vector<32x128xbf16>, vector<8x128xf32> -> vector<8x128xf32>
    %196 = arith.addf %173, %195 : vector<8x128xf32>
    %197 = vector.extract_strided_slice %142 {offsets = [0, 64], sizes = [8, 32], strides = [1, 1]} : vector<8x128xf32> to vector<8x32xf32>
    %198 = vector.extract_strided_slice %145 {offsets = [0, 64], sizes = [8, 32], strides = [1, 1]} : vector<8x128xf32> to vector<8x32xf32>
    %199 = vector.extract_strided_slice %148 {offsets = [0, 64], sizes = [8, 32], strides = [1, 1]} : vector<8x128xf32> to vector<8x32xf32>
    %200 = arith.truncf %197 : vector<8x32xf32> to vector<8x32xbf16>
    %201 = arith.truncf %198 : vector<8x32xf32> to vector<8x32xbf16>
    %cst_74 = arith.constant dense<0.000000e+00> : vector<8x8xf32>
    %202 = tpu.matmul %200, %201, %cst_74 {dimension_numbers = #tpu.dot_dimension_numbers<[1], [1], [0], [0], [0, 0, 1, 0], [], []>} : vector<8x32xbf16>, vector<8x32xbf16>, vector<8x8xf32> -> vector<8x8xf32>
    %cst_75 = arith.constant dense<0xFF800000> : vector<8xf32>
    %203 = vector.multi_reduction <maximumf>, %202, %cst_75 [1] : vector<8x8xf32> to vector<8xf32>
    %204 = vector.shape_cast %203 : vector<8xf32> to vector<8x1xf32>
    %205 = vector.broadcast %204 : vector<8x1xf32> to vector<8x8xf32>
    %206 = arith.subf %202, %205 : vector<8x8xf32>
    %207 = math.exp %206 : vector<8x8xf32>
    %cst_76 = arith.constant dense<0.000000e+00> : vector<8xf32>
    %208 = vector.multi_reduction <add>, %207, %cst_76 [1] : vector<8x8xf32> to vector<8xf32>
    %209 = vector.shape_cast %208 : vector<8xf32> to vector<8x1xf32>
    %210 = tpu.reciprocal %209 {approx = true} : vector<8x1xf32> -> vector<8x1xf32>
    %211 = vector.broadcast %210 : vector<8x1xf32> to vector<8x8xf32>
    %212 = arith.mulf %207, %211 : vector<8x8xf32>
    %213 = arith.truncf %212 : vector<8x8xf32> to vector<8x8xbf16>
    %214 = arith.truncf %199 : vector<8x32xf32> to vector<8x32xbf16>
    %cst_77 = arith.constant dense<0.000000e+00> : vector<8x32xf32>
    %215 = tpu.matmul %213, %214, %cst_77 {dimension_numbers = #tpu.dot_dimension_numbers<[1], [0], [0], [1], [0, 0, 1, 1], [], []>} : vector<8x8xbf16>, vector<8x32xbf16>, vector<8x32xf32> -> vector<8x32xf32>
    %216 = arith.truncf %215 : vector<8x32xf32> to vector<8x32xbf16>
    %217 = vector.extract_strided_slice %149 {offsets = [64, 0], sizes = [32, 128], strides = [1, 1]} : vector<128x128xbf16> to vector<32x128xbf16>
    %cst_78 = arith.constant dense<0.000000e+00> : vector<8x128xf32>
    %218 = tpu.matmul %216, %217, %cst_78 {dimension_numbers = #tpu.dot_dimension_numbers<[1], [0], [0], [1], [0, 0, 1, 1], [], []>} : vector<8x32xbf16>, vector<32x128xbf16>, vector<8x128xf32> -> vector<8x128xf32>
    %219 = arith.addf %196, %218 : vector<8x128xf32>
    %220 = vector.extract_strided_slice %142 {offsets = [0, 96], sizes = [8, 32], strides = [1, 1]} : vector<8x128xf32> to vector<8x32xf32>
    %221 = vector.extract_strided_slice %145 {offsets = [0, 96], sizes = [8, 32], strides = [1, 1]} : vector<8x128xf32> to vector<8x32xf32>
    %222 = vector.extract_strided_slice %148 {offsets = [0, 96], sizes = [8, 32], strides = [1, 1]} : vector<8x128xf32> to vector<8x32xf32>
    %223 = arith.truncf %220 : vector<8x32xf32> to vector<8x32xbf16>
    %224 = arith.truncf %221 : vector<8x32xf32> to vector<8x32xbf16>
    %cst_79 = arith.constant dense<0.000000e+00> : vector<8x8xf32>
    %225 = tpu.matmul %223, %224, %cst_79 {dimension_numbers = #tpu.dot_dimension_numbers<[1], [1], [0], [0], [0, 0, 1, 0], [], []>} : vector<8x32xbf16>, vector<8x32xbf16>, vector<8x8xf32> -> vector<8x8xf32>
    %cst_80 = arith.constant dense<0xFF800000> : vector<8xf32>
    %226 = vector.multi_reduction <maximumf>, %225, %cst_80 [1] : vector<8x8xf32> to vector<8xf32>
    %227 = vector.shape_cast %226 : vector<8xf32> to vector<8x1xf32>
    %228 = vector.broadcast %227 : vector<8x1xf32> to vector<8x8xf32>
    %229 = arith.subf %225, %228 : vector<8x8xf32>
    %230 = math.exp %229 : vector<8x8xf32>
    %cst_81 = arith.constant dense<0.000000e+00> : vector<8xf32>
    %231 = vector.multi_reduction <add>, %230, %cst_81 [1] : vector<8x8xf32> to vector<8xf32>
    %232 = vector.shape_cast %231 : vector<8xf32> to vector<8x1xf32>
    %233 = tpu.reciprocal %232 {approx = true} : vector<8x1xf32> -> vector<8x1xf32>
    %234 = vector.broadcast %233 : vector<8x1xf32> to vector<8x8xf32>
    %235 = arith.mulf %230, %234 : vector<8x8xf32>
    %236 = arith.truncf %235 : vector<8x8xf32> to vector<8x8xbf16>
    %237 = arith.truncf %222 : vector<8x32xf32> to vector<8x32xbf16>
    %cst_82 = arith.constant dense<0.000000e+00> : vector<8x32xf32>
    %238 = tpu.matmul %236, %237, %cst_82 {dimension_numbers = #tpu.dot_dimension_numbers<[1], [0], [0], [1], [0, 0, 1, 1], [], []>} : vector<8x8xbf16>, vector<8x32xbf16>, vector<8x32xf32> -> vector<8x32xf32>
    %239 = arith.truncf %238 : vector<8x32xf32> to vector<8x32xbf16>
    %240 = vector.extract_strided_slice %149 {offsets = [96, 0], sizes = [32, 128], strides = [1, 1]} : vector<128x128xbf16> to vector<32x128xbf16>
    %cst_83 = arith.constant dense<0.000000e+00> : vector<8x128xf32>
    %241 = tpu.matmul %239, %240, %cst_83 {dimension_numbers = #tpu.dot_dimension_numbers<[1], [0], [0], [1], [0, 0, 1, 1], [], []>} : vector<8x32xbf16>, vector<32x128xbf16>, vector<8x128xf32> -> vector<8x128xf32>
    %242 = arith.addf %219, %241 : vector<8x128xf32>
    %c0_84 = arith.constant 0 : index
    %c0_85 = arith.constant 0 : index
    %243 = vector.load %arg16[%c0_84, %c0_85] : memref<1x128xf32, #tpu.memory_space<vmem>>, vector<1x128xf32>
    %244 = vector.broadcast %243 : vector<1x128xf32> to vector<8x128xf32>
    %245 = arith.addf %242, %244 : vector<8x128xf32>
    %246 = arith.addf %245, %139 : vector<8x128xf32>
    %cst_86 = arith.constant dense<0.000000e+00> : vector<8xf32>
    %247 = vector.multi_reduction <add>, %246, %cst_86 [1] : vector<8x128xf32> to vector<8xf32>
    %248 = vector.shape_cast %247 : vector<8xf32> to vector<8x1xf32>
    %cst_87 = arith.constant 1.280000e+02 : f32
    %249 = vector.broadcast %cst_87 : f32 to vector<8x1xf32>
    %250 = arith.divf %248, %249 : vector<8x1xf32>
    %251 = vector.broadcast %250 : vector<8x1xf32> to vector<8x128xf32>
    %252 = arith.subf %246, %251 : vector<8x128xf32>
    %253 = arith.mulf %252, %252 : vector<8x128xf32>
    %cst_88 = arith.constant dense<0.000000e+00> : vector<8xf32>
    %254 = vector.multi_reduction <add>, %253, %cst_88 [1] : vector<8x128xf32> to vector<8xf32>
    %255 = vector.shape_cast %254 : vector<8xf32> to vector<8x1xf32>
    %cst_89 = arith.constant 1.280000e+02 : f32
    %256 = vector.broadcast %cst_89 : f32 to vector<8x1xf32>
    %257 = arith.divf %255, %256 : vector<8x1xf32>
    %cst_90 = arith.constant 9.99999974E-6 : f32
    %258 = vector.broadcast %cst_90 : f32 to vector<8x1xf32>
    %259 = arith.addf %257, %258 : vector<8x1xf32>
    %260 = math.rsqrt %259 : vector<8x1xf32>
    %261 = vector.broadcast %260 : vector<8x1xf32> to vector<8x128xf32>
    %262 = arith.mulf %252, %261 : vector<8x128xf32>
    %c0_91 = arith.constant 0 : index
    %c0_92 = arith.constant 0 : index
    %263 = vector.load %arg17[%c0_91, %c0_92] : memref<1x128xf32, #tpu.memory_space<vmem>>, vector<1x128xf32>
    %264 = vector.broadcast %263 : vector<1x128xf32> to vector<8x128xf32>
    %265 = arith.mulf %262, %264 : vector<8x128xf32>
    %c0_93 = arith.constant 0 : index
    %c0_94 = arith.constant 0 : index
    %266 = vector.load %arg18[%c0_93, %c0_94] : memref<1x128xf32, #tpu.memory_space<vmem>>, vector<1x128xf32>
    %267 = vector.broadcast %266 : vector<1x128xf32> to vector<8x128xf32>
    %268 = arith.addf %265, %267 : vector<8x128xf32>
    %269 = arith.truncf %268 : vector<8x128xf32> to vector<8x128xbf16>
    %c0_95 = arith.constant 0 : index
    %c0_96 = arith.constant 0 : index
    %270 = vector.load %arg19[%c0_95, %c0_96] : memref<128x512xbf16, #tpu.memory_space<vmem>>, vector<128x512xbf16>
    %cst_97 = arith.constant dense<0.000000e+00> : vector<8x512xf32>
    %271 = tpu.matmul %269, %270, %cst_97 {dimension_numbers = #tpu.dot_dimension_numbers<[1], [0], [0], [1], [0, 0, 1, 1], [], []>} : vector<8x128xbf16>, vector<128x512xbf16>, vector<8x512xf32> -> vector<8x512xf32>
    %c0_98 = arith.constant 0 : index
    %c0_99 = arith.constant 0 : index
    %272 = vector.load %arg20[%c0_98, %c0_99] : memref<1x512xf32, #tpu.memory_space<vmem>>, vector<1x512xf32>
    %273 = vector.broadcast %272 : vector<1x512xf32> to vector<8x512xf32>
    %274 = arith.addf %271, %273 : vector<8x512xf32>
    %cst_100 = arith.constant 0.000000e+00 : f32
    %275 = vector.broadcast %cst_100 : f32 to vector<8x512xf32>
    %276 = arith.maximumf %274, %275 : vector<8x512xf32>
    %277 = arith.truncf %276 : vector<8x512xf32> to vector<8x512xbf16>
    %c0_101 = arith.constant 0 : index
    %c0_102 = arith.constant 0 : index
    %278 = vector.load %arg21[%c0_101, %c0_102] : memref<512x128xbf16, #tpu.memory_space<vmem>>, vector<512x128xbf16>
    %cst_103 = arith.constant dense<0.000000e+00> : vector<8x128xf32>
    %279 = tpu.matmul %277, %278, %cst_103 {dimension_numbers = #tpu.dot_dimension_numbers<[1], [0], [0], [1], [0, 0, 1, 1], [], []>} : vector<8x512xbf16>, vector<512x128xbf16>, vector<8x128xf32> -> vector<8x128xf32>
    %c0_104 = arith.constant 0 : index
    %c0_105 = arith.constant 0 : index
    %280 = vector.load %arg22[%c0_104, %c0_105] : memref<1x128xf32, #tpu.memory_space<vmem>>, vector<1x128xf32>
    %281 = vector.broadcast %280 : vector<1x128xf32> to vector<8x128xf32>
    %282 = arith.addf %279, %281 : vector<8x128xf32>
    %283 = arith.addf %282, %268 : vector<8x128xf32>
    %cst_106 = arith.constant dense<0.000000e+00> : vector<8xf32>
    %284 = vector.multi_reduction <add>, %283, %cst_106 [1] : vector<8x128xf32> to vector<8xf32>
    %285 = vector.shape_cast %284 : vector<8xf32> to vector<8x1xf32>
    %cst_107 = arith.constant 1.280000e+02 : f32
    %286 = vector.broadcast %cst_107 : f32 to vector<8x1xf32>
    %287 = arith.divf %285, %286 : vector<8x1xf32>
    %288 = vector.broadcast %287 : vector<8x1xf32> to vector<8x128xf32>
    %289 = arith.subf %283, %288 : vector<8x128xf32>
    %290 = arith.mulf %289, %289 : vector<8x128xf32>
    %cst_108 = arith.constant dense<0.000000e+00> : vector<8xf32>
    %291 = vector.multi_reduction <add>, %290, %cst_108 [1] : vector<8x128xf32> to vector<8xf32>
    %292 = vector.shape_cast %291 : vector<8xf32> to vector<8x1xf32>
    %cst_109 = arith.constant 1.280000e+02 : f32
    %293 = vector.broadcast %cst_109 : f32 to vector<8x1xf32>
    %294 = arith.divf %292, %293 : vector<8x1xf32>
    %cst_110 = arith.constant 9.99999974E-6 : f32
    %295 = vector.broadcast %cst_110 : f32 to vector<8x1xf32>
    %296 = arith.addf %294, %295 : vector<8x1xf32>
    %297 = math.rsqrt %296 : vector<8x1xf32>
    %298 = vector.broadcast %297 : vector<8x1xf32> to vector<8x128xf32>
    %299 = arith.mulf %289, %298 : vector<8x128xf32>
    %c0_111 = arith.constant 0 : index
    %c0_112 = arith.constant 0 : index
    %300 = vector.load %arg23[%c0_111, %c0_112] : memref<1x128xf32, #tpu.memory_space<vmem>>, vector<1x128xf32>
    %301 = vector.broadcast %300 : vector<1x128xf32> to vector<8x128xf32>
    %302 = arith.mulf %299, %301 : vector<8x128xf32>
    %c0_113 = arith.constant 0 : index
    %c0_114 = arith.constant 0 : index
    %303 = vector.load %arg24[%c0_113, %c0_114] : memref<1x128xf32, #tpu.memory_space<vmem>>, vector<1x128xf32>
    %304 = vector.broadcast %303 : vector<1x128xf32> to vector<8x128xf32>
    %305 = arith.addf %302, %304 : vector<8x128xf32>
    %c0_115 = arith.constant 0 : index
    %c0_116 = arith.constant 0 : index
    %c0_117 = arith.constant 0 : index
    %306 = vector.load %arg25[%c0_115, %c0_116, %c0_117] : memref<1x8x128xf32, #tpu.memory_space<vmem>>, vector<1x8x128xf32>
    %307 = vector.shape_cast %306 : vector<1x8x128xf32> to vector<8x128xf32>
    %308 = vector.shape_cast %305 : vector<8x128xf32> to vector<1x8x128xf32>
    tpu.vector_store %arg25[%c0_115, %c0_116, %c0_117], %308 {strides = array<i32>} : memref<1x8x128xf32, #tpu.memory_space<vmem>>, vector<1x8x128xf32>,
    return
  }
  func.func @transform_0(%arg0: i32) -> (i32, i32, i32) {
    %c0_i32 = arith.constant 0 : i32
    %c0_i32_0 = arith.constant 0 : i32
    %c0_i32_1 = arith.constant 0 : i32
    return %arg0, %c0_i32, %c0_i32_0 : i32, i32, i32
  }
  func.func @transform_1(%arg0: i32) -> (i32, i32, i32) {
    %c0_i32 = arith.constant 0 : i32
    %c0_i32_0 = arith.constant 0 : i32
    %c0_i32_1 = arith.constant 0 : i32
    return %arg0, %c0_i32, %c0_i32_0 : i32, i32, i32
  }
  func.func @transform_2(%arg0: i32) -> (i32, i32, i32) {
    %c0_i32 = arith.constant 0 : i32
    %c0_i32_0 = arith.constant 0 : i32
    %c0_i32_1 = arith.constant 0 : i32
    return %arg0, %c0_i32, %c0_i32_0 : i32, i32, i32
  }
  func.func @transform_3(%arg0: i32) -> (i32, i32) {
    %c0_i32 = arith.constant 0 : i32
    %c0_i32_0 = arith.constant 0 : i32
    %c0_i32_1 = arith.constant 0 : i32
    return %c0_i32, %c0_i32_0 : i32, i32
  }
  func.func @transform_4(%arg0: i32) -> (i32, i32) {
    %c0_i32 = arith.constant 0 : i32
    %c0_i32_0 = arith.constant 0 : i32
    %c0_i32_1 = arith.constant 0 : i32
    return %c0_i32, %c0_i32_0 : i32, i32
  }
  func.func @transform_5(%arg0: i32) -> (i32, i32) {
    %c0_i32 = arith.constant 0 : i32
    %c0_i32_0 = arith.constant 0 : i32
    %c0_i32_1 = arith.constant 0 : i32
    return %c0_i32, %c0_i32_0 : i32, i32
  }
  func.func @transform_6(%arg0: i32) -> (i32, i32) {
    %c0_i32 = arith.constant 0 : i32
    %c0_i32_0 = arith.constant 0 : i32
    %c0_i32_1 = arith.constant 0 : i32
    return %c0_i32, %c0_i32_0 : i32, i32
  }
  func.func @transform_7(%arg0: i32) -> (i32, i32) {
    %c0_i32 = arith.constant 0 : i32
    %c0_i32_0 = arith.constant 0 : i32
    %c0_i32_1 = arith.constant 0 : i32
    return %c0_i32, %c0_i32_0 : i32, i32
  }
  func.func @transform_8(%arg0: i32) -> (i32, i32) {
    %c0_i32 = arith.constant 0 : i32
    %c0_i32_0 = arith.constant 0 : i32
    %c0_i32_1 = arith.constant 0 : i32
    return %c0_i32, %c0_i32_0 : i32, i32
  }
  func.func @transform_9(%arg0: i32) -> (i32, i32) {
    %c0_i32 = arith.constant 0 : i32
    %c0_i32_0 = arith.constant 0 : i32
    %c0_i32_1 = arith.constant 0 : i32
    return %c0_i32, %c0_i32_0 : i32, i32
  }
  func.func @transform_10(%arg0: i32) -> (i32, i32) {
    %c0_i32 = arith.constant 0 : i32
    %c0_i32_0 = arith.constant 0 : i32
    %c0_i32_1 = arith.constant 0 : i32
    return %c0_i32, %c0_i32_0 : i32, i32
  }
  func.func @transform_11(%arg0: i32) -> (i32, i32) {
    %c0_i32 = arith.constant 0 : i32
    %c0_i32_0 = arith.constant 0 : i32
    %c0_i32_1 = arith.constant 0 : i32
    return %c0_i32, %c0_i32_0 : i32, i32
  }
  func.func @transform_12(%arg0: i32) -> (i32, i32) {
    %c0_i32 = arith.constant 0 : i32
    %c0_i32_0 = arith.constant 0 : i32
    %c0_i32_1 = arith.constant 0 : i32
    return %c0_i32, %c0_i32_0 : i32, i32
  }
  func.func @transform_13(%arg0: i32) -> (i32, i32) {
    %c0_i32 = arith.constant 0 : i32
    %c0_i32_0 = arith.constant 0 : i32
    %c0_i32_1 = arith.constant 0 : i32
    return %c0_i32, %c0_i32_0 : i32, i32
  }
  func.func @transform_14(%arg0: i32) -> (i32, i32) {
    %c0_i32 = arith.constant 0 : i32
    %c0_i32_0 = arith.constant 0 : i32
    %c0_i32_1 = arith.constant 0 : i32
    return %c0_i32, %c0_i32_0 : i32, i32
  }
  func.func @transform_15(%arg0: i32) -> (i32, i32) {
    %c0_i32 = arith.constant 0 : i32
    %c0_i32_0 = arith.constant 0 : i32
    %c0_i32_1 = arith.constant 0 : i32
    return %c0_i32, %c0_i32_0 : i32, i32
  }
  func.func @transform_16(%arg0: i32) -> (i32, i32) {
    %c0_i32 = arith.constant 0 : i32
    %c0_i32_0 = arith.constant 0 : i32
    %c0_i32_1 = arith.constant 0 : i32
    return %c0_i32, %c0_i32_0 : i32, i32
  }
  func.func @transform_17(%arg0: i32) -> (i32, i32) {
    %c0_i32 = arith.constant 0 : i32
    %c0_i32_0 = arith.constant 0 : i32
    %c0_i32_1 = arith.constant 0 : i32
    return %c0_i32, %c0_i32_0 : i32, i32
  }
  func.func @transform_18(%arg0: i32) -> (i32, i32) {
    %c0_i32 = arith.constant 0 : i32
    %c0_i32_0 = arith.constant 0 : i32
    %c0_i32_1 = arith.constant 0 : i32
    return %c0_i32, %c0_i32_0 : i32, i32
  }
  func.func @transform_19(%arg0: i32) -> (i32, i32) {
    %c0_i32 = arith.constant 0 : i32
    %c0_i32_0 = arith.constant 0 : i32
    %c0_i32_1 = arith.constant 0 : i32
    return %c0_i32, %c0_i32_0 : i32, i32
  }
  func.func @transform_20(%arg0: i32) -> (i32, i32) {
    %c0_i32 = arith.constant 0 : i32
    %c0_i32_0 = arith.constant 0 : i32
    %c0_i32_1 = arith.constant 0 : i32
    return %c0_i32, %c0_i32_0 : i32, i32
  }
  func.func @transform_21(%arg0: i32) -> (i32, i32) {
    %c0_i32 = arith.constant 0 : i32
    %c0_i32_0 = arith.constant 0 : i32
    %c0_i32_1 = arith.constant 0 : i32
    return %c0_i32, %c0_i32_0 : i32, i32
  }
  func.func @transform_22(%arg0: i32) -> (i32, i32) {
    %c0_i32 = arith.constant 0 : i32
    %c0_i32_0 = arith.constant 0 : i32
    %c0_i32_1 = arith.constant 0 : i32
    return %c0_i32, %c0_i32_0 : i32, i32
  }
  func.func @transform_23(%arg0: i32) -> (i32, i32) {
    %c0_i32 = arith.constant 0 : i32
    %c0_i32_0 = arith.constant 0 : i32
    %c0_i32_1 = arith.constant 0 : i32
    return %c0_i32, %c0_i32_0 : i32, i32
  }
  func.func @transform_24(%arg0: i32) -> (i32, i32, i32) {
    %c0_i32 = arith.constant 0 : i32
    %c0_i32_0 = arith.constant 0 : i32
    %c0_i32_1 = arith.constant 0 : i32
    return %arg0, %c0_i32, %c0_i32_0 : i32, i32, i32
  }
}

</mosaic_0001>

<llo_original>
// kernel: decoder_block.1
$region0: #{decoder_block.1}
  #allocation0 [shape = 'u32[]', space=smem, size = 0x4, offset = 0x4, fixed_abs, tag = 'smem constant byte address 0x4 - core index']
  #allocation1 [shape = 'u32[144,128]{1,0:T(1,128)}', space=vmem, size = 0x12000, scoped, tag = 'internal scratch']
  %s0 = inlined_call_operand.vmem [shape: f32[2,8,128], index: 0, kind: input, shape index: {}]
  %s1 = inlined_call_operand.vmem [shape: f32[2,8,128], index: 1, kind: input, shape index: {}]
  %s2 = inlined_call_operand.vmem [shape: f32[2,8,128], index: 2, kind: input, shape index: {}]
  %s3 = inlined_call_operand.vmem [shape: f32[8,8], index: 3, kind: input, shape index: {}]
  %s4 = inlined_call_operand.vmem [shape: bf16[128,128], index: 4, kind: input, shape index: {}]
  %s5 = inlined_call_operand.vmem [shape: bf16[128,128], index: 5, kind: input, shape index: {}]
  %s6 = inlined_call_operand.vmem [shape: bf16[128,128], index: 6, kind: input, shape index: {}]
  %s7 = inlined_call_operand.vmem [shape: bf16[128,128], index: 7, kind: input, shape index: {}]
  %s8 = inlined_call_operand.vmem [shape: f32[1,128], index: 8, kind: input, shape index: {}]
  %s9 = inlined_call_operand.vmem [shape: f32[1,128], index: 9, kind: input, shape index: {}]
  %s10 = inlined_call_operand.vmem [shape: f32[1,128], index: 10, kind: input, shape index: {}]
  %s11 = inlined_call_operand.vmem [shape: bf16[128,128], index: 11, kind: input, shape index: {}]
  %s12 = inlined_call_operand.vmem [shape: bf16[128,128], index: 12, kind: input, shape index: {}]
  %s13 = inlined_call_operand.vmem [shape: bf16[128,128], index: 13, kind: input, shape index: {}]
  %s14 = inlined_call_operand.vmem [shape: bf16[128,128], index: 14, kind: input, shape index: {}]
  %s15 = inlined_call_operand.vmem [shape: f32[1,128], index: 15, kind: input, shape index: {}]
  %s16 = inlined_call_operand.vmem [shape: f32[1,128], index: 16, kind: input, shape index: {}]
  %s17 = inlined_call_operand.vmem [shape: f32[1,128], index: 17, kind: input, shape index: {}]
  %s18 = inlined_call_operand.vmem [shape: bf16[128,512], index: 18, kind: input, shape index: {}]
  %s19 = inlined_call_operand.vmem [shape: f32[1,512], index: 19, kind: input, shape index: {}]
  %s20 = inlined_call_operand.vmem [shape: bf16[512,128], index: 20, kind: input, shape index: {}]
  %s21 = inlined_call_operand.vmem [shape: f32[1,128], index: 21, kind: input, shape index: {}]
  %s22 = inlined_call_operand.vmem [shape: f32[1,128], index: 22, kind: input, shape index: {}]
  %s23 = inlined_call_operand.vmem [shape: f32[1,128], index: 23, kind: input, shape index: {}]
  %s24 = inlined_call_operand.hbm [shape: f32[2,8,128], index: 24, kind: output, shape index: {}]
  %s25 = sld [smem:[#allocation0]]
  $region129: #{decoder_block.1} parent=0
    _
  %s27 = ssub.s32 1, %s25
  %s28 = scalar_select 0, %s27, %s25
  $region1: #{decoder_block.1} parent=0
    #allocation2 [shape = 'u8[8192]{0}', space=vmem, size = 0x2000, scoped, tag = 'output window, operand 0']
    #allocation3 [shape = 's32[2]{0}', space=sflag, size = 0x8, scoped, tag = 'scoped memory for decoder_block.1']
    %29 = vsyncpa [#allocation3], 0
    %s30 = scalar_lea.sflag [#allocation3], 1
    %31 = vsyncpa %s30, 0
    loop: start=0, step=1, limit=4
    $region2: #{decoder_block.1} parent=1 // loop_pre_header
      _
    $region3: #{decoder_block.1} parent=1 // loop_header
      %s33 = sphi 0, %s37
      %p34 = scmp.ge.s32.totalorder %s33, 4
      %s43 = sphi 0, %s45
      %s46 = sphi 0, %s43
      %s47 = sphi 0, %s46
      %s63 = sphi 0, %s47
      %s69 = sphi 0, %s71
      %s72 = sphi 0, %s69
      %s73 = sphi 0, %s72
      %s89 = sphi 0, %s73
      %s95 = sphi 0, %s97
      %s98 = sphi 0, %s95
      %s99 = sphi 0, %s98
      %s115 = sphi 0, %s99
      %s119 = sphi 0, %s119
      %s121 = sphi 0, %s119
      %s122 = sphi 0, %s121
      %s136 = sphi 0, %s122
      %s140 = sphi 0, %s140
      %s142 = sphi 0, %s140
      %s143 = sphi 0, %s142
      %s157 = sphi 0, %s143
      %s161 = sphi 0, %s161
      %s163 = sphi 0, %s161
      %s164 = sphi 0, %s163
      %s178 = sphi 0, %s164
      %s182 = sphi 0, %s182
      %s184 = sphi 0, %s182
      %s185 = sphi 0, %s184
      %s199 = sphi 0, %s185
      %s203 = sphi 0, %s203
      %s205 = sphi 0, %s203
      %s206 = sphi 0, %s205
      %s220 = sphi 0, %s206
      %s224 = sphi 0, %s224
      %s226 = sphi 0, %s224
      %s227 = sphi 0, %s226
      %s241 = sphi 0, %s227
      %s245 = sphi 0, %s245
      %s247 = sphi 0, %s245
      %s248 = sphi 0, %s247
      %s262 = sphi 0, %s248
      %s266 = sphi 0, %s266
      %s268 = sphi 0, %s266
      %s269 = sphi 0, %s268
      %s283 = sphi 0, %s269
      %s287 = sphi 0, %s287
      %s289 = sphi 0, %s287
      %s290 = sphi 0, %s289
      %s304 = sphi 0, %s290
      %s308 = sphi 0, %s308
      %s310 = sphi 0, %s308
      %s311 = sphi 0, %s310
      %s325 = sphi 0, %s311
      %s329 = sphi 0, %s329
      %s331 = sphi 0, %s329
      %s332 = sphi 0, %s331
      %s346 = sphi 0, %s332
      %s350 = sphi 0, %s350
      %s352 = sphi 0, %s350
      %s353 = sphi 0, %s352
      %s367 = sphi 0, %s353
      %s371 = sphi 0, %s371
      %s373 = sphi 0, %s371
      %s374 = sphi 0, %s373
      %s388 = sphi 0, %s374
      %s392 = sphi 0, %s392
      %s394 = sphi 0, %s392
      %s395 = sphi 0, %s394
      %s409 = sphi 0, %s395
      %s413 = sphi 0, %s413
      %s415 = sphi 0, %s413
      %s416 = sphi 0, %s415
      %s430 = sphi 0, %s416
      %s434 = sphi 0, %s434
      %s436 = sphi 0, %s434
      %s437 = sphi 0, %s436
      %s451 = sphi 0, %s437
      %s455 = sphi 0, %s455
      %s457 = sphi 0, %s455
      %s458 = sphi 0, %s457
      %s472 = sphi 0, %s458
      %s476 = sphi 0, %s476
      %s478 = sphi 0, %s476
      %s479 = sphi 0, %s478
      %s493 = sphi 0, %s479
      %s497 = sphi 0, %s497
      %s499 = sphi 0, %s497
      %s500 = sphi 0, %s499
      %s514 = sphi 0, %s500
      %s518 = sphi 0, %s518
      %s520 = sphi 0, %s518
      %s521 = sphi 0, %s520
      %s535 = sphi 0, %s521
      %s539 = sphi 0, %s539
      %s541 = sphi 0, %s539
      %s542 = sphi 0, %s541
      %s556 = sphi 0, %s542
      %s562 = sphi 0, %s564
      %s565 = sphi 0, %s562
      %s566 = sphi 0, %s565
      %s582 = sphi 0, %s566
    $region4: #{decoder_block.1} parent=1 // loop_header_branch
      %36 = sbr.rel (%p34) target = $region8
    $region5: #{decoder_block.1} parent=1 // loop_body
      %s38 = ssub.s32 %s33, 1
      %s39 = ssub.s32 %s33, 2
      %s40 = sadd.s32 %s33, 1
      %s41 = ssub.s32 %s33, %s40
      %p42 = scmp.eq.s32.totalorder %s41, 0
      %s44 = sadd.s32 %s43, 1
      %s45 = scalar_select %p42, %s43, %s44
      %p48 = pneg %p42
      %p49 = scmp.eq.s32.totalorder %s33, 1
      %p50 = por %p48, %p49
      %p51 = scmp.ne.s32.totalorder %s43, %s46
      %p52 = scmp.eq.s32.totalorder %s33, 0
      %p53 = por %p51, %p52
      %p54 = scmp.ne.s32.totalorder %s43, %s46
      %p55 = scmp.eq.s32.totalorder %s38, 1
      %p56 = por %p54, %p55
      %p57 = scmp.ne.s32.totalorder %s46, %s47
      %p58 = scmp.eq.s32.totalorder %s38, 0
      %p59 = por %p57, %p58
      %p60 = scmp.ne.s32.totalorder %s46, %s47
      %p61 = scmp.eq.s32.totalorder %s39, 1
      %p62 = por %p60, %p61
      %p64 = scmp.ne.s32.totalorder %s47, %s63
      %p65 = scmp.eq.s32.totalorder %s39, 0
      %p66 = por %p64, %p65
      %s67 = ssub.s32 %s33, %s40
      %p68 = scmp.eq.s32.totalorder %s67, 0
      %s70 = sadd.s32 %s69, 1
      %s71 = scalar_select %p68, %s69, %s70
      %p74 = pneg %p68
      %p75 = scmp.eq.s32.totalorder %s33, 1
      %p76 = por %p74, %p75
      %p77 = scmp.ne.s32.totalorder %s69, %s72
      %p78 = scmp.eq.s32.totalorder %s33, 0
      %p79 = por %p77, %p78
      %p80 = scmp.ne.s32.totalorder %s69, %s72
      %p81 = scmp.eq.s32.totalorder %s38, 1
      %p82 = por %p80, %p81
      %p83 = scmp.ne.s32.totalorder %s72, %s73
      %p84 = scmp.eq.s32.totalorder %s38, 0
      %p85 = por %p83, %p84
      %p86 = scmp.ne.s32.totalorder %s72, %s73
      %p87 = scmp.eq.s32.totalorder %s39, 1
      %p88 = por %p86, %p87
      %p90 = scmp.ne.s32.totalorder %s73, %s89
      %p91 = scmp.eq.s32.totalorder %s39, 0
      %p92 = por %p90, %p91
      %s93 = ssub.s32 %s33, %s40
      %p94 = scmp.eq.s32.totalorder %s93, 0
      %s96 = sadd.s32 %s95, 1
      %s97 = scalar_select %p94, %s95, %s96
      %p100 = pneg %p94
      %p101 = scmp.eq.s32.totalorder %s33, 1
      %p102 = por %p100, %p101
      %p103 = scmp.ne.s32.totalorder %s95, %s98
      %p104 = scmp.eq.s32.totalorder %s33, 0
      %p105 = por %p103, %p104
      %p106 = scmp.ne.s32.totalorder %s95, %s98
      %p107 = scmp.eq.s32.totalorder %s38, 1
      %p108 = por %p106, %p107
      %p109 = scmp.ne.s32.totalorder %s98, %s99
      %p110 = scmp.eq.s32.totalorder %s38, 0
      %p111 = por %p109, %p110
      %p112 = scmp.ne.s32.totalorder %s98, %s99
      %p113 = scmp.eq.s32.totalorder %s39, 1
      %p114 = por %p112, %p113
      %p116 = scmp.ne.s32.totalorder %s99, %s115
      %p117 = scmp.eq.s32.totalorder %s39, 0
      %p118 = por %p116, %p117
      %s120 = sadd.s32 %s119, 1
      %p123 = scmp.eq.s32.totalorder %s33, 1
      %p124 = scmp.ne.s32.totalorder %s119, %s121
      %p125 = scmp.eq.s32.totalorder %s33, 0
      %p126 = por %p124, %p125
      %p127 = scmp.ne.s32.totalorder %s119, %s121
      %p128 = scmp.eq.s32.totalorder %s38, 1
      %p129 = por %p127, %p128
      %p130 = scmp.ne.s32.totalorder %s121, %s122
      %p131 = scmp.eq.s32.totalorder %s38, 0
      %p132 = por %p130, %p131
      %p133 = scmp.ne.s32.totalorder %s121, %s122
      %p134 = scmp.eq.s32.totalorder %s39, 1
      %p135 = por %p133, %p134
      %p137 = scmp.ne.s32.totalorder %s122, %s136
      %p138 = scmp.eq.s32.totalorder %s39, 0
      %p139 = por %p137, %p138
      %s141 = sadd.s32 %s140, 1
      %p144 = scmp.eq.s32.totalorder %s33, 1
      %p145 = scmp.ne.s32.totalorder %s140, %s142
      %p146 = scmp.eq.s32.totalorder %s33, 0
      %p147 = por %p145, %p146
      %p148 = scmp.ne.s32.totalorder %s140, %s142
      %p149 = scmp.eq.s32.totalorder %s38, 1
      %p150 = por %p148, %p149
      %p151 = scmp.ne.s32.totalorder %s142, %s143
      %p152 = scmp.eq.s32.totalorder %s38, 0
      %p153 = por %p151, %p152
      %p154 = scmp.ne.s32.totalorder %s142, %s143
      %p155 = scmp.eq.s32.totalorder %s39, 1
      %p156 = por %p154, %p155
      %p158 = scmp.ne.s32.totalorder %s143, %s157
      %p159 = scmp.eq.s32.totalorder %s39, 0
      %p160 = por %p158, %p159
      %s162 = sadd.s32 %s161, 1
      %p165 = scmp.eq.s32.totalorder %s33, 1
      %p166 = scmp.ne.s32.totalorder %s161, %s163
      %p167 = scmp.eq.s32.totalorder %s33, 0
      %p168 = por %p166, %p167
      %p169 = scmp.ne.s32.totalorder %s161, %s163
      %p170 = scmp.eq.s32.totalorder %s38, 1
      %p171 = por %p169, %p170
      %p172 = scmp.ne.s32.totalorder %s163, %s164
      %p173 = scmp.eq.s32.totalorder %s38, 0
      %p174 = por %p172, %p173
      %p175 = scmp.ne.s32.totalorder %s163, %s164
      %p176 = scmp.eq.s32.totalorder %s39, 1
      %p177 = por %p175, %p176
      %p179 = scmp.ne.s32.totalorder %s164, %s178
      %p180 = scmp.eq.s32.totalorder %s39, 0
      %p181 = por %p179, %p180
      %s183 = sadd.s32 %s182, 1
      %p186 = scmp.eq.s32.totalorder %s33, 1
      %p187 = scmp.ne.s32.totalorder %s182, %s184
      %p188 = scmp.eq.s32.totalorder %s33, 0
      %p189 = por %p187, %p188
      %p190 = scmp.ne.s32.totalorder %s182, %s184
      %p191 = scmp.eq.s32.totalorder %s38, 1
      %p192 = por %p190, %p191
      %p193 = scmp.ne.s32.totalorder %s184, %s185
      %p194 = scmp.eq.s32.totalorder %s38, 0
      %p195 = por %p193, %p194
      %p196 = scmp.ne.s32.totalorder %s184, %s185
      %p197 = scmp.eq.s32.totalorder %s39, 1
      %p198 = por %p196, %p197
      %p200 = scmp.ne.s32.totalorder %s185, %s199
      %p201 = scmp.eq.s32.totalorder %s39, 0
      %p202 = por %p200, %p201
      %s204 = sadd.s32 %s203, 1
      %p207 = scmp.eq.s32.totalorder %s33, 1
      %p208 = scmp.ne.s32.totalorder %s203, %s205
      %p209 = scmp.eq.s32.totalorder %s33, 0
      %p210 = por %p208, %p209
      %p211 = scmp.ne.s32.totalorder %s203, %s205
      %p212 = scmp.eq.s32.totalorder %s38, 1
      %p213 = por %p211, %p212
      %p214 = scmp.ne.s32.totalorder %s205, %s206
      %p215 = scmp.eq.s32.totalorder %s38, 0
      %p216 = por %p214, %p215
      %p217 = scmp.ne.s32.totalorder %s205, %s206
      %p218 = scmp.eq.s32.totalorder %s39, 1
      %p219 = por %p217, %p218
      %p221 = scmp.ne.s32.totalorder %s206, %s220
      %p222 = scmp.eq.s32.totalorder %s39, 0
      %p223 = por %p221, %p222
      %s225 = sadd.s32 %s224, 1
      %p228 = scmp.eq.s32.totalorder %s33, 1
      %p229 = scmp.ne.s32.totalorder %s224, %s226
      %p230 = scmp.eq.s32.totalorder %s33, 0
      %p231 = por %p229, %p230
      %p232 = scmp.ne.s32.totalorder %s224, %s226
      %p233 = scmp.eq.s32.totalorder %s38, 1
      %p234 = por %p232, %p233
      %p235 = scmp.ne.s32.totalorder %s226, %s227
      %p236 = scmp.eq.s32.totalorder %s38, 0
      %p237 = por %p235, %p236
      %p238 = scmp.ne.s32.totalorder %s226, %s227
      %p239 = scmp.eq.s32.totalorder %s39, 1
      %p240 = por %p238, %p239
      %p242 = scmp.ne.s32.totalorder %s227, %s241
      %p243 = scmp.eq.s32.totalorder %s39, 0
      %p244 = por %p242, %p243
      %s246 = sadd.s32 %s245, 1
      %p249 = scmp.eq.s32.totalorder %s33, 1
      %p250 = scmp.ne.s32.totalorder %s245, %s247
      %p251 = scmp.eq.s32.totalorder %s33, 0
      %p252 = por %p250, %p251
      %p253 = scmp.ne.s32.totalorder %s245, %s247
      %p254 = scmp.eq.s32.totalorder %s38, 1
      %p255 = por %p253, %p254
      %p256 = scmp.ne.s32.totalorder %s247, %s248
      %p257 = scmp.eq.s32.totalorder %s38, 0
      %p258 = por %p256, %p257
      %p259 = scmp.ne.s32.totalorder %s247, %s248
      %p260 = scmp.eq.s32.totalorder %s39, 1
      %p261 = por %p259, %p260
      %p263 = scmp.ne.s32.totalorder %s248, %s262
      %p264 = scmp.eq.s32.totalorder %s39, 0
      %p265 = por %p263, %p264
      %s267 = sadd.s32 %s266, 1
      %p270 = scmp.eq.s32.totalorder %s33, 1
      %p271 = scmp.ne.s32.totalorder %s266, %s268
      %p272 = scmp.eq.s32.totalorder %s33, 0
      %p273 = por %p271, %p272
      %p274 = scmp.ne.s32.totalorder %s266, %s268
      %p275 = scmp.eq.s32.totalorder %s38, 1
      %p276 = por %p274, %p275
      %p277 = scmp.ne.s32.totalorder %s268, %s269
      %p278 = scmp.eq.s32.totalorder %s38, 0
      %p279 = por %p277, %p278
      %p280 = scmp.ne.s32.totalorder %s268, %s269
      %p281 = scmp.eq.s32.totalorder %s39, 1
      %p282 = por %p280, %p281
      %p284 = scmp.ne.s32.totalorder %s269, %s283
      %p285 = scmp.eq.s32.totalorder %s39, 0
      %p286 = por %p284, %p285
      %s288 = sadd.s32 %s287, 1
      %p291 = scmp.eq.s32.totalorder %s33, 1
      %p292 = scmp.ne.s32.totalorder %s287, %s289
      %p293 = scmp.eq.s32.totalorder %s33, 0
      %p294 = por %p292, %p293
      %p295 = scmp.ne.s32.totalorder %s287, %s289
      %p296 = scmp.eq.s32.totalorder %s38, 1
      %p297 = por %p295, %p296
      %p298 = scmp.ne.s32.totalorder %s289, %s290
      %p299 = scmp.eq.s32.totalorder %s38, 0
      %p300 = por %p298, %p299
      %p301 = scmp.ne.s32.totalorder %s289, %s290
      %p302 = scmp.eq.s32.totalorder %s39, 1
      %p303 = por %p301, %p302
      %p305 = scmp.ne.s32.totalorder %s290, %s304
      %p306 = scmp.eq.s32.totalorder %s39, 0
      %p307 = por %p305, %p306
      %s309 = sadd.s32 %s308, 1
      %p312 = scmp.eq.s32.totalorder %s33, 1
      %p313 = scmp.ne.s32.totalorder %s308, %s310
      %p314 = scmp.eq.s32.totalorder %s33, 0
      %p315 = por %p313, %p314
      %p316 = scmp.ne.s32.totalorder %s308, %s310
      %p317 = scmp.eq.s32.totalorder %s38, 1
      %p318 = por %p316, %p317
      %p319 = scmp.ne.s32.totalorder %s310, %s311
      %p320 = scmp.eq.s32.totalorder %s38, 0
      %p321 = por %p319, %p320
      %p322 = scmp.ne.s32.totalorder %s310, %s311
      %p323 = scmp.eq.s32.totalorder %s39, 1
      %p324 = por %p322, %p323
      %p326 = scmp.ne.s32.totalorder %s311, %s325
      %p327 = scmp.eq.s32.totalorder %s39, 0
      %p328 = por %p326, %p327
      %s330 = sadd.s32 %s329, 1
      %p333 = scmp.eq.s32.totalorder %s33, 1
      %p334 = scmp.ne.s32.totalorder %s329, %s331
      %p335 = scmp.eq.s32.totalorder %s33, 0
      %p336 = por %p334, %p335
      %p337 = scmp.ne.s32.totalorder %s329, %s331
      %p338 = scmp.eq.s32.totalorder %s38, 1
      %p339 = por %p337, %p338
      %p340 = scmp.ne.s32.totalorder %s331, %s332
      %p341 = scmp.eq.s32.totalorder %s38, 0
      %p342 = por %p340, %p341
      %p343 = scmp.ne.s32.totalorder %s331, %s332
      %p344 = scmp.eq.s32.totalorder %s39, 1
      %p345 = por %p343, %p344
      %p347 = scmp.ne.s32.totalorder %s332, %s346
      %p348 = scmp.eq.s32.totalorder %s39, 0
      %p349 = por %p347, %p348
      %s351 = sadd.s32 %s350, 1
      %p354 = scmp.eq.s32.totalorder %s33, 1
      %p355 = scmp.ne.s32.totalorder %s350, %s352
      %p356 = scmp.eq.s32.totalorder %s33, 0
      %p357 = por %p355, %p356
      %p358 = scmp.ne.s32.totalorder %s350, %s352
      %p359 = scmp.eq.s32.totalorder %s38, 1
      %p360 = por %p358, %p359
      %p361 = scmp.ne.s32.totalorder %s352, %s353
      %p362 = scmp.eq.s32.totalorder %s38, 0
      %p363 = por %p361, %p362
      %p364 = scmp.ne.s32.totalorder %s352, %s353
      %p365 = scmp.eq.s32.totalorder %s39, 1
      %p366 = por %p364, %p365
      %p368 = scmp.ne.s32.totalorder %s353, %s367
      %p369 = scmp.eq.s32.totalorder %s39, 0
      %p370 = por %p368, %p369
      %s372 = sadd.s32 %s371, 1
      %p375 = scmp.eq.s32.totalorder %s33, 1
      %p376 = scmp.ne.s32.totalorder %s371, %s373
      %p377 = scmp.eq.s32.totalorder %s33, 0
      %p378 = por %p376, %p377
      %p379 = scmp.ne.s32.totalorder %s371, %s373
      %p380 = scmp.eq.s32.totalorder %s38, 1
      %p381 = por %p379, %p380
      %p382 = scmp.ne.s32.totalorder %s373, %s374
      %p383 = scmp.eq.s32.totalorder %s38, 0
      %p384 = por %p382, %p383
      %p385 = scmp.ne.s32.totalorder %s373, %s374
      %p386 = scmp.eq.s32.totalorder %s39, 1
      %p387 = por %p385, %p386
      %p389 = scmp.ne.s32.totalorder %s374, %s388
      %p390 = scmp.eq.s32.totalorder %s39, 0
      %p391 = por %p389, %p390
      %s393 = sadd.s32 %s392, 1
      %p396 = scmp.eq.s32.totalorder %s33, 1
      %p397 = scmp.ne.s32.totalorder %s392, %s394
      %p398 = scmp.eq.s32.totalorder %s33, 0
      %p399 = por %p397, %p398
      %p400 = scmp.ne.s32.totalorder %s392, %s394
      %p401 = scmp.eq.s32.totalorder %s38, 1
      %p402 = por %p400, %p401
      %p403 = scmp.ne.s32.totalorder %s394, %s395
      %p404 = scmp.eq.s32.totalorder %s38, 0
      %p405 = por %p403, %p404
      %p406 = scmp.ne.s32.totalorder %s394, %s395
      %p407 = scmp.eq.s32.totalorder %s39, 1
      %p408 = por %p406, %p407
      %p410 = scmp.ne.s32.totalorder %s395, %s409
      %p411 = scmp.eq.s32.totalorder %s39, 0
      %p412 = por %p410, %p411
      %s414 = sadd.s32 %s413, 1
      %p417 = scmp.eq.s32.totalorder %s33, 1
      %p418 = scmp.ne.s32.totalorder %s413, %s415
      %p419 = scmp.eq.s32.totalorder %s33, 0
      %p420 = por %p418, %p419
      %p421 = scmp.ne.s32.totalorder %s413, %s415
      %p422 = scmp.eq.s32.totalorder %s38, 1
      %p423 = por %p421, %p422
      %p424 = scmp.ne.s32.totalorder %s415, %s416
      %p425 = scmp.eq.s32.totalorder %s38, 0
      %p426 = por %p424, %p425
      %p427 = scmp.ne.s32.totalorder %s415, %s416
      %p428 = scmp.eq.s32.totalorder %s39, 1
      %p429 = por %p427, %p428
      %p431 = scmp.ne.s32.totalorder %s416, %s430
      %p432 = scmp.eq.s32.totalorder %s39, 0
      %p433 = por %p431, %p432
      %s435 = sadd.s32 %s434, 1
      %p438 = scmp.eq.s32.totalorder %s33, 1
      %p439 = scmp.ne.s32.totalorder %s434, %s436
      %p440 = scmp.eq.s32.totalorder %s33, 0
      %p441 = por %p439, %p440
      %p442 = scmp.ne.s32.totalorder %s434, %s436
      %p443 = scmp.eq.s32.totalorder %s38, 1
      %p444 = por %p442, %p443
      %p445 = scmp.ne.s32.totalorder %s436, %s437
      %p446 = scmp.eq.s32.totalorder %s38, 0
      %p447 = por %p445, %p446
      %p448 = scmp.ne.s32.totalorder %s436, %s437
      %p449 = scmp.eq.s32.totalorder %s39, 1
      %p450 = por %p448, %p449
      %p452 = scmp.ne.s32.totalorder %s437, %s451
      %p453 = scmp.eq.s32.totalorder %s39, 0
      %p454 = por %p452, %p453
      %s456 = sadd.s32 %s455, 1
      %p459 = scmp.eq.s32.totalorder %s33, 1
      %p460 = scmp.ne.s32.totalorder %s455, %s457
      %p461 = scmp.eq.s32.totalorder %s33, 0
      %p462 = por %p460, %p461
      %p463 = scmp.ne.s32.totalorder %s455, %s457
      %p464 = scmp.eq.s32.totalorder %s38, 1
      %p465 = por %p463, %p464
      %p466 = scmp.ne.s32.totalorder %s457, %s458
      %p467 = scmp.eq.s32.totalorder %s38, 0
      %p468 = por %p466, %p467
      %p469 = scmp.ne.s32.totalorder %s457, %s458
      %p470 = scmp.eq.s32.totalorder %s39, 1
      %p471 = por %p469, %p470
      %p473 = scmp.ne.s32.totalorder %s458, %s472
      %p474 = scmp.eq.s32.totalorder %s39, 0
      %p475 = por %p473, %p474
      %s477 = sadd.s32 %s476, 1
      %p480 = scmp.eq.s32.totalorder %s33, 1
      %p481 = scmp.ne.s32.totalorder %s476, %s478
      %p482 = scmp.eq.s32.totalorder %s33, 0
      %p483 = por %p481, %p482
      %p484 = scmp.ne.s32.totalorder %s476, %s478
      %p485 = scmp.eq.s32.totalorder %s38, 1
      %p486 = por %p484, %p485
      %p487 = scmp.ne.s32.totalorder %s478, %s479
      %p488 = scmp.eq.s32.totalorder %s38, 0
      %p489 = por %p487, %p488
      %p490 = scmp.ne.s32.totalorder %s478, %s479
      %p491 = scmp.eq.s32.totalorder %s39, 1
      %p492 = por %p490, %p491
      %p494 = scmp.ne.s32.totalorder %s479, %s493
      %p495 = scmp.eq.s32.totalorder %s39, 0
      %p496 = por %p494, %p495
      %s498 = sadd.s32 %s497, 1
      %p501 = scmp.eq.s32.totalorder %s33, 1
      %p502 = scmp.ne.s32.totalorder %s497, %s499
      %p503 = scmp.eq.s32.totalorder %s33, 0
      %p504 = por %p502, %p503
      %p505 = scmp.ne.s32.totalorder %s497, %s499
      %p506 = scmp.eq.s32.totalorder %s38, 1
      %p507 = por %p505, %p506
      %p508 = scmp.ne.s32.totalorder %s499, %s500
      %p509 = scmp.eq.s32.totalorder %s38, 0
      %p510 = por %p508, %p509
      %p511 = scmp.ne.s32.totalorder %s499, %s500
      %p512 = scmp.eq.s32.totalorder %s39, 1
      %p513 = por %p511, %p512
      %p515 = scmp.ne.s32.totalorder %s500, %s514
      %p516 = scmp.eq.s32.totalorder %s39, 0
      %p517 = por %p515, %p516
      %s519 = sadd.s32 %s518, 1
      %p522 = scmp.eq.s32.totalorder %s33, 1
      %p523 = scmp.ne.s32.totalorder %s518, %s520
      %p524 = scmp.eq.s32.totalorder %s33, 0
      %p525 = por %p523, %p524
      %p526 = scmp.ne.s32.totalorder %s518, %s520
      %p527 = scmp.eq.s32.totalorder %s38, 1
      %p528 = por %p526, %p527
      %p529 = scmp.ne.s32.totalorder %s520, %s521
      %p530 = scmp.eq.s32.totalorder %s38, 0
      %p531 = por %p529, %p530
      %p532 = scmp.ne.s32.totalorder %s520, %s521
      %p533 = scmp.eq.s32.totalorder %s39, 1
      %p534 = por %p532, %p533
      %p536 = scmp.ne.s32.totalorder %s521, %s535
      %p537 = scmp.eq.s32.totalorder %s39, 0
      %p538 = por %p536, %p537
      %s540 = sadd.s32 %s539, 1
      %p543 = scmp.eq.s32.totalorder %s33, 1
      %p544 = scmp.ne.s32.totalorder %s539, %s541
      %p545 = scmp.eq.s32.totalorder %s33, 0
      %p546 = por %p544, %p545
      %p547 = scmp.ne.s32.totalorder %s539, %s541
      %p548 = scmp.eq.s32.totalorder %s38, 1
      %p549 = por %p547, %p548
      %p550 = scmp.ne.s32.totalorder %s541, %s542
      %p551 = scmp.eq.s32.totalorder %s38, 0
      %p552 = por %p550, %p551
      %p553 = scmp.ne.s32.totalorder %s541, %s542
      %p554 = scmp.eq.s32.totalorder %s39, 1
      %p555 = por %p553, %p554
      %p557 = scmp.ne.s32.totalorder %s542, %s556
      %p558 = scmp.eq.s32.totalorder %s39, 0
      %p559 = por %p557, %p558
      %s560 = ssub.s32 %s33, %s40
      %p561 = scmp.eq.s32.totalorder %s560, 0
      %s563 = sadd.s32 %s562, 1
      %s564 = scalar_select %p561, %s562, %s563
      %p567 = pneg %p561
      %p568 = scmp.eq.s32.totalorder %s33, 1
      %p569 = por %p567, %p568
      %p570 = scmp.ne.s32.totalorder %s562, %s565
      %p571 = scmp.eq.s32.totalorder %s33, 0
      %p572 = por %p570, %p571
      %p573 = scmp.ne.s32.totalorder %s562, %s565
      %p574 = scmp.eq.s32.totalorder %s38, 1
      %p575 = por %p573, %p574
      %p576 = scmp.ne.s32.totalorder %s565, %s566
      %p577 = scmp.eq.s32.totalorder %s38, 0
      %p578 = por %p576, %p577
      %p579 = scmp.ne.s32.totalorder %s565, %s566
      %p580 = scmp.eq.s32.totalorder %s39, 1
      %p581 = por %p579, %p580
      %p583 = scmp.ne.s32.totalorder %s566, %s582
      %p584 = scmp.eq.s32.totalorder %s39, 0
      %p585 = por %p583, %p584
      %p586 = scmp.le.s32.totalorder 1, %s33
      %p587 = scmp.lt.s32.totalorder %s33, 3
      %p588 = pnand %p586, %p587
      %p589 = pneg %p588
      // Predicated region
      $region9: #{decoder_block.1} parent=5 // pred_check
        _
      $region10: #{decoder_block.1} parent=5 // pred_check_branch
        %591 = sbr.rel (%p588) target = $region12
      $region11: #{decoder_block.1} parent=5 // pred_region
        %s592 = ssub.s32 %s33, 1
        // Predicated region
        $region13: #{decoder_block.1} parent=11 // pred_check
          %p593 = pneg %p132
        $region14: #{decoder_block.1} parent=11 // pred_check_branch
          %595 = sbr.rel (%p593) target = $region16
        $region15: #{decoder_block.1} parent=11 // pred_region
          _
        $region16: #{decoder_block.1} parent=11 // pred_fallthru
          _
        // Predicated region
        $region17: #{decoder_block.1} parent=11 // pred_check
          %p596 = pneg %p153
        $region18: #{decoder_block.1} parent=11 // pred_check_branch
          %598 = sbr.rel (%p596) target = $region20
        $region19: #{decoder_block.1} parent=11 // pred_region
          _
        $region20: #{decoder_block.1} parent=11 // pred_fallthru
          _
        // Predicated region
        $region21: #{decoder_block.1} parent=11 // pred_check
          %p599 = pneg %p174
        $region22: #{decoder_block.1} parent=11 // pred_check_branch
          %601 = sbr.rel (%p599) target = $region24
        $region23: #{decoder_block.1} parent=11 // pred_region
          _
        $region24: #{decoder_block.1} parent=11 // pred_fallthru
          _
        // Predicated region
        $region25: #{decoder_block.1} parent=11 // pred_check
          %p602 = pneg %p195
        $region26: #{decoder_block.1} parent=11 // pred_check_branch
          %604 = sbr.rel (%p602) target = $region28
        $region27: #{decoder_block.1} parent=11 // pred_region
          _
        $region28: #{decoder_block.1} parent=11 // pred_fallthru
          _
        // Predicated region
        $region29: #{decoder_block.1} parent=11 // pred_check
          %p605 = pneg %p216
        $region30: #{decoder_block.1} parent=11 // pred_check_branch
          %607 = sbr.rel (%p605) target = $region32
        $region31: #{decoder_block.1} parent=11 // pred_region
          _
        $region32: #{decoder_block.1} parent=11 // pred_fallthru
          _
        // Predicated region
        $region33: #{decoder_block.1} parent=11 // pred_check
          %p608 = pneg %p237
        $region34: #{decoder_block.1} parent=11 // pred_check_branch
          %610 = sbr.rel (%p608) target = $region36
        $region35: #{decoder_block.1} parent=11 // pred_region
          _
        $region36: #{decoder_block.1} parent=11 // pred_fallthru
          _
        // Predicated region
        $region37: #{decoder_block.1} parent=11 // pred_check
          %p611 = pneg %p258
        $region38: #{decoder_block.1} parent=11 // pred_check_branch
          %613 = sbr.rel (%p611) target = $region40
        $region39: #{decoder_block.1} parent=11 // pred_region
          _
        $region40: #{decoder_block.1} parent=11 // pred_fallthru
          _
        // Predicated region
        $region41: #{decoder_block.1} parent=11 // pred_check
          %p614 = pneg %p279
        $region42: #{decoder_block.1} parent=11 // pred_check_branch
          %616 = sbr.rel (%p614) target = $region44
        $region43: #{decoder_block.1} parent=11 // pred_region
          _
        $region44: #{decoder_block.1} parent=11 // pred_fallthru
          _
        // Predicated region
        $region45: #{decoder_block.1} parent=11 // pred_check
          %p617 = pneg %p300
        $region46: #{decoder_block.1} parent=11 // pred_check_branch
          %619 = sbr.rel (%p617) target = $region48
        $region47: #{decoder_block.1} parent=11 // pred_region
          _
        $region48: #{decoder_block.1} parent=11 // pred_fallthru
          _
        // Predicated region
        $region49: #{decoder_block.1} parent=11 // pred_check
          %p620 = pneg %p321
        $region50: #{decoder_block.1} parent=11 // pred_check_branch
          %622 = sbr.rel (%p620) target = $region52
        $region51: #{decoder_block.1} parent=11 // pred_region
          _
        $region52: #{decoder_block.1} parent=11 // pred_fallthru
          _
        // Predicated region
        $region53: #{decoder_block.1} parent=11 // pred_check
          %p623 = pneg %p342
        $region54: #{decoder_block.1} parent=11 // pred_check_branch
          %625 = sbr.rel (%p623) target = $region56
        $region55: #{decoder_block.1} parent=11 // pred_region
          _
        $region56: #{decoder_block.1} parent=11 // pred_fallthru
          _
        // Predicated region
        $region57: #{decoder_block.1} parent=11 // pred_check
          %p626 = pneg %p363
        $region58: #{decoder_block.1} parent=11 // pred_check_branch
          %628 = sbr.rel (%p626) target = $region60
        $region59: #{decoder_block.1} parent=11 // pred_region
          _
        $region60: #{decoder_block.1} parent=11 // pred_fallthru
          _
        // Predicated region
        $region61: #{decoder_block.1} parent=11 // pred_check
          %p629 = pneg %p384
        $region62: #{decoder_block.1} parent=11 // pred_check_branch
          %631 = sbr.rel (%p629) target = $region64
        $region63: #{decoder_block.1} parent=11 // pred_region
          _
        $region64: #{decoder_block.1} parent=11 // pred_fallthru
          _
        // Predicated region
        $region65: #{decoder_block.1} parent=11 // pred_check
          %p632 = pneg %p405
        $region66: #{decoder_block.1} parent=11 // pred_check_branch
          %634 = sbr.rel (%p632) target = $region68
        $region67: #{decoder_block.1} parent=11 // pred_region
          _
        $region68: #{decoder_block.1} parent=11 // pred_fallthru
          _
        // Predicated region
        $region69: #{decoder_block.1} parent=11 // pred_check
          %p635 = pneg %p426
        $region70: #{decoder_block.1} parent=11 // pred_check_branch
          %637 = sbr.rel (%p635) target = $region72
        $region71: #{decoder_block.1} parent=11 // pred_region
          _
        $region72: #{decoder_block.1} parent=11 // pred_fallthru
          _
        // Predicated region
        $region73: #{decoder_block.1} parent=11 // pred_check
          %p638 = pneg %p447
        $region74: #{decoder_block.1} parent=11 // pred_check_branch
          %640 = sbr.rel (%p638) target = $region76
        $region75: #{decoder_block.1} parent=11 // pred_region
          _
        $region76: #{decoder_block.1} parent=11 // pred_fallthru
          _
        // Predicated region
        $region77: #{decoder_block.1} parent=11 // pred_check
          %p641 = pneg %p468
        $region78: #{decoder_block.1} parent=11 // pred_check_branch
          %643 = sbr.rel (%p641) target = $region80
        $region79: #{decoder_block.1} parent=11 // pred_region
          _
        $region80: #{decoder_block.1} parent=11 // pred_fallthru
          _
        // Predicated region
        $region81: #{decoder_block.1} parent=11 // pred_check
          %p644 = pneg %p489
        $region82: #{decoder_block.1} parent=11 // pred_check_branch
          %646 = sbr.rel (%p644) target = $region84
        $region83: #{decoder_block.1} parent=11 // pred_region
          _
        $region84: #{decoder_block.1} parent=11 // pred_fallthru
          _
        // Predicated region
        $region85: #{decoder_block.1} parent=11 // pred_check
          %p647 = pneg %p510
        $region86: #{decoder_block.1} parent=11 // pred_check_branch
          %649 = sbr.rel (%p647) target = $region88
        $region87: #{decoder_block.1} parent=11 // pred_region
          _
        $region88: #{decoder_block.1} parent=11 // pred_fallthru
          _
        // Predicated region
        $region89: #{decoder_block.1} parent=11 // pred_check
          %p650 = pneg %p531
        $region90: #{decoder_block.1} parent=11 // pred_check_branch
          %652 = sbr.rel (%p650) target = $region92
        $region91: #{decoder_block.1} parent=11 // pred_region
          _
        $region92: #{decoder_block.1} parent=11 // pred_fallthru
          _
        // Predicated region
        $region93: #{decoder_block.1} parent=11 // pred_check
          %p653 = pneg %p552
        $region94: #{decoder_block.1} parent=11 // pred_check_branch
          %655 = sbr.rel (%p653) target = $region96
        $region95: #{decoder_block.1} parent=11 // pred_region
          _
        $region96: #{decoder_block.1} parent=11 // pred_fallthru
          _
      $region12: #{decoder_block.1} parent=5 // pred_fallthru
        _
      %p656 = scmp.lt.s32.totalorder %s33, 2
      // Predicated region
      $region97: #{decoder_block.1} parent=5 // pred_check
        %p657 = pneg %p656
      $region98: #{decoder_block.1} parent=5 // pred_check_branch
        %659 = sbr.rel (%p657) target = $region100
      $region99: #{decoder_block.1} parent=5 // pred_region
        // Predicated region
        $region101: #{decoder_block.1} parent=99 // pred_check
          %p660 = pneg %p53
        $region102: #{decoder_block.1} parent=99 // pred_check_branch
          %662 = sbr.rel (%p660) target = $region104
        $region103: #{decoder_block.1} parent=99 // pred_region
          %p663 = scmp.lt.s32.totalorder %s33, 1
          %s664 = scalar_select %p663, %s33, 1
          %s665 = smul.addr %s664, 8
          %s666 = scalar_lea.vmem %s0, %s665
        $region104: #{decoder_block.1} parent=99 // pred_fallthru
          _
        // Predicated region
        $region105: #{decoder_block.1} parent=99 // pred_check
          %p667 = pneg %p79
        $region106: #{decoder_block.1} parent=99 // pred_check_branch
          %669 = sbr.rel (%p667) target = $region108
        $region107: #{decoder_block.1} parent=99 // pred_region
          %p670 = scmp.lt.s32.totalorder %s33, 1
          %s671 = scalar_select %p670, %s33, 1
          %s672 = smul.addr %s671, 8
          %s673 = scalar_lea.vmem %s1, %s672
        $region108: #{decoder_block.1} parent=99 // pred_fallthru
          _
        // Predicated region
        $region109: #{decoder_block.1} parent=99 // pred_check
          %p674 = pneg %p105
        $region110: #{decoder_block.1} parent=99 // pred_check_branch
          %676 = sbr.rel (%p674) target = $region112
        $region111: #{decoder_block.1} parent=99 // pred_region
          %p677 = scmp.lt.s32.totalorder %s33, 1
          %s678 = scalar_select %p677, %s33, 1
          %s679 = smul.addr %s678, 8
          %s680 = scalar_lea.vmem %s2, %s679
        $region112: #{decoder_block.1} parent=99 // pred_fallthru
          _
      $region100: #{decoder_block.1} parent=5 // pred_fallthru
        _
      %p681 = scmp.le.s32.totalorder 1, %s33
      %p682 = scmp.lt.s32.totalorder %s33, 3
      %p683 = pnand %p681, %p682
      %p684 = pneg %p683
      // Predicated region
      $region113: #{decoder_block.1} parent=5 // pred_check
        _
      $region114: #{decoder_block.1} parent=5 // pred_check_branch
        %686 = sbr.rel (%p683) target = $region116
      $region115: #{decoder_block.1} parent=5 // pred_region
        %s687 = ssub.s32 %s33, 1
        %p688 = scmp.lt.s32.totalorder %s38, 1
        %s689 = scalar_select %p688, %s38, 1
        %s690 = smul.addr %s689, 8
        %s691 = scalar_lea.vmem %s0, %s690
        %p692 = pneg %p59
        %p693 = pneg %p56
        %p694 = scmp.lt.s32.totalorder %s38, 1
        %s695 = scalar_select %p694, %s38, 1
        %s696 = smul.addr %s695, 8
        %s697 = scalar_lea.vmem %s1, %s696
        %p698 = pneg %p85
        %p699 = pneg %p82
        %p700 = scmp.lt.s32.totalorder %s38, 1
        %s701 = scalar_select %p700, %s38, 1
        %s702 = smul.addr %s701, 8
        %s703 = scalar_lea.vmem %s2, %s702
        %p704 = pneg %p111
        %p705 = pneg %p108
        %p706 = pneg %p132
        %p707 = pneg %p129
        %p708 = pneg %p153
        %p709 = pneg %p150
        %p710 = pneg %p174
        %p711 = pneg %p171
        %p712 = pneg %p195
        %p713 = pneg %p192
        %p714 = pneg %p216
        %p715 = pneg %p213
        %p716 = pneg %p237
        %p717 = pneg %p234
        %p718 = pneg %p258
        %p719 = pneg %p255
        %p720 = pneg %p279
        %p721 = pneg %p276
        %p722 = pneg %p300
        %p723 = pneg %p297
        %p724 = pneg %p321
        %p725 = pneg %p318
        %p726 = pneg %p342
        %p727 = pneg %p339
        %p728 = pneg %p363
        %p729 = pneg %p360
        %p730 = pneg %p384
        %p731 = pneg %p381
        %p732 = pneg %p405
        %p733 = pneg %p402
        %p734 = pneg %p426
        %p735 = pneg %p423
        %p736 = pneg %p447
        %p737 = pneg %p444
        %p738 = pneg %p468
        %p739 = pneg %p465
        %p740 = pneg %p489
        %p741 = pneg %p486
        %p742 = pneg %p510
        %p743 = pneg %p507
        %p744 = pneg %p531
        %p745 = pneg %p528
        %p746 = pneg %p552
        %p747 = pneg %p549
        %p748 = pneg %p578
        %p749 = pneg %p575
        %s750 = sand.u32 %s565, 1
        %s751 = scalar_lea.sflag [#allocation3], %s750
        %s752 = sand.u32 %s565, 1
        %s753 = smul.addr %s752, 8
        %s754 = scalar_lea.vmem [#allocation2], %s753
        %p755 = scmp.lt.s32.totalorder %s38, 1
        %s756 = scalar_select %p755, %s38, 1
        %s757 = smul.addr %s756, 8
        %s758 = scalar_lea.vmem %s0, %s757
        %p759 = scmp.lt.s32.totalorder %s38, 1
        %s760 = scalar_select %p759, %s38, 1
        %s761 = smul.addr %s760, 8
        %s762 = scalar_lea.vmem %s1, %s761
        %p763 = scmp.lt.s32.totalorder %s38, 1
        %s764 = scalar_select %p763, %s38, 1
        %s765 = smul.addr %s764, 8
        %s766 = scalar_lea.vmem %s2, %s765
        %v768 = vld [vmem:[%s758] sm:$0xff]
        %v769 = vld [vmem:[%s762] sm:$0xff]
        %v770 = vld [vmem:[%s766] sm:$0xff]
        %v771 = vld [vmem:[%s3] sm:$0xff]
        %v772 = vpack.c.bf16 %v768, %v768
        %v773 = vld [vmem:[%s4] sm:$0xf]
        %v774 = vld [vmem:[%s4 + $0x4] sm:$0xf]
        %v775 = vld [vmem:[%s4 + $0x8] sm:$0xf]
        %v776 = vld [vmem:[%s4 + $0xc] sm:$0xf]
        %v777 = vld [vmem:[%s4 + $0x10] sm:$0xf]
        %v778 = vld [vmem:[%s4 + $0x14] sm:$0xf]
        %v779 = vld [vmem:[%s4 + $0x18] sm:$0xf]
        %v780 = vld [vmem:[%s4 + $0x1c] sm:$0xf]
        %v781 = vld [vmem:[%s4 + $0x20] sm:$0xf]
        %v782 = vld [vmem:[%s4 + $0x24] sm:$0xf]
        %v783 = vld [vmem:[%s4 + $0x28] sm:$0xf]
        %v784 = vld [vmem:[%s4 + $0x2c] sm:$0xf]
        %v785 = vld [vmem:[%s4 + $0x30] sm:$0xf]
        %v786 = vld [vmem:[%s4 + $0x34] sm:$0xf]
        %v787 = vld [vmem:[%s4 + $0x38] sm:$0xf]
        %v788 = vld [vmem:[%s4 + $0x3c] sm:$0xf]
        %v805 = vunpack.c.l.b16 %v773
        %v806 = vunpack.c.l.b16 %v774
        %v807 = vunpack.c.l.b16 %v775
        %v808 = vunpack.c.l.b16 %v776
        %v809 = vunpack.c.l.b16 %v777
        %v810 = vunpack.c.l.b16 %v778
        %v811 = vunpack.c.l.b16 %v779
        %v812 = vunpack.c.l.b16 %v780
        %v813 = vunpack.c.l.b16 %v781
        %v814 = vunpack.c.l.b16 %v782
        %v815 = vunpack.c.l.b16 %v783
        %v816 = vunpack.c.l.b16 %v784
        %v817 = vunpack.c.l.b16 %v785
        %v818 = vunpack.c.l.b16 %v786
        %v819 = vunpack.c.l.b16 %v787
        %v820 = vunpack.c.l.b16 %v788
        %v821 = vpack.c.b16 %v806, %v805
        %v822 = vpack.c.b16 %v808, %v807
        %v823 = vpack.c.b16 %v810, %v809
        %v824 = vpack.c.b16 %v812, %v811
        %v825 = vpack.c.b16 %v814, %v813
        %v826 = vpack.c.b16 %v816, %v815
        %v827 = vpack.c.b16 %v818, %v817
        %v828 = vpack.c.b16 %v820, %v819
        %837 = vmatprep.subr.bf16.mxu0 0
        %838 = vmatpush1.bf16.msra.mxu0 %v821
        %839 = vmatprep.subr.bf16.mxu0 0
        %840 = vmatpush1.bf16.msra.mxu0 %v822
        %841 = vmatprep.subr.bf16.mxu0 0
        %842 = vmatpush1.bf16.msra.mxu0 %v823
        %843 = vmatprep.subr.bf16.mxu0 0
        %844 = vmatpush1.bf16.msra.mxu0 %v824
        %845 = vmatprep.subr.bf16.mxu0 0
        %846 = vmatpush1.bf16.msra.mxu0 %v825
        %847 = vmatprep.subr.bf16.mxu0 0
        %848 = vmatpush1.bf16.msra.mxu0 %v826
        %849 = vmatprep.subr.bf16.mxu0 0
        %850 = vmatpush1.bf16.msra.mxu0 %v827
        %851 = vmatprep.subr.bf16.mxu0 0
        %852 = vmatpush1.bf16.msra.mxu0 %v828
        %853 = vmatprep.subr.bf16.mxu0 0
        %854 = vmatpush1.bf16.msra.mxu0 0
        %855 = vmatprep.subr.bf16.mxu0 0
        %856 = vmatpush1.bf16.msra.mxu0 0
        %857 = vmatprep.subr.bf16.mxu0 0
        %858 = vmatpush1.bf16.msra.mxu0 0
        %859 = vmatprep.subr.bf16.mxu0 0
        %860 = vmatpush1.bf16.msra.mxu0 0
        %861 = vmatprep.subr.bf16.mxu0 0
        %862 = vmatpush1.bf16.msra.mxu0 0
        %863 = vmatprep.subr.bf16.mxu0 0
        %864 = vmatpush1.bf16.msra.mxu0 0
        %865 = vmatprep.subr.bf16.mxu0 0
        %866 = vmatpush1.bf16.msra.mxu0 0
        %867 = vmatprep.subr.bf16.mxu0 0
        %868 = vmatpush1.bf16.msra.mxu0 0
        %869 = vmatprep.mubr.bf16.mxu0 0
        %870 = vmatmul.mubr.bf16.gmra.mrb[0].mxu0 %v772
        %v871 = vpop.f32.mrb[0].mxu0
        %v872 = vadd.f32 0.0, %v871
        %v873 = vpop.f32.mrb[0].mxu0
        %v874 = vpop.f32.mrb[0].mxu0
        %v875 = vpop.f32.mrb[0].mxu0
        %876 = vdwg.mxu0
        %v877 = vld [vmem:[%s5] sm:$0xf]
        %v878 = vld [vmem:[%s5 + $0x4] sm:$0xf]
        %v879 = vld [vmem:[%s5 + $0x8] sm:$0xf]
        %v880 = vld [vmem:[%s5 + $0xc] sm:$0xf]
        %v881 = vld [vmem:[%s5 + $0x10] sm:$0xf]
        %v882 = vld [vmem:[%s5 + $0x14] sm:$0xf]
        %v883 = vld [vmem:[%s5 + $0x18] sm:$0xf]
        %v884 = vld [vmem:[%s5 + $0x1c] sm:$0xf]
        %v885 = vld [vmem:[%s5 + $0x20] sm:$0xf]
        %v886 = vld [vmem:[%s5 + $0x24] sm:$0xf]
        %v887 = vld [vmem:[%s5 + $0x28] sm:$0xf]
        %v888 = vld [vmem:[%s5 + $0x2c] sm:$0xf]
        %v889 = vld [vmem:[%s5 + $0x30] sm:$0xf]
        %v890 = vld [vmem:[%s5 + $0x34] sm:$0xf]
        %v891 = vld [vmem:[%s5 + $0x38] sm:$0xf]
        %v892 = vld [vmem:[%s5 + $0x3c] sm:$0xf]
        %v909 = vunpack.c.l.b16 %v877
        %v910 = vunpack.c.l.b16 %v878
        %v911 = vunpack.c.l.b16 %v879
        %v912 = vunpack.c.l.b16 %v880
        %v913 = vunpack.c.l.b16 %v881
        %v914 = vunpack.c.l.b16 %v882
        %v915 = vunpack.c.l.b16 %v883
        %v916 = vunpack.c.l.b16 %v884
        %v917 = vunpack.c.l.b16 %v885
        %v918 = vunpack.c.l.b16 %v886
        %v919 = vunpack.c.l.b16 %v887
        %v920 = vunpack.c.l.b16 %v888
        %v921 = vunpack.c.l.b16 %v889
        %v922 = vunpack.c.l.b16 %v890
        %v923 = vunpack.c.l.b16 %v891
        %v924 = vunpack.c.l.b16 %v892
        %v925 = vpack.c.b16 %v910, %v909
        %v926 = vpack.c.b16 %v912, %v911
        %v927 = vpack.c.b16 %v914, %v913
        %v928 = vpack.c.b16 %v916, %v915
        %v929 = vpack.c.b16 %v918, %v917
        %v930 = vpack.c.b16 %v920, %v919
        %v931 = vpack.c.b16 %v922, %v921
        %v932 = vpack.c.b16 %v924, %v923
        %941 = vmatprep.subr.bf16.mxu0 0
        %942 = vmatpush1.bf16.msra.mxu0 %v925
        %943 = vmatprep.subr.bf16.mxu0 0
        %944 = vmatpush1.bf16.msra.mxu0 %v926
        %945 = vmatprep.subr.bf16.mxu0 0
        %946 = vmatpush1.bf16.msra.mxu0 %v927
        %947 = vmatprep.subr.bf16.mxu0 0
        %948 = vmatpush1.bf16.msra.mxu0 %v928
        %949 = vmatprep.subr.bf16.mxu0 0
        %950 = vmatpush1.bf16.msra.mxu0 %v929
        %951 = vmatprep.subr.bf16.mxu0 0
        %952 = vmatpush1.bf16.msra.mxu0 %v930
        %953 = vmatprep.subr.bf16.mxu0 0
        %954 = vmatpush1.bf16.msra.mxu0 %v931
        %955 = vmatprep.subr.bf16.mxu0 0
        %956 = vmatpush1.bf16.msra.mxu0 %v932
        %957 = vmatprep.subr.bf16.mxu0 0
        %958 = vmatpush1.bf16.msra.mxu0 0
        %959 = vmatprep.subr.bf16.mxu0 0
        %960 = vmatpush1.bf16.msra.mxu0 0
        %961 = vmatprep.subr.bf16.mxu0 0
        %962 = vmatpush1.bf16.msra.mxu0 0
        %963 = vmatprep.subr.bf16.mxu0 0
        %964 = vmatpush1.bf16.msra.mxu0 0
        %965 = vmatprep.subr.bf16.mxu0 0
        %966 = vmatpush1.bf16.msra.mxu0 0
        %967 = vmatprep.subr.bf16.mxu0 0
        %968 = vmatpush1.bf16.msra.mxu0 0
        %969 = vmatprep.subr.bf16.mxu0 0
        %970 = vmatpush1.bf16.msra.mxu0 0
        %971 = vmatprep.subr.bf16.mxu0 0
        %972 = vmatpush1.bf16.msra.mxu0 0
        %973 = vmatprep.mubr.bf16.mxu0 0
        %974 = vmatmul.mubr.bf16.gmra.mrb[0].mxu0 %v772
        %v975 = vpop.f32.mrb[0].mxu0
        %v976 = vadd.f32 0.0, %v975
        %v977 = vpop.f32.mrb[0].mxu0
        %v978 = vpop.f32.mrb[0].mxu0
        %v979 = vpop.f32.mrb[0].mxu0
        %980 = vdwg.mxu0
        %v981 = vld [vmem:[%s6] sm:$0xf]
        %v982 = vld [vmem:[%s6 + $0x4] sm:$0xf]
        %v983 = vld [vmem:[%s6 + $0x8] sm:$0xf]
        %v984 = vld [vmem:[%s6 + $0xc] sm:$0xf]
        %v985 = vld [vmem:[%s6 + $0x10] sm:$0xf]
        %v986 = vld [vmem:[%s6 + $0x14] sm:$0xf]
        %v987 = vld [vmem:[%s6 + $0x18] sm:$0xf]
        %v988 = vld [vmem:[%s6 + $0x1c] sm:$0xf]
        %v989 = vld [vmem:[%s6 + $0x20] sm:$0xf]
        %v990 = vld [vmem:[%s6 + $0x24] sm:$0xf]
        %v991 = vld [vmem:[%s6 + $0x28] sm:$0xf]
        %v992 = vld [vmem:[%s6 + $0x2c] sm:$0xf]
        %v993 = vld [vmem:[%s6 + $0x30] sm:$0xf]
        %v994 = vld [vmem:[%s6 + $0x34] sm:$0xf]
        %v995 = vld [vmem:[%s6 + $0x38] sm:$0xf]
        %v996 = vld [vmem:[%s6 + $0x3c] sm:$0xf]
        %v1013 = vunpack.c.l.b16 %v981
        %v1014 = vunpack.c.l.b16 %v982
        %v1015 = vunpack.c.l.b16 %v983
        %v1016 = vunpack.c.l.b16 %v984
        %v1017 = vunpack.c.l.b16 %v985
        %v1018 = vunpack.c.l.b16 %v986
        %v1019 = vunpack.c.l.b16 %v987
        %v1020 = vunpack.c.l.b16 %v988
        %v1021 = vunpack.c.l.b16 %v989
        %v1022 = vunpack.c.l.b16 %v990
        %v1023 = vunpack.c.l.b16 %v991
        %v1024 = vunpack.c.l.b16 %v992
        %v1025 = vunpack.c.l.b16 %v993
        %v1026 = vunpack.c.l.b16 %v994
        %v1027 = vunpack.c.l.b16 %v995
        %v1028 = vunpack.c.l.b16 %v996
        %v1029 = vpack.c.b16 %v1014, %v1013
        %v1030 = vpack.c.b16 %v1016, %v1015
        %v1031 = vpack.c.b16 %v1018, %v1017
        %v1032 = vpack.c.b16 %v1020, %v1019
        %v1033 = vpack.c.b16 %v1022, %v1021
        %v1034 = vpack.c.b16 %v1024, %v1023
        %v1035 = vpack.c.b16 %v1026, %v1025
        %v1036 = vpack.c.b16 %v1028, %v1027
        %1045 = vmatprep.subr.bf16.mxu0 0
        %1046 = vmatpush1.bf16.msra.mxu0 %v1029
        %1047 = vmatprep.subr.bf16.mxu0 0
        %1048 = vmatpush1.bf16.msra.mxu0 %v1030
        %1049 = vmatprep.subr.bf16.mxu0 0
        %1050 = vmatpush1.bf16.msra.mxu0 %v1031
        %1051 = vmatprep.subr.bf16.mxu0 0
        %1052 = vmatpush1.bf16.msra.mxu0 %v1032
        %1053 = vmatprep.subr.bf16.mxu0 0
        %1054 = vmatpush1.bf16.msra.mxu0 %v1033
        %1055 = vmatprep.subr.bf16.mxu0 0
        %1056 = vmatpush1.bf16.msra.mxu0 %v1034
        %1057 = vmatprep.subr.bf16.mxu0 0
        %1058 = vmatpush1.bf16.msra.mxu0 %v1035
        %1059 = vmatprep.subr.bf16.mxu0 0
        %1060 = vmatpush1.bf16.msra.mxu0 %v1036
        %1061 = vmatprep.subr.bf16.mxu0 0
        %1062 = vmatpush1.bf16.msra.mxu0 0
        %1063 = vmatprep.subr.bf16.mxu0 0
        %1064 = vmatpush1.bf16.msra.mxu0 0
        %1065 = vmatprep.subr.bf16.mxu0 0
        %1066 = vmatpush1.bf16.msra.mxu0 0
        %1067 = vmatprep.subr.bf16.mxu0 0
        %1068 = vmatpush1.bf16.msra.mxu0 0
        %1069 = vmatprep.subr.bf16.mxu0 0
        %1070 = vmatpush1.bf16.msra.mxu0 0
        %1071 = vmatprep.subr.bf16.mxu0 0
        %1072 = vmatpush1.bf16.msra.mxu0 0
        %1073 = vmatprep.subr.bf16.mxu0 0
        %1074 = vmatpush1.bf16.msra.mxu0 0
        %1075 = vmatprep.subr.bf16.mxu0 0
        %1076 = vmatpush1.bf16.msra.mxu0 0
        %1077 = vmatprep.mubr.bf16.mxu0 0
        %1078 = vmatmul.mubr.bf16.gmra.mrb[0].mxu0 %v772
        %v1079 = vpop.f32.mrb[0].mxu0
        %v1080 = vadd.f32 0.0, %v1079
        %v1081 = vpop.f32.mrb[0].mxu0
        %v1082 = vpop.f32.mrb[0].mxu0
        %v1083 = vpop.f32.mrb[0].mxu0
        %1084 = vdwg.mxu0
        %v1085 = vld [vmem:[%s7] sm:$0xf]
        %v1086 = vld [vmem:[%s7 + $0x4] sm:$0xf]
        %v1087 = vld [vmem:[%s7 + $0x8] sm:$0xf]
        %v1088 = vld [vmem:[%s7 + $0xc] sm:$0xf]
        %v1089 = vld [vmem:[%s7 + $0x10] sm:$0xf]
        %v1090 = vld [vmem:[%s7 + $0x14] sm:$0xf]
        %v1091 = vld [vmem:[%s7 + $0x18] sm:$0xf]
        %v1092 = vld [vmem:[%s7 + $0x1c] sm:$0xf]
        %v1093 = vld [vmem:[%s7 + $0x20] sm:$0xf]
        %v1094 = vld [vmem:[%s7 + $0x24] sm:$0xf]
        %v1095 = vld [vmem:[%s7 + $0x28] sm:$0xf]
        %v1096 = vld [vmem:[%s7 + $0x2c] sm:$0xf]
        %v1097 = vld [vmem:[%s7 + $0x30] sm:$0xf]
        %v1098 = vld [vmem:[%s7 + $0x34] sm:$0xf]
        %v1099 = vld [vmem:[%s7 + $0x38] sm:$0xf]
        %v1100 = vld [vmem:[%s7 + $0x3c] sm:$0xf]
        %v1101 = vpack.c.bf16 %v872, %v872
        %v1102 = vpack.c.bf16 %v976, %v976
        %vm1103 = vcmask 261120
        %v1105 = vsel %vm1103, %v1101, 0
        %v1108 = vsel %vm1103, %v1102, 0
        %1110 = vmatprep.subr.bf16.mxu0 0
        %1111 = vmatpush1.bf16.xpose.msra.mxu0 %v1108
        %1112 = vmatprep.subr.bf16.mxu0 0
        %1113 = vmatpush1.bf16.xpose.msra.mxu0 0
        %1114 = vmatprep.subr.bf16.mxu0 0
        %1115 = vmatpush1.bf16.xpose.msra.mxu0 0
        %1116 = vmatprep.subr.bf16.mxu0 0
        %1117 = vmatpush1.bf16.xpose.msra.mxu0 0
        %1118 = vmatprep.subr.bf16.mxu0 0
        %1119 = vmatpush1.bf16.xpose.msra.mxu0 0
        %1120 = vmatprep.subr.bf16.mxu0 0
        %1121 = vmatpush1.bf16.xpose.msra.mxu0 0
        %1122 = vmatprep.subr.bf16.mxu0 0
        %1123 = vmatpush1.bf16.xpose.msra.mxu0 0
        %1124 = vmatprep.subr.bf16.mxu0 0
        %1125 = vmatpush1.bf16.xpose.msra.mxu0 0
        %1126 = vmatprep.subr.bf16.mxu0 0
        %1127 = vmatpush1.bf16.xpose.msra.mxu0 0
        %1128 = vmatprep.subr.bf16.mxu0 0
        %1129 = vmatpush1.bf16.xpose.msra.mxu0 0
        %1130 = vmatprep.subr.bf16.mxu0 0
        %1131 = vmatpush1.bf16.xpose.msra.mxu0 0
        %1132 = vmatprep.subr.bf16.mxu0 0
        %1133 = vmatpush1.bf16.xpose.msra.mxu0 0
        %1134 = vmatprep.subr.bf16.mxu0 0
        %1135 = vmatpush1.bf16.xpose.msra.mxu0 0
        %1136 = vmatprep.subr.bf16.mxu0 0
        %1137 = vmatpush1.bf16.xpose.msra.mxu0 0
        %1138 = vmatprep.subr.bf16.mxu0 0
        %1139 = vmatpush1.bf16.xpose.msra.mxu0 0
        %1140 = vmatprep.subr.bf16.mxu0 0
        %1141 = vmatpush1.bf16.xpose.msra.mxu0 0
        %1142 = vmatprep.mubr.bf16.mxu0 0
        %1143 = vmatmul.mubr.bf16.gmra.mrb[0].mxu0 %v1105
        %v1144 = vpop.f32.mrb[0].mxu0
        %v1145 = vadd.f32 %v771, %v1144
        %v1146 = vpop.f32.mrb[0].mxu0
        %v1147 = vpop.f32.mrb[0].mxu0
        %v1148 = vpop.f32.mrb[0].mxu0
        %1149 = vdwg.mxu0
        %vm1150 = vcmask 64512
        %v1151 = vsel %vm1150, %v1145, -inf
        %1152 = vmax.xlane.f32.xlu0 %v1151
        %v1153 = vpop.xlane.xlu0 %1152
        %v1154 = vsub.f32 %v1145, %v1153
        %v1155 = vmul.f32 %v1154, 1.442695
        %v1156 = vpow.pop %v1155
        %v1157 = vsel %vm1150, %v1156, 0.0
        %1158 = vadd.xlane.f32.xlu0 %v1157
        %v1159 = vpop.xlane.xlu0 %1158
        %v1160 = vrcp.pop %v1159
        %v1161 = vmul.f32 %v1156, %v1160
        %v1162 = vpack.c.bf16 %v1161, %v1161
        %v1163 = vpack.c.bf16 %v1080, %v1080
        %v1165 = vsel %vm1150, %v1162, 0
        %vm1167 = vcmask 1043456
        %v1169 = vsel %vm1167, %v1163, 0
        %1171 = vmatprep.subr.bf16.mxu0 0
        %1172 = vmatpush1.bf16.msra.mxu0 %v1169
        %1173 = vmatprep.subr.bf16.mxu0 0
        %1174 = vmatpush1.bf16.msra.mxu0 0
        %1175 = vmatprep.subr.bf16.mxu0 0
        %1176 = vmatpush1.bf16.msra.mxu0 0
        %1177 = vmatprep.subr.bf16.mxu0 0
        %1178 = vmatpush1.bf16.msra.mxu0 0
        %1179 = vmatprep.subr.bf16.mxu0 0
        %1180 = vmatpush1.bf16.msra.mxu0 0
        %1181 = vmatprep.subr.bf16.mxu0 0
        %1182 = vmatpush1.bf16.msra.mxu0 0
        %1183 = vmatprep.subr.bf16.mxu0 0
        %1184 = vmatpush1.bf16.msra.mxu0 0
        %1185 = vmatprep.subr.bf16.mxu0 0
        %1186 = vmatpush1.bf16.msra.mxu0 0
        %1187 = vmatprep.subr.bf16.mxu0 0
        %1188 = vmatpush1.bf16.msra.mxu0 0
        %1189 = vmatprep.subr.bf16.mxu0 0
        %1190 = vmatpush1.bf16.msra.mxu0 0
        %1191 = vmatprep.subr.bf16.mxu0 0
        %1192 = vmatpush1.bf16.msra.mxu0 0
        %1193 = vmatprep.subr.bf16.mxu0 0
        %1194 = vmatpush1.bf16.msra.mxu0 0
        %1195 = vmatprep.subr.bf16.mxu0 0
        %1196 = vmatpush1.bf16.msra.mxu0 0
        %1197 = vmatprep.subr.bf16.mxu0 0
        %1198 = vmatpush1.bf16.msra.mxu0 0
        %1199 = vmatprep.subr.bf16.mxu0 0
        %1200 = vmatpush1.bf16.msra.mxu0 0
        %1201 = vmatprep.subr.bf16.mxu0 0
        %1202 = vmatpush1.bf16.msra.mxu0 0
        %1203 = vmatprep.mubr.bf16.mxu0 0
        %1204 = vmatmul.mubr.bf16.gmra.mrb[0].mxu0 %v1165
        %v1205 = vpop.f32.mrb[0].mxu0
        %v1206 = vadd.f32 0.0, %v1205
        %v1207 = vpop.f32.mrb[0].mxu0
        %v1208 = vpop.f32.mrb[0].mxu0
        %v1209 = vpop.f32.mrb[0].mxu0
        %1210 = vdwg.mxu0
        %v1211 = vpack.c.bf16 %v1206, %v1206
        %1213 = vrot.lane.b32.xlu0 %v1101, 96
        %v1214 = vpop.permute.xlu0 %1213
        %1216 = vrot.lane.b32.xlu0 %v1102, 96
        %v1217 = vpop.permute.xlu0 %1216
        %v1219 = vsel %vm1103, %v1214, 0
        %v1222 = vsel %vm1103, %v1217, 0
        %1224 = vmatprep.subr.bf16.mxu0 0
        %1225 = vmatpush1.bf16.xpose.msra.mxu0 %v1222
        %1226 = vmatprep.subr.bf16.mxu0 0
        %1227 = vmatpush1.bf16.xpose.msra.mxu0 0
        %1228 = vmatprep.subr.bf16.mxu0 0
        %1229 = vmatpush1.bf16.xpose.msra.mxu0 0
        %1230 = vmatprep.subr.bf16.mxu0 0
        %1231 = vmatpush1.bf16.xpose.msra.mxu0 0
        %1232 = vmatprep.subr.bf16.mxu0 0
        %1233 = vmatpush1.bf16.xpose.msra.mxu0 0
        %1234 = vmatprep.subr.bf16.mxu0 0
        %1235 = vmatpush1.bf16.xpose.msra.mxu0 0
        %1236 = vmatprep.subr.bf16.mxu0 0
        %1237 = vmatpush1.bf16.xpose.msra.mxu0 0
        %1238 = vmatprep.subr.bf16.mxu0 0
        %1239 = vmatpush1.bf16.xpose.msra.mxu0 0
        %1240 = vmatprep.subr.bf16.mxu0 0
        %1241 = vmatpush1.bf16.xpose.msra.mxu0 0
        %1242 = vmatprep.subr.bf16.mxu0 0
        %1243 = vmatpush1.bf16.xpose.msra.mxu0 0
        %1244 = vmatprep.subr.bf16.mxu0 0
        %1245 = vmatpush1.bf16.xpose.msra.mxu0 0
        %1246 = vmatprep.subr.bf16.mxu0 0
        %1247 = vmatpush1.bf16.xpose.msra.mxu0 0
        %1248 = vmatprep.subr.bf16.mxu0 0
        %1249 = vmatpush1.bf16.xpose.msra.mxu0 0
        %1250 = vmatprep.subr.bf16.mxu0 0
        %1251 = vmatpush1.bf16.xpose.msra.mxu0 0
        %1252 = vmatprep.subr.bf16.mxu0 0
        %1253 = vmatpush1.bf16.xpose.msra.mxu0 0
        %1254 = vmatprep.subr.bf16.mxu0 0
        %1255 = vmatpush1.bf16.xpose.msra.mxu0 0
        %1256 = vmatprep.mubr.bf16.mxu0 0
        %1257 = vmatmul.mubr.bf16.gmra.mrb[0].mxu0 %v1219
        %v1258 = vpop.f32.mrb[0].mxu0
        %v1259 = vadd.f32 %v771, %v1258
        %v1260 = vpop.f32.mrb[0].mxu0
        %v1261 = vpop.f32.mrb[0].mxu0
        %v1262 = vpop.f32.mrb[0].mxu0
        %1263 = vdwg.mxu0
        %v1264 = vsel %vm1150, %v1259, -inf
        %1265 = vmax.xlane.f32.xlu0 %v1264
        %v1266 = vpop.xlane.xlu0 %1265
        %v1267 = vsub.f32 %v1259, %v1266
        %v1268 = vmul.f32 %v1267, 1.442695
        %v1269 = vpow.pop %v1268
        %v1270 = vsel %vm1150, %v1269, 0.0
        %1271 = vadd.xlane.f32.xlu0 %v1270
        %v1272 = vpop.xlane.xlu0 %1271
        %v1273 = vrcp.pop %v1272
        %v1274 = vmul.f32 %v1269, %v1273
        %v1275 = vpack.c.bf16 %v1274, %v1274
        %1277 = vrot.lane.b32.xlu0 %v1163, 96
        %v1278 = vpop.permute.xlu0 %1277
        %v1280 = vsel %vm1150, %v1275, 0
        %v1283 = vsel %vm1167, %v1278, 0
        %1285 = vmatprep.subr.bf16.mxu0 0
        %1286 = vmatpush1.bf16.msra.mxu0 %v1283
        %1287 = vmatprep.subr.bf16.mxu0 0
        %1288 = vmatpush1.bf16.msra.mxu0 0
        %1289 = vmatprep.subr.bf16.mxu0 0
        %1290 = vmatpush1.bf16.msra.mxu0 0
        %1291 = vmatprep.subr.bf16.mxu0 0
        %1292 = vmatpush1.bf16.msra.mxu0 0
        %1293 = vmatprep.subr.bf16.mxu0 0
        %1294 = vmatpush1.bf16.msra.mxu0 0
        %1295 = vmatprep.subr.bf16.mxu0 0
        %1296 = vmatpush1.bf16.msra.mxu0 0
        %1297 = vmatprep.subr.bf16.mxu0 0
        %1298 = vmatpush1.bf16.msra.mxu0 0
        %1299 = vmatprep.subr.bf16.mxu0 0
        %1300 = vmatpush1.bf16.msra.mxu0 0
        %1301 = vmatprep.subr.bf16.mxu0 0
        %1302 = vmatpush1.bf16.msra.mxu0 0
        %1303 = vmatprep.subr.bf16.mxu0 0
        %1304 = vmatpush1.bf16.msra.mxu0 0
        %1305 = vmatprep.subr.bf16.mxu0 0
        %1306 = vmatpush1.bf16.msra.mxu0 0
        %1307 = vmatprep.subr.bf16.mxu0 0
        %1308 = vmatpush1.bf16.msra.mxu0 0
        %1309 = vmatprep.subr.bf16.mxu0 0
        %1310 = vmatpush1.bf16.msra.mxu0 0
        %1311 = vmatprep.subr.bf16.mxu0 0
        %1312 = vmatpush1.bf16.msra.mxu0 0
        %1313 = vmatprep.subr.bf16.mxu0 0
        %1314 = vmatpush1.bf16.msra.mxu0 0
        %1315 = vmatprep.subr.bf16.mxu0 0
        %1316 = vmatpush1.bf16.msra.mxu0 0
        %1317 = vmatprep.mubr.bf16.mxu0 0
        %1318 = vmatmul.mubr.bf16.gmra.mrb[0].mxu0 %v1280
        %v1319 = vpop.f32.mrb[0].mxu0
        %v1320 = vadd.f32 0.0, %v1319
        %v1321 = vpop.f32.mrb[0].mxu0
        %v1322 = vpop.f32.mrb[0].mxu0
        %v1323 = vpop.f32.mrb[0].mxu0
        %1324 = vdwg.mxu0
        %v1325 = vpack.c.bf16 %v1320, %v1320
        %v1330 = vunpack.c.l.b16 %v1089
        %v1331 = vunpack.c.l.b16 %v1090
        %v1332 = vunpack.c.l.b16 %v1091
        %v1333 = vunpack.c.l.b16 %v1092
        %v1334 = vpack.c.b16 %v1331, %v1330
        %v1335 = vpack.c.b16 %v1333, %v1332
        %v1339 = vsel %vm1103, %v1325, 0
        %1341 = vmatprep.subr.bf16.mxu0 0
        %1342 = vmatpush1.bf16.msra.mxu0 %v1334
        %1343 = vmatprep.subr.bf16.mxu0 0
        %1344 = vmatpush1.bf16.msra.mxu0 %v1335
        %1345 = vmatprep.subr.bf16.mxu0 0
        %1346 = vmatpush1.bf16.msra.mxu0 0
        %1347 = vmatprep.subr.bf16.mxu0 0
        %1348 = vmatpush1.bf16.msra.mxu0 0
        %1349 = vmatprep.subr.bf16.mxu0 0
        %1350 = vmatpush1.bf16.msra.mxu0 0
        %1351 = vmatprep.subr.bf16.mxu0 0
        %1352 = vmatpush1.bf16.msra.mxu0 0
        %1353 = vmatprep.subr.bf16.mxu0 0
        %1354 = vmatpush1.bf16.msra.mxu0 0
        %1355 = vmatprep.subr.bf16.mxu0 0
        %1356 = vmatpush1.bf16.msra.mxu0 0
        %1357 = vmatprep.subr.bf16.mxu0 0
        %1358 = vmatpush1.bf16.msra.mxu0 0
        %1359 = vmatprep.subr.bf16.mxu0 0
        %1360 = vmatpush1.bf16.msra.mxu0 0
        %1361 = vmatprep.subr.bf16.mxu0 0
        %1362 = vmatpush1.bf16.msra.mxu0 0
        %1363 = vmatprep.subr.bf16.mxu0 0
        %1364 = vmatpush1.bf16.msra.mxu0 0
        %1365 = vmatprep.subr.bf16.mxu0 0
        %1366 = vmatpush1.bf16.msra.mxu0 0
        %1367 = vmatprep.subr.bf16.mxu0 0
        %1368 = vmatpush1.bf16.msra.mxu0 0
        %1369 = vmatprep.subr.bf16.mxu0 0
        %1370 = vmatpush1.bf16.msra.mxu0 0
        %1371 = vmatprep.subr.bf16.mxu0 0
        %1372 = vmatpush1.bf16.msra.mxu0 0
        %1373 = vmatprep.mubr.bf16.mxu0 0
        %1374 = vmatmul.mubr.bf16.gmra.mrb[0].mxu0 %v1339
        %v1375 = vpop.f32.mrb[0].mxu0
        %v1376 = vadd.f32 0.0, %v1375
        %v1377 = vpop.f32.mrb[0].mxu0
        %v1378 = vpop.f32.mrb[0].mxu0
        %v1379 = vpop.f32.mrb[0].mxu0
        %1380 = vdwg.mxu0
        %v1385 = vunpack.c.l.b16 %v1085
        %v1386 = vunpack.c.l.b16 %v1086
        %v1387 = vunpack.c.l.b16 %v1087
        %v1388 = vunpack.c.l.b16 %v1088
        %v1389 = vpack.c.b16 %v1386, %v1385
        %v1390 = vpack.c.b16 %v1388, %v1387
        %v1394 = vsel %vm1103, %v1211, 0
        %1396 = vmatprep.subr.bf16.mxu0 0
        %1397 = vmatpush1.bf16.msra.mxu0 %v1389
        %1398 = vmatprep.subr.bf16.mxu0 0
        %1399 = vmatpush1.bf16.msra.mxu0 %v1390
        %1400 = vmatprep.subr.bf16.mxu0 0
        %1401 = vmatpush1.bf16.msra.mxu0 0
        %1402 = vmatprep.subr.bf16.mxu0 0
        %1403 = vmatpush1.bf16.msra.mxu0 0
        %1404 = vmatprep.subr.bf16.mxu0 0
        %1405 = vmatpush1.bf16.msra.mxu0 0
        %1406 = vmatprep.subr.bf16.mxu0 0
        %1407 = vmatpush1.bf16.msra.mxu0 0
        %1408 = vmatprep.subr.bf16.mxu0 0
        %1409 = vmatpush1.bf16.msra.mxu0 0
        %1410 = vmatprep.subr.bf16.mxu0 0
        %1411 = vmatpush1.bf16.msra.mxu0 0
        %1412 = vmatprep.subr.bf16.mxu0 0
        %1413 = vmatpush1.bf16.msra.mxu0 0
        %1414 = vmatprep.subr.bf16.mxu0 0
        %1415 = vmatpush1.bf16.msra.mxu0 0
        %1416 = vmatprep.subr.bf16.mxu0 0
        %1417 = vmatpush1.bf16.msra.mxu0 0
        %1418 = vmatprep.subr.bf16.mxu0 0
        %1419 = vmatpush1.bf16.msra.mxu0 0
        %1420 = vmatprep.subr.bf16.mxu0 0
        %1421 = vmatpush1.bf16.msra.mxu0 0
        %1422 = vmatprep.subr.bf16.mxu0 0
        %1423 = vmatpush1.bf16.msra.mxu0 0
        %1424 = vmatprep.subr.bf16.mxu0 0
        %1425 = vmatpush1.bf16.msra.mxu0 0
        %1426 = vmatprep.subr.bf16.mxu0 0
        %1427 = vmatpush1.bf16.msra.mxu0 0
        %1428 = vmatprep.mubr.bf16.mxu0 0
        %1429 = vmatmul.mubr.bf16.gmra.mrb[0].mxu0 %v1394
        %v1430 = vpop.f32.mrb[0].mxu0
        %v1431 = vadd.f32 %v1376, %v1430
        %v1432 = vpop.f32.mrb[0].mxu0
        %v1433 = vpop.f32.mrb[0].mxu0
        %v1434 = vpop.f32.mrb[0].mxu0
        %1435 = vdwg.mxu0
        %1436 = vrot.lane.b32.xlu0 %v1101, 64
        %v1437 = vpop.permute.xlu0 %1436
        %1438 = vrot.lane.b32.xlu0 %v1102, 64
        %v1439 = vpop.permute.xlu0 %1438
        %v1441 = vsel %vm1103, %v1437, 0
        %v1444 = vsel %vm1103, %v1439, 0
        %1446 = vmatprep.subr.bf16.mxu0 0
        %1447 = vmatpush1.bf16.xpose.msra.mxu0 %v1444
        %1448 = vmatprep.subr.bf16.mxu0 0
        %1449 = vmatpush1.bf16.xpose.msra.mxu0 0
        %1450 = vmatprep.subr.bf16.mxu0 0
        %1451 = vmatpush1.bf16.xpose.msra.mxu0 0
        %1452 = vmatprep.subr.bf16.mxu0 0
        %1453 = vmatpush1.bf16.xpose.msra.mxu0 0
        %1454 = vmatprep.subr.bf16.mxu0 0
        %1455 = vmatpush1.bf16.xpose.msra.mxu0 0
        %1456 = vmatprep.subr.bf16.mxu0 0
        %1457 = vmatpush1.bf16.xpose.msra.mxu0 0
        %1458 = vmatprep.subr.bf16.mxu0 0
        %1459 = vmatpush1.bf16.xpose.msra.mxu0 0
        %1460 = vmatprep.subr.bf16.mxu0 0
        %1461 = vmatpush1.bf16.xpose.msra.mxu0 0
        %1462 = vmatprep.subr.bf16.mxu0 0
        %1463 = vmatpush1.bf16.xpose.msra.mxu0 0
        %1464 = vmatprep.subr.bf16.mxu0 0
        %1465 = vmatpush1.bf16.xpose.msra.mxu0 0
        %1466 = vmatprep.subr.bf16.mxu0 0
        %1467 = vmatpush1.bf16.xpose.msra.mxu0 0
        %1468 = vmatprep.subr.bf16.mxu0 0
        %1469 = vmatpush1.bf16.xpose.msra.mxu0 0
        %1470 = vmatprep.subr.bf16.mxu0 0
        %1471 = vmatpush1.bf16.xpose.msra.mxu0 0
        %1472 = vmatprep.subr.bf16.mxu0 0
        %1473 = vmatpush1.bf16.xpose.msra.mxu0 0
        %1474 = vmatprep.subr.bf16.mxu0 0
        %1475 = vmatpush1.bf16.xpose.msra.mxu0 0
        %1476 = vmatprep.subr.bf16.mxu0 0
        %1477 = vmatpush1.bf16.xpose.msra.mxu0 0
        %1478 = vmatprep.mubr.bf16.mxu0 0
        %1479 = vmatmul.mubr.bf16.gmra.mrb[0].mxu0 %v1441
        %v1480 = vpop.f32.mrb[0].mxu0
        %v1481 = vadd.f32 %v771, %v1480
        %v1482 = vpop.f32.mrb[0].mxu0
        %v1483 = vpop.f32.mrb[0].mxu0
        %v1484 = vpop.f32.mrb[0].mxu0
        %1485 = vdwg.mxu0
        %v1486 = vsel %vm1150, %v1481, -inf
        %1487 = vmax.xlane.f32.xlu0 %v1486
        %v1488 = vpop.xlane.xlu0 %1487
        %v1489 = vsub.f32 %v1481, %v1488
        %v1490 = vmul.f32 %v1489, 1.442695
        %v1491 = vpow.pop %v1490
        %v1492 = vsel %vm1150, %v1491, 0.0
        %1493 = vadd.xlane.f32.xlu0 %v1492
        %v1494 = vpop.xlane.xlu0 %1493
        %v1495 = vrcp.pop %v1494
        %v1496 = vmul.f32 %v1491, %v1495
        %v1497 = vpack.c.bf16 %v1496, %v1496
        %1498 = vrot.lane.b32.xlu0 %v1163, 64
        %v1499 = vpop.permute.xlu0 %1498
        %v1501 = vsel %vm1150, %v1497, 0
        %v1504 = vsel %vm1167, %v1499, 0
        %1506 = vmatprep.subr.bf16.mxu0 0
        %1507 = vmatpush1.bf16.msra.mxu0 %v1504
        %1508 = vmatprep.subr.bf16.mxu0 0
        %1509 = vmatpush1.bf16.msra.mxu0 0
        %1510 = vmatprep.subr.bf16.mxu0 0
        %1511 = vmatpush1.bf16.msra.mxu0 0
        %1512 = vmatprep.subr.bf16.mxu0 0
        %1513 = vmatpush1.bf16.msra.mxu0 0
        %1514 = vmatprep.subr.bf16.mxu0 0
        %1515 = vmatpush1.bf16.msra.mxu0 0
        %1516 = vmatprep.subr.bf16.mxu0 0
        %1517 = vmatpush1.bf16.msra.mxu0 0
        %1518 = vmatprep.subr.bf16.mxu0 0
        %1519 = vmatpush1.bf16.msra.mxu0 0
        %1520 = vmatprep.subr.bf16.mxu0 0
        %1521 = vmatpush1.bf16.msra.mxu0 0
        %1522 = vmatprep.subr.bf16.mxu0 0
        %1523 = vmatpush1.bf16.msra.mxu0 0
        %1524 = vmatprep.subr.bf16.mxu0 0
        %1525 = vmatpush1.bf16.msra.mxu0 0
        %1526 = vmatprep.subr.bf16.mxu0 0
        %1527 = vmatpush1.bf16.msra.mxu0 0
        %1528 = vmatprep.subr.bf16.mxu0 0
        %1529 = vmatpush1.bf16.msra.mxu0 0
        %1530 = vmatprep.subr.bf16.mxu0 0
        %1531 = vmatpush1.bf16.msra.mxu0 0
        %1532 = vmatprep.subr.bf16.mxu0 0
        %1533 = vmatpush1.bf16.msra.mxu0 0
        %1534 = vmatprep.subr.bf16.mxu0 0
        %1535 = vmatpush1.bf16.msra.mxu0 0
        %1536 = vmatprep.subr.bf16.mxu0 0
        %1537 = vmatpush1.bf16.msra.mxu0 0
        %1538 = vmatprep.mubr.bf16.mxu0 0
        %1539 = vmatmul.mubr.bf16.gmra.mrb[0].mxu0 %v1501
        %v1540 = vpop.f32.mrb[0].mxu0
        %v1541 = vadd.f32 0.0, %v1540
        %v1542 = vpop.f32.mrb[0].mxu0
        %v1543 = vpop.f32.mrb[0].mxu0
        %v1544 = vpop.f32.mrb[0].mxu0
        %1545 = vdwg.mxu0
        %v1546 = vpack.c.bf16 %v1541, %v1541
        %v1551 = vunpack.c.l.b16 %v1093
        %v1552 = vunpack.c.l.b16 %v1094
        %v1553 = vunpack.c.l.b16 %v1095
        %v1554 = vunpack.c.l.b16 %v1096
        %v1555 = vpack.c.b16 %v1552, %v1551
        %v1556 = vpack.c.b16 %v1554, %v1553
        %v1560 = vsel %vm1103, %v1546, 0
        %1562 = vmatprep.subr.bf16.mxu0 0
        %1563 = vmatpush1.bf16.msra.mxu0 %v1555
        %1564 = vmatprep.subr.bf16.mxu0 0
        %1565 = vmatpush1.bf16.msra.mxu0 %v1556
        %1566 = vmatprep.subr.bf16.mxu0 0
        %1567 = vmatpush1.bf16.msra.mxu0 0
        %1568 = vmatprep.subr.bf16.mxu0 0
        %1569 = vmatpush1.bf16.msra.mxu0 0
        %1570 = vmatprep.subr.bf16.mxu0 0
        %1571 = vmatpush1.bf16.msra.mxu0 0
        %1572 = vmatprep.subr.bf16.mxu0 0
        %1573 = vmatpush1.bf16.msra.mxu0 0
        %1574 = vmatprep.subr.bf16.mxu0 0
        %1575 = vmatpush1.bf16.msra.mxu0 0
        %1576 = vmatprep.subr.bf16.mxu0 0
        %1577 = vmatpush1.bf16.msra.mxu0 0
        %1578 = vmatprep.subr.bf16.mxu0 0
        %1579 = vmatpush1.bf16.msra.mxu0 0
        %1580 = vmatprep.subr.bf16.mxu0 0
        %1581 = vmatpush1.bf16.msra.mxu0 0
        %1582 = vmatprep.subr.bf16.mxu0 0
        %1583 = vmatpush1.bf16.msra.mxu0 0
        %1584 = vmatprep.subr.bf16.mxu0 0
        %1585 = vmatpush1.bf16.msra.mxu0 0
        %1586 = vmatprep.subr.bf16.mxu0 0
        %1587 = vmatpush1.bf16.msra.mxu0 0
        %1588 = vmatprep.subr.bf16.mxu0 0
        %1589 = vmatpush1.bf16.msra.mxu0 0
        %1590 = vmatprep.subr.bf16.mxu0 0
        %1591 = vmatpush1.bf16.msra.mxu0 0
        %1592 = vmatprep.subr.bf16.mxu0 0
        %1593 = vmatpush1.bf16.msra.mxu0 0
        %1594 = vmatprep.mubr.bf16.mxu0 0
        %1595 = vmatmul.mubr.bf16.gmra.mrb[0].mxu0 %v1560
        %v1596 = vpop.f32.mrb[0].mxu0
        %v1597 = vadd.f32 0.0, %v1596
        %v1598 = vpop.f32.mrb[0].mxu0
        %v1599 = vpop.f32.mrb[0].mxu0
        %v1600 = vpop.f32.mrb[0].mxu0
        %1601 = vdwg.mxu0
        %v1602 = vadd.f32 %v1431, %v1597
        %1603 = vrot.lane.b32.xlu0 %v1101, 32
        %v1604 = vpop.permute.xlu0 %1603
        %1605 = vrot.lane.b32.xlu0 %v1102, 32
        %v1606 = vpop.permute.xlu0 %1605
        %v1608 = vsel %vm1103, %v1604, 0
        %v1611 = vsel %vm1103, %v1606, 0
        %1613 = vmatprep.subr.bf16.mxu0 0
        %1614 = vmatpush1.bf16.xpose.msra.mxu0 %v1611
        %1615 = vmatprep.subr.bf16.mxu0 0
        %1616 = vmatpush1.bf16.xpose.msra.mxu0 0
        %1617 = vmatprep.subr.bf16.mxu0 0
        %1618 = vmatpush1.bf16.xpose.msra.mxu0 0
        %1619 = vmatprep.subr.bf16.mxu0 0
        %1620 = vmatpush1.bf16.xpose.msra.mxu0 0
        %1621 = vmatprep.subr.bf16.mxu0 0
        %1622 = vmatpush1.bf16.xpose.msra.mxu0 0
        %1623 = vmatprep.subr.bf16.mxu0 0
        %1624 = vmatpush1.bf16.xpose.msra.mxu0 0
        %1625 = vmatprep.subr.bf16.mxu0 0
        %1626 = vmatpush1.bf16.xpose.msra.mxu0 0
        %1627 = vmatprep.subr.bf16.mxu0 0
        %1628 = vmatpush1.bf16.xpose.msra.mxu0 0
        %1629 = vmatprep.subr.bf16.mxu0 0
        %1630 = vmatpush1.bf16.xpose.msra.mxu0 0
        %1631 = vmatprep.subr.bf16.mxu0 0
        %1632 = vmatpush1.bf16.xpose.msra.mxu0 0
        %1633 = vmatprep.subr.bf16.mxu0 0
        %1634 = vmatpush1.bf16.xpose.msra.mxu0 0
        %1635 = vmatprep.subr.bf16.mxu0 0
        %1636 = vmatpush1.bf16.xpose.msra.mxu0 0
        %1637 = vmatprep.subr.bf16.mxu0 0
        %1638 = vmatpush1.bf16.xpose.msra.mxu0 0
        %1639 = vmatprep.subr.bf16.mxu0 0
        %1640 = vmatpush1.bf16.xpose.msra.mxu0 0
        %1641 = vmatprep.subr.bf16.mxu0 0
        %1642 = vmatpush1.bf16.xpose.msra.mxu0 0
        %1643 = vmatprep.subr.bf16.mxu0 0
        %1644 = vmatpush1.bf16.xpose.msra.mxu0 0
        %1645 = vmatprep.mubr.bf16.mxu0 0
        %1646 = vmatmul.mubr.bf16.gmra.mrb[0].mxu0 %v1608
        %v1647 = vpop.f32.mrb[0].mxu0
        %v1648 = vadd.f32 %v771, %v1647
        %v1649 = vpop.f32.mrb[0].mxu0
        %v1650 = vpop.f32.mrb[0].mxu0
        %v1651 = vpop.f32.mrb[0].mxu0
        %1652 = vdwg.mxu0
        %v1653 = vsel %vm1150, %v1648, -inf
        %1654 = vmax.xlane.f32.xlu0 %v1653
        %v1655 = vpop.xlane.xlu0 %1654
        %v1656 = vsub.f32 %v1648, %v1655
        %v1657 = vmul.f32 %v1656, 1.442695
        %v1658 = vpow.pop %v1657
        %v1659 = vsel %vm1150, %v1658, 0.0
        %1660 = vadd.xlane.f32.xlu0 %v1659
        %v1661 = vpop.xlane.xlu0 %1660
        %v1662 = vrcp.pop %v1661
        %v1663 = vmul.f32 %v1658, %v1662
        %v1664 = vpack.c.bf16 %v1663, %v1663
        %1665 = vrot.lane.b32.xlu0 %v1163, 32
        %v1666 = vpop.permute.xlu0 %1665
        %v1668 = vsel %vm1150, %v1664, 0
        %v1671 = vsel %vm1167, %v1666, 0
        %1673 = vmatprep.subr.bf16.mxu0 0
        %1674 = vmatpush1.bf16.msra.mxu0 %v1671
        %1675 = vmatprep.subr.bf16.mxu0 0
        %1676 = vmatpush1.bf16.msra.mxu0 0
        %1677 = vmatprep.subr.bf16.mxu0 0
        %1678 = vmatpush1.bf16.msra.mxu0 0
        %1679 = vmatprep.subr.bf16.mxu0 0
        %1680 = vmatpush1.bf16.msra.mxu0 0
        %1681 = vmatprep.subr.bf16.mxu0 0
        %1682 = vmatpush1.bf16.msra.mxu0 0
        %1683 = vmatprep.subr.bf16.mxu0 0
        %1684 = vmatpush1.bf16.msra.mxu0 0
        %1685 = vmatprep.subr.bf16.mxu0 0
        %1686 = vmatpush1.bf16.msra.mxu0 0
        %1687 = vmatprep.subr.bf16.mxu0 0
        %1688 = vmatpush1.bf16.msra.mxu0 0
        %1689 = vmatprep.subr.bf16.mxu0 0
        %1690 = vmatpush1.bf16.msra.mxu0 0
        %1691 = vmatprep.subr.bf16.mxu0 0
        %1692 = vmatpush1.bf16.msra.mxu0 0
        %1693 = vmatprep.subr.bf16.mxu0 0
        %1694 = vmatpush1.bf16.msra.mxu0 0
        %1695 = vmatprep.subr.bf16.mxu0 0
        %1696 = vmatpush1.bf16.msra.mxu0 0
        %1697 = vmatprep.subr.bf16.mxu0 0
        %1698 = vmatpush1.bf16.msra.mxu0 0
        %1699 = vmatprep.subr.bf16.mxu0 0
        %1700 = vmatpush1.bf16.msra.mxu0 0
        %1701 = vmatprep.subr.bf16.mxu0 0
        %1702 = vmatpush1.bf16.msra.mxu0 0
        %1703 = vmatprep.subr.bf16.mxu0 0
        %1704 = vmatpush1.bf16.msra.mxu0 0
        %1705 = vmatprep.mubr.bf16.mxu0 0
        %1706 = vmatmul.mubr.bf16.gmra.mrb[0].mxu0 %v1668
        %v1707 = vpop.f32.mrb[0].mxu0
        %v1708 = vadd.f32 0.0, %v1707
        %v1709 = vpop.f32.mrb[0].mxu0
        %v1710 = vpop.f32.mrb[0].mxu0
        %v1711 = vpop.f32.mrb[0].mxu0
        %1712 = vdwg.mxu0
        %v1713 = vpack.c.bf16 %v1708, %v1708
        %v1718 = vunpack.c.l.b16 %v1097
        %v1719 = vunpack.c.l.b16 %v1098
        %v1720 = vunpack.c.l.b16 %v1099
        %v1721 = vunpack.c.l.b16 %v1100
        %v1722 = vpack.c.b16 %v1719, %v1718
        %v1723 = vpack.c.b16 %v1721, %v1720
        %v1727 = vsel %vm1103, %v1713, 0
        %1729 = vmatprep.subr.bf16.mxu0 0
        %1730 = vmatpush1.bf16.msra.mxu0 %v1722
        %1731 = vmatprep.subr.bf16.mxu0 0
        %1732 = vmatpush1.bf16.msra.mxu0 %v1723
        %1733 = vmatprep.subr.bf16.mxu0 0
        %1734 = vmatpush1.bf16.msra.mxu0 0
        %1735 = vmatprep.subr.bf16.mxu0 0
        %1736 = vmatpush1.bf16.msra.mxu0 0
        %1737 = vmatprep.subr.bf16.mxu0 0
        %1738 = vmatpush1.bf16.msra.mxu0 0
        %1739 = vmatprep.subr.bf16.mxu0 0
        %1740 = vmatpush1.bf16.msra.mxu0 0
        %1741 = vmatprep.subr.bf16.mxu0 0
        %1742 = vmatpush1.bf16.msra.mxu0 0
        %1743 = vmatprep.subr.bf16.mxu0 0
        %1744 = vmatpush1.bf16.msra.mxu0 0
        %1745 = vmatprep.subr.bf16.mxu0 0
        %1746 = vmatpush1.bf16.msra.mxu0 0
        %1747 = vmatprep.subr.bf16.mxu0 0
        %1748 = vmatpush1.bf16.msra.mxu0 0
        %1749 = vmatprep.subr.bf16.mxu0 0
        %1750 = vmatpush1.bf16.msra.mxu0 0
        %1751 = vmatprep.subr.bf16.mxu0 0
        %1752 = vmatpush1.bf16.msra.mxu0 0
        %1753 = vmatprep.subr.bf16.mxu0 0
        %1754 = vmatpush1.bf16.msra.mxu0 0
        %1755 = vmatprep.subr.bf16.mxu0 0
        %1756 = vmatpush1.bf16.msra.mxu0 0
        %1757 = vmatprep.subr.bf16.mxu0 0
        %1758 = vmatpush1.bf16.msra.mxu0 0
        %1759 = vmatprep.subr.bf16.mxu0 0
        %1760 = vmatpush1.bf16.msra.mxu0 0
        %1761 = vmatprep.mubr.bf16.mxu0 0
        %1762 = vmatmul.mubr.bf16.gmra.mrb[0].mxu0 %v1727
        %v1763 = vpop.f32.mrb[0].mxu0
        %v1764 = vadd.f32 0.0, %v1763
        %v1765 = vpop.f32.mrb[0].mxu0
        %v1766 = vpop.f32.mrb[0].mxu0
        %v1767 = vpop.f32.mrb[0].mxu0
        %1768 = vdwg.mxu0
        %v1769 = vadd.f32 %v1602, %v1764
        %v1770 = vld [vmem:[%s8] sm:$0x1]
        %v1772 = vlaneseq
        %v1773 = vshrl.u32 %v1772, 7
        %v1774 = vsub.s32 0, %v1773
        %v1775 = vrot.slane %v1770, %v1774
        %v1777 = vadd.f32 %v1769, %v1775
        %v1778 = vadd.f32 %v1777, %v768
        %1779 = vadd.xlane.f32.xlu0 %v1778
        %v1780 = vpop.xlane.xlu0 %1779
        %v1781 = vrcp.pop 128.0
        %v1782 = vmul.f32 %v1780, %v1781
        %v1783 = vsub.f32 %v1778, %v1782
        %v1784 = vmul.f32 %v1783, %v1783
        %1785 = vadd.xlane.f32.xlu0 %v1784
        %v1786 = vpop.xlane.xlu0 %1785
        %v1787 = vmul.f32 %v1786, %v1781
        %v1788 = vadd.f32 %v1787, 1e-05
        %v1789 = vrsqrt.pop %v1788
        %v1790 = vmul.f32 %v1783, %v1789
        %v1791 = vld [vmem:[%s9] sm:$0x1]
        %v1793 = vlaneseq
        %v1794 = vshrl.u32 %v1793, 7
        %v1795 = vsub.s32 0, %v1794
        %v1796 = vrot.slane %v1791, %v1795
        %v1798 = vmul.f32 %v1790, %v1796
        %v1799 = vld [vmem:[%s10] sm:$0x1]
        %v1801 = vlaneseq
        %v1802 = vshrl.u32 %v1801, 7
        %v1803 = vsub.s32 0, %v1802
        %v1804 = vrot.slane %v1799, %v1803
        %v1806 = vadd.f32 %v1798, %v1804
        %v1807 = vpack.c.bf16 %v770, %v770
        %v1808 = vld [vmem:[%s11] sm:$0xf]
        %v1809 = vld [vmem:[%s11 + $0x4] sm:$0xf]
        %v1810 = vld [vmem:[%s11 + $0x8] sm:$0xf]
        %v1811 = vld [vmem:[%s11 + $0xc] sm:$0xf]
        %v1812 = vld [vmem:[%s11 + $0x10] sm:$0xf]
        %v1813 = vld [vmem:[%s11 + $0x14] sm:$0xf]
        %v1814 = vld [vmem:[%s11 + $0x18] sm:$0xf]
        %v1815 = vld [vmem:[%s11 + $0x1c] sm:$0xf]
        %v1816 = vld [vmem:[%s11 + $0x20] sm:$0xf]
        %v1817 = vld [vmem:[%s11 + $0x24] sm:$0xf]
        %v1818 = vld [vmem:[%s11 + $0x28] sm:$0xf]
        %v1819 = vld [vmem:[%s11 + $0x2c] sm:$0xf]
        %v1820 = vld [vmem:[%s11 + $0x30] sm:$0xf]
        %v1821 = vld [vmem:[%s11 + $0x34] sm:$0xf]
        %v1822 = vld [vmem:[%s11 + $0x38] sm:$0xf]
        %v1823 = vld [vmem:[%s11 + $0x3c] sm:$0xf]
        %v1840 = vunpack.c.l.b16 %v1808
        %v1841 = vunpack.c.l.b16 %v1809
        %v1842 = vunpack.c.l.b16 %v1810
        %v1843 = vunpack.c.l.b16 %v1811
        %v1844 = vunpack.c.l.b16 %v1812
        %v1845 = vunpack.c.l.b16 %v1813
        %v1846 = vunpack.c.l.b16 %v1814
        %v1847 = vunpack.c.l.b16 %v1815
        %v1848 = vunpack.c.l.b16 %v1816
        %v1849 = vunpack.c.l.b16 %v1817
        %v1850 = vunpack.c.l.b16 %v1818
        %v1851 = vunpack.c.l.b16 %v1819
        %v1852 = vunpack.c.l.b16 %v1820
        %v1853 = vunpack.c.l.b16 %v1821
        %v1854 = vunpack.c.l.b16 %v1822
        %v1855 = vunpack.c.l.b16 %v1823
        %v1856 = vpack.c.b16 %v1841, %v1840
        %v1857 = vpack.c.b16 %v1843, %v1842
        %v1858 = vpack.c.b16 %v1845, %v1844
        %v1859 = vpack.c.b16 %v1847, %v1846
        %v1860 = vpack.c.b16 %v1849, %v1848
        %v1861 = vpack.c.b16 %v1851, %v1850
        %v1862 = vpack.c.b16 %v1853, %v1852
        %v1863 = vpack.c.b16 %v1855, %v1854
        %1872 = vmatprep.subr.bf16.mxu0 0
        %1873 = vmatpush1.bf16.msra.mxu0 %v1856
        %1874 = vmatprep.subr.bf16.mxu0 0
        %1875 = vmatpush1.bf16.msra.mxu0 %v1857
        %1876 = vmatprep.subr.bf16.mxu0 0
        %1877 = vmatpush1.bf16.msra.mxu0 %v1858
        %1878 = vmatprep.subr.bf16.mxu0 0
        %1879 = vmatpush1.bf16.msra.mxu0 %v1859
        %1880 = vmatprep.subr.bf16.mxu0 0
        %1881 = vmatpush1.bf16.msra.mxu0 %v1860
        %1882 = vmatprep.subr.bf16.mxu0 0
        %1883 = vmatpush1.bf16.msra.mxu0 %v1861
        %1884 = vmatprep.subr.bf16.mxu0 0
        %1885 = vmatpush1.bf16.msra.mxu0 %v1862
        %1886 = vmatprep.subr.bf16.mxu0 0
        %1887 = vmatpush1.bf16.msra.mxu0 %v1863
        %1888 = vmatprep.subr.bf16.mxu0 0
        %1889 = vmatpush1.bf16.msra.mxu0 0
        %1890 = vmatprep.subr.bf16.mxu0 0
        %1891 = vmatpush1.bf16.msra.mxu0 0
        %1892 = vmatprep.subr.bf16.mxu0 0
        %1893 = vmatpush1.bf16.msra.mxu0 0
        %1894 = vmatprep.subr.bf16.mxu0 0
        %1895 = vmatpush1.bf16.msra.mxu0 0
        %1896 = vmatprep.subr.bf16.mxu0 0
        %1897 = vmatpush1.bf16.msra.mxu0 0
        %1898 = vmatprep.subr.bf16.mxu0 0
        %1899 = vmatpush1.bf16.msra.mxu0 0
        %1900 = vmatprep.subr.bf16.mxu0 0
        %1901 = vmatpush1.bf16.msra.mxu0 0
        %1902 = vmatprep.subr.bf16.mxu0 0
        %1903 = vmatpush1.bf16.msra.mxu0 0
        %1904 = vmatprep.mubr.bf16.mxu0 0
        %1905 = vmatmul.mubr.bf16.gmra.mrb[0].mxu0 %v1807
        %v1906 = vpop.f32.mrb[0].mxu0
        %v1907 = vadd.f32 0.0, %v1906
        %v1908 = vpop.f32.mrb[0].mxu0
        %v1909 = vpop.f32.mrb[0].mxu0
        %v1910 = vpop.f32.mrb[0].mxu0
        %1911 = vdwg.mxu0
        %v1912 = vpack.c.bf16 %v769, %v769
        %v1913 = vld [vmem:[%s12] sm:$0xf]
        %v1914 = vld [vmem:[%s12 + $0x4] sm:$0xf]
        %v1915 = vld [vmem:[%s12 + $0x8] sm:$0xf]
        %v1916 = vld [vmem:[%s12 + $0xc] sm:$0xf]
        %v1917 = vld [vmem:[%s12 + $0x10] sm:$0xf]
        %v1918 = vld [vmem:[%s12 + $0x14] sm:$0xf]
        %v1919 = vld [vmem:[%s12 + $0x18] sm:$0xf]
        %v1920 = vld [vmem:[%s12 + $0x1c] sm:$0xf]
        %v1921 = vld [vmem:[%s12 + $0x20] sm:$0xf]
        %v1922 = vld [vmem:[%s12 + $0x24] sm:$0xf]
        %v1923 = vld [vmem:[%s12 + $0x28] sm:$0xf]
        %v1924 = vld [vmem:[%s12 + $0x2c] sm:$0xf]
        %v1925 = vld [vmem:[%s12 + $0x30] sm:$0xf]
        %v1926 = vld [vmem:[%s12 + $0x34] sm:$0xf]
        %v1927 = vld [vmem:[%s12 + $0x38] sm:$0xf]
        %v1928 = vld [vmem:[%s12 + $0x3c] sm:$0xf]
        %v1945 = vunpack.c.l.b16 %v1913
        %v1946 = vunpack.c.l.b16 %v1914
        %v1947 = vunpack.c.l.b16 %v1915
        %v1948 = vunpack.c.l.b16 %v1916
        %v1949 = vunpack.c.l.b16 %v1917
        %v1950 = vunpack.c.l.b16 %v1918
        %v1951 = vunpack.c.l.b16 %v1919
        %v1952 = vunpack.c.l.b16 %v1920
        %v1953 = vunpack.c.l.b16 %v1921
        %v1954 = vunpack.c.l.b16 %v1922
        %v1955 = vunpack.c.l.b16 %v1923
        %v1956 = vunpack.c.l.b16 %v1924
        %v1957 = vunpack.c.l.b16 %v1925
        %v1958 = vunpack.c.l.b16 %v1926
        %v1959 = vunpack.c.l.b16 %v1927
        %v1960 = vunpack.c.l.b16 %v1928
        %v1961 = vpack.c.b16 %v1946, %v1945
        %v1962 = vpack.c.b16 %v1948, %v1947
        %v1963 = vpack.c.b16 %v1950, %v1949
        %v1964 = vpack.c.b16 %v1952, %v1951
        %v1965 = vpack.c.b16 %v1954, %v1953
        %v1966 = vpack.c.b16 %v1956, %v1955
        %v1967 = vpack.c.b16 %v1958, %v1957
        %v1968 = vpack.c.b16 %v1960, %v1959
        %1977 = vmatprep.subr.bf16.mxu0 0
        %1978 = vmatpush1.bf16.msra.mxu0 %v1961
        %1979 = vmatprep.subr.bf16.mxu0 0
        %1980 = vmatpush1.bf16.msra.mxu0 %v1962
        %1981 = vmatprep.subr.bf16.mxu0 0
        %1982 = vmatpush1.bf16.msra.mxu0 %v1963
        %1983 = vmatprep.subr.bf16.mxu0 0
        %1984 = vmatpush1.bf16.msra.mxu0 %v1964
        %1985 = vmatprep.subr.bf16.mxu0 0
        %1986 = vmatpush1.bf16.msra.mxu0 %v1965
        %1987 = vmatprep.subr.bf16.mxu0 0
        %1988 = vmatpush1.bf16.msra.mxu0 %v1966
        %1989 = vmatprep.subr.bf16.mxu0 0
        %1990 = vmatpush1.bf16.msra.mxu0 %v1967
        %1991 = vmatprep.subr.bf16.mxu0 0
        %1992 = vmatpush1.bf16.msra.mxu0 %v1968
        %1993 = vmatprep.subr.bf16.mxu0 0
        %1994 = vmatpush1.bf16.msra.mxu0 0
        %1995 = vmatprep.subr.bf16.mxu0 0
        %1996 = vmatpush1.bf16.msra.mxu0 0
        %1997 = vmatprep.subr.bf16.mxu0 0
        %1998 = vmatpush1.bf16.msra.mxu0 0
        %1999 = vmatprep.subr.bf16.mxu0 0
        %2000 = vmatpush1.bf16.msra.mxu0 0
        %2001 = vmatprep.subr.bf16.mxu0 0
        %2002 = vmatpush1.bf16.msra.mxu0 0
        %2003 = vmatprep.subr.bf16.mxu0 0
        %2004 = vmatpush1.bf16.msra.mxu0 0
        %2005 = vmatprep.subr.bf16.mxu0 0
        %2006 = vmatpush1.bf16.msra.mxu0 0
        %2007 = vmatprep.subr.bf16.mxu0 0
        %2008 = vmatpush1.bf16.msra.mxu0 0
        %2009 = vmatprep.mubr.bf16.mxu0 0
        %2010 = vmatmul.mubr.bf16.gmra.mrb[0].mxu0 %v1912
        %v2011 = vpop.f32.mrb[0].mxu0
        %v2012 = vadd.f32 0.0, %v2011
        %v2013 = vpop.f32.mrb[0].mxu0
        %v2014 = vpop.f32.mrb[0].mxu0
        %v2015 = vpop.f32.mrb[0].mxu0
        %2016 = vdwg.mxu0
        %v2017 = vpack.c.bf16 %v1806, %v1806
        %v2018 = vld [vmem:[%s13] sm:$0xf]
        %v2019 = vld [vmem:[%s13 + $0x4] sm:$0xf]
        %v2020 = vld [vmem:[%s13 + $0x8] sm:$0xf]
        %v2021 = vld [vmem:[%s13 + $0xc] sm:$0xf]
        %v2022 = vld [vmem:[%s13 + $0x10] sm:$0xf]
        %v2023 = vld [vmem:[%s13 + $0x14] sm:$0xf]
        %v2024 = vld [vmem:[%s13 + $0x18] sm:$0xf]
        %v2025 = vld [vmem:[%s13 + $0x1c] sm:$0xf]
        %v2026 = vld [vmem:[%s13 + $0x20] sm:$0xf]
        %v2027 = vld [vmem:[%s13 + $0x24] sm:$0xf]
        %v2028 = vld [vmem:[%s13 + $0x28] sm:$0xf]
        %v2029 = vld [vmem:[%s13 + $0x2c] sm:$0xf]
        %v2030 = vld [vmem:[%s13 + $0x30] sm:$0xf]
        %v2031 = vld [vmem:[%s13 + $0x34] sm:$0xf]
        %v2032 = vld [vmem:[%s13 + $0x38] sm:$0xf]
        %v2033 = vld [vmem:[%s13 + $0x3c] sm:$0xf]
        %v2050 = vunpack.c.l.b16 %v2018
        %v2051 = vunpack.c.l.b16 %v2019
        %v2052 = vunpack.c.l.b16 %v2020
        %v2053 = vunpack.c.l.b16 %v2021
        %v2054 = vunpack.c.l.b16 %v2022
        %v2055 = vunpack.c.l.b16 %v2023
        %v2056 = vunpack.c.l.b16 %v2024
        %v2057 = vunpack.c.l.b16 %v2025
        %v2058 = vunpack.c.l.b16 %v2026
        %v2059 = vunpack.c.l.b16 %v2027
        %v2060 = vunpack.c.l.b16 %v2028
        %v2061 = vunpack.c.l.b16 %v2029
        %v2062 = vunpack.c.l.b16 %v2030
        %v2063 = vunpack.c.l.b16 %v2031
        %v2064 = vunpack.c.l.b16 %v2032
        %v2065 = vunpack.c.l.b16 %v2033
        %v2066 = vpack.c.b16 %v2051, %v2050
        %v2067 = vpack.c.b16 %v2053, %v2052
        %v2068 = vpack.c.b16 %v2055, %v2054
        %v2069 = vpack.c.b16 %v2057, %v2056
        %v2070 = vpack.c.b16 %v2059, %v2058
        %v2071 = vpack.c.b16 %v2061, %v2060
        %v2072 = vpack.c.b16 %v2063, %v2062
        %v2073 = vpack.c.b16 %v2065, %v2064
        %2082 = vmatprep.subr.bf16.mxu0 0
        %2083 = vmatpush1.bf16.msra.mxu0 %v2066
        %2084 = vmatprep.subr.bf16.mxu0 0
        %2085 = vmatpush1.bf16.msra.mxu0 %v2067
        %2086 = vmatprep.subr.bf16.mxu0 0
        %2087 = vmatpush1.bf16.msra.mxu0 %v2068
        %2088 = vmatprep.subr.bf16.mxu0 0
        %2089 = vmatpush1.bf16.msra.mxu0 %v2069
        %2090 = vmatprep.subr.bf16.mxu0 0
        %2091 = vmatpush1.bf16.msra.mxu0 %v2070
        %2092 = vmatprep.subr.bf16.mxu0 0
        %2093 = vmatpush1.bf16.msra.mxu0 %v2071
        %2094 = vmatprep.subr.bf16.mxu0 0
        %2095 = vmatpush1.bf16.msra.mxu0 %v2072
        %2096 = vmatprep.subr.bf16.mxu0 0
        %2097 = vmatpush1.bf16.msra.mxu0 %v2073
        %2098 = vmatprep.subr.bf16.mxu0 0
        %2099 = vmatpush1.bf16.msra.mxu0 0
        %2100 = vmatprep.subr.bf16.mxu0 0
        %2101 = vmatpush1.bf16.msra.mxu0 0
        %2102 = vmatprep.subr.bf16.mxu0 0
        %2103 = vmatpush1.bf16.msra.mxu0 0
        %2104 = vmatprep.subr.bf16.mxu0 0
        %2105 = vmatpush1.bf16.msra.mxu0 0
        %2106 = vmatprep.subr.bf16.mxu0 0
        %2107 = vmatpush1.bf16.msra.mxu0 0
        %2108 = vmatprep.subr.bf16.mxu0 0
        %2109 = vmatpush1.bf16.msra.mxu0 0
        %2110 = vmatprep.subr.bf16.mxu0 0
        %2111 = vmatpush1.bf16.msra.mxu0 0
        %2112 = vmatprep.subr.bf16.mxu0 0
        %2113 = vmatpush1.bf16.msra.mxu0 0
        %2114 = vmatprep.mubr.bf16.mxu0 0
        %2115 = vmatmul.mubr.bf16.gmra.mrb[0].mxu0 %v2017
        %v2116 = vpop.f32.mrb[0].mxu0
        %v2117 = vadd.f32 0.0, %v2116
        %v2118 = vpop.f32.mrb[0].mxu0
        %v2119 = vpop.f32.mrb[0].mxu0
        %v2120 = vpop.f32.mrb[0].mxu0
        %2121 = vdwg.mxu0
        %v2122 = vld [vmem:[%s14] sm:$0xf]
        %v2123 = vld [vmem:[%s14 + $0x4] sm:$0xf]
        %v2124 = vld [vmem:[%s14 + $0x8] sm:$0xf]
        %v2125 = vld [vmem:[%s14 + $0xc] sm:$0xf]
        %v2126 = vld [vmem:[%s14 + $0x10] sm:$0xf]
        %v2127 = vld [vmem:[%s14 + $0x14] sm:$0xf]
        %v2128 = vld [vmem:[%s14 + $0x18] sm:$0xf]
        %v2129 = vld [vmem:[%s14 + $0x1c] sm:$0xf]
        %v2130 = vld [vmem:[%s14 + $0x20] sm:$0xf]
        %v2131 = vld [vmem:[%s14 + $0x24] sm:$0xf]
        %v2132 = vld [vmem:[%s14 + $0x28] sm:$0xf]
        %v2133 = vld [vmem:[%s14 + $0x2c] sm:$0xf]
        %v2134 = vld [vmem:[%s14 + $0x30] sm:$0xf]
        %v2135 = vld [vmem:[%s14 + $0x34] sm:$0xf]
        %v2136 = vld [vmem:[%s14 + $0x38] sm:$0xf]
        %v2137 = vld [vmem:[%s14 + $0x3c] sm:$0xf]
        %v2138 = vpack.c.bf16 %v1907, %v1907
        %v2139 = vpack.c.bf16 %v2012, %v2012
        %v2141 = vsel %vm1103, %v2138, 0
        %v2144 = vsel %vm1103, %v2139, 0
        %2146 = vmatprep.subr.bf16.mxu0 0
        %2147 = vmatpush1.bf16.xpose.msra.mxu0 %v2144
        %2148 = vmatprep.subr.bf16.mxu0 0
        %2149 = vmatpush1.bf16.xpose.msra.mxu0 0
        %2150 = vmatprep.subr.bf16.mxu0 0
        %2151 = vmatpush1.bf16.xpose.msra.mxu0 0
        %2152 = vmatprep.subr.bf16.mxu0 0
        %2153 = vmatpush1.bf16.xpose.msra.mxu0 0
        %2154 = vmatprep.subr.bf16.mxu0 0
        %2155 = vmatpush1.bf16.xpose.msra.mxu0 0
        %2156 = vmatprep.subr.bf16.mxu0 0
        %2157 = vmatpush1.bf16.xpose.msra.mxu0 0
        %2158 = vmatprep.subr.bf16.mxu0 0
        %2159 = vmatpush1.bf16.xpose.msra.mxu0 0
        %2160 = vmatprep.subr.bf16.mxu0 0
        %2161 = vmatpush1.bf16.xpose.msra.mxu0 0
        %2162 = vmatprep.subr.bf16.mxu0 0
        %2163 = vmatpush1.bf16.xpose.msra.mxu0 0
        %2164 = vmatprep.subr.bf16.mxu0 0
        %2165 = vmatpush1.bf16.xpose.msra.mxu0 0
        %2166 = vmatprep.subr.bf16.mxu0 0
        %2167 = vmatpush1.bf16.xpose.msra.mxu0 0
        %2168 = vmatprep.subr.bf16.mxu0 0
        %2169 = vmatpush1.bf16.xpose.msra.mxu0 0
        %2170 = vmatprep.subr.bf16.mxu0 0
        %2171 = vmatpush1.bf16.xpose.msra.mxu0 0
        %2172 = vmatprep.subr.bf16.mxu0 0
        %2173 = vmatpush1.bf16.xpose.msra.mxu0 0
        %2174 = vmatprep.subr.bf16.mxu0 0
        %2175 = vmatpush1.bf16.xpose.msra.mxu0 0
        %2176 = vmatprep.subr.bf16.mxu0 0
        %2177 = vmatpush1.bf16.xpose.msra.mxu0 0
        %2178 = vmatprep.mubr.bf16.mxu0 0
        %2179 = vmatmul.mubr.bf16.gmra.mrb[0].mxu0 %v2141
        %v2180 = vpop.f32.mrb[0].mxu0
        %v2181 = vadd.f32 0.0, %v2180
        %v2182 = vpop.f32.mrb[0].mxu0
        %v2183 = vpop.f32.mrb[0].mxu0
        %v2184 = vpop.f32.mrb[0].mxu0
        %2185 = vdwg.mxu0
        %v2186 = vsel %vm1150, %v2181, -inf
        %2187 = vmax.xlane.f32.xlu0 %v2186
        %v2188 = vpop.xlane.xlu0 %2187
        %v2189 = vsub.f32 %v2181, %v2188
        %v2190 = vmul.f32 %v2189, 1.442695
        %v2191 = vpow.pop %v2190
        %v2192 = vsel %vm1150, %v2191, 0.0
        %2193 = vadd.xlane.f32.xlu0 %v2192
        %v2194 = vpop.xlane.xlu0 %2193
        %v2195 = vrcp.pop %v2194
        %v2196 = vmul.f32 %v2191, %v2195
        %v2197 = vpack.c.bf16 %v2196, %v2196
        %v2198 = vpack.c.bf16 %v2117, %v2117
        %v2200 = vsel %vm1150, %v2197, 0
        %v2203 = vsel %vm1167, %v2198, 0
        %2205 = vmatprep.subr.bf16.mxu0 0
        %2206 = vmatpush1.bf16.msra.mxu0 %v2203
        %2207 = vmatprep.subr.bf16.mxu0 0
        %2208 = vmatpush1.bf16.msra.mxu0 0
        %2209 = vmatprep.subr.bf16.mxu0 0
        %2210 = vmatpush1.bf16.msra.mxu0 0
        %2211 = vmatprep.subr.bf16.mxu0 0
        %2212 = vmatpush1.bf16.msra.mxu0 0
        %2213 = vmatprep.subr.bf16.mxu0 0
        %2214 = vmatpush1.bf16.msra.mxu0 0
        %2215 = vmatprep.subr.bf16.mxu0 0
        %2216 = vmatpush1.bf16.msra.mxu0 0
        %2217 = vmatprep.subr.bf16.mxu0 0
        %2218 = vmatpush1.bf16.msra.mxu0 0
        %2219 = vmatprep.subr.bf16.mxu0 0
        %2220 = vmatpush1.bf16.msra.mxu0 0
        %2221 = vmatprep.subr.bf16.mxu0 0
        %2222 = vmatpush1.bf16.msra.mxu0 0
        %2223 = vmatprep.subr.bf16.mxu0 0
        %2224 = vmatpush1.bf16.msra.mxu0 0
        %2225 = vmatprep.subr.bf16.mxu0 0
        %2226 = vmatpush1.bf16.msra.mxu0 0
        %2227 = vmatprep.subr.bf16.mxu0 0
        %2228 = vmatpush1.bf16.msra.mxu0 0
        %2229 = vmatprep.subr.bf16.mxu0 0
        %2230 = vmatpush1.bf16.msra.mxu0 0
        %2231 = vmatprep.subr.bf16.mxu0 0
        %2232 = vmatpush1.bf16.msra.mxu0 0
        %2233 = vmatprep.subr.bf16.mxu0 0
        %2234 = vmatpush1.bf16.msra.mxu0 0
        %2235 = vmatprep.subr.bf16.mxu0 0
        %2236 = vmatpush1.bf16.msra.mxu0 0
        %2237 = vmatprep.mubr.bf16.mxu0 0
        %2238 = vmatmul.mubr.bf16.gmra.mrb[0].mxu0 %v2200
        %v2239 = vpop.f32.mrb[0].mxu0
        %v2240 = vadd.f32 0.0, %v2239
        %v2241 = vpop.f32.mrb[0].mxu0
        %v2242 = vpop.f32.mrb[0].mxu0
        %v2243 = vpop.f32.mrb[0].mxu0
        %2244 = vdwg.mxu0
        %v2245 = vpack.c.bf16 %v2240, %v2240
        %2247 = vrot.lane.b32.xlu0 %v2138, 96
        %v2248 = vpop.permute.xlu0 %2247
        %2250 = vrot.lane.b32.xlu0 %v2139, 96
        %v2251 = vpop.permute.xlu0 %2250
        %v2253 = vsel %vm1103, %v2248, 0
        %v2256 = vsel %vm1103, %v2251, 0
        %2258 = vmatprep.subr.bf16.mxu0 0
        %2259 = vmatpush1.bf16.xpose.msra.mxu0 %v2256
        %2260 = vmatprep.subr.bf16.mxu0 0
        %2261 = vmatpush1.bf16.xpose.msra.mxu0 0
        %2262 = vmatprep.subr.bf16.mxu0 0
        %2263 = vmatpush1.bf16.xpose.msra.mxu0 0
        %2264 = vmatprep.subr.bf16.mxu0 0
        %2265 = vmatpush1.bf16.xpose.msra.mxu0 0
        %2266 = vmatprep.subr.bf16.mxu0 0
        %2267 = vmatpush1.bf16.xpose.msra.mxu0 0
        %2268 = vmatprep.subr.bf16.mxu0 0
        %2269 = vmatpush1.bf16.xpose.msra.mxu0 0
        %2270 = vmatprep.subr.bf16.mxu0 0
        %2271 = vmatpush1.bf16.xpose.msra.mxu0 0
        %2272 = vmatprep.subr.bf16.mxu0 0
        %2273 = vmatpush1.bf16.xpose.msra.mxu0 0
        %2274 = vmatprep.subr.bf16.mxu0 0
        %2275 = vmatpush1.bf16.xpose.msra.mxu0 0
        %2276 = vmatprep.subr.bf16.mxu0 0
        %2277 = vmatpush1.bf16.xpose.msra.mxu0 0
        %2278 = vmatprep.subr.bf16.mxu0 0
        %2279 = vmatpush1.bf16.xpose.msra.mxu0 0
        %2280 = vmatprep.subr.bf16.mxu0 0
        %2281 = vmatpush1.bf16.xpose.msra.mxu0 0
        %2282 = vmatprep.subr.bf16.mxu0 0
        %2283 = vmatpush1.bf16.xpose.msra.mxu0 0
        %2284 = vmatprep.subr.bf16.mxu0 0
        %2285 = vmatpush1.bf16.xpose.msra.mxu0 0
        %2286 = vmatprep.subr.bf16.mxu0 0
        %2287 = vmatpush1.bf16.xpose.msra.mxu0 0
        %2288 = vmatprep.subr.bf16.mxu0 0
        %2289 = vmatpush1.bf16.xpose.msra.mxu0 0
        %2290 = vmatprep.mubr.bf16.mxu0 0
        %2291 = vmatmul.mubr.bf16.gmra.mrb[0].mxu0 %v2253
        %v2292 = vpop.f32.mrb[0].mxu0
        %v2293 = vadd.f32 0.0, %v2292
        %v2294 = vpop.f32.mrb[0].mxu0
        %v2295 = vpop.f32.mrb[0].mxu0
        %v2296 = vpop.f32.mrb[0].mxu0
        %2297 = vdwg.mxu0
        %v2298 = vsel %vm1150, %v2293, -inf
        %2299 = vmax.xlane.f32.xlu0 %v2298
        %v2300 = vpop.xlane.xlu0 %2299
        %v2301 = vsub.f32 %v2293, %v2300
        %v2302 = vmul.f32 %v2301, 1.442695
        %v2303 = vpow.pop %v2302
        %v2304 = vsel %vm1150, %v2303, 0.0
        %2305 = vadd.xlane.f32.xlu0 %v2304
        %v2306 = vpop.xlane.xlu0 %2305
        %v2307 = vrcp.pop %v2306
        %v2308 = vmul.f32 %v2303, %v2307
        %v2309 = vpack.c.bf16 %v2308, %v2308
        %2311 = vrot.lane.b32.xlu0 %v2198, 96
        %v2312 = vpop.permute.xlu0 %2311
        %v2314 = vsel %vm1150, %v2309, 0
        %v2317 = vsel %vm1167, %v2312, 0
        %2319 = vmatprep.subr.bf16.mxu0 0
        %2320 = vmatpush1.bf16.msra.mxu0 %v2317
        %2321 = vmatprep.subr.bf16.mxu0 0
        %2322 = vmatpush1.bf16.msra.mxu0 0
        %2323 = vmatprep.subr.bf16.mxu0 0
        %2324 = vmatpush1.bf16.msra.mxu0 0
        %2325 = vmatprep.subr.bf16.mxu0 0
        %2326 = vmatpush1.bf16.msra.mxu0 0
        %2327 = vmatprep.subr.bf16.mxu0 0
        %2328 = vmatpush1.bf16.msra.mxu0 0
        %2329 = vmatprep.subr.bf16.mxu0 0
        %2330 = vmatpush1.bf16.msra.mxu0 0
        %2331 = vmatprep.subr.bf16.mxu0 0
        %2332 = vmatpush1.bf16.msra.mxu0 0
        %2333 = vmatprep.subr.bf16.mxu0 0
        %2334 = vmatpush1.bf16.msra.mxu0 0
        %2335 = vmatprep.subr.bf16.mxu0 0
        %2336 = vmatpush1.bf16.msra.mxu0 0
        %2337 = vmatprep.subr.bf16.mxu0 0
        %2338 = vmatpush1.bf16.msra.mxu0 0
        %2339 = vmatprep.subr.bf16.mxu0 0
        %2340 = vmatpush1.bf16.msra.mxu0 0
        %2341 = vmatprep.subr.bf16.mxu0 0
        %2342 = vmatpush1.bf16.msra.mxu0 0
        %2343 = vmatprep.subr.bf16.mxu0 0
        %2344 = vmatpush1.bf16.msra.mxu0 0
        %2345 = vmatprep.subr.bf16.mxu0 0
        %2346 = vmatpush1.bf16.msra.mxu0 0
        %2347 = vmatprep.subr.bf16.mxu0 0
        %2348 = vmatpush1.bf16.msra.mxu0 0
        %2349 = vmatprep.subr.bf16.mxu0 0
        %2350 = vmatpush1.bf16.msra.mxu0 0
        %2351 = vmatprep.mubr.bf16.mxu0 0
        %2352 = vmatmul.mubr.bf16.gmra.mrb[0].mxu0 %v2314
        %v2353 = vpop.f32.mrb[0].mxu0
        %v2354 = vadd.f32 0.0, %v2353
        %v2355 = vpop.f32.mrb[0].mxu0
        %v2356 = vpop.f32.mrb[0].mxu0
        %v2357 = vpop.f32.mrb[0].mxu0
        %2358 = vdwg.mxu0
        %v2359 = vpack.c.bf16 %v2354, %v2354
        %v2364 = vunpack.c.l.b16 %v2126
        %v2365 = vunpack.c.l.b16 %v2127
        %v2366 = vunpack.c.l.b16 %v2128
        %v2367 = vunpack.c.l.b16 %v2129
        %v2368 = vpack.c.b16 %v2365, %v2364
        %v2369 = vpack.c.b16 %v2367, %v2366
        %v2373 = vsel %vm1103, %v2359, 0
        %2375 = vmatprep.subr.bf16.mxu0 0
        %2376 = vmatpush1.bf16.msra.mxu0 %v2368
        %2377 = vmatprep.subr.bf16.mxu0 0
        %2378 = vmatpush1.bf16.msra.mxu0 %v2369
        %2379 = vmatprep.subr.bf16.mxu0 0
        %2380 = vmatpush1.bf16.msra.mxu0 0
        %2381 = vmatprep.subr.bf16.mxu0 0
        %2382 = vmatpush1.bf16.msra.mxu0 0
        %2383 = vmatprep.subr.bf16.mxu0 0
        %2384 = vmatpush1.bf16.msra.mxu0 0
        %2385 = vmatprep.subr.bf16.mxu0 0
        %2386 = vmatpush1.bf16.msra.mxu0 0
        %2387 = vmatprep.subr.bf16.mxu0 0
        %2388 = vmatpush1.bf16.msra.mxu0 0
        %2389 = vmatprep.subr.bf16.mxu0 0
        %2390 = vmatpush1.bf16.msra.mxu0 0
        %2391 = vmatprep.subr.bf16.mxu0 0
        %2392 = vmatpush1.bf16.msra.mxu0 0
        %2393 = vmatprep.subr.bf16.mxu0 0
        %2394 = vmatpush1.bf16.msra.mxu0 0
        %2395 = vmatprep.subr.bf16.mxu0 0
        %2396 = vmatpush1.bf16.msra.mxu0 0
        %2397 = vmatprep.subr.bf16.mxu0 0
        %2398 = vmatpush1.bf16.msra.mxu0 0
        %2399 = vmatprep.subr.bf16.mxu0 0
        %2400 = vmatpush1.bf16.msra.mxu0 0
        %2401 = vmatprep.subr.bf16.mxu0 0
        %2402 = vmatpush1.bf16.msra.mxu0 0
        %2403 = vmatprep.subr.bf16.mxu0 0
        %2404 = vmatpush1.bf16.msra.mxu0 0
        %2405 = vmatprep.subr.bf16.mxu0 0
        %2406 = vmatpush1.bf16.msra.mxu0 0
        %2407 = vmatprep.mubr.bf16.mxu0 0
        %2408 = vmatmul.mubr.bf16.gmra.mrb[0].mxu0 %v2373
        %v2409 = vpop.f32.mrb[0].mxu0
        %v2410 = vadd.f32 0.0, %v2409
        %v2411 = vpop.f32.mrb[0].mxu0
        %v2412 = vpop.f32.mrb[0].mxu0
        %v2413 = vpop.f32.mrb[0].mxu0
        %2414 = vdwg.mxu0
        %v2419 = vunpack.c.l.b16 %v2122
        %v2420 = vunpack.c.l.b16 %v2123
        %v2421 = vunpack.c.l.b16 %v2124
        %v2422 = vunpack.c.l.b16 %v2125
        %v2423 = vpack.c.b16 %v2420, %v2419
        %v2424 = vpack.c.b16 %v2422, %v2421
        %v2428 = vsel %vm1103, %v2245, 0
        %2430 = vmatprep.subr.bf16.mxu0 0
        %2431 = vmatpush1.bf16.msra.mxu0 %v2423
        %2432 = vmatprep.subr.bf16.mxu0 0
        %2433 = vmatpush1.bf16.msra.mxu0 %v2424
        %2434 = vmatprep.subr.bf16.mxu0 0
        %2435 = vmatpush1.bf16.msra.mxu0 0
        %2436 = vmatprep.subr.bf16.mxu0 0
        %2437 = vmatpush1.bf16.msra.mxu0 0
        %2438 = vmatprep.subr.bf16.mxu0 0
        %2439 = vmatpush1.bf16.msra.mxu0 0
        %2440 = vmatprep.subr.bf16.mxu0 0
        %2441 = vmatpush1.bf16.msra.mxu0 0
        %2442 = vmatprep.subr.bf16.mxu0 0
        %2443 = vmatpush1.bf16.msra.mxu0 0
        %2444 = vmatprep.subr.bf16.mxu0 0
        %2445 = vmatpush1.bf16.msra.mxu0 0
        %2446 = vmatprep.subr.bf16.mxu0 0
        %2447 = vmatpush1.bf16.msra.mxu0 0
        %2448 = vmatprep.subr.bf16.mxu0 0
        %2449 = vmatpush1.bf16.msra.mxu0 0
        %2450 = vmatprep.subr.bf16.mxu0 0
        %2451 = vmatpush1.bf16.msra.mxu0 0
        %2452 = vmatprep.subr.bf16.mxu0 0
        %2453 = vmatpush1.bf16.msra.mxu0 0
        %2454 = vmatprep.subr.bf16.mxu0 0
        %2455 = vmatpush1.bf16.msra.mxu0 0
        %2456 = vmatprep.subr.bf16.mxu0 0
        %2457 = vmatpush1.bf16.msra.mxu0 0
        %2458 = vmatprep.subr.bf16.mxu0 0
        %2459 = vmatpush1.bf16.msra.mxu0 0
        %2460 = vmatprep.subr.bf16.mxu0 0
        %2461 = vmatpush1.bf16.msra.mxu0 0
        %2462 = vmatprep.mubr.bf16.mxu0 0
        %2463 = vmatmul.mubr.bf16.gmra.mrb[0].mxu0 %v2428
        %v2464 = vpop.f32.mrb[0].mxu0
        %v2465 = vadd.f32 %v2410, %v2464
        %v2466 = vpop.f32.mrb[0].mxu0
        %v2467 = vpop.f32.mrb[0].mxu0
        %v2468 = vpop.f32.mrb[0].mxu0
        %2469 = vdwg.mxu0
        %2470 = vrot.lane.b32.xlu0 %v2138, 64
        %v2471 = vpop.permute.xlu0 %2470
        %2472 = vrot.lane.b32.xlu0 %v2139, 64
        %v2473 = vpop.permute.xlu0 %2472
        %v2475 = vsel %vm1103, %v2471, 0
        %v2478 = vsel %vm1103, %v2473, 0
        %2480 = vmatprep.subr.bf16.mxu0 0
        %2481 = vmatpush1.bf16.xpose.msra.mxu0 %v2478
        %2482 = vmatprep.subr.bf16.mxu0 0
        %2483 = vmatpush1.bf16.xpose.msra.mxu0 0
        %2484 = vmatprep.subr.bf16.mxu0 0
        %2485 = vmatpush1.bf16.xpose.msra.mxu0 0
        %2486 = vmatprep.subr.bf16.mxu0 0
        %2487 = vmatpush1.bf16.xpose.msra.mxu0 0
        %2488 = vmatprep.subr.bf16.mxu0 0
        %2489 = vmatpush1.bf16.xpose.msra.mxu0 0
        %2490 = vmatprep.subr.bf16.mxu0 0
        %2491 = vmatpush1.bf16.xpose.msra.mxu0 0
        %2492 = vmatprep.subr.bf16.mxu0 0
        %2493 = vmatpush1.bf16.xpose.msra.mxu0 0
        %2494 = vmatprep.subr.bf16.mxu0 0
        %2495 = vmatpush1.bf16.xpose.msra.mxu0 0
        %2496 = vmatprep.subr.bf16.mxu0 0
        %2497 = vmatpush1.bf16.xpose.msra.mxu0 0
        %2498 = vmatprep.subr.bf16.mxu0 0
        %2499 = vmatpush1.bf16.xpose.msra.mxu0 0
        %2500 = vmatprep.subr.bf16.mxu0 0
        %2501 = vmatpush1.bf16.xpose.msra.mxu0 0
        %2502 = vmatprep.subr.bf16.mxu0 0
        %2503 = vmatpush1.bf16.xpose.msra.mxu0 0
        %2504 = vmatprep.subr.bf16.mxu0 0
        %2505 = vmatpush1.bf16.xpose.msra.mxu0 0
        %2506 = vmatprep.subr.bf16.mxu0 0
        %2507 = vmatpush1.bf16.xpose.msra.mxu0 0
        %2508 = vmatprep.subr.bf16.mxu0 0
        %2509 = vmatpush1.bf16.xpose.msra.mxu0 0
        %2510 = vmatprep.subr.bf16.mxu0 0
        %2511 = vmatpush1.bf16.xpose.msra.mxu0 0
        %2512 = vmatprep.mubr.bf16.mxu0 0
        %2513 = vmatmul.mubr.bf16.gmra.mrb[0].mxu0 %v2475
        %v2514 = vpop.f32.mrb[0].mxu0
        %v2515 = vadd.f32 0.0, %v2514
        %v2516 = vpop.f32.mrb[0].mxu0
        %v2517 = vpop.f32.mrb[0].mxu0
        %v2518 = vpop.f32.mrb[0].mxu0
        %2519 = vdwg.mxu0
        %v2520 = vsel %vm1150, %v2515, -inf
        %2521 = vmax.xlane.f32.xlu0 %v2520
        %v2522 = vpop.xlane.xlu0 %2521
        %v2523 = vsub.f32 %v2515, %v2522
        %v2524 = vmul.f32 %v2523, 1.442695
        %v2525 = vpow.pop %v2524
        %v2526 = vsel %vm1150, %v2525, 0.0
        %2527 = vadd.xlane.f32.xlu0 %v2526
        %v2528 = vpop.xlane.xlu0 %2527
        %v2529 = vrcp.pop %v2528
        %v2530 = vmul.f32 %v2525, %v2529
        %v2531 = vpack.c.bf16 %v2530, %v2530
        %2532 = vrot.lane.b32.xlu0 %v2198, 64
        %v2533 = vpop.permute.xlu0 %2532
        %v2535 = vsel %vm1150, %v2531, 0
        %v2538 = vsel %vm1167, %v2533, 0
        %2540 = vmatprep.subr.bf16.mxu0 0
        %2541 = vmatpush1.bf16.msra.mxu0 %v2538
        %2542 = vmatprep.subr.bf16.mxu0 0
        %2543 = vmatpush1.bf16.msra.mxu0 0
        %2544 = vmatprep.subr.bf16.mxu0 0
        %2545 = vmatpush1.bf16.msra.mxu0 0
        %2546 = vmatprep.subr.bf16.mxu0 0
        %2547 = vmatpush1.bf16.msra.mxu0 0
        %2548 = vmatprep.subr.bf16.mxu0 0
        %2549 = vmatpush1.bf16.msra.mxu0 0
        %2550 = vmatprep.subr.bf16.mxu0 0
        %2551 = vmatpush1.bf16.msra.mxu0 0
        %2552 = vmatprep.subr.bf16.mxu0 0
        %2553 = vmatpush1.bf16.msra.mxu0 0
        %2554 = vmatprep.subr.bf16.mxu0 0
        %2555 = vmatpush1.bf16.msra.mxu0 0
        %2556 = vmatprep.subr.bf16.mxu0 0
        %2557 = vmatpush1.bf16.msra.mxu0 0
        %2558 = vmatprep.subr.bf16.mxu0 0
        %2559 = vmatpush1.bf16.msra.mxu0 0
        %2560 = vmatprep.subr.bf16.mxu0 0
        %2561 = vmatpush1.bf16.msra.mxu0 0
        %2562 = vmatprep.subr.bf16.mxu0 0
        %2563 = vmatpush1.bf16.msra.mxu0 0
        %2564 = vmatprep.subr.bf16.mxu0 0
        %2565 = vmatpush1.bf16.msra.mxu0 0
        %2566 = vmatprep.subr.bf16.mxu0 0
        %2567 = vmatpush1.bf16.msra.mxu0 0
        %2568 = vmatprep.subr.bf16.mxu0 0
        %2569 = vmatpush1.bf16.msra.mxu0 0
        %2570 = vmatprep.subr.bf16.mxu0 0
        %2571 = vmatpush1.bf16.msra.mxu0 0
        %2572 = vmatprep.mubr.bf16.mxu0 0
        %2573 = vmatmul.mubr.bf16.gmra.mrb[0].mxu0 %v2535
        %v2574 = vpop.f32.mrb[0].mxu0
        %v2575 = vadd.f32 0.0, %v2574
        %v2576 = vpop.f32.mrb[0].mxu0
        %v2577 = vpop.f32.mrb[0].mxu0
        %v2578 = vpop.f32.mrb[0].mxu0
        %2579 = vdwg.mxu0
        %v2580 = vpack.c.bf16 %v2575, %v2575
        %v2585 = vunpack.c.l.b16 %v2130
        %v2586 = vunpack.c.l.b16 %v2131
        %v2587 = vunpack.c.l.b16 %v2132
        %v2588 = vunpack.c.l.b16 %v2133
        %v2589 = vpack.c.b16 %v2586, %v2585
        %v2590 = vpack.c.b16 %v2588, %v2587
        %v2594 = vsel %vm1103, %v2580, 0
        %2596 = vmatprep.subr.bf16.mxu0 0
        %2597 = vmatpush1.bf16.msra.mxu0 %v2589
        %2598 = vmatprep.subr.bf16.mxu0 0
        %2599 = vmatpush1.bf16.msra.mxu0 %v2590
        %2600 = vmatprep.subr.bf16.mxu0 0
        %2601 = vmatpush1.bf16.msra.mxu0 0
        %2602 = vmatprep.subr.bf16.mxu0 0
        %2603 = vmatpush1.bf16.msra.mxu0 0
        %2604 = vmatprep.subr.bf16.mxu0 0
        %2605 = vmatpush1.bf16.msra.mxu0 0
        %2606 = vmatprep.subr.bf16.mxu0 0
        %2607 = vmatpush1.bf16.msra.mxu0 0
        %2608 = vmatprep.subr.bf16.mxu0 0
        %2609 = vmatpush1.bf16.msra.mxu0 0
        %2610 = vmatprep.subr.bf16.mxu0 0
        %2611 = vmatpush1.bf16.msra.mxu0 0
        %2612 = vmatprep.subr.bf16.mxu0 0
        %2613 = vmatpush1.bf16.msra.mxu0 0
        %2614 = vmatprep.subr.bf16.mxu0 0
        %2615 = vmatpush1.bf16.msra.mxu0 0
        %2616 = vmatprep.subr.bf16.mxu0 0
        %2617 = vmatpush1.bf16.msra.mxu0 0
        %2618 = vmatprep.subr.bf16.mxu0 0
        %2619 = vmatpush1.bf16.msra.mxu0 0
        %2620 = vmatprep.subr.bf16.mxu0 0
        %2621 = vmatpush1.bf16.msra.mxu0 0
        %2622 = vmatprep.subr.bf16.mxu0 0
        %2623 = vmatpush1.bf16.msra.mxu0 0
        %2624 = vmatprep.subr.bf16.mxu0 0
        %2625 = vmatpush1.bf16.msra.mxu0 0
        %2626 = vmatprep.subr.bf16.mxu0 0
        %2627 = vmatpush1.bf16.msra.mxu0 0
        %2628 = vmatprep.mubr.bf16.mxu0 0
        %2629 = vmatmul.mubr.bf16.gmra.mrb[0].mxu0 %v2594
        %v2630 = vpop.f32.mrb[0].mxu0
        %v2631 = vadd.f32 0.0, %v2630
        %v2632 = vpop.f32.mrb[0].mxu0
        %v2633 = vpop.f32.mrb[0].mxu0
        %v2634 = vpop.f32.mrb[0].mxu0
        %2635 = vdwg.mxu0
        %v2636 = vadd.f32 %v2465, %v2631
        %2637 = vrot.lane.b32.xlu0 %v2138, 32
        %v2638 = vpop.permute.xlu0 %2637
        %2639 = vrot.lane.b32.xlu0 %v2139, 32
        %v2640 = vpop.permute.xlu0 %2639
        %v2642 = vsel %vm1103, %v2638, 0
        %v2645 = vsel %vm1103, %v2640, 0
        %2647 = vmatprep.subr.bf16.mxu0 0
        %2648 = vmatpush1.bf16.xpose.msra.mxu0 %v2645
        %2649 = vmatprep.subr.bf16.mxu0 0
        %2650 = vmatpush1.bf16.xpose.msra.mxu0 0
        %2651 = vmatprep.subr.bf16.mxu0 0
        %2652 = vmatpush1.bf16.xpose.msra.mxu0 0
        %2653 = vmatprep.subr.bf16.mxu0 0
        %2654 = vmatpush1.bf16.xpose.msra.mxu0 0
        %2655 = vmatprep.subr.bf16.mxu0 0
        %2656 = vmatpush1.bf16.xpose.msra.mxu0 0
        %2657 = vmatprep.subr.bf16.mxu0 0
        %2658 = vmatpush1.bf16.xpose.msra.mxu0 0
        %2659 = vmatprep.subr.bf16.mxu0 0
        %2660 = vmatpush1.bf16.xpose.msra.mxu0 0
        %2661 = vmatprep.subr.bf16.mxu0 0
        %2662 = vmatpush1.bf16.xpose.msra.mxu0 0
        %2663 = vmatprep.subr.bf16.mxu0 0
        %2664 = vmatpush1.bf16.xpose.msra.mxu0 0
        %2665 = vmatprep.subr.bf16.mxu0 0
        %2666 = vmatpush1.bf16.xpose.msra.mxu0 0
        %2667 = vmatprep.subr.bf16.mxu0 0
        %2668 = vmatpush1.bf16.xpose.msra.mxu0 0
        %2669 = vmatprep.subr.bf16.mxu0 0
        %2670 = vmatpush1.bf16.xpose.msra.mxu0 0
        %2671 = vmatprep.subr.bf16.mxu0 0
        %2672 = vmatpush1.bf16.xpose.msra.mxu0 0
        %2673 = vmatprep.subr.bf16.mxu0 0
        %2674 = vmatpush1.bf16.xpose.msra.mxu0 0
        %2675 = vmatprep.subr.bf16.mxu0 0
        %2676 = vmatpush1.bf16.xpose.msra.mxu0 0
        %2677 = vmatprep.subr.bf16.mxu0 0
        %2678 = vmatpush1.bf16.xpose.msra.mxu0 0
        %2679 = vmatprep.mubr.bf16.mxu0 0
        %2680 = vmatmul.mubr.bf16.gmra.mrb[0].mxu0 %v2642
        %v2681 = vpop.f32.mrb[0].mxu0
        %v2682 = vadd.f32 0.0, %v2681
        %v2683 = vpop.f32.mrb[0].mxu0
        %v2684 = vpop.f32.mrb[0].mxu0
        %v2685 = vpop.f32.mrb[0].mxu0
        %2686 = vdwg.mxu0
        %v2687 = vsel %vm1150, %v2682, -inf
        %2688 = vmax.xlane.f32.xlu0 %v2687
        %v2689 = vpop.xlane.xlu0 %2688
        %v2690 = vsub.f32 %v2682, %v2689
        %v2691 = vmul.f32 %v2690, 1.442695
        %v2692 = vpow.pop %v2691
        %v2693 = vsel %vm1150, %v2692, 0.0
        %2694 = vadd.xlane.f32.xlu0 %v2693
        %v2695 = vpop.xlane.xlu0 %2694
        %v2696 = vrcp.pop %v2695
        %v2697 = vmul.f32 %v2692, %v2696
        %v2698 = vpack.c.bf16 %v2697, %v2697
        %2699 = vrot.lane.b32.xlu0 %v2198, 32
        %v2700 = vpop.permute.xlu0 %2699
        %v2702 = vsel %vm1150, %v2698, 0
        %v2705 = vsel %vm1167, %v2700, 0
        %2707 = vmatprep.subr.bf16.mxu0 0
        %2708 = vmatpush1.bf16.msra.mxu0 %v2705
        %2709 = vmatprep.subr.bf16.mxu0 0
        %2710 = vmatpush1.bf16.msra.mxu0 0
        %2711 = vmatprep.subr.bf16.mxu0 0
        %2712 = vmatpush1.bf16.msra.mxu0 0
        %2713 = vmatprep.subr.bf16.mxu0 0
        %2714 = vmatpush1.bf16.msra.mxu0 0
        %2715 = vmatprep.subr.bf16.mxu0 0
        %2716 = vmatpush1.bf16.msra.mxu0 0
        %2717 = vmatprep.subr.bf16.mxu0 0
        %2718 = vmatpush1.bf16.msra.mxu0 0
        %2719 = vmatprep.subr.bf16.mxu0 0
        %2720 = vmatpush1.bf16.msra.mxu0 0
        %2721 = vmatprep.subr.bf16.mxu0 0
        %2722 = vmatpush1.bf16.msra.mxu0 0
        %2723 = vmatprep.subr.bf16.mxu0 0
        %2724 = vmatpush1.bf16.msra.mxu0 0
        %2725 = vmatprep.subr.bf16.mxu0 0
        %2726 = vmatpush1.bf16.msra.mxu0 0
        %2727 = vmatprep.subr.bf16.mxu0 0
        %2728 = vmatpush1.bf16.msra.mxu0 0
        %2729 = vmatprep.subr.bf16.mxu0 0
        %2730 = vmatpush1.bf16.msra.mxu0 0
        %2731 = vmatprep.subr.bf16.mxu0 0
        %2732 = vmatpush1.bf16.msra.mxu0 0
        %2733 = vmatprep.subr.bf16.mxu0 0
        %2734 = vmatpush1.bf16.msra.mxu0 0
        %2735 = vmatprep.subr.bf16.mxu0 0
        %2736 = vmatpush1.bf16.msra.mxu0 0
        %2737 = vmatprep.subr.bf16.mxu0 0
        %2738 = vmatpush1.bf16.msra.mxu0 0
        %2739 = vmatprep.mubr.bf16.mxu0 0
        %2740 = vmatmul.mubr.bf16.gmra.mrb[0].mxu0 %v2702
        %v2741 = vpop.f32.mrb[0].mxu0
        %v2742 = vadd.f32 0.0, %v2741
        %v2743 = vpop.f32.mrb[0].mxu0
        %v2744 = vpop.f32.mrb[0].mxu0
        %v2745 = vpop.f32.mrb[0].mxu0
        %2746 = vdwg.mxu0
        %v2747 = vpack.c.bf16 %v2742, %v2742
        %v2752 = vunpack.c.l.b16 %v2134
        %v2753 = vunpack.c.l.b16 %v2135
        %v2754 = vunpack.c.l.b16 %v2136
        %v2755 = vunpack.c.l.b16 %v2137
        %v2756 = vpack.c.b16 %v2753, %v2752
        %v2757 = vpack.c.b16 %v2755, %v2754
        %v2761 = vsel %vm1103, %v2747, 0
        %2763 = vmatprep.subr.bf16.mxu0 0
        %2764 = vmatpush1.bf16.msra.mxu0 %v2756
        %2765 = vmatprep.subr.bf16.mxu0 0
        %2766 = vmatpush1.bf16.msra.mxu0 %v2757
        %2767 = vmatprep.subr.bf16.mxu0 0
        %2768 = vmatpush1.bf16.msra.mxu0 0
        %2769 = vmatprep.subr.bf16.mxu0 0
        %2770 = vmatpush1.bf16.msra.mxu0 0
        %2771 = vmatprep.subr.bf16.mxu0 0
        %2772 = vmatpush1.bf16.msra.mxu0 0
        %2773 = vmatprep.subr.bf16.mxu0 0
        %2774 = vmatpush1.bf16.msra.mxu0 0
        %2775 = vmatprep.subr.bf16.mxu0 0
        %2776 = vmatpush1.bf16.msra.mxu0 0
        %2777 = vmatprep.subr.bf16.mxu0 0
        %2778 = vmatpush1.bf16.msra.mxu0 0
        %2779 = vmatprep.subr.bf16.mxu0 0
        %2780 = vmatpush1.bf16.msra.mxu0 0
        %2781 = vmatprep.subr.bf16.mxu0 0
        %2782 = vmatpush1.bf16.msra.mxu0 0
        %2783 = vmatprep.subr.bf16.mxu0 0
        %2784 = vmatpush1.bf16.msra.mxu0 0
        %2785 = vmatprep.subr.bf16.mxu0 0
        %2786 = vmatpush1.bf16.msra.mxu0 0
        %2787 = vmatprep.subr.bf16.mxu0 0
        %2788 = vmatpush1.bf16.msra.mxu0 0
        %2789 = vmatprep.subr.bf16.mxu0 0
        %2790 = vmatpush1.bf16.msra.mxu0 0
        %2791 = vmatprep.subr.bf16.mxu0 0
        %2792 = vmatpush1.bf16.msra.mxu0 0
        %2793 = vmatprep.subr.bf16.mxu0 0
        %2794 = vmatpush1.bf16.msra.mxu0 0
        %2795 = vmatprep.mubr.bf16.mxu0 0
        %2796 = vmatmul.mubr.bf16.gmra.mrb[0].mxu0 %v2761
        %v2797 = vpop.f32.mrb[0].mxu0
        %v2798 = vadd.f32 0.0, %v2797
        %v2799 = vpop.f32.mrb[0].mxu0
        %v2800 = vpop.f32.mrb[0].mxu0
        %v2801 = vpop.f32.mrb[0].mxu0
        %2802 = vdwg.mxu0
        %v2803 = vadd.f32 %v2636, %v2798
        %v2804 = vld [vmem:[%s15] sm:$0x1]
        %v2806 = vlaneseq
        %v2807 = vshrl.u32 %v2806, 7
        %v2808 = vsub.s32 0, %v2807
        %v2809 = vrot.slane %v2804, %v2808
        %v2811 = vadd.f32 %v2803, %v2809
        %v2812 = vadd.f32 %v2811, %v1806
        %2813 = vadd.xlane.f32.xlu0 %v2812
        %v2814 = vpop.xlane.xlu0 %2813
        %v2815 = vmul.f32 %v2814, %v1781
        %v2816 = vsub.f32 %v2812, %v2815
        %v2817 = vmul.f32 %v2816, %v2816
        %2818 = vadd.xlane.f32.xlu0 %v2817
        %v2819 = vpop.xlane.xlu0 %2818
        %v2820 = vmul.f32 %v2819, %v1781
        %v2821 = vadd.f32 %v2820, 1e-05
        %v2822 = vrsqrt.pop %v2821
        %v2823 = vmul.f32 %v2816, %v2822
        %v2824 = vld [vmem:[%s16] sm:$0x1]
        %v2826 = vlaneseq
        %v2827 = vshrl.u32 %v2826, 7
        %v2828 = vsub.s32 0, %v2827
        %v2829 = vrot.slane %v2824, %v2828
        %v2831 = vmul.f32 %v2823, %v2829
        %v2832 = vld [vmem:[%s17] sm:$0x1]
        %v2834 = vlaneseq
        %v2835 = vshrl.u32 %v2834, 7
        %v2836 = vsub.s32 0, %v2835
        %v2837 = vrot.slane %v2832, %v2836
        %v2839 = vadd.f32 %v2831, %v2837
        %v2840 = vpack.c.bf16 %v2839, %v2839
        %v2841 = vld [vmem:[%s18] sm:$0xff]
        %v2842 = vld [vmem:[%s18 + $0x8] sm:$0xff]
        %v2843 = vld [vmem:[%s18 + $0x10] sm:$0xff]
        %v2844 = vld [vmem:[%s18 + $0x18] sm:$0xff]
        %v2845 = vld [vmem:[%s18 + $0x20] sm:$0xff]
        %v2846 = vld [vmem:[%s18 + $0x28] sm:$0xff]
        %v2847 = vld [vmem:[%s18 + $0x30] sm:$0xff]
        %v2848 = vld [vmem:[%s18 + $0x38] sm:$0xff]
        %v2849 = vld [vmem:[%s18 + $0x40] sm:$0xff]
        %v2850 = vld [vmem:[%s18 + $0x48] sm:$0xff]
        %v2851 = vld [vmem:[%s18 + $0x50] sm:$0xff]
        %v2852 = vld [vmem:[%s18 + $0x58] sm:$0xff]
        %v2853 = vld [vmem:[%s18 + $0x60] sm:$0xff]
        %v2854 = vld [vmem:[%s18 + $0x68] sm:$0xff]
        %v2855 = vld [vmem:[%s18 + $0x70] sm:$0xff]
        %v2856 = vld [vmem:[%s18 + $0x78] sm:$0xff]
        %v2857 = vld [vmem:[%s18 + $0x80] sm:$0xff]
        %v2858 = vld [vmem:[%s18 + $0x88] sm:$0xff]
        %v2859 = vld [vmem:[%s18 + $0x90] sm:$0xff]
        %v2860 = vld [vmem:[%s18 + $0x98] sm:$0xff]
        %v2861 = vld [vmem:[%s18 + $0xa0] sm:$0xff]
        %v2862 = vld [vmem:[%s18 + $0xa8] sm:$0xff]
        %v2863 = vld [vmem:[%s18 + $0xb0] sm:$0xff]
        %v2864 = vld [vmem:[%s18 + $0xb8] sm:$0xff]
        %v2865 = vld [vmem:[%s18 + $0xc0] sm:$0xff]
        %v2866 = vld [vmem:[%s18 + $0xc8] sm:$0xff]
        %v2867 = vld [vmem:[%s18 + $0xd0] sm:$0xff]
        %v2868 = vld [vmem:[%s18 + $0xd8] sm:$0xff]
        %v2869 = vld [vmem:[%s18 + $0xe0] sm:$0xff]
        %v2870 = vld [vmem:[%s18 + $0xe8] sm:$0xff]
        %v2871 = vld [vmem:[%s18 + $0xf0] sm:$0xff]
        %v2872 = vld [vmem:[%s18 + $0xf8] sm:$0xff]
        %v2873 = vld [vmem:[%s19] sm:$0xf]
        %v2875 = vlaneseq
        %v2876 = vshrl.u32 %v2875, 7
        %v2877 = vsub.s32 0, %v2876
        %v2878 = vrot.slane %v2873, %v2877
        %v2879 = vlaneseq
        %v2880 = vshrl.u32 %v2879, 7
        %v2881 = vsub.s32 1, %v2880
        %v2882 = vrot.slane %v2873, %v2881
        %v2883 = vlaneseq
        %v2884 = vshrl.u32 %v2883, 7
        %v2885 = vsub.s32 2, %v2884
        %v2886 = vrot.slane %v2873, %v2885
        %v2887 = vlaneseq
        %v2888 = vshrl.u32 %v2887, 7
        %v2889 = vsub.s32 3, %v2888
        %v2890 = vrot.slane %v2873, %v2889
        %v2927 = vunpack.c.l.b16 %v2841
        %v2928 = vunpack.c.h.b16 %v2841
        %v2929 = vunpack.c.l.b16 %v2842
        %v2930 = vunpack.c.h.b16 %v2842
        %v2931 = vunpack.c.l.b16 %v2843
        %v2932 = vunpack.c.h.b16 %v2843
        %v2933 = vunpack.c.l.b16 %v2844
        %v2934 = vunpack.c.h.b16 %v2844
        %v2935 = vunpack.c.l.b16 %v2845
        %v2936 = vunpack.c.h.b16 %v2845
        %v2937 = vunpack.c.l.b16 %v2846
        %v2938 = vunpack.c.h.b16 %v2846
        %v2939 = vunpack.c.l.b16 %v2847
        %v2940 = vunpack.c.h.b16 %v2847
        %v2941 = vunpack.c.l.b16 %v2848
        %v2942 = vunpack.c.h.b16 %v2848
        %v2943 = vunpack.c.l.b16 %v2849
        %v2944 = vunpack.c.h.b16 %v2849
        %v2945 = vunpack.c.l.b16 %v2850
        %v2946 = vunpack.c.h.b16 %v2850
        %v2947 = vunpack.c.l.b16 %v2851
        %v2948 = vunpack.c.h.b16 %v2851
        %v2949 = vunpack.c.l.b16 %v2852
        %v2950 = vunpack.c.h.b16 %v2852
        %v2951 = vunpack.c.l.b16 %v2853
        %v2952 = vunpack.c.h.b16 %v2853
        %v2953 = vunpack.c.l.b16 %v2854
        %v2954 = vunpack.c.h.b16 %v2854
        %v2955 = vunpack.c.l.b16 %v2855
        %v2956 = vunpack.c.h.b16 %v2855
        %v2957 = vunpack.c.l.b16 %v2856
        %v2958 = vunpack.c.h.b16 %v2856
        %v2959 = vunpack.c.l.b16 %v2857
        %v2960 = vunpack.c.h.b16 %v2857
        %v2961 = vunpack.c.l.b16 %v2858
        %v2962 = vunpack.c.h.b16 %v2858
        %v2963 = vunpack.c.l.b16 %v2859
        %v2964 = vunpack.c.h.b16 %v2859
        %v2965 = vunpack.c.l.b16 %v2860
        %v2966 = vunpack.c.h.b16 %v2860
        %v2967 = vunpack.c.l.b16 %v2861
        %v2968 = vunpack.c.h.b16 %v2861
        %v2969 = vunpack.c.l.b16 %v2862
        %v2970 = vunpack.c.h.b16 %v2862
        %v2971 = vunpack.c.l.b16 %v2863
        %v2972 = vunpack.c.h.b16 %v2863
        %v2973 = vunpack.c.l.b16 %v2864
        %v2974 = vunpack.c.h.b16 %v2864
        %v2975 = vunpack.c.l.b16 %v2865
        %v2976 = vunpack.c.h.b16 %v2865
        %v2977 = vunpack.c.l.b16 %v2866
        %v2978 = vunpack.c.h.b16 %v2866
        %v2979 = vunpack.c.l.b16 %v2867
        %v2980 = vunpack.c.h.b16 %v2867
        %v2981 = vunpack.c.l.b16 %v2868
        %v2982 = vunpack.c.h.b16 %v2868
        %v2983 = vunpack.c.l.b16 %v2869
        %v2984 = vunpack.c.h.b16 %v2869
        %v2985 = vunpack.c.l.b16 %v2870
        %v2986 = vunpack.c.h.b16 %v2870
        %v2987 = vunpack.c.l.b16 %v2871
        %v2988 = vunpack.c.h.b16 %v2871
        %v2989 = vunpack.c.l.b16 %v2872
        %v2990 = vunpack.c.h.b16 %v2872
        %v2991 = vpack.c.b16 %v2931, %v2927
        %v2992 = vpack.c.b16 %v2932, %v2928
        %v2993 = vpack.c.b16 %v2933, %v2929
        %v2994 = vpack.c.b16 %v2934, %v2930
        %v2995 = vpack.c.b16 %v2939, %v2935
        %v2996 = vpack.c.b16 %v2940, %v2936
        %v2997 = vpack.c.b16 %v2941, %v2937
        %v2998 = vpack.c.b16 %v2942, %v2938
        %v2999 = vpack.c.b16 %v2947, %v2943
        %v3000 = vpack.c.b16 %v2948, %v2944
        %v3001 = vpack.c.b16 %v2949, %v2945
        %v3002 = vpack.c.b16 %v2950, %v2946
        %v3003 = vpack.c.b16 %v2955, %v2951
        %v3004 = vpack.c.b16 %v2956, %v2952
        %v3005 = vpack.c.b16 %v2957, %v2953
        %v3006 = vpack.c.b16 %v2958, %v2954
        %v3007 = vpack.c.b16 %v2963, %v2959
        %v3008 = vpack.c.b16 %v2964, %v2960
        %v3009 = vpack.c.b16 %v2965, %v2961
        %v3010 = vpack.c.b16 %v2966, %v2962
        %v3011 = vpack.c.b16 %v2971, %v2967
        %v3012 = vpack.c.b16 %v2972, %v2968
        %v3013 = vpack.c.b16 %v2973, %v2969
        %v3014 = vpack.c.b16 %v2974, %v2970
        %v3015 = vpack.c.b16 %v2979, %v2975
        %v3016 = vpack.c.b16 %v2980, %v2976
        %v3017 = vpack.c.b16 %v2981, %v2977
        %v3018 = vpack.c.b16 %v2982, %v2978
        %v3019 = vpack.c.b16 %v2987, %v2983
        %v3020 = vpack.c.b16 %v2988, %v2984
        %v3021 = vpack.c.b16 %v2989, %v2985
        %v3022 = vpack.c.b16 %v2990, %v2986
        %3055 = vmatprep.subr.bf16.mxu0 %v2992
        %3056 = vmatpush1.bf16.msra.mxu0 %v2991
        %3057 = vmatprep.subr.bf16.mxu0 %v2996
        %3058 = vmatpush1.bf16.msra.mxu0 %v2995
        %3059 = vmatprep.subr.bf16.mxu0 %v3000
        %3060 = vmatpush1.bf16.msra.mxu0 %v2999
        %3061 = vmatprep.subr.bf16.mxu0 %v3004
        %3062 = vmatpush1.bf16.msra.mxu0 %v3003
        %3063 = vmatprep.subr.bf16.mxu0 %v3008
        %3064 = vmatpush1.bf16.msra.mxu0 %v3007
        %3065 = vmatprep.subr.bf16.mxu0 %v3012
        %3066 = vmatpush1.bf16.msra.mxu0 %v3011
        %3067 = vmatprep.subr.bf16.mxu0 %v3016
        %3068 = vmatpush1.bf16.msra.mxu0 %v3015
        %3069 = vmatprep.subr.bf16.mxu0 %v3020
        %3070 = vmatpush1.bf16.msra.mxu0 %v3019
        %3071 = vmatprep.subr.bf16.mxu0 0
        %3072 = vmatpush1.bf16.msra.mxu0 0
        %3073 = vmatprep.subr.bf16.mxu0 0
        %3074 = vmatpush1.bf16.msra.mxu0 0
        %3075 = vmatprep.subr.bf16.mxu0 0
        %3076 = vmatpush1.bf16.msra.mxu0 0
        %3077 = vmatprep.subr.bf16.mxu0 0
        %3078 = vmatpush1.bf16.msra.mxu0 0
        %3079 = vmatprep.subr.bf16.mxu0 0
        %3080 = vmatpush1.bf16.msra.mxu0 0
        %3081 = vmatprep.subr.bf16.mxu0 0
        %3082 = vmatpush1.bf16.msra.mxu0 0
        %3083 = vmatprep.subr.bf16.mxu0 0
        %3084 = vmatpush1.bf16.msra.mxu0 0
        %3085 = vmatprep.subr.bf16.mxu0 0
        %3086 = vmatpush1.bf16.msra.mxu0 0
        %3087 = vmatprep.mubr.bf16.mxu0 0
        %3088 = vmatmul.mubr.bf16.gmra.mrb[0].mxu0 %v2840
        %v3089 = vpop.f32.mrb[0].mxu0
        %v3090 = vadd.f32 %v2878, %v3089
        %v3091 = vpop.f32.mrb[0].mxu0
        %v3092 = vadd.f32 %v2882, %v3091
        %v3093 = vpop.f32.mrb[0].mxu0
        %v3094 = vpop.f32.mrb[0].mxu0
        %3095 = vdwg.mxu0
        %3096 = vmatprep.subr.bf16.mxu0 %v2994
        %3097 = vmatpush1.bf16.msra.mxu0 %v2993
        %3098 = vmatprep.subr.bf16.mxu0 %v2998
        %3099 = vmatpush1.bf16.msra.mxu0 %v2997
        %3100 = vmatprep.subr.bf16.mxu0 %v3002
        %3101 = vmatpush1.bf16.msra.mxu0 %v3001
        %3102 = vmatprep.subr.bf16.mxu0 %v3006
        %3103 = vmatpush1.bf16.msra.mxu0 %v3005
        %3104 = vmatprep.subr.bf16.mxu0 %v3010
        %3105 = vmatpush1.bf16.msra.mxu0 %v3009
        %3106 = vmatprep.subr.bf16.mxu0 %v3014
        %3107 = vmatpush1.bf16.msra.mxu0 %v3013
        %3108 = vmatprep.subr.bf16.mxu0 %v3018
        %3109 = vmatpush1.bf16.msra.mxu0 %v3017
        %3110 = vmatprep.subr.bf16.mxu0 %v3022
        %3111 = vmatpush1.bf16.msra.mxu0 %v3021
        %3112 = vmatprep.subr.bf16.mxu0 0
        %3113 = vmatpush1.bf16.msra.mxu0 0
        %3114 = vmatprep.subr.bf16.mxu0 0
        %3115 = vmatpush1.bf16.msra.mxu0 0
        %3116 = vmatprep.subr.bf16.mxu0 0
        %3117 = vmatpush1.bf16.msra.mxu0 0
        %3118 = vmatprep.subr.bf16.mxu0 0
        %3119 = vmatpush1.bf16.msra.mxu0 0
        %3120 = vmatprep.subr.bf16.mxu0 0
        %3121 = vmatpush1.bf16.msra.mxu0 0
        %3122 = vmatprep.subr.bf16.mxu0 0
        %3123 = vmatpush1.bf16.msra.mxu0 0
        %3124 = vmatprep.subr.bf16.mxu0 0
        %3125 = vmatpush1.bf16.msra.mxu0 0
        %3126 = vmatprep.subr.bf16.mxu0 0
        %3127 = vmatpush1.bf16.msra.mxu0 0
        %3128 = vmatprep.mubr.bf16.mxu0 0
        %3129 = vmatmul.mubr.bf16.gmra.mrb[0].mxu0 %v2840
        %v3130 = vpop.f32.mrb[0].mxu0
        %v3131 = vadd.f32 %v2886, %v3130
        %v3132 = vpop.f32.mrb[0].mxu0
        %v3133 = vadd.f32 %v2890, %v3132
        %v3134 = vpop.f32.mrb[0].mxu0
        %v3135 = vpop.f32.mrb[0].mxu0
        %3136 = vdwg.mxu0
        %v3137 = vmax.f32 %v3090, 0.0
        %v3138 = vmax.f32 %v3092, 0.0
        %v3139 = vmax.f32 %v3131, 0.0
        %v3140 = vmax.f32 %v3133, 0.0
        %v3141 = vpack.c.bf16 %v3137, %v3137
        %v3142 = vpack.c.bf16 %v3138, %v3138
        %v3143 = vpack.c.bf16 %v3139, %v3139
        %v3144 = vpack.c.bf16 %v3140, %v3140
        %v3145 = vld [vmem:[%s20] sm:$0xf]
        %v3146 = vld [vmem:[%s20 + $0x4] sm:$0xf]
        %v3147 = vld [vmem:[%s20 + $0x8] sm:$0xf]
        %v3148 = vld [vmem:[%s20 + $0xc] sm:$0xf]
        %v3149 = vld [vmem:[%s20 + $0x10] sm:$0xf]
        %v3150 = vld [vmem:[%s20 + $0x14] sm:$0xf]
        %v3151 = vld [vmem:[%s20 + $0x18] sm:$0xf]
        %v3152 = vld [vmem:[%s20 + $0x1c] sm:$0xf]
        %v3153 = vld [vmem:[%s20 + $0x20] sm:$0xf]
        %v3154 = vld [vmem:[%s20 + $0x24] sm:$0xf]
        %v3155 = vld [vmem:[%s20 + $0x28] sm:$0xf]
        %v3156 = vld [vmem:[%s20 + $0x2c] sm:$0xf]
        %v3157 = vld [vmem:[%s20 + $0x30] sm:$0xf]
        %v3158 = vld [vmem:[%s20 + $0x34] sm:$0xf]
        %v3159 = vld [vmem:[%s20 + $0x38] sm:$0xf]
        %v3160 = vld [vmem:[%s20 + $0x3c] sm:$0xf]
        %v3161 = vld [vmem:[%s20 + $0x40] sm:$0xf]
        %v3162 = vld [vmem:[%s20 + $0x44] sm:$0xf]
        %v3163 = vld [vmem:[%s20 + $0x48] sm:$0xf]
        %v3164 = vld [vmem:[%s20 + $0x4c] sm:$0xf]
        %v3165 = vld [vmem:[%s20 + $0x50] sm:$0xf]
        %v3166 = vld [vmem:[%s20 + $0x54] sm:$0xf]
        %v3167 = vld [vmem:[%s20 + $0x58] sm:$0xf]
        %v3168 = vld [vmem:[%s20 + $0x5c] sm:$0xf]
        %v3169 = vld [vmem:[%s20 + $0x60] sm:$0xf]
        %v3170 = vld [vmem:[%s20 + $0x64] sm:$0xf]
        %v3171 = vld [vmem:[%s20 + $0x68] sm:$0xf]
        %v3172 = vld [vmem:[%s20 + $0x6c] sm:$0xf]
        %v3173 = vld [vmem:[%s20 + $0x70] sm:$0xf]
        %v3174 = vld [vmem:[%s20 + $0x74] sm:$0xf]
        %v3175 = vld [vmem:[%s20 + $0x78] sm:$0xf]
        %v3176 = vld [vmem:[%s20 + $0x7c] sm:$0xf]
        %v3177 = vld [vmem:[%s20 + $0x80] sm:$0xf]
        %v3178 = vld [vmem:[%s20 + $0x84] sm:$0xf]
        %v3179 = vld [vmem:[%s20 + $0x88] sm:$0xf]
        %v3180 = vld [vmem:[%s20 + $0x8c] sm:$0xf]
        %v3181 = vld [vmem:[%s20 + $0x90] sm:$0xf]
        %v3182 = vld [vmem:[%s20 + $0x94] sm:$0xf]
        %v3183 = vld [vmem:[%s20 + $0x98] sm:$0xf]
        %v3184 = vld [vmem:[%s20 + $0x9c] sm:$0xf]
        %v3185 = vld [vmem:[%s20 + $0xa0] sm:$0xf]
        %v3186 = vld [vmem:[%s20 + $0xa4] sm:$0xf]
        %v3187 = vld [vmem:[%s20 + $0xa8] sm:$0xf]
        %v3188 = vld [vmem:[%s20 + $0xac] sm:$0xf]
        %v3189 = vld [vmem:[%s20 + $0xb0] sm:$0xf]
        %v3190 = vld [vmem:[%s20 + $0xb4] sm:$0xf]
        %v3191 = vld [vmem:[%s20 + $0xb8] sm:$0xf]
        %v3192 = vld [vmem:[%s20 + $0xbc] sm:$0xf]
        %v3193 = vld [vmem:[%s20 + $0xc0] sm:$0xf]
        %v3194 = vld [vmem:[%s20 + $0xc4] sm:$0xf]
        %v3195 = vld [vmem:[%s20 + $0xc8] sm:$0xf]
        %v3196 = vld [vmem:[%s20 + $0xcc] sm:$0xf]
        %v3197 = vld [vmem:[%s20 + $0xd0] sm:$0xf]
        %v3198 = vld [vmem:[%s20 + $0xd4] sm:$0xf]
        %v3199 = vld [vmem:[%s20 + $0xd8] sm:$0xf]
        %v3200 = vld [vmem:[%s20 + $0xdc] sm:$0xf]
        %v3201 = vld [vmem:[%s20 + $0xe0] sm:$0xf]
        %v3202 = vld [vmem:[%s20 + $0xe4] sm:$0xf]
        %v3203 = vld [vmem:[%s20 + $0xe8] sm:$0xf]
        %v3204 = vld [vmem:[%s20 + $0xec] sm:$0xf]
        %v3205 = vld [vmem:[%s20 + $0xf0] sm:$0xf]
        %v3206 = vld [vmem:[%s20 + $0xf4] sm:$0xf]
        %v3207 = vld [vmem:[%s20 + $0xf8] sm:$0xf]
        %v3208 = vld [vmem:[%s20 + $0xfc] sm:$0xf]
        %v3209 = vld [vmem:[%s21] sm:$0x1]
        %v3211 = vlaneseq
        %v3212 = vshrl.u32 %v3211, 7
        %v3213 = vsub.s32 0, %v3212
        %v3214 = vrot.slane %v3209, %v3213
        %v3280 = vunpack.c.l.b16 %v3145
        %v3281 = vunpack.c.l.b16 %v3146
        %v3282 = vunpack.c.l.b16 %v3147
        %v3283 = vunpack.c.l.b16 %v3148
        %v3284 = vunpack.c.l.b16 %v3149
        %v3285 = vunpack.c.l.b16 %v3150
        %v3286 = vunpack.c.l.b16 %v3151
        %v3287 = vunpack.c.l.b16 %v3152
        %v3288 = vunpack.c.l.b16 %v3153
        %v3289 = vunpack.c.l.b16 %v3154
        %v3290 = vunpack.c.l.b16 %v3155
        %v3291 = vunpack.c.l.b16 %v3156
        %v3292 = vunpack.c.l.b16 %v3157
        %v3293 = vunpack.c.l.b16 %v3158
        %v3294 = vunpack.c.l.b16 %v3159
        %v3295 = vunpack.c.l.b16 %v3160
        %v3296 = vunpack.c.l.b16 %v3161
        %v3297 = vunpack.c.l.b16 %v3162
        %v3298 = vunpack.c.l.b16 %v3163
        %v3299 = vunpack.c.l.b16 %v3164
        %v3300 = vunpack.c.l.b16 %v3165
        %v3301 = vunpack.c.l.b16 %v3166
        %v3302 = vunpack.c.l.b16 %v3167
        %v3303 = vunpack.c.l.b16 %v3168
        %v3304 = vunpack.c.l.b16 %v3169
        %v3305 = vunpack.c.l.b16 %v3170
        %v3306 = vunpack.c.l.b16 %v3171
        %v3307 = vunpack.c.l.b16 %v3172
        %v3308 = vunpack.c.l.b16 %v3173
        %v3309 = vunpack.c.l.b16 %v3174
        %v3310 = vunpack.c.l.b16 %v3175
        %v3311 = vunpack.c.l.b16 %v3176
        %v3312 = vunpack.c.l.b16 %v3177
        %v3313 = vunpack.c.l.b16 %v3178
        %v3314 = vunpack.c.l.b16 %v3179
        %v3315 = vunpack.c.l.b16 %v3180
        %v3316 = vunpack.c.l.b16 %v3181
        %v3317 = vunpack.c.l.b16 %v3182
        %v3318 = vunpack.c.l.b16 %v3183
        %v3319 = vunpack.c.l.b16 %v3184
        %v3320 = vunpack.c.l.b16 %v3185
        %v3321 = vunpack.c.l.b16 %v3186
        %v3322 = vunpack.c.l.b16 %v3187
        %v3323 = vunpack.c.l.b16 %v3188
        %v3324 = vunpack.c.l.b16 %v3189
        %v3325 = vunpack.c.l.b16 %v3190
        %v3326 = vunpack.c.l.b16 %v3191
        %v3327 = vunpack.c.l.b16 %v3192
        %v3328 = vunpack.c.l.b16 %v3193
        %v3329 = vunpack.c.l.b16 %v3194
        %v3330 = vunpack.c.l.b16 %v3195
        %v3331 = vunpack.c.l.b16 %v3196
        %v3332 = vunpack.c.l.b16 %v3197
        %v3333 = vunpack.c.l.b16 %v3198
        %v3334 = vunpack.c.l.b16 %v3199
        %v3335 = vunpack.c.l.b16 %v3200
        %v3336 = vunpack.c.l.b16 %v3201
        %v3337 = vunpack.c.l.b16 %v3202
        %v3338 = vunpack.c.l.b16 %v3203
        %v3339 = vunpack.c.l.b16 %v3204
        %v3340 = vunpack.c.l.b16 %v3205
        %v3341 = vunpack.c.l.b16 %v3206
        %v3342 = vunpack.c.l.b16 %v3207
        %v3343 = vunpack.c.l.b16 %v3208
        %v3344 = vpack.c.b16 %v3281, %v3280
        %v3345 = vpack.c.b16 %v3283, %v3282
        %v3346 = vpack.c.b16 %v3285, %v3284
        %v3347 = vpack.c.b16 %v3287, %v3286
        %v3348 = vpack.c.b16 %v3289, %v3288
        %v3349 = vpack.c.b16 %v3291, %v3290
        %v3350 = vpack.c.b16 %v3293, %v3292
        %v3351 = vpack.c.b16 %v3295, %v3294
        %v3352 = vpack.c.b16 %v3297, %v3296
        %v3353 = vpack.c.b16 %v3299, %v3298
        %v3354 = vpack.c.b16 %v3301, %v3300
        %v3355 = vpack.c.b16 %v3303, %v3302
        %v3356 = vpack.c.b16 %v3305, %v3304
        %v3357 = vpack.c.b16 %v3307, %v3306
        %v3358 = vpack.c.b16 %v3309, %v3308
        %v3359 = vpack.c.b16 %v3311, %v3310
        %v3360 = vpack.c.b16 %v3313, %v3312
        %v3361 = vpack.c.b16 %v3315, %v3314
        %v3362 = vpack.c.b16 %v3317, %v3316
        %v3363 = vpack.c.b16 %v3319, %v3318
        %v3364 = vpack.c.b16 %v3321, %v3320
        %v3365 = vpack.c.b16 %v3323, %v3322
        %v3366 = vpack.c.b16 %v3325, %v3324
        %v3367 = vpack.c.b16 %v3327, %v3326
        %v3368 = vpack.c.b16 %v3329, %v3328
        %v3369 = vpack.c.b16 %v3331, %v3330
        %v3370 = vpack.c.b16 %v3333, %v3332
        %v3371 = vpack.c.b16 %v3335, %v3334
        %v3372 = vpack.c.b16 %v3337, %v3336
        %v3373 = vpack.c.b16 %v3339, %v3338
        %v3374 = vpack.c.b16 %v3341, %v3340
        %v3375 = vpack.c.b16 %v3343, %v3342
        %3408 = vmatprep.subr.bf16.mxu0 0
        %3409 = vmatpush1.bf16.msra.mxu0 %v3344
        %3410 = vmatprep.subr.bf16.mxu0 0
        %3411 = vmatpush1.bf16.msra.mxu0 %v3345
        %3412 = vmatprep.subr.bf16.mxu0 0
        %3413 = vmatpush1.bf16.msra.mxu0 %v3346
        %3414 = vmatprep.subr.bf16.mxu0 0
        %3415 = vmatpush1.bf16.msra.mxu0 %v3347
        %3416 = vmatprep.subr.bf16.mxu0 0
        %3417 = vmatpush1.bf16.msra.mxu0 %v3348
        %3418 = vmatprep.subr.bf16.mxu0 0
        %3419 = vmatpush1.bf16.msra.mxu0 %v3349
        %3420 = vmatprep.subr.bf16.mxu0 0
        %3421 = vmatpush1.bf16.msra.mxu0 %v3350
        %3422 = vmatprep.subr.bf16.mxu0 0
        %3423 = vmatpush1.bf16.msra.mxu0 %v3351
        %3424 = vmatprep.subr.bf16.mxu0 0
        %3425 = vmatpush1.bf16.msra.mxu0 %v3352
        %3426 = vmatprep.subr.bf16.mxu0 0
        %3427 = vmatpush1.bf16.msra.mxu0 %v3353
        %3428 = vmatprep.subr.bf16.mxu0 0
        %3429 = vmatpush1.bf16.msra.mxu0 %v3354
        %3430 = vmatprep.subr.bf16.mxu0 0
        %3431 = vmatpush1.bf16.msra.mxu0 %v3355
        %3432 = vmatprep.subr.bf16.mxu0 0
        %3433 = vmatpush1.bf16.msra.mxu0 %v3356
        %3434 = vmatprep.subr.bf16.mxu0 0
        %3435 = vmatpush1.bf16.msra.mxu0 %v3357
        %3436 = vmatprep.subr.bf16.mxu0 0
        %3437 = vmatpush1.bf16.msra.mxu0 %v3358
        %3438 = vmatprep.subr.bf16.mxu0 0
        %3439 = vmatpush1.bf16.msra.mxu0 %v3359
        %3440 = vmatprep.mubr.bf16.mxu0 %v3142
        %3441 = vmatmul.mubr.bf16.gmra.mrb[0].mxu0 %v3141
        %v3442 = vpop.f32.mrb[0].mxu0
        %v3443 = vadd.f32 %v3214, %v3442
        %v3444 = vpop.f32.mrb[0].mxu0
        %v3445 = vpop.f32.mrb[0].mxu0
        %v3446 = vpop.f32.mrb[0].mxu0
        %3447 = vdwg.mxu0
        %3448 = vmatprep.subr.bf16.mxu0 0
        %3449 = vmatpush1.bf16.msra.mxu0 %v3360
        %3450 = vmatprep.subr.bf16.mxu0 0
        %3451 = vmatpush1.bf16.msra.mxu0 %v3361
        %3452 = vmatprep.subr.bf16.mxu0 0
        %3453 = vmatpush1.bf16.msra.mxu0 %v3362
        %3454 = vmatprep.subr.bf16.mxu0 0
        %3455 = vmatpush1.bf16.msra.mxu0 %v3363
        %3456 = vmatprep.subr.bf16.mxu0 0
        %3457 = vmatpush1.bf16.msra.mxu0 %v3364
        %3458 = vmatprep.subr.bf16.mxu0 0
        %3459 = vmatpush1.bf16.msra.mxu0 %v3365
        %3460 = vmatprep.subr.bf16.mxu0 0
        %3461 = vmatpush1.bf16.msra.mxu0 %v3366
        %3462 = vmatprep.subr.bf16.mxu0 0
        %3463 = vmatpush1.bf16.msra.mxu0 %v3367
        %3464 = vmatprep.subr.bf16.mxu0 0
        %3465 = vmatpush1.bf16.msra.mxu0 %v3368
        %3466 = vmatprep.subr.bf16.mxu0 0
        %3467 = vmatpush1.bf16.msra.mxu0 %v3369
        %3468 = vmatprep.subr.bf16.mxu0 0
        %3469 = vmatpush1.bf16.msra.mxu0 %v3370
        %3470 = vmatprep.subr.bf16.mxu0 0
        %3471 = vmatpush1.bf16.msra.mxu0 %v3371
        %3472 = vmatprep.subr.bf16.mxu0 0
        %3473 = vmatpush1.bf16.msra.mxu0 %v3372
        %3474 = vmatprep.subr.bf16.mxu0 0
        %3475 = vmatpush1.bf16.msra.mxu0 %v3373
        %3476 = vmatprep.subr.bf16.mxu0 0
        %3477 = vmatpush1.bf16.msra.mxu0 %v3374
        %3478 = vmatprep.subr.bf16.mxu0 0
        %3479 = vmatpush1.bf16.msra.mxu0 %v3375
        %3480 = vmatprep.mubr.bf16.mxu0 %v3144
        %3481 = vmatmul.mubr.bf16.gmra.mrb[0].mxu0 %v3143
        %v3482 = vpop.f32.mrb[0].mxu0
        %v3483 = vadd.f32 %v3443, %v3482
        %v3484 = vpop.f32.mrb[0].mxu0
        %v3485 = vpop.f32.mrb[0].mxu0
        %v3486 = vpop.f32.mrb[0].mxu0
        %3487 = vdwg.mxu0
        %v3488 = vadd.f32 %v3483, %v2839
        %3489 = vadd.xlane.f32.xlu0 %v3488
        %v3490 = vpop.xlane.xlu0 %3489
        %v3491 = vmul.f32 %v3490, %v1781
        %v3492 = vsub.f32 %v3488, %v3491
        %v3493 = vmul.f32 %v3492, %v3492
        %3494 = vadd.xlane.f32.xlu0 %v3493
        %v3495 = vpop.xlane.xlu0 %3494
        %v3496 = vmul.f32 %v3495, %v1781
        %v3497 = vadd.f32 %v3496, 1e-05
        %v3498 = vrsqrt.pop %v3497
        %v3499 = vmul.f32 %v3492, %v3498
        %v3500 = vld [vmem:[%s22] sm:$0x1]
        %v3502 = vlaneseq
        %v3503 = vshrl.u32 %v3502, 7
        %v3504 = vsub.s32 0, %v3503
        %v3505 = vrot.slane %v3500, %v3504
        %v3507 = vmul.f32 %v3499, %v3505
        %v3508 = vld [vmem:[%s23] sm:$0x1]
        %v3510 = vlaneseq
        %v3511 = vshrl.u32 %v3510, 7
        %v3512 = vsub.s32 0, %v3511
        %v3513 = vrot.slane %v3508, %v3512
        %v3515 = vadd.f32 %v3507, %v3513
        %3516 = vst [vmem:[%s754] sm:$0xff] %v3515
        %s3517 = sand.u32 %s565, 1
        %s3518 = scalar_lea.sflag [#allocation3], %s3517
        %s3519 = sand.u32 %s565, 1
        %s3520 = smul.addr %s3519, 8
        %s3521 = scalar_lea.vmem [#allocation2], %s3520
        // Predicated region
        $region117: #{decoder_block.1} parent=115 // pred_check
          %p3522 = pneg %p575
        $region118: #{decoder_block.1} parent=115 // pred_check_branch
          %3524 = sbr.rel (%p3522) target = $region120
        $region119: #{decoder_block.1} parent=115 // pred_region
          %s3526 = ssub.s32 128, 128
          %3527 = vsyncadd %s3518, %s3526
          %s3528 = smul.addr %s38, 128
          %s3529 = scalar_lea.hbm %s24, %s3528
          %s3531 = sshll.u32 %s3521, 4
          %s3532 = int_to_ptr.vmem [resolvable:$true] %s3531
          %3534 = dma.vmem_to_hbm [thread:$0]  %s3532, 128, %s3529, %s3518
        $region120: #{decoder_block.1} parent=115 // pred_fallthru
          _
      $region116: #{decoder_block.1} parent=5 // pred_fallthru
        _
      %p3535 = scmp.le.s32.totalorder 2, %s33
      // Predicated region
      $region121: #{decoder_block.1} parent=5 // pred_check
        %p3536 = pneg %p3535
      $region122: #{decoder_block.1} parent=5 // pred_check_branch
        %3538 = sbr.rel (%p3536) target = $region124
      $region123: #{decoder_block.1} parent=5 // pred_region
        %s3539 = ssub.s32 %s33, 2
        // Predicated region
        $region125: #{decoder_block.1} parent=123 // pred_check
          %p3540 = pneg %p581
        $region126: #{decoder_block.1} parent=123 // pred_check_branch
          %3542 = sbr.rel (%p3540) target = $region128
        $region127: #{decoder_block.1} parent=123 // pred_region
          %s3543 = sand.u32 %s566, 1
          %s3544 = scalar_lea.sflag [#allocation3], %s3543
          %s3545 = sand.u32 %s566, 1
          %s3546 = smul.addr %s3545, 8
          %s3547 = scalar_lea.vmem [#allocation2], %s3546
          %3548 = dma.done %s3544, 128
        $region128: #{decoder_block.1} parent=123 // pred_fallthru
          _
      $region124: #{decoder_block.1} parent=5 // pred_fallthru
        _
    $region6: #{decoder_block.1} parent=1 // loop_footer
      %s37 = sadd.s32 1, %s33
    $region7: #{decoder_block.1} parent=1 // loop_footer_branch
      %32 = sbr.rel target = $region3
    $region8: #{decoder_block.1} parent=1 // loop_exit
      _
    %3549 = vsyncpa [#allocation3], 1
    %s3550 = scalar_lea.sflag [#allocation3], 1
    %3551 = vsyncpa %s3550, 1

// kernel: decoder_block.1
$region0: #{decoder_block.1}
  #allocation0 [shape = 'u32[]', space=smem, size = 0x4, offset = 0x4, fixed_abs, tag = 'smem constant byte address 0x4 - core index']
  #allocation1 [shape = 'u32[144,128]{1,0:T(1,128)}', space=vmem, size = 0x12000, scoped, tag = 'internal scratch']
  %s0 = inlined_call_operand.vmem [shape: f32[2,8,128], index: 0, kind: input, shape index: {}]
  %s1 = inlined_call_operand.vmem [shape: f32[2,8,128], index: 1, kind: input, shape index: {}]
  %s2 = inlined_call_operand.vmem [shape: f32[2,8,128], index: 2, kind: input, shape index: {}]
  %s3 = inlined_call_operand.vmem [shape: f32[8,8], index: 3, kind: input, shape index: {}]
  %s4 = inlined_call_operand.vmem [shape: bf16[128,128], index: 4, kind: input, shape index: {}]
  %s5 = inlined_call_operand.vmem [shape: bf16[128,128], index: 5, kind: input, shape index: {}]
  %s6 = inlined_call_operand.vmem [shape: bf16[128,128], index: 6, kind: input, shape index: {}]
  %s7 = inlined_call_operand.vmem [shape: bf16[128,128], index: 7, kind: input, shape index: {}]
  %s8 = inlined_call_operand.vmem [shape: f32[1,128], index: 8, kind: input, shape index: {}]
  %s9 = inlined_call_operand.vmem [shape: f32[1,128], index: 9, kind: input, shape index: {}]
  %s10 = inlined_call_operand.vmem [shape: f32[1,128], index: 10, kind: input, shape index: {}]
  %s11 = inlined_call_operand.vmem [shape: bf16[128,128], index: 11, kind: input, shape index: {}]
  %s12 = inlined_call_operand.vmem [shape: bf16[128,128], index: 12, kind: input, shape index: {}]
  %s13 = inlined_call_operand.vmem [shape: bf16[128,128], index: 13, kind: input, shape index: {}]
  %s14 = inlined_call_operand.vmem [shape: bf16[128,128], index: 14, kind: input, shape index: {}]
  %s15 = inlined_call_operand.vmem [shape: f32[1,128], index: 15, kind: input, shape index: {}]
  %s16 = inlined_call_operand.vmem [shape: f32[1,128], index: 16, kind: input, shape index: {}]
  %s17 = inlined_call_operand.vmem [shape: f32[1,128], index: 17, kind: input, shape index: {}]
  %s18 = inlined_call_operand.vmem [shape: bf16[128,512], index: 18, kind: input, shape index: {}]
  %s19 = inlined_call_operand.vmem [shape: f32[1,512], index: 19, kind: input, shape index: {}]
  %s20 = inlined_call_operand.vmem [shape: bf16[512,128], index: 20, kind: input, shape index: {}]
  %s21 = inlined_call_operand.vmem [shape: f32[1,128], index: 21, kind: input, shape index: {}]
  %s22 = inlined_call_operand.vmem [shape: f32[1,128], index: 22, kind: input, shape index: {}]
  %s23 = inlined_call_operand.vmem [shape: f32[1,128], index: 23, kind: input, shape index: {}]
  %s24 = inlined_call_operand.hbm [shape: f32[2,8,128], index: 24, kind: output, shape index: {}]
  %s25 = sld [smem:[#allocation0]]
  $region129: #{decoder_block.1} parent=0
    _
  %s27 = ssub.s32 1, %s25
  %s28 = scalar_select 0, %s27, %s25
  $region1: #{decoder_block.1} parent=0
    #allocation2 [shape = 'u8[8192]{0}', space=vmem, size = 0x2000, scoped, tag = 'output window, operand 0']
    #allocation3 [shape = 's32[2]{0}', space=sflag, size = 0x8, scoped, tag = 'scoped memory for decoder_block.1']
    %29 = vsyncpa [#allocation3], 0
    %s30 = scalar_lea.sflag [#allocation3], 1
    %31 = vsyncpa %s30, 0
    loop: start=0, step=1, limit=4
    $region2: #{decoder_block.1} parent=1 // loop_pre_header
      _
    $region3: #{decoder_block.1} parent=1 // loop_header
      %s33 = sphi 0, %s37
      %p34 = scmp.ge.s32.totalorder %s33, 4
      %s43 = sphi 0, %s45
      %s46 = sphi 0, %s43
      %s47 = sphi 0, %s46
      %s63 = sphi 0, %s47
      %s69 = sphi 0, %s71
      %s72 = sphi 0, %s69
      %s73 = sphi 0, %s72
      %s89 = sphi 0, %s73
      %s95 = sphi 0, %s97
      %s98 = sphi 0, %s95
      %s99 = sphi 0, %s98
      %s115 = sphi 0, %s99
      %s119 = sphi 0, %s119
      %s121 = sphi 0, %s119
      %s122 = sphi 0, %s121
      %s136 = sphi 0, %s122
      %s140 = sphi 0, %s140
      %s142 = sphi 0, %s140
      %s143 = sphi 0, %s142
      %s157 = sphi 0, %s143
      %s161 = sphi 0, %s161
      %s163 = sphi 0, %s161
      %s164 = sphi 0, %s163
      %s178 = sphi 0, %s164
      %s182 = sphi 0, %s182
      %s184 = sphi 0, %s182
      %s185 = sphi 0, %s184
      %s199 = sphi 0, %s185
      %s203 = sphi 0, %s203
      %s205 = sphi 0, %s203
      %s206 = sphi 0, %s205
      %s220 = sphi 0, %s206
      %s224 = sphi 0, %s224
      %s226 = sphi 0, %s224
      %s227 = sphi 0, %s226
      %s241 = sphi 0, %s227
      %s245 = sphi 0, %s245
      %s247 = sphi 0, %s245
      %s248 = sphi 0, %s247
      %s262 = sphi 0, %s248
      %s266 = sphi 0, %s266
      %s268 = sphi 0, %s266
      %s269 = sphi 0, %s268
      %s283 = sphi 0, %s269
      %s287 = sphi 0, %s287
      %s289 = sphi 0, %s287
      %s290 = sphi 0, %s289
      %s304 = sphi 0, %s290
      %s308 = sphi 0, %s308
      %s310 = sphi 0, %s308
      %s311 = sphi 0, %s310
      %s325 = sphi 0, %s311
      %s329 = sphi 0, %s329
      %s331 = sphi 0, %s329
      %s332 = sphi 0, %s331
      %s346 = sphi 0, %s332
      %s350 = sphi 0, %s350
      %s352 = sphi 0, %s350
      %s353 = sphi 0, %s352
      %s367 = sphi 0, %s353
      %s371 = sphi 0, %s371
      %s373 = sphi 0, %s371
      %s374 = sphi 0, %s373
      %s388 = sphi 0, %s374
      %s392 = sphi 0, %s392
      %s394 = sphi 0, %s392
      %s395 = sphi 0, %s394
      %s409 = sphi 0, %s395
      %s413 = sphi 0, %s413
      %s415 = sphi 0, %s413
      %s416 = sphi 0, %s415
      %s430 = sphi 0, %s416
      %s434 = sphi 0, %s434
      %s436 = sphi 0, %s434
      %s437 = sphi 0, %s436
      %s451 = sphi 0, %s437
      %s455 = sphi 0, %s455
      %s457 = sphi 0, %s455
      %s458 = sphi 0, %s457
      %s472 = sphi 0, %s458
      %s476 = sphi 0, %s476
      %s478 = sphi 0, %s476
      %s479 = sphi 0, %s478
      %s493 = sphi 0, %s479
      %s497 = sphi 0, %s497
      %s499 = sphi 0, %s497
      %s500 = sphi 0, %s499
      %s514 = sphi 0, %s500
      %s518 = sphi 0, %s518
      %s520 = sphi 0, %s518
      %s521 = sphi 0, %s520
      %s535 = sphi 0, %s521
      %s539 = sphi 0, %s539
      %s541 = sphi 0, %s539
      %s542 = sphi 0, %s541
      %s556 = sphi 0, %s542
      %s562 = sphi 0, %s564
      %s565 = sphi 0, %s562
      %s566 = sphi 0, %s565
      %s582 = sphi 0, %s566
    $region4: #{decoder_block.1} parent=1 // loop_header_branch
      %36 = sbr.rel (%p34) target = $region8
    $region5: #{decoder_block.1} parent=1 // loop_body
      %s38 = ssub.s32 %s33, 1
      %s39 = ssub.s32 %s33, 2
      %s40 = sadd.s32 %s33, 1
      %s41 = ssub.s32 %s33, %s40
      %p42 = scmp.eq.s32.totalorder %s41, 0
      %s44 = sadd.s32 %s43, 1
      %s45 = scalar_select %p42, %s43, %s44
      %p48 = pneg %p42
      %p49 = scmp.eq.s32.totalorder %s33, 1
      %p50 = por %p48, %p49
      %p51 = scmp.ne.s32.totalorder %s43, %s46
      %p52 = scmp.eq.s32.totalorder %s33, 0
      %p53 = por %p51, %p52
      %p54 = scmp.ne.s32.totalorder %s43, %s46
      %p55 = scmp.eq.s32.totalorder %s38, 1
      %p56 = por %p54, %p55
      %p57 = scmp.ne.s32.totalorder %s46, %s47
      %p58 = scmp.eq.s32.totalorder %s38, 0
      %p59 = por %p57, %p58
      %p60 = scmp.ne.s32.totalorder %s46, %s47
      %p61 = scmp.eq.s32.totalorder %s39, 1
      %p62 = por %p60, %p61
      %p64 = scmp.ne.s32.totalorder %s47, %s63
      %p65 = scmp.eq.s32.totalorder %s39, 0
      %p66 = por %p64, %p65
      %s67 = ssub.s32 %s33, %s40
      %p68 = scmp.eq.s32.totalorder %s67, 0
      %s70 = sadd.s32 %s69, 1
      %s71 = scalar_select %p68, %s69, %s70
      %p74 = pneg %p68
      %p75 = scmp.eq.s32.totalorder %s33, 1
      %p76 = por %p74, %p75
      %p77 = scmp.ne.s32.totalorder %s69, %s72
      %p78 = scmp.eq.s32.totalorder %s33, 0
      %p79 = por %p77, %p78
      %p80 = scmp.ne.s32.totalorder %s69, %s72
      %p81 = scmp.eq.s32.totalorder %s38, 1
      %p82 = por %p80, %p81
      %p83 = scmp.ne.s32.totalorder %s72, %s73
      %p84 = scmp.eq.s32.totalorder %s38, 0
      %p85 = por %p83, %p84
      %p86 = scmp.ne.s32.totalorder %s72, %s73
      %p87 = scmp.eq.s32.totalorder %s39, 1
      %p88 = por %p86, %p87
      %p90 = scmp.ne.s32.totalorder %s73, %s89
      %p91 = scmp.eq.s32.totalorder %s39, 0
      %p92 = por %p90, %p91
      %s93 = ssub.s32 %s33, %s40
      %p94 = scmp.eq.s32.totalorder %s93, 0
      %s96 = sadd.s32 %s95, 1
      %s97 = scalar_select %p94, %s95, %s96
      %p100 = pneg %p94
      %p101 = scmp.eq.s32.totalorder %s33, 1
      %p102 = por %p100, %p101
      %p103 = scmp.ne.s32.totalorder %s95, %s98
      %p104 = scmp.eq.s32.totalorder %s33, 0
      %p105 = por %p103, %p104
      %p106 = scmp.ne.s32.totalorder %s95, %s98
      %p107 = scmp.eq.s32.totalorder %s38, 1
      %p108 = por %p106, %p107
      %p109 = scmp.ne.s32.totalorder %s98, %s99
      %p110 = scmp.eq.s32.totalorder %s38, 0
      %p111 = por %p109, %p110
      %p112 = scmp.ne.s32.totalorder %s98, %s99
      %p113 = scmp.eq.s32.totalorder %s39, 1
      %p114 = por %p112, %p113
      %p116 = scmp.ne.s32.totalorder %s99, %s115
      %p117 = scmp.eq.s32.totalorder %s39, 0
      %p118 = por %p116, %p117
      %s120 = sadd.s32 %s119, 1
      %p123 = scmp.eq.s32.totalorder %s33, 1
      %p124 = scmp.ne.s32.totalorder %s119, %s121
      %p125 = scmp.eq.s32.totalorder %s33, 0
      %p126 = por %p124, %p125
      %p127 = scmp.ne.s32.totalorder %s119, %s121
      %p128 = scmp.eq.s32.totalorder %s38, 1
      %p129 = por %p127, %p128
      %p130 = scmp.ne.s32.totalorder %s121, %s122
      %p131 = scmp.eq.s32.totalorder %s38, 0
      %p132 = por %p130, %p131
      %p133 = scmp.ne.s32.totalorder %s121, %s122
      %p134 = scmp.eq.s32.totalorder %s39, 1
      %p135 = por %p133, %p134
      %p137 = scmp.ne.s32.totalorder %s122, %s136
      %p138 = scmp.eq.s32.totalorder %s39, 0
      %p139 = por %p137, %p138
      %s141 = sadd.s32 %s140, 1
      %p144 = scmp.eq.s32.totalorder %s33, 1
      %p145 = scmp.ne.s32.totalorder %s140, %s142
      %p146 = scmp.eq.s32.totalorder %s33, 0
      %p147 = por %p145, %p146
      %p148 = scmp.ne.s32.totalorder %s140, %s142
      %p149 = scmp.eq.s32.totalorder %s38, 1
      %p150 = por %p148, %p149
      %p151 = scmp.ne.s32.totalorder %s142, %s143
      %p152 = scmp.eq.s32.totalorder %s38, 0
      %p153 = por %p151, %p152
      %p154 = scmp.ne.s32.totalorder %s142, %s143
      %p155 = scmp.eq.s32.totalorder %s39, 1
      %p156 = por %p154, %p155
      %p158 = scmp.ne.s32.totalorder %s143, %s157
      %p159 = scmp.eq.s32.totalorder %s39, 0
      %p160 = por %p158, %p159
      %s162 = sadd.s32 %s161, 1
      %p165 = scmp.eq.s32.totalorder %s33, 1
      %p166 = scmp.ne.s32.totalorder %s161, %s163
      %p167 = scmp.eq.s32.totalorder %s33, 0
      %p168 = por %p166, %p167
      %p169 = scmp.ne.s32.totalorder %s161, %s163
      %p170 = scmp.eq.s32.totalorder %s38, 1
      %p171 = por %p169, %p170
      %p172 = scmp.ne.s32.totalorder %s163, %s164
      %p173 = scmp.eq.s32.totalorder %s38, 0
      %p174 = por %p172, %p173
      %p175 = scmp.ne.s32.totalorder %s163, %s164
      %p176 = scmp.eq.s32.totalorder %s39, 1
      %p177 = por %p175, %p176
      %p179 = scmp.ne.s32.totalorder %s164, %s178
      %p180 = scmp.eq.s32.totalorder %s39, 0
      %p181 = por %p179, %p180
      %s183 = sadd.s32 %s182, 1
      %p186 = scmp.eq.s32.totalorder %s33, 1
      %p187 = scmp.ne.s32.totalorder %s182, %s184
      %p188 = scmp.eq.s32.totalorder %s33, 0
      %p189 = por %p187, %p188
      %p190 = scmp.ne.s32.totalorder %s182, %s184
      %p191 = scmp.eq.s32.totalorder %s38, 1
      %p192 = por %p190, %p191
      %p193 = scmp.ne.s32.totalorder %s184, %s185
      %p194 = scmp.eq.s32.totalorder %s38, 0
      %p195 = por %p193, %p194
      %p196 = scmp.ne.s32.totalorder %s184, %s185
      %p197 = scmp.eq.s32.totalorder %s39, 1
      %p198 = por %p196, %p197
      %p200 = scmp.ne.s32.totalorder %s185, %s199
      %p201 = scmp.eq.s32.totalorder %s39, 0
      %p202 = por %p200, %p201
      %s204 = sadd.s32 %s203, 1
      %p207 = scmp.eq.s32.totalorder %s33, 1
      %p208 = scmp.ne.s32.totalorder %s203, %s205
      %p209 = scmp.eq.s32.totalorder %s33, 0
      %p210 = por %p208, %p209
      %p211 = scmp.ne.s32.totalorder %s203, %s205
      %p212 = scmp.eq.s32.totalorder %s38, 1
      %p213 = por %p211, %p212
      %p214 = scmp.ne.s32.totalorder %s205, %s206
      %p215 = scmp.eq.s32.totalorder %s38, 0
      %p216 = por %p214, %p215
      %p217 = scmp.ne.s32.totalorder %s205, %s206
      %p218 = scmp.eq.s32.totalorder %s39, 1
      %p219 = por %p217, %p218
      %p221 = scmp.ne.s32.totalorder %s206, %s220
      %p222 = scmp.eq.s32.totalorder %s39, 0
      %p223 = por %p221, %p222
      %s225 = sadd.s32 %s224, 1
      %p228 = scmp.eq.s32.totalorder %s33, 1
      %p229 = scmp.ne.s32.totalorder %s224, %s226
      %p230 = scmp.eq.s32.totalorder %s33, 0
      %p231 = por %p229, %p230
      %p232 = scmp.ne.s32.totalorder %s224, %s226
      %p233 = scmp.eq.s32.totalorder %s38, 1
      %p234 = por %p232, %p233
      %p235 = scmp.ne.s32.totalorder %s226, %s227
      %p236 = scmp.eq.s32.totalorder %s38, 0
      %p237 = por %p235, %p236
      %p238 = scmp.ne.s32.totalorder %s226, %s227
      %p239 = scmp.eq.s32.totalorder %s39, 1
      %p240 = por %p238, %p239
      %p242 = scmp.ne.s32.totalorder %s227, %s241
      %p243 = scmp.eq.s32.totalorder %s39, 0
      %p244 = por %p242, %p243
      %s246 = sadd.s32 %s245, 1
      %p249 = scmp.eq.s32.totalorder %s33, 1
      %p250 = scmp.ne.s32.totalorder %s245, %s247
      %p251 = scmp.eq.s32.totalorder %s33, 0
      %p252 = por %p250, %p251
      %p253 = scmp.ne.s32.totalorder %s245, %s247
      %p254 = scmp.eq.s32.totalorder %s38, 1
      %p255 = por %p253, %p254
      %p256 = scmp.ne.s32.totalorder %s247, %s248
      %p257 = scmp.eq.s32.totalorder %s38, 0
      %p258 = por %p256, %p257
      %p259 = scmp.ne.s32.totalorder %s247, %s248
      %p260 = scmp.eq.s32.totalorder %s39, 1
      %p261 = por %p259, %p260
      %p263 = scmp.ne.s32.totalorder %s248, %s262
      %p264 = scmp.eq.s32.totalorder %s39, 0
      %p265 = por %p263, %p264
      %s267 = sadd.s32 %s266, 1
      %p270 = scmp.eq.s32.totalorder %s33, 1
      %p271 = scmp.ne.s32.totalorder %s266, %s268
      %p272 = scmp.eq.s32.totalorder %s33, 0
      %p273 = por %p271, %p272
      %p274 = scmp.ne.s32.totalorder %s266, %s268
      %p275 = scmp.eq.s32.totalorder %s38, 1
      %p276 = por %p274, %p275
      %p277 = scmp.ne.s32.totalorder %s268, %s269
      %p278 = scmp.eq.s32.totalorder %s38, 0
      %p279 = por %p277, %p278
      %p280 = scmp.ne.s32.totalorder %s268, %s269
      %p281 = scmp.eq.s32.totalorder %s39, 1
      %p282 = por %p280, %p281
      %p284 = scmp.ne.s32.totalorder %s269, %s283
      %p285 = scmp.eq.s32.totalorder %s39, 0
      %p286 = por %p284, %p285
      %s288 = sadd.s32 %s287, 1
      %p291 = scmp.eq.s32.totalorder %s33, 1
      %p292 = scmp.ne.s32.totalorder %s287, %s289
      %p293 = scmp.eq.s32.totalorder %s33, 0
      %p294 = por %p292, %p293
      %p295 = scmp.ne.s32.totalorder %s287, %s289
      %p296 = scmp.eq.s32.totalorder %s38, 1
      %p297 = por %p295, %p296
      %p298 = scmp.ne.s32.totalorder %s289, %s290
      %p299 = scmp.eq.s32.totalorder %s38, 0
      %p300 = por %p298, %p299
      %p301 = scmp.ne.s32.totalorder %s289, %s290
      %p302 = scmp.eq.s32.totalorder %s39, 1
      %p303 = por %p301, %p302
      %p305 = scmp.ne.s32.totalorder %s290, %s304
      %p306 = scmp.eq.s32.totalorder %s39, 0
      %p307 = por %p305, %p306
      %s309 = sadd.s32 %s308, 1
      %p312 = scmp.eq.s32.totalorder %s33, 1
      %p313 = scmp.ne.s32.totalorder %s308, %s310
      %p314 = scmp.eq.s32.totalorder %s33, 0
      %p315 = por %p313, %p314
      %p316 = scmp.ne.s32.totalorder %s308, %s310
      %p317 = scmp.eq.s32.totalorder %s38, 1
      %p318 = por %p316, %p317
      %p319 = scmp.ne.s32.totalorder %s310, %s311
      %p320 = scmp.eq.s32.totalorder %s38, 0
      %p321 = por %p319, %p320
      %p322 = scmp.ne.s32.totalorder %s310, %s311
      %p323 = scmp.eq.s32.totalorder %s39, 1
      %p324 = por %p322, %p323
      %p326 = scmp.ne.s32.totalorder %s311, %s325
      %p327 = scmp.eq.s32.totalorder %s39, 0
      %p328 = por %p326, %p327
      %s330 = sadd.s32 %s329, 1
      %p333 = scmp.eq.s32.totalorder %s33, 1
      %p334 = scmp.ne.s32.totalorder %s329, %s331
      %p335 = scmp.eq.s32.totalorder %s33, 0
      %p336 = por %p334, %p335
      %p337 = scmp.ne.s32.totalorder %s329, %s331
      %p338 = scmp.eq.s32.totalorder %s38, 1
      %p339 = por %p337, %p338
      %p340 = scmp.ne.s32.totalorder %s331, %s332
      %p341 = scmp.eq.s32.totalorder %s38, 0
      %p342 = por %p340, %p341
      %p343 = scmp.ne.s32.totalorder %s331, %s332
      %p344 = scmp.eq.s32.totalorder %s39, 1
      %p345 = por %p343, %p344
      %p347 = scmp.ne.s32.totalorder %s332, %s346
      %p348 = scmp.eq.s32.totalorder %s39, 0
      %p349 = por %p347, %p348
      %s351 = sadd.s32 %s350, 1
      %p354 = scmp.eq.s32.totalorder %s33, 1
      %p355 = scmp.ne.s32.totalorder %s350, %s352
      %p356 = scmp.eq.s32.totalorder %s33, 0
      %p357 = por %p355, %p356
      %p358 = scmp.ne.s32.totalorder %s350, %s352
      %p359 = scmp.eq.s32.totalorder %s38, 1
      %p360 = por %p358, %p359
      %p361 = scmp.ne.s32.totalorder %s352, %s353
      %p362 = scmp.eq.s32.totalorder %s38, 0
      %p363 = por %p361, %p362
      %p364 = scmp.ne.s32.totalorder %s352, %s353
      %p365 = scmp.eq.s32.totalorder %s39, 1
      %p366 = por %p364, %p365
      %p368 = scmp.ne.s32.totalorder %s353, %s367
      %p369 = scmp.eq.s32.totalorder %s39, 0
      %p370 = por %p368, %p369
      %s372 = sadd.s32 %s371, 1
      %p375 = scmp.eq.s32.totalorder %s33, 1
      %p376 = scmp.ne.s32.totalorder %s371, %s373
      %p377 = scmp.eq.s32.totalorder %s33, 0
      %p378 = por %p376, %p377
      %p379 = scmp.ne.s32.totalorder %s371, %s373
      %p380 = scmp.eq.s32.totalorder %s38, 1
      %p381 = por %p379, %p380
      %p382 = scmp.ne.s32.totalorder %s373, %s374
      %p383 = scmp.eq.s32.totalorder %s38, 0
      %p384 = por %p382, %p383
      %p385 = scmp.ne.s32.totalorder %s373, %s374
      %p386 = scmp.eq.s32.totalorder %s39, 1
      %p387 = por %p385, %p386
      %p389 = scmp.ne.s32.totalorder %s374, %s388
      %p390 = scmp.eq.s32.totalorder %s39, 0
      %p391 = por %p389, %p390
      %s393 = sadd.s32 %s392, 1
      %p396 = scmp.eq.s32.totalorder %s33, 1
      %p397 = scmp.ne.s32.totalorder %s392, %s394
      %p398 = scmp.eq.s32.totalorder %s33, 0
      %p399 = por %p397, %p398
      %p400 = scmp.ne.s32.totalorder %s392, %s394
      %p401 = scmp.eq.s32.totalorder %s38, 1
      %p402 = por %p400, %p401
      %p403 = scmp.ne.s32.totalorder %s394, %s395
      %p404 = scmp.eq.s32.totalorder %s38, 0
      %p405 = por %p403, %p404
      %p406 = scmp.ne.s32.totalorder %s394, %s395
      %p407 = scmp.eq.s32.totalorder %s39, 1
      %p408 = por %p406, %p407
      %p410 = scmp.ne.s32.totalorder %s395, %s409
      %p411 = scmp.eq.s32.totalorder %s39, 0
      %p412 = por %p410, %p411
      %s414 = sadd.s32 %s413, 1
      %p417 = scmp.eq.s32.totalorder %s33, 1
      %p418 = scmp.ne.s32.totalorder %s413, %s415
      %p419 = scmp.eq.s32.totalorder %s33, 0
      %p420 = por %p418, %p419
      %p421 = scmp.ne.s32.totalorder %s413, %s415
      %p422 = scmp.eq.s32.totalorder %s38, 1
      %p423 = por %p421, %p422
      %p424 = scmp.ne.s32.totalorder %s415, %s416
      %p425 = scmp.eq.s32.totalorder %s38, 0
      %p426 = por %p424, %p425
      %p427 = scmp.ne.s32.totalorder %s415, %s416
      %p428 = scmp.eq.s32.totalorder %s39, 1
      %p429 = por %p427, %p428
      %p431 = scmp.ne.s32.totalorder %s416, %s430
      %p432 = scmp.eq.s32.totalorder %s39, 0
      %p433 = por %p431, %p432
      %s435 = sadd.s32 %s434, 1
      %p438 = scmp.eq.s32.totalorder %s33, 1
      %p439 = scmp.ne.s32.totalorder %s434, %s436
      %p440 = scmp.eq.s32.totalorder %s33, 0
      %p441 = por %p439, %p440
      %p442 = scmp.ne.s32.totalorder %s434, %s436
      %p443 = scmp.eq.s32.totalorder %s38, 1
      %p444 = por %p442, %p443
      %p445 = scmp.ne.s32.totalorder %s436, %s437
      %p446 = scmp.eq.s32.totalorder %s38, 0
      %p447 = por %p445, %p446
      %p448 = scmp.ne.s32.totalorder %s436, %s437
      %p449 = scmp.eq.s32.totalorder %s39, 1
      %p450 = por %p448, %p449
      %p452 = scmp.ne.s32.totalorder %s437, %s451
      %p453 = scmp.eq.s32.totalorder %s39, 0
      %p454 = por %p452, %p453
      %s456 = sadd.s32 %s455, 1
      %p459 = scmp.eq.s32.totalorder %s33, 1
      %p460 = scmp.ne.s32.totalorder %s455, %s457
      %p461 = scmp.eq.s32.totalorder %s33, 0
      %p462 = por %p460, %p461
      %p463 = scmp.ne.s32.totalorder %s455, %s457
      %p464 = scmp.eq.s32.totalorder %s38, 1
      %p465 = por %p463, %p464
      %p466 = scmp.ne.s32.totalorder %s457, %s458
      %p467 = scmp.eq.s32.totalorder %s38, 0
      %p468 = por %p466, %p467
      %p469 = scmp.ne.s32.totalorder %s457, %s458
      %p470 = scmp.eq.s32.totalorder %s39, 1
      %p471 = por %p469, %p470
      %p473 = scmp.ne.s32.totalorder %s458, %s472
      %p474 = scmp.eq.s32.totalorder %s39, 0
      %p475 = por %p473, %p474
      %s477 = sadd.s32 %s476, 1
      %p480 = scmp.eq.s32.totalorder %s33, 1
      %p481 = scmp.ne.s32.totalorder %s476, %s478
      %p482 = scmp.eq.s32.totalorder %s33, 0
      %p483 = por %p481, %p482
      %p484 = scmp.ne.s32.totalorder %s476, %s478
      %p485 = scmp.eq.s32.totalorder %s38, 1
      %p486 = por %p484, %p485
      %p487 = scmp.ne.s32.totalorder %s478, %s479
      %p488 = scmp.eq.s32.totalorder %s38, 0
      %p489 = por %p487, %p488
      %p490 = scmp.ne.s32.totalorder %s478, %s479
      %p491 = scmp.eq.s32.totalorder %s39, 1
      %p492 = por %p490, %p491
      %p494 = scmp.ne.s32.totalorder %s479, %s493
      %p495 = scmp.eq.s32.totalorder %s39, 0
      %p496 = por %p494, %p495
      %s498 = sadd.s32 %s497, 1
      %p501 = scmp.eq.s32.totalorder %s33, 1
      %p502 = scmp.ne.s32.totalorder %s497, %s499
      %p503 = scmp.eq.s32.totalorder %s33, 0
      %p504 = por %p502, %p503
      %p505 = scmp.ne.s32.totalorder %s497, %s499
      %p506 = scmp.eq.s32.totalorder %s38, 1
      %p507 = por %p505, %p506
      %p508 = scmp.ne.s32.totalorder %s499, %s500
      %p509 = scmp.eq.s32.totalorder %s38, 0
      %p510 = por %p508, %p509
      %p511 = scmp.ne.s32.totalorder %s499, %s500
      %p512 = scmp.eq.s32.totalorder %s39, 1
      %p513 = por %p511, %p512
      %p515 = scmp.ne.s32.totalorder %s500, %s514
      %p516 = scmp.eq.s32.totalorder %s39, 0
      %p517 = por %p515, %p516
      %s519 = sadd.s32 %s518, 1
      %p522 = scmp.eq.s32.totalorder %s33, 1
      %p523 = scmp.ne.s32.totalorder %s518, %s520
      %p524 = scmp.eq.s32.totalorder %s33, 0
      %p525 = por %p523, %p524
      %p526 = scmp.ne.s32.totalorder %s518, %s520
      %p527 = scmp.eq.s32.totalorder %s38, 1
      %p528 = por %p526, %p527
      %p529 = scmp.ne.s32.totalorder %s520, %s521
      %p530 = scmp.eq.s32.totalorder %s38, 0
      %p531 = por %p529, %p530
      %p532 = scmp.ne.s32.totalorder %s520, %s521
      %p533 = scmp.eq.s32.totalorder %s39, 1
      %p534 = por %p532, %p533
      %p536 = scmp.ne.s32.totalorder %s521, %s535
      %p537 = scmp.eq.s32.totalorder %s39, 0
      %p538 = por %p536, %p537
      %s540 = sadd.s32 %s539, 1
      %p543 = scmp.eq.s32.totalorder %s33, 1
      %p544 = scmp.ne.s32.totalorder %s539, %s541
      %p545 = scmp.eq.s32.totalorder %s33, 0
      %p546 = por %p544, %p545
      %p547 = scmp.ne.s32.totalorder %s539, %s541
      %p548 = scmp.eq.s32.totalorder %s38, 1
      %p549 = por %p547, %p548
      %p550 = scmp.ne.s32.totalorder %s541, %s542
      %p551 = scmp.eq.s32.totalorder %s38, 0
      %p552 = por %p550, %p551
      %p553 = scmp.ne.s32.totalorder %s541, %s542
      %p554 = scmp.eq.s32.totalorder %s39, 1
      %p555 = por %p553, %p554
      %p557 = scmp.ne.s32.totalorder %s542, %s556
      %p558 = scmp.eq.s32.totalorder %s39, 0
      %p559 = por %p557, %p558
      %s560 = ssub.s32 %s33, %s40
      %p561 = scmp.eq.s32.totalorder %s560, 0
      %s563 = sadd.s32 %s562, 1
      %s564 = scalar_select %p561, %s562, %s563
      %p567 = pneg %p561
      %p568 = scmp.eq.s32.totalorder %s33, 1
      %p569 = por %p567, %p568
      %p570 = scmp.ne.s32.totalorder %s562, %s565
      %p571 = scmp.eq.s32.totalorder %s33, 0
      %p572 = por %p570, %p571
      %p573 = scmp.ne.s32.totalorder %s562, %s565
      %p574 = scmp.eq.s32.totalorder %s38, 1
      %p575 = por %p573, %p574
      %p576 = scmp.ne.s32.totalorder %s565, %s566
      %p577 = scmp.eq.s32.totalorder %s38, 0
      %p578 = por %p576, %p577
      %p579 = scmp.ne.s32.totalorder %s565, %s566
      %p580 = scmp.eq.s32.totalorder %s39, 1
      %p581 = por %p579, %p580
      %p583 = scmp.ne.s32.totalorder %s566, %s582
      %p584 = scmp.eq.s32.totalorder %s39, 0
      %p585 = por %p583, %p584
      %p586 = scmp.le.s32.totalorder 1, %s33
      %p587 = scmp.lt.s32.totalorder %s33, 3
      %p588 = pnand %p586, %p587
      %p589 = pneg %p588
      // Predicated region
      $region9: #{decoder_block.1} parent=5 // pred_check
        _
      $region10: #{decoder_block.1} parent=5 // pred_check_branch
        %591 = sbr.rel (%p588) target = $region12
      $region11: #{decoder_block.1} parent=5 // pred_region
        %s592 = ssub.s32 %s33, 1
        // Predicated region
        $region13: #{decoder_block.1} parent=11 // pred_check
          %p593 = pneg %p132
        $region14: #{decoder_block.1} parent=11 // pred_check_branch
          %595 = sbr.rel (%p593) target = $region16
        $region15: #{decoder_block.1} parent=11 // pred_region
          _
        $region16: #{decoder_block.1} parent=11 // pred_fallthru
          _
        // Predicated region
        $region17: #{decoder_block.1} parent=11 // pred_check
          %p596 = pneg %p153
        $region18: #{decoder_block.1} parent=11 // pred_check_branch
          %598 = sbr.rel (%p596) target = $region20
        $region19: #{decoder_block.1} parent=11 // pred_region
          _
        $region20: #{decoder_block.1} parent=11 // pred_fallthru
          _
        // Predicated region
        $region21: #{decoder_block.1} parent=11 // pred_check
          %p599 = pneg %p174
        $region22: #{decoder_block.1} parent=11 // pred_check_branch
          %601 = sbr.rel (%p599) target = $region24
        $region23: #{decoder_block.1} parent=11 // pred_region
          _
        $region24: #{decoder_block.1} parent=11 // pred_fallthru
          _
        // Predicated region
        $region25: #{decoder_block.1} parent=11 // pred_check
          %p602 = pneg %p195
        $region26: #{decoder_block.1} parent=11 // pred_check_branch
          %604 = sbr.rel (%p602) target = $region28
        $region27: #{decoder_block.1} parent=11 // pred_region
          _
        $region28: #{decoder_block.1} parent=11 // pred_fallthru
          _
        // Predicated region
        $region29: #{decoder_block.1} parent=11 // pred_check
          %p605 = pneg %p216
        $region30: #{decoder_block.1} parent=11 // pred_check_branch
          %607 = sbr.rel (%p605) target = $region32
        $region31: #{decoder_block.1} parent=11 // pred_region
          _
        $region32: #{decoder_block.1} parent=11 // pred_fallthru
          _
        // Predicated region
        $region33: #{decoder_block.1} parent=11 // pred_check
          %p608 = pneg %p237
        $region34: #{decoder_block.1} parent=11 // pred_check_branch
          %610 = sbr.rel (%p608) target = $region36
        $region35: #{decoder_block.1} parent=11 // pred_region
          _
        $region36: #{decoder_block.1} parent=11 // pred_fallthru
          _
        // Predicated region
        $region37: #{decoder_block.1} parent=11 // pred_check
          %p611 = pneg %p258
        $region38: #{decoder_block.1} parent=11 // pred_check_branch
          %613 = sbr.rel (%p611) target = $region40
        $region39: #{decoder_block.1} parent=11 // pred_region
          _
        $region40: #{decoder_block.1} parent=11 // pred_fallthru
          _
        // Predicated region
        $region41: #{decoder_block.1} parent=11 // pred_check
          %p614 = pneg %p279
        $region42: #{decoder_block.1} parent=11 // pred_check_branch
          %616 = sbr.rel (%p614) target = $region44
        $region43: #{decoder_block.1} parent=11 // pred_region
          _
        $region44: #{decoder_block.1} parent=11 // pred_fallthru
          _
        // Predicated region
        $region45: #{decoder_block.1} parent=11 // pred_check
          %p617 = pneg %p300
        $region46: #{decoder_block.1} parent=11 // pred_check_branch
          %619 = sbr.rel (%p617) target = $region48
        $region47: #{decoder_block.1} parent=11 // pred_region
          _
        $region48: #{decoder_block.1} parent=11 // pred_fallthru
          _
        // Predicated region
        $region49: #{decoder_block.1} parent=11 // pred_check
          %p620 = pneg %p321
        $region50: #{decoder_block.1} parent=11 // pred_check_branch
          %622 = sbr.rel (%p620) target = $region52
        $region51: #{decoder_block.1} parent=11 // pred_region
          _
        $region52: #{decoder_block.1} parent=11 // pred_fallthru
          _
        // Predicated region
        $region53: #{decoder_block.1} parent=11 // pred_check
          %p623 = pneg %p342
        $region54: #{decoder_block.1} parent=11 // pred_check_branch
          %625 = sbr.rel (%p623) target = $region56
        $region55: #{decoder_block.1} parent=11 // pred_region
          _
        $region56: #{decoder_block.1} parent=11 // pred_fallthru
          _
        // Predicated region
        $region57: #{decoder_block.1} parent=11 // pred_check
          %p626 = pneg %p363
        $region58: #{decoder_block.1} parent=11 // pred_check_branch
          %628 = sbr.rel (%p626) target = $region60
        $region59: #{decoder_block.1} parent=11 // pred_region
          _
        $region60: #{decoder_block.1} parent=11 // pred_fallthru
          _
        // Predicated region
        $region61: #{decoder_block.1} parent=11 // pred_check
          %p629 = pneg %p384
        $region62: #{decoder_block.1} parent=11 // pred_check_branch
          %631 = sbr.rel (%p629) target = $region64
        $region63: #{decoder_block.1} parent=11 // pred_region
          _
        $region64: #{decoder_block.1} parent=11 // pred_fallthru
          _
        // Predicated region
        $region65: #{decoder_block.1} parent=11 // pred_check
          %p632 = pneg %p405
        $region66: #{decoder_block.1} parent=11 // pred_check_branch
          %634 = sbr.rel (%p632) target = $region68
        $region67: #{decoder_block.1} parent=11 // pred_region
          _
        $region68: #{decoder_block.1} parent=11 // pred_fallthru
          _
        // Predicated region
        $region69: #{decoder_block.1} parent=11 // pred_check
          %p635 = pneg %p426
        $region70: #{decoder_block.1} parent=11 // pred_check_branch
          %637 = sbr.rel (%p635) target = $region72
        $region71: #{decoder_block.1} parent=11 // pred_region
          _
        $region72: #{decoder_block.1} parent=11 // pred_fallthru
          _
        // Predicated region
        $region73: #{decoder_block.1} parent=11 // pred_check
          %p638 = pneg %p447
        $region74: #{decoder_block.1} parent=11 // pred_check_branch
          %640 = sbr.rel (%p638) target = $region76
        $region75: #{decoder_block.1} parent=11 // pred_region
          _
        $region76: #{decoder_block.1} parent=11 // pred_fallthru
          _
        // Predicated region
        $region77: #{decoder_block.1} parent=11 // pred_check
          %p641 = pneg %p468
        $region78: #{decoder_block.1} parent=11 // pred_check_branch
          %643 = sbr.rel (%p641) target = $region80
        $region79: #{decoder_block.1} parent=11 // pred_region
          _
        $region80: #{decoder_block.1} parent=11 // pred_fallthru
          _
        // Predicated region
        $region81: #{decoder_block.1} parent=11 // pred_check
          %p644 = pneg %p489
        $region82: #{decoder_block.1} parent=11 // pred_check_branch
          %646 = sbr.rel (%p644) target = $region84
        $region83: #{decoder_block.1} parent=11 // pred_region
          _
        $region84: #{decoder_block.1} parent=11 // pred_fallthru
          _
        // Predicated region
        $region85: #{decoder_block.1} parent=11 // pred_check
          %p647 = pneg %p510
        $region86: #{decoder_block.1} parent=11 // pred_check_branch
          %649 = sbr.rel (%p647) target = $region88
        $region87: #{decoder_block.1} parent=11 // pred_region
          _
        $region88: #{decoder_block.1} parent=11 // pred_fallthru
          _
        // Predicated region
        $region89: #{decoder_block.1} parent=11 // pred_check
          %p650 = pneg %p531
        $region90: #{decoder_block.1} parent=11 // pred_check_branch
          %652 = sbr.rel (%p650) target = $region92
        $region91: #{decoder_block.1} parent=11 // pred_region
          _
        $region92: #{decoder_block.1} parent=11 // pred_fallthru
          _
        // Predicated region
        $region93: #{decoder_block.1} parent=11 // pred_check
          %p653 = pneg %p552
        $region94: #{decoder_block.1} parent=11 // pred_check_branch
          %655 = sbr.rel (%p653) target = $region96
        $region95: #{decoder_block.1} parent=11 // pred_region
          _
        $region96: #{decoder_block.1} parent=11 // pred_fallthru
          _
      $region12: #{decoder_block.1} parent=5 // pred_fallthru
        _
      %p656 = scmp.lt.s32.totalorder %s33, 2
      // Predicated region
      $region97: #{decoder_block.1} parent=5 // pred_check
        %p657 = pneg %p656
      $region98: #{decoder_block.1} parent=5 // pred_check_branch
        %659 = sbr.rel (%p657) target = $region100
      $region99: #{decoder_block.1} parent=5 // pred_region
        // Predicated region
        $region101: #{decoder_block.1} parent=99 // pred_check
          %p660 = pneg %p53
        $region102: #{decoder_block.1} parent=99 // pred_check_branch
          %662 = sbr.rel (%p660) target = $region104
        $region103: #{decoder_block.1} parent=99 // pred_region
          %p663 = scmp.lt.s32.totalorder %s33, 1
          %s664 = scalar_select %p663, %s33, 1
          %s665 = smul.addr %s664, 8
          %s666 = scalar_lea.vmem %s0, %s665
        $region104: #{decoder_block.1} parent=99 // pred_fallthru
          _
        // Predicated region
        $region105: #{decoder_block.1} parent=99 // pred_check
          %p667 = pneg %p79
        $region106: #{decoder_block.1} parent=99 // pred_check_branch
          %669 = sbr.rel (%p667) target = $region108
        $region107: #{decoder_block.1} parent=99 // pred_region
          %p670 = scmp.lt.s32.totalorder %s33, 1
          %s671 = scalar_select %p670, %s33, 1
          %s672 = smul.addr %s671, 8
          %s673 = scalar_lea.vmem %s1, %s672
        $region108: #{decoder_block.1} parent=99 // pred_fallthru
          _
        // Predicated region
        $region109: #{decoder_block.1} parent=99 // pred_check
          %p674 = pneg %p105
        $region110: #{decoder_block.1} parent=99 // pred_check_branch
          %676 = sbr.rel (%p674) target = $region112
        $region111: #{decoder_block.1} parent=99 // pred_region
          %p677 = scmp.lt.s32.totalorder %s33, 1
          %s678 = scalar_select %p677, %s33, 1
          %s679 = smul.addr %s678, 8
          %s680 = scalar_lea.vmem %s2, %s679
        $region112: #{decoder_block.1} parent=99 // pred_fallthru
          _
      $region100: #{decoder_block.1} parent=5 // pred_fallthru
        _
      %p681 = scmp.le.s32.totalorder 1, %s33
      %p682 = scmp.lt.s32.totalorder %s33, 3
      %p683 = pnand %p681, %p682
      %p684 = pneg %p683
      // Predicated region
      $region113: #{decoder_block.1} parent=5 // pred_check
        _
      $region114: #{decoder_block.1} parent=5 // pred_check_branch
        %686 = sbr.rel (%p683) target = $region116
      $region115: #{decoder_block.1} parent=5 // pred_region
        %s687 = ssub.s32 %s33, 1
        %p688 = scmp.lt.s32.totalorder %s38, 1
        %s689 = scalar_select %p688, %s38, 1
        %s690 = smul.addr %s689, 8
        %s691 = scalar_lea.vmem %s0, %s690
        %p692 = pneg %p59
        %p693 = pneg %p56
        %p694 = scmp.lt.s32.totalorder %s38, 1
        %s695 = scalar_select %p694, %s38, 1
        %s696 = smul.addr %s695, 8
        %s697 = scalar_lea.vmem %s1, %s696
        %p698 = pneg %p85
        %p699 = pneg %p82
        %p700 = scmp.lt.s32.totalorder %s38, 1
        %s701 = scalar_select %p700, %s38, 1
        %s702 = smul.addr %s701, 8
        %s703 = scalar_lea.vmem %s2, %s702
        %p704 = pneg %p111
        %p705 = pneg %p108
        %p706 = pneg %p132
        %p707 = pneg %p129
        %p708 = pneg %p153
        %p709 = pneg %p150
        %p710 = pneg %p174
        %p711 = pneg %p171
        %p712 = pneg %p195
        %p713 = pneg %p192
        %p714 = pneg %p216
        %p715 = pneg %p213
        %p716 = pneg %p237
        %p717 = pneg %p234
        %p718 = pneg %p258
        %p719 = pneg %p255
        %p720 = pneg %p279
        %p721 = pneg %p276
        %p722 = pneg %p300
        %p723 = pneg %p297
        %p724 = pneg %p321
        %p725 = pneg %p318
        %p726 = pneg %p342
        %p727 = pneg %p339
        %p728 = pneg %p363
        %p729 = pneg %p360
        %p730 = pneg %p384
        %p731 = pneg %p381
        %p732 = pneg %p405
        %p733 = pneg %p402
        %p734 = pneg %p426
        %p735 = pneg %p423
        %p736 = pneg %p447
        %p737 = pneg %p444
        %p738 = pneg %p468
        %p739 = pneg %p465
        %p740 = pneg %p489
        %p741 = pneg %p486
        %p742 = pneg %p510
        %p743 = pneg %p507
        %p744 = pneg %p531
        %p745 = pneg %p528
        %p746 = pneg %p552
        %p747 = pneg %p549
        %p748 = pneg %p578
        %p749 = pneg %p575
        %s750 = sand.u32 %s565, 1
        %s751 = scalar_lea.sflag [#allocation3], %s750
        %s752 = sand.u32 %s565, 1
        %s753 = smul.addr %s752, 8
        %s754 = scalar_lea.vmem [#allocation2], %s753
        %p755 = scmp.lt.s32.totalorder %s38, 1
        %s756 = scalar_select %p755, %s38, 1
        %s757 = smul.addr %s756, 8
        %s758 = scalar_lea.vmem %s0, %s757
        %p759 = scmp.lt.s32.totalorder %s38, 1
        %s760 = scalar_select %p759, %s38, 1
        %s761 = smul.addr %s760, 8
        %s762 = scalar_lea.vmem %s1, %s761
        %p763 = scmp.lt.s32.totalorder %s38, 1
        %s764 = scalar_select %p763, %s38, 1
        %s765 = smul.addr %s764, 8
        %s766 = scalar_lea.vmem %s2, %s765
        %v768 = vld [vmem:[%s758] sm:$0xff]
        %v769 = vld [vmem:[%s762] sm:$0xff]
        %v770 = vld [vmem:[%s766] sm:$0xff]
        %v771 = vld [vmem:[%s3] sm:$0xff]
        %v772 = vpack.c.bf16 %v768, %v768
        %v773 = vld [vmem:[%s4] sm:$0xf]
        %v774 = vld [vmem:[%s4 + $0x4] sm:$0xf]
        %v775 = vld [vmem:[%s4 + $0x8] sm:$0xf]
        %v776 = vld [vmem:[%s4 + $0xc] sm:$0xf]
        %v777 = vld [vmem:[%s4 + $0x10] sm:$0xf]
        %v778 = vld [vmem:[%s4 + $0x14] sm:$0xf]
        %v779 = vld [vmem:[%s4 + $0x18] sm:$0xf]
        %v780 = vld [vmem:[%s4 + $0x1c] sm:$0xf]
        %v781 = vld [vmem:[%s4 + $0x20] sm:$0xf]
        %v782 = vld [vmem:[%s4 + $0x24] sm:$0xf]
        %v783 = vld [vmem:[%s4 + $0x28] sm:$0xf]
        %v784 = vld [vmem:[%s4 + $0x2c] sm:$0xf]
        %v785 = vld [vmem:[%s4 + $0x30] sm:$0xf]
        %v786 = vld [vmem:[%s4 + $0x34] sm:$0xf]
        %v787 = vld [vmem:[%s4 + $0x38] sm:$0xf]
        %v788 = vld [vmem:[%s4 + $0x3c] sm:$0xf]
        %v805 = vunpack.c.l.b16 %v773
        %v806 = vunpack.c.l.b16 %v774
        %v807 = vunpack.c.l.b16 %v775
        %v808 = vunpack.c.l.b16 %v776
        %v809 = vunpack.c.l.b16 %v777
        %v810 = vunpack.c.l.b16 %v778
        %v811 = vunpack.c.l.b16 %v779
        %v812 = vunpack.c.l.b16 %v780
        %v813 = vunpack.c.l.b16 %v781
        %v814 = vunpack.c.l.b16 %v782
        %v815 = vunpack.c.l.b16 %v783
        %v816 = vunpack.c.l.b16 %v784
        %v817 = vunpack.c.l.b16 %v785
        %v818 = vunpack.c.l.b16 %v786
        %v819 = vunpack.c.l.b16 %v787
        %v820 = vunpack.c.l.b16 %v788
        %v821 = vpack.c.b16 %v806, %v805
        %v822 = vpack.c.b16 %v808, %v807
        %v823 = vpack.c.b16 %v810, %v809
        %v824 = vpack.c.b16 %v812, %v811
        %v825 = vpack.c.b16 %v814, %v813
        %v826 = vpack.c.b16 %v816, %v815
        %v827 = vpack.c.b16 %v818, %v817
        %v828 = vpack.c.b16 %v820, %v819
        %837 = vmatprep.subr.bf16.mxu0 0
        %838 = vmatpush1.bf16.msra.mxu0 %v821
        %839 = vmatprep.subr.bf16.mxu0 0
        %840 = vmatpush1.bf16.msra.mxu0 %v822
        %841 = vmatprep.subr.bf16.mxu0 0
        %842 = vmatpush1.bf16.msra.mxu0 %v823
        %843 = vmatprep.subr.bf16.mxu0 0
        %844 = vmatpush1.bf16.msra.mxu0 %v824
        %845 = vmatprep.subr.bf16.mxu0 0
        %846 = vmatpush1.bf16.msra.mxu0 %v825
        %847 = vmatprep.subr.bf16.mxu0 0
        %848 = vmatpush1.bf16.msra.mxu0 %v826
        %849 = vmatprep.subr.bf16.mxu0 0
        %850 = vmatpush1.bf16.msra.mxu0 %v827
        %851 = vmatprep.subr.bf16.mxu0 0
        %852 = vmatpush1.bf16.msra.mxu0 %v828
        %853 = vmatprep.subr.bf16.mxu0 0
        %854 = vmatpush1.bf16.msra.mxu0 0
        %855 = vmatprep.subr.bf16.mxu0 0
        %856 = vmatpush1.bf16.msra.mxu0 0
        %857 = vmatprep.subr.bf16.mxu0 0
        %858 = vmatpush1.bf16.msra.mxu0 0
        %859 = vmatprep.subr.bf16.mxu0 0
        %860 = vmatpush1.bf16.msra.mxu0 0
        %861 = vmatprep.subr.bf16.mxu0 0
        %862 = vmatpush1.bf16.msra.mxu0 0
        %863 = vmatprep.subr.bf16.mxu0 0
        %864 = vmatpush1.bf16.msra.mxu0 0
        %865 = vmatprep.subr.bf16.mxu0 0
        %866 = vmatpush1.bf16.msra.mxu0 0
        %867 = vmatprep.subr.bf16.mxu0 0
        %868 = vmatpush1.bf16.msra.mxu0 0
        %869 = vmatprep.mubr.bf16.mxu0 0
        %870 = vmatmul.mubr.bf16.gmra.mrb[0].mxu0 %v772
        %v871 = vpop.f32.mrb[0].mxu0
        %v872 = vadd.f32 0.0, %v871
        %v873 = vpop.f32.mrb[0].mxu0
        %v874 = vpop.f32.mrb[0].mxu0
        %v875 = vpop.f32.mrb[0].mxu0
        %876 = vdwg.mxu0
        %v877 = vld [vmem:[%s5] sm:$0xf]
        %v878 = vld [vmem:[%s5 + $0x4] sm:$0xf]
        %v879 = vld [vmem:[%s5 + $0x8] sm:$0xf]
        %v880 = vld [vmem:[%s5 + $0xc] sm:$0xf]
        %v881 = vld [vmem:[%s5 + $0x10] sm:$0xf]
        %v882 = vld [vmem:[%s5 + $0x14] sm:$0xf]
        %v883 = vld [vmem:[%s5 + $0x18] sm:$0xf]
        %v884 = vld [vmem:[%s5 + $0x1c] sm:$0xf]
        %v885 = vld [vmem:[%s5 + $0x20] sm:$0xf]
        %v886 = vld [vmem:[%s5 + $0x24] sm:$0xf]
        %v887 = vld [vmem:[%s5 + $0x28] sm:$0xf]
        %v888 = vld [vmem:[%s5 + $0x2c] sm:$0xf]
        %v889 = vld [vmem:[%s5 + $0x30] sm:$0xf]
        %v890 = vld [vmem:[%s5 + $0x34] sm:$0xf]
        %v891 = vld [vmem:[%s5 + $0x38] sm:$0xf]
        %v892 = vld [vmem:[%s5 + $0x3c] sm:$0xf]
        %v909 = vunpack.c.l.b16 %v877
        %v910 = vunpack.c.l.b16 %v878
        %v911 = vunpack.c.l.b16 %v879
        %v912 = vunpack.c.l.b16 %v880
        %v913 = vunpack.c.l.b16 %v881
        %v914 = vunpack.c.l.b16 %v882
        %v915 = vunpack.c.l.b16 %v883
        %v916 = vunpack.c.l.b16 %v884
        %v917 = vunpack.c.l.b16 %v885
        %v918 = vunpack.c.l.b16 %v886
        %v919 = vunpack.c.l.b16 %v887
        %v920 = vunpack.c.l.b16 %v888
        %v921 = vunpack.c.l.b16 %v889
        %v922 = vunpack.c.l.b16 %v890
        %v923 = vunpack.c.l.b16 %v891
        %v924 = vunpack.c.l.b16 %v892
        %v925 = vpack.c.b16 %v910, %v909
        %v926 = vpack.c.b16 %v912, %v911
        %v927 = vpack.c.b16 %v914, %v913
        %v928 = vpack.c.b16 %v916, %v915
        %v929 = vpack.c.b16 %v918, %v917
        %v930 = vpack.c.b16 %v920, %v919
        %v931 = vpack.c.b16 %v922, %v921
        %v932 = vpack.c.b16 %v924, %v923
        %941 = vmatprep.subr.bf16.mxu0 0
        %942 = vmatpush1.bf16.msra.mxu0 %v925
        %943 = vmatprep.subr.bf16.mxu0 0
        %944 = vmatpush1.bf16.msra.mxu0 %v926
        %945 = vmatprep.subr.bf16.mxu0 0
        %946 = vmatpush1.bf16.msra.mxu0 %v927
        %947 = vmatprep.subr.bf16.mxu0 0
        %948 = vmatpush1.bf16.msra.mxu0 %v928
        %949 = vmatprep.subr.bf16.mxu0 0
        %950 = vmatpush1.bf16.msra.mxu0 %v929
        %951 = vmatprep.subr.bf16.mxu0 0
        %952 = vmatpush1.bf16.msra.mxu0 %v930
        %953 = vmatprep.subr.bf16.mxu0 0
        %954 = vmatpush1.bf16.msra.mxu0 %v931
        %955 = vmatprep.subr.bf16.mxu0 0
        %956 = vmatpush1.bf16.msra.mxu0 %v932
        %957 = vmatprep.subr.bf16.mxu0 0
        %958 = vmatpush1.bf16.msra.mxu0 0
        %959 = vmatprep.subr.bf16.mxu0 0
        %960 = vmatpush1.bf16.msra.mxu0 0
        %961 = vmatprep.subr.bf16.mxu0 0
        %962 = vmatpush1.bf16.msra.mxu0 0
        %963 = vmatprep.subr.bf16.mxu0 0
        %964 = vmatpush1.bf16.msra.mxu0 0
        %965 = vmatprep.subr.bf16.mxu0 0
        %966 = vmatpush1.bf16.msra.mxu0 0
        %967 = vmatprep.subr.bf16.mxu0 0
        %968 = vmatpush1.bf16.msra.mxu0 0
        %969 = vmatprep.subr.bf16.mxu0 0
        %970 = vmatpush1.bf16.msra.mxu0 0
        %971 = vmatprep.subr.bf16.mxu0 0
        %972 = vmatpush1.bf16.msra.mxu0 0
        %973 = vmatprep.mubr.bf16.mxu0 0
        %974 = vmatmul.mubr.bf16.gmra.mrb[0].mxu0 %v772
        %v975 = vpop.f32.mrb[0].mxu0
        %v976 = vadd.f32 0.0, %v975
        %v977 = vpop.f32.mrb[0].mxu0
        %v978 = vpop.f32.mrb[0].mxu0
        %v979 = vpop.f32.mrb[0].mxu0
        %980 = vdwg.mxu0
        %v981 = vld [vmem:[%s6] sm:$0xf]
        %v982 = vld [vmem:[%s6 + $0x4] sm:$0xf]
        %v983 = vld [vmem:[%s6 + $0x8] sm:$0xf]
        %v984 = vld [vmem:[%s6 + $0xc] sm:$0xf]
        %v985 = vld [vmem:[%s6 + $0x10] sm:$0xf]
        %v986 = vld [vmem:[%s6 + $0x14] sm:$0xf]
        %v987 = vld [vmem:[%s6 + $0x18] sm:$0xf]
        %v988 = vld [vmem:[%s6 + $0x1c] sm:$0xf]
        %v989 = vld [vmem:[%s6 + $0x20] sm:$0xf]
        %v990 = vld [vmem:[%s6 + $0x24] sm:$0xf]
        %v991 = vld [vmem:[%s6 + $0x28] sm:$0xf]
        %v992 = vld [vmem:[%s6 + $0x2c] sm:$0xf]
        %v993 = vld [vmem:[%s6 + $0x30] sm:$0xf]
        %v994 = vld [vmem:[%s6 + $0x34] sm:$0xf]
        %v995 = vld [vmem:[%s6 + $0x38] sm:$0xf]
        %v996 = vld [vmem:[%s6 + $0x3c] sm:$0xf]
        %v1013 = vunpack.c.l.b16 %v981
        %v1014 = vunpack.c.l.b16 %v982
        %v1015 = vunpack.c.l.b16 %v983
        %v1016 = vunpack.c.l.b16 %v984
        %v1017 = vunpack.c.l.b16 %v985
        %v1018 = vunpack.c.l.b16 %v986
        %v1019 = vunpack.c.l.b16 %v987
        %v1020 = vunpack.c.l.b16 %v988
        %v1021 = vunpack.c.l.b16 %v989
        %v1022 = vunpack.c.l.b16 %v990
        %v1023 = vunpack.c.l.b16 %v991
        %v1024 = vunpack.c.l.b16 %v992
        %v1025 = vunpack.c.l.b16 %v993
        %v1026 = vunpack.c.l.b16 %v994
        %v1027 = vunpack.c.l.b16 %v995
        %v1028 = vunpack.c.l.b16 %v996
        %v1029 = vpack.c.b16 %v1014, %v1013
        %v1030 = vpack.c.b16 %v1016, %v1015
        %v1031 = vpack.c.b16 %v1018, %v1017
        %v1032 = vpack.c.b16 %v1020, %v1019
        %v1033 = vpack.c.b16 %v1022, %v1021
        %v1034 = vpack.c.b16 %v1024, %v1023
        %v1035 = vpack.c.b16 %v1026, %v1025
        %v1036 = vpack.c.b16 %v1028, %v1027
        %1045 = vmatprep.subr.bf16.mxu0 0
        %1046 = vmatpush1.bf16.msra.mxu0 %v1029
        %1047 = vmatprep.subr.bf16.mxu0 0
        %1048 = vmatpush1.bf16.msra.mxu0 %v1030
        %1049 = vmatprep.subr.bf16.mxu0 0
        %1050 = vmatpush1.bf16.msra.mxu0 %v1031
        %1051 = vmatprep.subr.bf16.mxu0 0
        %1052 = vmatpush1.bf16.msra.mxu0 %v1032
        %1053 = vmatprep.subr.bf16.mxu0 0
        %1054 = vmatpush1.bf16.msra.mxu0 %v1033
        %1055 = vmatprep.subr.bf16.mxu0 0
        %1056 = vmatpush1.bf16.msra.mxu0 %v1034
        %1057 = vmatprep.subr.bf16.mxu0 0
        %1058 = vmatpush1.bf16.msra.mxu0 %v1035
        %1059 = vmatprep.subr.bf16.mxu0 0
        %1060 = vmatpush1.bf16.msra.mxu0 %v1036
        %1061 = vmatprep.subr.bf16.mxu0 0
        %1062 = vmatpush1.bf16.msra.mxu0 0
        %1063 = vmatprep.subr.bf16.mxu0 0
        %1064 = vmatpush1.bf16.msra.mxu0 0
        %1065 = vmatprep.subr.bf16.mxu0 0
        %1066 = vmatpush1.bf16.msra.mxu0 0
        %1067 = vmatprep.subr.bf16.mxu0 0
        %1068 = vmatpush1.bf16.msra.mxu0 0
        %1069 = vmatprep.subr.bf16.mxu0 0
        %1070 = vmatpush1.bf16.msra.mxu0 0
        %1071 = vmatprep.subr.bf16.mxu0 0
        %1072 = vmatpush1.bf16.msra.mxu0 0
        %1073 = vmatprep.subr.bf16.mxu0 0
        %1074 = vmatpush1.bf16.msra.mxu0 0
        %1075 = vmatprep.subr.bf16.mxu0 0
        %1076 = vmatpush1.bf16.msra.mxu0 0
        %1077 = vmatprep.mubr.bf16.mxu0 0
        %1078 = vmatmul.mubr.bf16.gmra.mrb[0].mxu0 %v772
        %v1079 = vpop.f32.mrb[0].mxu0
        %v1080 = vadd.f32 0.0, %v1079
        %v1081 = vpop.f32.mrb[0].mxu0
        %v1082 = vpop.f32.mrb[0].mxu0
        %v1083 = vpop.f32.mrb[0].mxu0
        %1084 = vdwg.mxu0
        %v1085 = vld [vmem:[%s7] sm:$0xf]
        %v1086 = vld [vmem:[%s7 + $0x4] sm:$0xf]
        %v1087 = vld [vmem:[%s7 + $0x8] sm:$0xf]
        %v1088 = vld [vmem:[%s7 + $0xc] sm:$0xf]
        %v1089 = vld [vmem:[%s7 + $0x10] sm:$0xf]
        %v1090 = vld [vmem:[%s7 + $0x14] sm:$0xf]
        %v1091 = vld [vmem:[%s7 + $0x18] sm:$0xf]
        %v1092 = vld [vmem:[%s7 + $0x1c] sm:$0xf]
        %v1093 = vld [vmem:[%s7 + $0x20] sm:$0xf]
        %v1094 = vld [vmem:[%s7 + $0x24] sm:$0xf]
        %v1095 = vld [vmem:[%s7 + $0x28] sm:$0xf]
        %v1096 = vld [vmem:[%s7 + $0x2c] sm:$0xf]
        %v1097 = vld [vmem:[%s7 + $0x30] sm:$0xf]
        %v1098 = vld [vmem:[%s7 + $0x34] sm:$0xf]
        %v1099 = vld [vmem:[%s7 + $0x38] sm:$0xf]
        %v1100 = vld [vmem:[%s7 + $0x3c] sm:$0xf]
        %v1101 = vpack.c.bf16 %v872, %v872
        %v1102 = vpack.c.bf16 %v976, %v976
        %vm1103 = vcmask 261120
        %v1105 = vsel %vm1103, %v1101, 0
        %v1108 = vsel %vm1103, %v1102, 0
        %1110 = vmatprep.subr.bf16.mxu0 0
        %1111 = vmatpush1.bf16.xpose.msra.mxu0 %v1108
        %1112 = vmatprep.subr.bf16.mxu0 0
        %1113 = vmatpush1.bf16.xpose.msra.mxu0 0
        %1114 = vmatprep.subr.bf16.mxu0 0
        %1115 = vmatpush1.bf16.xpose.msra.mxu0 0
        %1116 = vmatprep.subr.bf16.mxu0 0
        %1117 = vmatpush1.bf16.xpose.msra.mxu0 0
        %1118 = vmatprep.subr.bf16.mxu0 0
        %1119 = vmatpush1.bf16.xpose.msra.mxu0 0
        %1120 = vmatprep.subr.bf16.mxu0 0
        %1121 = vmatpush1.bf16.xpose.msra.mxu0 0
        %1122 = vmatprep.subr.bf16.mxu0 0
        %1123 = vmatpush1.bf16.xpose.msra.mxu0 0
        %1124 = vmatprep.subr.bf16.mxu0 0
        %1125 = vmatpush1.bf16.xpose.msra.mxu0 0
        %1126 = vmatprep.subr.bf16.mxu0 0
        %1127 = vmatpush1.bf16.xpose.msra.mxu0 0
        %1128 = vmatprep.subr.bf16.mxu0 0
        %1129 = vmatpush1.bf16.xpose.msra.mxu0 0
        %1130 = vmatprep.subr.bf16.mxu0 0
        %1131 = vmatpush1.bf16.xpose.msra.mxu0 0
        %1132 = vmatprep.subr.bf16.mxu0 0
        %1133 = vmatpush1.bf16.xpose.msra.mxu0 0
        %1134 = vmatprep.subr.bf16.mxu0 0
        %1135 = vmatpush1.bf16.xpose.msra.mxu0 0
        %1136 = vmatprep.subr.bf16.mxu0 0
        %1137 = vmatpush1.bf16.xpose.msra.mxu0 0
        %1138 = vmatprep.subr.bf16.mxu0 0
        %1139 = vmatpush1.bf16.xpose.msra.mxu0 0
        %1140 = vmatprep.subr.bf16.mxu0 0
        %1141 = vmatpush1.bf16.xpose.msra.mxu0 0
        %1142 = vmatprep.mubr.bf16.mxu0 0
        %1143 = vmatmul.mubr.bf16.gmra.mrb[0].mxu0 %v1105
        %v1144 = vpop.f32.mrb[0].mxu0
        %v1145 = vadd.f32 %v771, %v1144
        %v1146 = vpop.f32.mrb[0].mxu0
        %v1147 = vpop.f32.mrb[0].mxu0
        %v1148 = vpop.f32.mrb[0].mxu0
        %1149 = vdwg.mxu0
        %vm1150 = vcmask 64512
        %v1151 = vsel %vm1150, %v1145, -inf
        %1152 = vmax.xlane.f32.xlu0 %v1151
        %v1153 = vpop.xlane.xlu0 %1152
        %v1154 = vsub.f32 %v1145, %v1153
        %v1155 = vmul.f32 %v1154, 1.442695
        %v1156 = vpow.pop %v1155
        %v1157 = vsel %vm1150, %v1156, 0.0
        %1158 = vadd.xlane.f32.xlu0 %v1157
        %v1159 = vpop.xlane.xlu0 %1158
        %v1160 = vrcp.pop %v1159
        %v1161 = vmul.f32 %v1156, %v1160
        %v1162 = vpack.c.bf16 %v1161, %v1161
        %v1163 = vpack.c.bf16 %v1080, %v1080
        %v1165 = vsel %vm1150, %v1162, 0
        %vm1167 = vcmask 1043456
        %v1169 = vsel %vm1167, %v1163, 0
        %1171 = vmatprep.subr.bf16.mxu0 0
        %1172 = vmatpush1.bf16.msra.mxu0 %v1169
        %1173 = vmatprep.subr.bf16.mxu0 0
        %1174 = vmatpush1.bf16.msra.mxu0 0
        %1175 = vmatprep.subr.bf16.mxu0 0
        %1176 = vmatpush1.bf16.msra.mxu0 0
        %1177 = vmatprep.subr.bf16.mxu0 0
        %1178 = vmatpush1.bf16.msra.mxu0 0
        %1179 = vmatprep.subr.bf16.mxu0 0
        %1180 = vmatpush1.bf16.msra.mxu0 0
        %1181 = vmatprep.subr.bf16.mxu0 0
        %1182 = vmatpush1.bf16.msra.mxu0 0
        %1183 = vmatprep.subr.bf16.mxu0 0
        %1184 = vmatpush1.bf16.msra.mxu0 0
        %1185 = vmatprep.subr.bf16.mxu0 0
        %1186 = vmatpush1.bf16.msra.mxu0 0
        %1187 = vmatprep.subr.bf16.mxu0 0
        %1188 = vmatpush1.bf16.msra.mxu0 0
        %1189 = vmatprep.subr.bf16.mxu0 0
        %1190 = vmatpush1.bf16.msra.mxu0 0
        %1191 = vmatprep.subr.bf16.mxu0 0
        %1192 = vmatpush1.bf16.msra.mxu0 0
        %1193 = vmatprep.subr.bf16.mxu0 0
        %1194 = vmatpush1.bf16.msra.mxu0 0
        %1195 = vmatprep.subr.bf16.mxu0 0
        %1196 = vmatpush1.bf16.msra.mxu0 0
        %1197 = vmatprep.subr.bf16.mxu0 0
        %1198 = vmatpush1.bf16.msra.mxu0 0
        %1199 = vmatprep.subr.bf16.mxu0 0
        %1200 = vmatpush1.bf16.msra.mxu0 0
        %1201 = vmatprep.subr.bf16.mxu0 0
        %1202 = vmatpush1.bf16.msra.mxu0 0
        %1203 = vmatprep.mubr.bf16.mxu0 0
        %1204 = vmatmul.mubr.bf16.gmra.mrb[0].mxu0 %v1165
        %v1205 = vpop.f32.mrb[0].mxu0
        %v1206 = vadd.f32 0.0, %v1205
        %v1207 = vpop.f32.mrb[0].mxu0
        %v1208 = vpop.f32.mrb[0].mxu0
        %v1209 = vpop.f32.mrb[0].mxu0
        %1210 = vdwg.mxu0
        %v1211 = vpack.c.bf16 %v1206, %v1206
        %1213 = vrot.lane.b32.xlu0 %v1101, 96
        %v1214 = vpop.permute.xlu0 %1213
        %1216 = vrot.lane.b32.xlu0 %v1102, 96
        %v1217 = vpop.permute.xlu0 %1216
        %v1219 = vsel %vm1103, %v1214, 0
        %v1222 = vsel %vm1103, %v1217, 0
        %1224 = vmatprep.subr.bf16.mxu0 0
        %1225 = vmatpush1.bf16.xpose.msra.mxu0 %v1222
        %1226 = vmatprep.subr.bf16.mxu0 0
        %1227 = vmatpush1.bf16.xpose.msra.mxu0 0
        %1228 = vmatprep.subr.bf16.mxu0 0
        %1229 = vmatpush1.bf16.xpose.msra.mxu0 0
        %1230 = vmatprep.subr.bf16.mxu0 0
        %1231 = vmatpush1.bf16.xpose.msra.mxu0 0
        %1232 = vmatprep.subr.bf16.mxu0 0
        %1233 = vmatpush1.bf16.xpose.msra.mxu0 0
        %1234 = vmatprep.subr.bf16.mxu0 0
        %1235 = vmatpush1.bf16.xpose.msra.mxu0 0
        %1236 = vmatprep.subr.bf16.mxu0 0
        %1237 = vmatpush1.bf16.xpose.msra.mxu0 0
        %1238 = vmatprep.subr.bf16.mxu0 0
        %1239 = vmatpush1.bf16.xpose.msra.mxu0 0
        %1240 = vmatprep.subr.bf16.mxu0 0
        %1241 = vmatpush1.bf16.xpose.msra.mxu0 0
        %1242 = vmatprep.subr.bf16.mxu0 0
        %1243 = vmatpush1.bf16.xpose.msra.mxu0 0
        %1244 = vmatprep.subr.bf16.mxu0 0
        %1245 = vmatpush1.bf16.xpose.msra.mxu0 0
        %1246 = vmatprep.subr.bf16.mxu0 0
        %1247 = vmatpush1.bf16.xpose.msra.mxu0 0
        %1248 = vmatprep.subr.bf16.mxu0 0
        %1249 = vmatpush1.bf16.xpose.msra.mxu0 0
        %1250 = vmatprep.subr.bf16.mxu0 0
        %1251 = vmatpush1.bf16.xpose.msra.mxu0 0
        %1252 = vmatprep.subr.bf16.mxu0 0
        %1253 = vmatpush1.bf16.xpose.msra.mxu0 0
        %1254 = vmatprep.subr.bf16.mxu0 0
        %1255 = vmatpush1.bf16.xpose.msra.mxu0 0
        %1256 = vmatprep.mubr.bf16.mxu0 0
        %1257 = vmatmul.mubr.bf16.gmra.mrb[0].mxu0 %v1219
        %v1258 = vpop.f32.mrb[0].mxu0
        %v1259 = vadd.f32 %v771, %v1258
        %v1260 = vpop.f32.mrb[0].mxu0
        %v1261 = vpop.f32.mrb[0].mxu0
        %v1262 = vpop.f32.mrb[0].mxu0
        %1263 = vdwg.mxu0
        %v1264 = vsel %vm1150, %v1259, -inf
        %1265 = vmax.xlane.f32.xlu0 %v1264
        %v1266 = vpop.xlane.xlu0 %1265
        %v1267 = vsub.f32 %v1259, %v1266
        %v1268 = vmul.f32 %v1267, 1.442695
        %v1269 = vpow.pop %v1268
        %v1270 = vsel %vm1150, %v1269, 0.0
        %1271 = vadd.xlane.f32.xlu0 %v1270
        %v1272 = vpop.xlane.xlu0 %1271
        %v1273 = vrcp.pop %v1272
        %v1274 = vmul.f32 %v1269, %v1273
        %v1275 = vpack.c.bf16 %v1274, %v1274
        %1277 = vrot.lane.b32.xlu0 %v1163, 96
        %v1278 = vpop.permute.xlu0 %1277
        %v1280 = vsel %vm1150, %v1275, 0
        %v1283 = vsel %vm1167, %v1278, 0
        %1285 = vmatprep.subr.bf16.mxu0 0
        %1286 = vmatpush1.bf16.msra.mxu0 %v1283
        %1287 = vmatprep.subr.bf16.mxu0 0
        %1288 = vmatpush1.bf16.msra.mxu0 0
        %1289 = vmatprep.subr.bf16.mxu0 0
        %1290 = vmatpush1.bf16.msra.mxu0 0
        %1291 = vmatprep.subr.bf16.mxu0 0
        %1292 = vmatpush1.bf16.msra.mxu0 0
        %1293 = vmatprep.subr.bf16.mxu0 0
        %1294 = vmatpush1.bf16.msra.mxu0 0
        %1295 = vmatprep.subr.bf16.mxu0 0
        %1296 = vmatpush1.bf16.msra.mxu0 0
        %1297 = vmatprep.subr.bf16.mxu0 0
        %1298 = vmatpush1.bf16.msra.mxu0 0
        %1299 = vmatprep.subr.bf16.mxu0 0
        %1300 = vmatpush1.bf16.msra.mxu0 0
        %1301 = vmatprep.subr.bf16.mxu0 0
        %1302 = vmatpush1.bf16.msra.mxu0 0
        %1303 = vmatprep.subr.bf16.mxu0 0
        %1304 = vmatpush1.bf16.msra.mxu0 0
        %1305 = vmatprep.subr.bf16.mxu0 0
        %1306 = vmatpush1.bf16.msra.mxu0 0
        %1307 = vmatprep.subr.bf16.mxu0 0
        %1308 = vmatpush1.bf16.msra.mxu0 0
        %1309 = vmatprep.subr.bf16.mxu0 0
        %1310 = vmatpush1.bf16.msra.mxu0 0
        %1311 = vmatprep.subr.bf16.mxu0 0
        %1312 = vmatpush1.bf16.msra.mxu0 0
        %1313 = vmatprep.subr.bf16.mxu0 0
        %1314 = vmatpush1.bf16.msra.mxu0 0
        %1315 = vmatprep.subr.bf16.mxu0 0
        %1316 = vmatpush1.bf16.msra.mxu0 0
        %1317 = vmatprep.mubr.bf16.mxu0 0
        %1318 = vmatmul.mubr.bf16.gmra.mrb[0].mxu0 %v1280
        %v1319 = vpop.f32.mrb[0].mxu0
        %v1320 = vadd.f32 0.0, %v1319
        %v1321 = vpop.f32.mrb[0].mxu0
        %v1322 = vpop.f32.mrb[0].mxu0
        %v1323 = vpop.f32.mrb[0].mxu0
        %1324 = vdwg.mxu0
        %v1325 = vpack.c.bf16 %v1320, %v1320
        %v1330 = vunpack.c.l.b16 %v1089
        %v1331 = vunpack.c.l.b16 %v1090
        %v1332 = vunpack.c.l.b16 %v1091
        %v1333 = vunpack.c.l.b16 %v1092
        %v1334 = vpack.c.b16 %v1331, %v1330
        %v1335 = vpack.c.b16 %v1333, %v1332
        %v1339 = vsel %vm1103, %v1325, 0
        %1341 = vmatprep.subr.bf16.mxu0 0
        %1342 = vmatpush1.bf16.msra.mxu0 %v1334
        %1343 = vmatprep.subr.bf16.mxu0 0
        %1344 = vmatpush1.bf16.msra.mxu0 %v1335
        %1345 = vmatprep.subr.bf16.mxu0 0
        %1346 = vmatpush1.bf16.msra.mxu0 0
        %1347 = vmatprep.subr.bf16.mxu0 0
        %1348 = vmatpush1.bf16.msra.mxu0 0
        %1349 = vmatprep.subr.bf16.mxu0 0
        %1350 = vmatpush1.bf16.msra.mxu0 0
        %1351 = vmatprep.subr.bf16.mxu0 0
        %1352 = vmatpush1.bf16.msra.mxu0 0
        %1353 = vmatprep.subr.bf16.mxu0 0
        %1354 = vmatpush1.bf16.msra.mxu0 0
        %1355 = vmatprep.subr.bf16.mxu0 0
        %1356 = vmatpush1.bf16.msra.mxu0 0
        %1357 = vmatprep.subr.bf16.mxu0 0
        %1358 = vmatpush1.bf16.msra.mxu0 0
        %1359 = vmatprep.subr.bf16.mxu0 0
        %1360 = vmatpush1.bf16.msra.mxu0 0
        %1361 = vmatprep.subr.bf16.mxu0 0
        %1362 = vmatpush1.bf16.msra.mxu0 0
        %1363 = vmatprep.subr.bf16.mxu0 0
        %1364 = vmatpush1.bf16.msra.mxu0 0
        %1365 = vmatprep.subr.bf16.mxu0 0
        %1366 = vmatpush1.bf16.msra.mxu0 0
        %1367 = vmatprep.subr.bf16.mxu0 0
        %1368 = vmatpush1.bf16.msra.mxu0 0
        %1369 = vmatprep.subr.bf16.mxu0 0
        %1370 = vmatpush1.bf16.msra.mxu0 0
        %1371 = vmatprep.subr.bf16.mxu0 0
        %1372 = vmatpush1.bf16.msra.mxu0 0
        %1373 = vmatprep.mubr.bf16.mxu0 0
        %1374 = vmatmul.mubr.bf16.gmra.mrb[0].mxu0 %v1339
        %v1375 = vpop.f32.mrb[0].mxu0
        %v1376 = vadd.f32 0.0, %v1375
        %v1377 = vpop.f32.mrb[0].mxu0
        %v1378 = vpop.f32.mrb[0].mxu0
        %v1379 = vpop.f32.mrb[0].mxu0
        %1380 = vdwg.mxu0
        %v1385 = vunpack.c.l.b16 %v1085
        %v1386 = vunpack.c.l.b16 %v1086
        %v1387 = vunpack.c.l.b16 %v1087
        %v1388 = vunpack.c.l.b16 %v1088
        %v1389 = vpack.c.b16 %v1386, %v1385
        %v1390 = vpack.c.b16 %v1388, %v1387
        %v1394 = vsel %vm1103, %v1211, 0
        %1396 = vmatprep.subr.bf16.mxu0 0
        %1397 = vmatpush1.bf16.msra.mxu0 %v1389
        %1398 = vmatprep.subr.bf16.mxu0 0
        %1399 = vmatpush1.bf16.msra.mxu0 %v1390
        %1400 = vmatprep.subr.bf16.mxu0 0
        %1401 = vmatpush1.bf16.msra.mxu0 0
        %1402 = vmatprep.subr.bf16.mxu0 0
        %1403 = vmatpush1.bf16.msra.mxu0 0
        %1404 = vmatprep.subr.bf16.mxu0 0
        %1405 = vmatpush1.bf16.msra.mxu0 0
        %1406 = vmatprep.subr.bf16.mxu0 0
        %1407 = vmatpush1.bf16.msra.mxu0 0
        %1408 = vmatprep.subr.bf16.mxu0 0
        %1409 = vmatpush1.bf16.msra.mxu0 0
        %1410 = vmatprep.subr.bf16.mxu0 0
        %1411 = vmatpush1.bf16.msra.mxu0 0
        %1412 = vmatprep.subr.bf16.mxu0 0
        %1413 = vmatpush1.bf16.msra.mxu0 0
        %1414 = vmatprep.subr.bf16.mxu0 0
        %1415 = vmatpush1.bf16.msra.mxu0 0
        %1416 = vmatprep.subr.bf16.mxu0 0
        %1417 = vmatpush1.bf16.msra.mxu0 0
        %1418 = vmatprep.subr.bf16.mxu0 0
        %1419 = vmatpush1.bf16.msra.mxu0 0
        %1420 = vmatprep.subr.bf16.mxu0 0
        %1421 = vmatpush1.bf16.msra.mxu0 0
        %1422 = vmatprep.subr.bf16.mxu0 0
        %1423 = vmatpush1.bf16.msra.mxu0 0
        %1424 = vmatprep.subr.bf16.mxu0 0
        %1425 = vmatpush1.bf16.msra.mxu0 0
        %1426 = vmatprep.subr.bf16.mxu0 0
        %1427 = vmatpush1.bf16.msra.mxu0 0
        %1428 = vmatprep.mubr.bf16.mxu0 0
        %1429 = vmatmul.mubr.bf16.gmra.mrb[0].mxu0 %v1394
        %v1430 = vpop.f32.mrb[0].mxu0
        %v1431 = vadd.f32 %v1376, %v1430
        %v1432 = vpop.f32.mrb[0].mxu0
        %v1433 = vpop.f32.mrb[0].mxu0
        %v1434 = vpop.f32.mrb[0].mxu0
        %1435 = vdwg.mxu0
        %1436 = vrot.lane.b32.xlu0 %v1101, 64
        %v1437 = vpop.permute.xlu0 %1436
        %1438 = vrot.lane.b32.xlu0 %v1102, 64
        %v1439 = vpop.permute.xlu0 %1438
        %v1441 = vsel %vm1103, %v1437, 0
        %v1444 = vsel %vm1103, %v1439, 0
        %1446 = vmatprep.subr.bf16.mxu0 0
        %1447 = vmatpush1.bf16.xpose.msra.mxu0 %v1444
        %1448 = vmatprep.subr.bf16.mxu0 0
        %1449 = vmatpush1.bf16.xpose.msra.mxu0 0
        %1450 = vmatprep.subr.bf16.mxu0 0
        %1451 = vmatpush1.bf16.xpose.msra.mxu0 0
        %1452 = vmatprep.subr.bf16.mxu0 0
        %1453 = vmatpush1.bf16.xpose.msra.mxu0 0
        %1454 = vmatprep.subr.bf16.mxu0 0
        %1455 = vmatpush1.bf16.xpose.msra.mxu0 0
        %1456 = vmatprep.subr.bf16.mxu0 0
        %1457 = vmatpush1.bf16.xpose.msra.mxu0 0
        %1458 = vmatprep.subr.bf16.mxu0 0
        %1459 = vmatpush1.bf16.xpose.msra.mxu0 0
        %1460 = vmatprep.subr.bf16.mxu0 0
        %1461 = vmatpush1.bf16.xpose.msra.mxu0 0
        %1462 = vmatprep.subr.bf16.mxu0 0
        %1463 = vmatpush1.bf16.xpose.msra.mxu0 0
        %1464 = vmatprep.subr.bf16.mxu0 0
        %1465 = vmatpush1.bf16.xpose.msra.mxu0 0
        %1466 = vmatprep.subr.bf16.mxu0 0
        %1467 = vmatpush1.bf16.xpose.msra.mxu0 0
        %1468 = vmatprep.subr.bf16.mxu0 0
        %1469 = vmatpush1.bf16.xpose.msra.mxu0 0
        %1470 = vmatprep.subr.bf16.mxu0 0
        %1471 = vmatpush1.bf16.xpose.msra.mxu0 0
        %1472 = vmatprep.subr.bf16.mxu0 0
        %1473 = vmatpush1.bf16.xpose.msra.mxu0 0
        %1474 = vmatprep.subr.bf16.mxu0 0
        %1475 = vmatpush1.bf16.xpose.msra.mxu0 0
        %1476 = vmatprep.subr.bf16.mxu0 0
        %1477 = vmatpush1.bf16.xpose.msra.mxu0 0
        %1478 = vmatprep.mubr.bf16.mxu0 0
        %1479 = vmatmul.mubr.bf16.gmra.mrb[0].mxu0 %v1441
        %v1480 = vpop.f32.mrb[0].mxu0
        %v1481 = vadd.f32 %v771, %v1480
        %v1482 = vpop.f32.mrb[0].mxu0
        %v1483 = vpop.f32.mrb[0].mxu0
        %v1484 = vpop.f32.mrb[0].mxu0
        %1485 = vdwg.mxu0
        %v1486 = vsel %vm1150, %v1481, -inf
        %1487 = vmax.xlane.f32.xlu0 %v1486
        %v1488 = vpop.xlane.xlu0 %1487
        %v1489 = vsub.f32 %v1481, %v1488
        %v1490 = vmul.f32 %v1489, 1.442695
        %v1491 = vpow.pop %v1490
        %v1492 = vsel %vm1150, %v1491, 0.0
        %1493 = vadd.xlane.f32.xlu0 %v1492
        %v1494 = vpop.xlane.xlu0 %1493
        %v1495 = vrcp.pop %v1494
        %v1496 = vmul.f32 %v1491, %v1495
        %v1497 = vpack.c.bf16 %v1496, %v1496
        %1498 = vrot.lane.b32.xlu0 %v1163, 64
        %v1499 = vpop.permute.xlu0 %1498
        %v1501 = vsel %vm1150, %v1497, 0
        %v1504 = vsel %vm1167, %v1499, 0
        %1506 = vmatprep.subr.bf16.mxu0 0
        %1507 = vmatpush1.bf16.msra.mxu0 %v1504
        %1508 = vmatprep.subr.bf16.mxu0 0
        %1509 = vmatpush1.bf16.msra.mxu0 0
        %1510 = vmatprep.subr.bf16.mxu0 0
        %1511 = vmatpush1.bf16.msra.mxu0 0
        %1512 = vmatprep.subr.bf16.mxu0 0
        %1513 = vmatpush1.bf16.msra.mxu0 0
        %1514 = vmatprep.subr.bf16.mxu0 0
        %1515 = vmatpush1.bf16.msra.mxu0 0
        %1516 = vmatprep.subr.bf16.mxu0 0
        %1517 = vmatpush1.bf16.msra.mxu0 0
        %1518 = vmatprep.subr.bf16.mxu0 0
        %1519 = vmatpush1.bf16.msra.mxu0 0
        %1520 = vmatprep.subr.bf16.mxu0 0
        %1521 = vmatpush1.bf16.msra.mxu0 0
        %1522 = vmatprep.subr.bf16.mxu0 0
        %1523 = vmatpush1.bf16.msra.mxu0 0
        %1524 = vmatprep.subr.bf16.mxu0 0
        %1525 = vmatpush1.bf16.msra.mxu0 0
        %1526 = vmatprep.subr.bf16.mxu0 0
        %1527 = vmatpush1.bf16.msra.mxu0 0
        %1528 = vmatprep.subr.bf16.mxu0 0
        %1529 = vmatpush1.bf16.msra.mxu0 0
        %1530 = vmatprep.subr.bf16.mxu0 0
        %1531 = vmatpush1.bf16.msra.mxu0 0
        %1532 = vmatprep.subr.bf16.mxu0 0
        %1533 = vmatpush1.bf16.msra.mxu0 0
        %1534 = vmatprep.subr.bf16.mxu0 0
        %1535 = vmatpush1.bf16.msra.mxu0 0
        %1536 = vmatprep.subr.bf16.mxu0 0
        %1537 = vmatpush1.bf16.msra.mxu0 0
        %1538 = vmatprep.mubr.bf16.mxu0 0
        %1539 = vmatmul.mubr.bf16.gmra.mrb[0].mxu0 %v1501
        %v1540 = vpop.f32.mrb[0].mxu0
        %v1541 = vadd.f32 0.0, %v1540
        %v1542 = vpop.f32.mrb[0].mxu0
        %v1543 = vpop.f32.mrb[0].mxu0
        %v1544 = vpop.f32.mrb[0].mxu0
        %1545 = vdwg.mxu0
        %v1546 = vpack.c.bf16 %v1541, %v1541
        %v1551 = vunpack.c.l.b16 %v1093
        %v1552 = vunpack.c.l.b16 %v1094
        %v1553 = vunpack.c.l.b16 %v1095
        %v1554 = vunpack.c.l.b16 %v1096
        %v1555 = vpack.c.b16 %v1552, %v1551
        %v1556 = vpack.c.b16 %v1554, %v1553
        %v1560 = vsel %vm1103, %v1546, 0
        %1562 = vmatprep.subr.bf16.mxu0 0
        %1563 = vmatpush1.bf16.msra.mxu0 %v1555
        %1564 = vmatprep.subr.bf16.mxu0 0
        %1565 = vmatpush1.bf16.msra.mxu0 %v1556
        %1566 = vmatprep.subr.bf16.mxu0 0
        %1567 = vmatpush1.bf16.msra.mxu0 0
        %1568 = vmatprep.subr.bf16.mxu0 0
        %1569 = vmatpush1.bf16.msra.mxu0 0
        %1570 = vmatprep.subr.bf16.mxu0 0
        %1571 = vmatpush1.bf16.msra.mxu0 0
        %1572 = vmatprep.subr.bf16.mxu0 0
        %1573 = vmatpush1.bf16.msra.mxu0 0
        %1574 = vmatprep.subr.bf16.mxu0 0
        %1575 = vmatpush1.bf16.msra.mxu0 0
        %1576 = vmatprep.subr.bf16.mxu0 0
        %1577 = vmatpush1.bf16.msra.mxu0 0
        %1578 = vmatprep.subr.bf16.mxu0 0
        %1579 = vmatpush1.bf16.msra.mxu0 0
        %1580 = vmatprep.subr.bf16.mxu0 0
        %1581 = vmatpush1.bf16.msra.mxu0 0
        %1582 = vmatprep.subr.bf16.mxu0 0
        %1583 = vmatpush1.bf16.msra.mxu0 0
        %1584 = vmatprep.subr.bf16.mxu0 0
        %1585 = vmatpush1.bf16.msra.mxu0 0
        %1586 = vmatprep.subr.bf16.mxu0 0
        %1587 = vmatpush1.bf16.msra.mxu0 0
        %1588 = vmatprep.subr.bf16.mxu0 0
        %1589 = vmatpush1.bf16.msra.mxu0 0
        %1590 = vmatprep.subr.bf16.mxu0 0
        %1591 = vmatpush1.bf16.msra.mxu0 0
        %1592 = vmatprep.subr.bf16.mxu0 0
        %1593 = vmatpush1.bf16.msra.mxu0 0
        %1594 = vmatprep.mubr.bf16.mxu0 0
        %1595 = vmatmul.mubr.bf16.gmra.mrb[0].mxu0 %v1560
        %v1596 = vpop.f32.mrb[0].mxu0
        %v1597 = vadd.f32 0.0, %v1596
        %v1598 = vpop.f32.mrb[0].mxu0
        %v1599 = vpop.f32.mrb[0].mxu0
        %v1600 = vpop.f32.mrb[0].mxu0
        %1601 = vdwg.mxu0
        %v1602 = vadd.f32 %v1431, %v1597
        %1603 = vrot.lane.b32.xlu0 %v1101, 32
        %v1604 = vpop.permute.xlu0 %1603
        %1605 = vrot.lane.b32.xlu0 %v1102, 32
        %v1606 = vpop.permute.xlu0 %1605
        %v1608 = vsel %vm1103, %v1604, 0
        %v1611 = vsel %vm1103, %v1606, 0
        %1613 = vmatprep.subr.bf16.mxu0 0
        %1614 = vmatpush1.bf16.xpose.msra.mxu0 %v1611
        %1615 = vmatprep.subr.bf16.mxu0 0
        %1616 = vmatpush1.bf16.xpose.msra.mxu0 0
        %1617 = vmatprep.subr.bf16.mxu0 0
        %1618 = vmatpush1.bf16.xpose.msra.mxu0 0
        %1619 = vmatprep.subr.bf16.mxu0 0
        %1620 = vmatpush1.bf16.xpose.msra.mxu0 0
        %1621 = vmatprep.subr.bf16.mxu0 0
        %1622 = vmatpush1.bf16.xpose.msra.mxu0 0
        %1623 = vmatprep.subr.bf16.mxu0 0
        %1624 = vmatpush1.bf16.xpose.msra.mxu0 0
        %1625 = vmatprep.subr.bf16.mxu0 0
        %1626 = vmatpush1.bf16.xpose.msra.mxu0 0
        %1627 = vmatprep.subr.bf16.mxu0 0
        %1628 = vmatpush1.bf16.xpose.msra.mxu0 0
        %1629 = vmatprep.subr.bf16.mxu0 0
        %1630 = vmatpush1.bf16.xpose.msra.mxu0 0
        %1631 = vmatprep.subr.bf16.mxu0 0
        %1632 = vmatpush1.bf16.xpose.msra.mxu0 0
        %1633 = vmatprep.subr.bf16.mxu0 0
        %1634 = vmatpush1.bf16.xpose.msra.mxu0 0
        %1635 = vmatprep.subr.bf16.mxu0 0
        %1636 = vmatpush1.bf16.xpose.msra.mxu0 0
        %1637 = vmatprep.subr.bf16.mxu0 0
        %1638 = vmatpush1.bf16.xpose.msra.mxu0 0
        %1639 = vmatprep.subr.bf16.mxu0 0
        %1640 = vmatpush1.bf16.xpose.msra.mxu0 0
        %1641 = vmatprep.subr.bf16.mxu0 0
        %1642 = vmatpush1.bf16.xpose.msra.mxu0 0
        %1643 = vmatprep.subr.bf16.mxu0 0
        %1644 = vmatpush1.bf16.xpose.msra.mxu0 0
        %1645 = vmatprep.mubr.bf16.mxu0 0
        %1646 = vmatmul.mubr.bf16.gmra.mrb[0].mxu0 %v1608
        %v1647 = vpop.f32.mrb[0].mxu0
        %v1648 = vadd.f32 %v771, %v1647
        %v1649 = vpop.f32.mrb[0].mxu0
        %v1650 = vpop.f32.mrb[0].mxu0
        %v1651 = vpop.f32.mrb[0].mxu0
        %1652 = vdwg.mxu0
        %v1653 = vsel %vm1150, %v1648, -inf
        %1654 = vmax.xlane.f32.xlu0 %v1653
        %v1655 = vpop.xlane.xlu0 %1654
        %v1656 = vsub.f32 %v1648, %v1655
        %v1657 = vmul.f32 %v1656, 1.442695
        %v1658 = vpow.pop %v1657
        %v1659 = vsel %vm1150, %v1658, 0.0
        %1660 = vadd.xlane.f32.xlu0 %v1659
        %v1661 = vpop.xlane.xlu0 %1660
        %v1662 = vrcp.pop %v1661
        %v1663 = vmul.f32 %v1658, %v1662
        %v1664 = vpack.c.bf16 %v1663, %v1663
        %1665 = vrot.lane.b32.xlu0 %v1163, 32
        %v1666 = vpop.permute.xlu0 %1665
        %v1668 = vsel %vm1150, %v1664, 0
        %v1671 = vsel %vm1167, %v1666, 0
        %1673 = vmatprep.subr.bf16.mxu0 0
        %1674 = vmatpush1.bf16.msra.mxu0 %v1671
        %1675 = vmatprep.subr.bf16.mxu0 0
        %1676 = vmatpush1.bf16.msra.mxu0 0
        %1677 = vmatprep.subr.bf16.mxu0 0
        %1678 = vmatpush1.bf16.msra.mxu0 0
        %1679 = vmatprep.subr.bf16.mxu0 0
        %1680 = vmatpush1.bf16.msra.mxu0 0
        %1681 = vmatprep.subr.bf16.mxu0 0
        %1682 = vmatpush1.bf16.msra.mxu0 0
        %1683 = vmatprep.subr.bf16.mxu0 0
        %1684 = vmatpush1.bf16.msra.mxu0 0
        %1685 = vmatprep.subr.bf16.mxu0 0
        %1686 = vmatpush1.bf16.msra.mxu0 0
        %1687 = vmatprep.subr.bf16.mxu0 0
        %1688 = vmatpush1.bf16.msra.mxu0 0
        %1689 = vmatprep.subr.bf16.mxu0 0
        %1690 = vmatpush1.bf16.msra.mxu0 0
        %1691 = vmatprep.subr.bf16.mxu0 0
        %1692 = vmatpush1.bf16.msra.mxu0 0
        %1693 = vmatprep.subr.bf16.mxu0 0
        %1694 = vmatpush1.bf16.msra.mxu0 0
        %1695 = vmatprep.subr.bf16.mxu0 0
        %1696 = vmatpush1.bf16.msra.mxu0 0
        %1697 = vmatprep.subr.bf16.mxu0 0
        %1698 = vmatpush1.bf16.msra.mxu0 0
        %1699 = vmatprep.subr.bf16.mxu0 0
        %1700 = vmatpush1.bf16.msra.mxu0 0
        %1701 = vmatprep.subr.bf16.mxu0 0
        %1702 = vmatpush1.bf16.msra.mxu0 0
        %1703 = vmatprep.subr.bf16.mxu0 0
        %1704 = vmatpush1.bf16.msra.mxu0 0
        %1705 = vmatprep.mubr.bf16.mxu0 0
        %1706 = vmatmul.mubr.bf16.gmra.mrb[0].mxu0 %v1668
        %v1707 = vpop.f32.mrb[0].mxu0
        %v1708 = vadd.f32 0.0, %v1707
        %v1709 = vpop.f32.mrb[0].mxu0
        %v1710 = vpop.f32.mrb[0].mxu0
        %v1711 = vpop.f32.mrb[0].mxu0
        %1712 = vdwg.mxu0
        %v1713 = vpack.c.bf16 %v1708, %v1708
        %v1718 = vunpack.c.l.b16 %v1097
        %v1719 = vunpack.c.l.b16 %v1098
        %v1720 = vunpack.c.l.b16 %v1099
        %v1721 = vunpack.c.l.b16 %v1100
        %v1722 = vpack.c.b16 %v1719, %v1718
        %v1723 = vpack.c.b16 %v1721, %v1720
        %v1727 = vsel %vm1103, %v1713, 0
        %1729 = vmatprep.subr.bf16.mxu0 0
        %1730 = vmatpush1.bf16.msra.mxu0 %v1722
        %1731 = vmatprep.subr.bf16.mxu0 0
        %1732 = vmatpush1.bf16.msra.mxu0 %v1723
        %1733 = vmatprep.subr.bf16.mxu0 0
        %1734 = vmatpush1.bf16.msra.mxu0 0
        %1735 = vmatprep.subr.bf16.mxu0 0
        %1736 = vmatpush1.bf16.msra.mxu0 0
        %1737 = vmatprep.subr.bf16.mxu0 0
        %1738 = vmatpush1.bf16.msra.mxu0 0
        %1739 = vmatprep.subr.bf16.mxu0 0
        %1740 = vmatpush1.bf16.msra.mxu0 0
        %1741 = vmatprep.subr.bf16.mxu0 0
        %1742 = vmatpush1.bf16.msra.mxu0 0
        %1743 = vmatprep.subr.bf16.mxu0 0
        %1744 = vmatpush1.bf16.msra.mxu0 0
        %1745 = vmatprep.subr.bf16.mxu0 0
        %1746 = vmatpush1.bf16.msra.mxu0 0
        %1747 = vmatprep.subr.bf16.mxu0 0
        %1748 = vmatpush1.bf16.msra.mxu0 0
        %1749 = vmatprep.subr.bf16.mxu0 0
        %1750 = vmatpush1.bf16.msra.mxu0 0
        %1751 = vmatprep.subr.bf16.mxu0 0
        %1752 = vmatpush1.bf16.msra.mxu0 0
        %1753 = vmatprep.subr.bf16.mxu0 0
        %1754 = vmatpush1.bf16.msra.mxu0 0
        %1755 = vmatprep.subr.bf16.mxu0 0
        %1756 = vmatpush1.bf16.msra.mxu0 0
        %1757 = vmatprep.subr.bf16.mxu0 0
        %1758 = vmatpush1.bf16.msra.mxu0 0
        %1759 = vmatprep.subr.bf16.mxu0 0
        %1760 = vmatpush1.bf16.msra.mxu0 0
        %1761 = vmatprep.mubr.bf16.mxu0 0
        %1762 = vmatmul.mubr.bf16.gmra.mrb[0].mxu0 %v1727
        %v1763 = vpop.f32.mrb[0].mxu0
        %v1764 = vadd.f32 0.0, %v1763
        %v1765 = vpop.f32.mrb[0].mxu0
        %v1766 = vpop.f32.mrb[0].mxu0
        %v1767 = vpop.f32.mrb[0].mxu0
        %1768 = vdwg.mxu0
        %v1769 = vadd.f32 %v1602, %v1764
        %v1770 = vld [vmem:[%s8] sm:$0x1]
        %v1772 = vlaneseq
        %v1773 = vshrl.u32 %v1772, 7
        %v1774 = vsub.s32 0, %v1773
        %v1775 = vrot.slane %v1770, %v1774
        %v1777 = vadd.f32 %v1769, %v1775
        %v1778 = vadd.f32 %v1777, %v768
        %1779 = vadd.xlane.f32.xlu0 %v1778
        %v1780 = vpop.xlane.xlu0 %1779
        %v1781 = vrcp.pop 128.0
        %v1782 = vmul.f32 %v1780, %v1781
        %v1783 = vsub.f32 %v1778, %v1782
        %v1784 = vmul.f32 %v1783, %v1783
        %1785 = vadd.xlane.f32.xlu0 %v1784
        %v1786 = vpop.xlane.xlu0 %1785
        %v1787 = vmul.f32 %v1786, %v1781
        %v1788 = vadd.f32 %v1787, 1e-05
        %v1789 = vrsqrt.pop %v1788
        %v1790 = vmul.f32 %v1783, %v1789
        %v1791 = vld [vmem:[%s9] sm:$0x1]
        %v1793 = vlaneseq
        %v1794 = vshrl.u32 %v1793, 7
        %v1795 = vsub.s32 0, %v1794
        %v1796 = vrot.slane %v1791, %v1795
        %v1798 = vmul.f32 %v1790, %v1796
        %v1799 = vld [vmem:[%s10] sm:$0x1]
        %v1801 = vlaneseq
        %v1802 = vshrl.u32 %v1801, 7
        %v1803 = vsub.s32 0, %v1802
        %v1804 = vrot.slane %v1799, %v1803
        %v1806 = vadd.f32 %v1798, %v1804
        %v1807 = vpack.c.bf16 %v770, %v770
        %v1808 = vld [vmem:[%s11] sm:$0xf]
        %v1809 = vld [vmem:[%s11 + $0x4] sm:$0xf]
        %v1810 = vld [vmem:[%s11 + $0x8] sm:$0xf]
        %v1811 = vld [vmem:[%s11 + $0xc] sm:$0xf]
        %v1812 = vld [vmem:[%s11 + $0x10] sm:$0xf]
        %v1813 = vld [vmem:[%s11 + $0x14] sm:$0xf]
        %v1814 = vld [vmem:[%s11 + $0x18] sm:$0xf]
        %v1815 = vld [vmem:[%s11 + $0x1c] sm:$0xf]
        %v1816 = vld [vmem:[%s11 + $0x20] sm:$0xf]
        %v1817 = vld [vmem:[%s11 + $0x24] sm:$0xf]
        %v1818 = vld [vmem:[%s11 + $0x28] sm:$0xf]
        %v1819 = vld [vmem:[%s11 + $0x2c] sm:$0xf]
        %v1820 = vld [vmem:[%s11 + $0x30] sm:$0xf]
        %v1821 = vld [vmem:[%s11 + $0x34] sm:$0xf]
        %v1822 = vld [vmem:[%s11 + $0x38] sm:$0xf]
        %v1823 = vld [vmem:[%s11 + $0x3c] sm:$0xf]
        %v1840 = vunpack.c.l.b16 %v1808
        %v1841 = vunpack.c.l.b16 %v1809
        %v1842 = vunpack.c.l.b16 %v1810
        %v1843 = vunpack.c.l.b16 %v1811
        %v1844 = vunpack.c.l.b16 %v1812
        %v1845 = vunpack.c.l.b16 %v1813
        %v1846 = vunpack.c.l.b16 %v1814
        %v1847 = vunpack.c.l.b16 %v1815
        %v1848 = vunpack.c.l.b16 %v1816
        %v1849 = vunpack.c.l.b16 %v1817
        %v1850 = vunpack.c.l.b16 %v1818
        %v1851 = vunpack.c.l.b16 %v1819
        %v1852 = vunpack.c.l.b16 %v1820
        %v1853 = vunpack.c.l.b16 %v1821
        %v1854 = vunpack.c.l.b16 %v1822
        %v1855 = vunpack.c.l.b16 %v1823
        %v1856 = vpack.c.b16 %v1841, %v1840
        %v1857 = vpack.c.b16 %v1843, %v1842
        %v1858 = vpack.c.b16 %v1845, %v1844
        %v1859 = vpack.c.b16 %v1847, %v1846
        %v1860 = vpack.c.b16 %v1849, %v1848
        %v1861 = vpack.c.b16 %v1851, %v1850
        %v1862 = vpack.c.b16 %v1853, %v1852
        %v1863 = vpack.c.b16 %v1855, %v1854
        %1872 = vmatprep.subr.bf16.mxu0 0
        %1873 = vmatpush1.bf16.msra.mxu0 %v1856
        %1874 = vmatprep.subr.bf16.mxu0 0
        %1875 = vmatpush1.bf16.msra.mxu0 %v1857
        %1876 = vmatprep.subr.bf16.mxu0 0
        %1877 = vmatpush1.bf16.msra.mxu0 %v1858
        %1878 = vmatprep.subr.bf16.mxu0 0
        %1879 = vmatpush1.bf16.msra.mxu0 %v1859
        %1880 = vmatprep.subr.bf16.mxu0 0
        %1881 = vmatpush1.bf16.msra.mxu0 %v1860
        %1882 = vmatprep.subr.bf16.mxu0 0
        %1883 = vmatpush1.bf16.msra.mxu0 %v1861
        %1884 = vmatprep.subr.bf16.mxu0 0
        %1885 = vmatpush1.bf16.msra.mxu0 %v1862
        %1886 = vmatprep.subr.bf16.mxu0 0
        %1887 = vmatpush1.bf16.msra.mxu0 %v1863
        %1888 = vmatprep.subr.bf16.mxu0 0
        %1889 = vmatpush1.bf16.msra.mxu0 0
        %1890 = vmatprep.subr.bf16.mxu0 0
        %1891 = vmatpush1.bf16.msra.mxu0 0
        %1892 = vmatprep.subr.bf16.mxu0 0
        %1893 = vmatpush1.bf16.msra.mxu0 0
        %1894 = vmatprep.subr.bf16.mxu0 0
        %1895 = vmatpush1.bf16.msra.mxu0 0
        %1896 = vmatprep.subr.bf16.mxu0 0
        %1897 = vmatpush1.bf16.msra.mxu0 0
        %1898 = vmatprep.subr.bf16.mxu0 0
        %1899 = vmatpush1.bf16.msra.mxu0 0
        %1900 = vmatprep.subr.bf16.mxu0 0
        %1901 = vmatpush1.bf16.msra.mxu0 0
        %1902 = vmatprep.subr.bf16.mxu0 0
        %1903 = vmatpush1.bf16.msra.mxu0 0
        %1904 = vmatprep.mubr.bf16.mxu0 0
        %1905 = vmatmul.mubr.bf16.gmra.mrb[0].mxu0 %v1807
        %v1906 = vpop.f32.mrb[0].mxu0
        %v1907 = vadd.f32 0.0, %v1906
        %v1908 = vpop.f32.mrb[0].mxu0
        %v1909 = vpop.f32.mrb[0].mxu0
        %v1910 = vpop.f32.mrb[0].mxu0
        %1911 = vdwg.mxu0
        %v1912 = vpack.c.bf16 %v769, %v769
        %v1913 = vld [vmem:[%s12] sm:$0xf]
        %v1914 = vld [vmem:[%s12 + $0x4] sm:$0xf]
        %v1915 = vld [vmem:[%s12 + $0x8] sm:$0xf]
        %v1916 = vld [vmem:[%s12 + $0xc] sm:$0xf]
        %v1917 = vld [vmem:[%s12 + $0x10] sm:$0xf]
        %v1918 = vld [vmem:[%s12 + $0x14] sm:$0xf]
        %v1919 = vld [vmem:[%s12 + $0x18] sm:$0xf]
        %v1920 = vld [vmem:[%s12 + $0x1c] sm:$0xf]
        %v1921 = vld [vmem:[%s12 + $0x20] sm:$0xf]
        %v1922 = vld [vmem:[%s12 + $0x24] sm:$0xf]
        %v1923 = vld [vmem:[%s12 + $0x28] sm:$0xf]
        %v1924 = vld [vmem:[%s12 + $0x2c] sm:$0xf]
        %v1925 = vld [vmem:[%s12 + $0x30] sm:$0xf]
        %v1926 = vld [vmem:[%s12 + $0x34] sm:$0xf]
        %v1927 = vld [vmem:[%s12 + $0x38] sm:$0xf]
        %v1928 = vld [vmem:[%s12 + $0x3c] sm:$0xf]
        %v1945 = vunpack.c.l.b16 %v1913
        %v1946 = vunpack.c.l.b16 %v1914
        %v1947 = vunpack.c.l.b16 %v1915
        %v1948 = vunpack.c.l.b16 %v1916
        %v1949 = vunpack.c.l.b16 %v1917
        %v1950 = vunpack.c.l.b16 %v1918
        %v1951 = vunpack.c.l.b16 %v1919
        %v1952 = vunpack.c.l.b16 %v1920
        %v1953 = vunpack.c.l.b16 %v1921
        %v1954 = vunpack.c.l.b16 %v1922
        %v1955 = vunpack.c.l.b16 %v1923
        %v1956 = vunpack.c.l.b16 %v1924
        %v1957 = vunpack.c.l.b16 %v1925
        %v1958 = vunpack.c.l.b16 %v1926
        %v1959 = vunpack.c.l.b16 %v1927
        %v1960 = vunpack.c.l.b16 %v1928
        %v1961 = vpack.c.b16 %v1946, %v1945
        %v1962 = vpack.c.b16 %v1948, %v1947
        %v1963 = vpack.c.b16 %v1950, %v1949
        %v1964 = vpack.c.b16 %v1952, %v1951
        %v1965 = vpack.c.b16 %v1954, %v1953
        %v1966 = vpack.c.b16 %v1956, %v1955
        %v1967 = vpack.c.b16 %v1958, %v1957
        %v1968 = vpack.c.b16 %v1960, %v1959
        %1977 = vmatprep.subr.bf16.mxu0 0
        %1978 = vmatpush1.bf16.msra.mxu0 %v1961
        %1979 = vmatprep.subr.bf16.mxu0 0
        %1980 = vmatpush1.bf16.msra.mxu0 %v1962
        %1981 = vmatprep.subr.bf16.mxu0 0
        %1982 = vmatpush1.bf16.msra.mxu0 %v1963
        %1983 = vmatprep.subr.bf16.mxu0 0
        %1984 = vmatpush1.bf16.msra.mxu0 %v1964
        %1985 = vmatprep.subr.bf16.mxu0 0
        %1986 = vmatpush1.bf16.msra.mxu0 %v1965
        %1987 = vmatprep.subr.bf16.mxu0 0
        %1988 = vmatpush1.bf16.msra.mxu0 %v1966
        %1989 = vmatprep.subr.bf16.mxu0 0
        %1990 = vmatpush1.bf16.msra.mxu0 %v1967
        %1991 = vmatprep.subr.bf16.mxu0 0
        %1992 = vmatpush1.bf16.msra.mxu0 %v1968
        %1993 = vmatprep.subr.bf16.mxu0 0
        %1994 = vmatpush1.bf16.msra.mxu0 0
        %1995 = vmatprep.subr.bf16.mxu0 0
        %1996 = vmatpush1.bf16.msra.mxu0 0
        %1997 = vmatprep.subr.bf16.mxu0 0
        %1998 = vmatpush1.bf16.msra.mxu0 0
        %1999 = vmatprep.subr.bf16.mxu0 0
        %2000 = vmatpush1.bf16.msra.mxu0 0
        %2001 = vmatprep.subr.bf16.mxu0 0
        %2002 = vmatpush1.bf16.msra.mxu0 0
        %2003 = vmatprep.subr.bf16.mxu0 0
        %2004 = vmatpush1.bf16.msra.mxu0 0
        %2005 = vmatprep.subr.bf16.mxu0 0
        %2006 = vmatpush1.bf16.msra.mxu0 0
        %2007 = vmatprep.subr.bf16.mxu0 0
        %2008 = vmatpush1.bf16.msra.mxu0 0
        %2009 = vmatprep.mubr.bf16.mxu0 0
        %2010 = vmatmul.mubr.bf16.gmra.mrb[0].mxu0 %v1912
        %v2011 = vpop.f32.mrb[0].mxu0
        %v2012 = vadd.f32 0.0, %v2011
        %v2013 = vpop.f32.mrb[0].mxu0
        %v2014 = vpop.f32.mrb[0].mxu0
        %v2015 = vpop.f32.mrb[0].mxu0
        %2016 = vdwg.mxu0
        %v2017 = vpack.c.bf16 %v1806, %v1806
        %v2018 = vld [vmem:[%s13] sm:$0xf]
        %v2019 = vld [vmem:[%s13 + $0x4] sm:$0xf]
        %v2020 = vld [vmem:[%s13 + $0x8] sm:$0xf]
        %v2021 = vld [vmem:[%s13 + $0xc] sm:$0xf]
        %v2022 = vld [vmem:[%s13 + $0x10] sm:$0xf]
        %v2023 = vld [vmem:[%s13 + $0x14] sm:$0xf]
        %v2024 = vld [vmem:[%s13 + $0x18] sm:$0xf]
        %v2025 = vld [vmem:[%s13 + $0x1c] sm:$0xf]
        %v2026 = vld [vmem:[%s13 + $0x20] sm:$0xf]
        %v2027 = vld [vmem:[%s13 + $0x24] sm:$0xf]
        %v2028 = vld [vmem:[%s13 + $0x28] sm:$0xf]
        %v2029 = vld [vmem:[%s13 + $0x2c] sm:$0xf]
        %v2030 = vld [vmem:[%s13 + $0x30] sm:$0xf]
        %v2031 = vld [vmem:[%s13 + $0x34] sm:$0xf]
        %v2032 = vld [vmem:[%s13 + $0x38] sm:$0xf]
        %v2033 = vld [vmem:[%s13 + $0x3c] sm:$0xf]
        %v2050 = vunpack.c.l.b16 %v2018
        %v2051 = vunpack.c.l.b16 %v2019
        %v2052 = vunpack.c.l.b16 %v2020
        %v2053 = vunpack.c.l.b16 %v2021
        %v2054 = vunpack.c.l.b16 %v2022
        %v2055 = vunpack.c.l.b16 %v2023
        %v2056 = vunpack.c.l.b16 %v2024
        %v2057 = vunpack.c.l.b16 %v2025
        %v2058 = vunpack.c.l.b16 %v2026
        %v2059 = vunpack.c.l.b16 %v2027
        %v2060 = vunpack.c.l.b16 %v2028
        %v2061 = vunpack.c.l.b16 %v2029
        %v2062 = vunpack.c.l.b16 %v2030
        %v2063 = vunpack.c.l.b16 %v2031
        %v2064 = vunpack.c.l.b16 %v2032
        %v2065 = vunpack.c.l.b16 %v2033
        %v2066 = vpack.c.b16 %v2051, %v2050
        %v2067 = vpack.c.b16 %v2053, %v2052
        %v2068 = vpack.c.b16 %v2055, %v2054
        %v2069 = vpack.c.b16 %v2057, %v2056
        %v2070 = vpack.c.b16 %v2059, %v2058
        %v2071 = vpack.c.b16 %v2061, %v2060
        %v2072 = vpack.c.b16 %v2063, %v2062
        %v2073 = vpack.c.b16 %v2065, %v2064
        %2082 = vmatprep.subr.bf16.mxu0 0
        %2083 = vmatpush1.bf16.msra.mxu0 %v2066
        %2084 = vmatprep.subr.bf16.mxu0 0
        %2085 = vmatpush1.bf16.msra.mxu0 %v2067
        %2086 = vmatprep.subr.bf16.mxu0 0
        %2087 = vmatpush1.bf16.msra.mxu0 %v2068
        %2088 = vmatprep.subr.bf16.mxu0 0
        %2089 = vmatpush1.bf16.msra.mxu0 %v2069
        %2090 = vmatprep.subr.bf16.mxu0 0
        %2091 = vmatpush1.bf16.msra.mxu0 %v2070
        %2092 = vmatprep.subr.bf16.mxu0 0
        %2093 = vmatpush1.bf16.msra.mxu0 %v2071
        %2094 = vmatprep.subr.bf16.mxu0 0
        %2095 = vmatpush1.bf16.msra.mxu0 %v2072
        %2096 = vmatprep.subr.bf16.mxu0 0
        %2097 = vmatpush1.bf16.msra.mxu0 %v2073
        %2098 = vmatprep.subr.bf16.mxu0 0
        %2099 = vmatpush1.bf16.msra.mxu0 0
        %2100 = vmatprep.subr.bf16.mxu0 0
        %2101 = vmatpush1.bf16.msra.mxu0 0
        %2102 = vmatprep.subr.bf16.mxu0 0
        %2103 = vmatpush1.bf16.msra.mxu0 0
        %2104 = vmatprep.subr.bf16.mxu0 0
        %2105 = vmatpush1.bf16.msra.mxu0 0
        %2106 = vmatprep.subr.bf16.mxu0 0
        %2107 = vmatpush1.bf16.msra.mxu0 0
        %2108 = vmatprep.subr.bf16.mxu0 0
        %2109 = vmatpush1.bf16.msra.mxu0 0
        %2110 = vmatprep.subr.bf16.mxu0 0
        %2111 = vmatpush1.bf16.msra.mxu0 0
        %2112 = vmatprep.subr.bf16.mxu0 0
        %2113 = vmatpush1.bf16.msra.mxu0 0
        %2114 = vmatprep.mubr.bf16.mxu0 0
        %2115 = vmatmul.mubr.bf16.gmra.mrb[0].mxu0 %v2017
        %v2116 = vpop.f32.mrb[0].mxu0
        %v2117 = vadd.f32 0.0, %v2116
        %v2118 = vpop.f32.mrb[0].mxu0
        %v2119 = vpop.f32.mrb[0].mxu0
        %v2120 = vpop.f32.mrb[0].mxu0
        %2121 = vdwg.mxu0
        %v2122 = vld [vmem:[%s14] sm:$0xf]
        %v2123 = vld [vmem:[%s14 + $0x4] sm:$0xf]
        %v2124 = vld [vmem:[%s14 + $0x8] sm:$0xf]
        %v2125 = vld [vmem:[%s14 + $0xc] sm:$0xf]
        %v2126 = vld [vmem:[%s14 + $0x10] sm:$0xf]
        %v2127 = vld [vmem:[%s14 + $0x14] sm:$0xf]
        %v2128 = vld [vmem:[%s14 + $0x18] sm:$0xf]
        %v2129 = vld [vmem:[%s14 + $0x1c] sm:$0xf]
        %v2130 = vld [vmem:[%s14 + $0x20] sm:$0xf]
        %v2131 = vld [vmem:[%s14 + $0x24] sm:$0xf]
        %v2132 = vld [vmem:[%s14 + $0x28] sm:$0xf]
        %v2133 = vld [vmem:[%s14 + $0x2c] sm:$0xf]
        %v2134 = vld [vmem:[%s14 + $0x30] sm:$0xf]
        %v2135 = vld [vmem:[%s14 + $0x34] sm:$0xf]
        %v2136 = vld [vmem:[%s14 + $0x38] sm:$0xf]
        %v2137 = vld [vmem:[%s14 + $0x3c] sm:$0xf]
        %v2138 = vpack.c.bf16 %v1907, %v1907
        %v2139 = vpack.c.bf16 %v2012, %v2012
        %v2141 = vsel %vm1103, %v2138, 0
        %v2144 = vsel %vm1103, %v2139, 0
        %2146 = vmatprep.subr.bf16.mxu0 0
        %2147 = vmatpush1.bf16.xpose.msra.mxu0 %v2144
        %2148 = vmatprep.subr.bf16.mxu0 0
        %2149 = vmatpush1.bf16.xpose.msra.mxu0 0
        %2150 = vmatprep.subr.bf16.mxu0 0
        %2151 = vmatpush1.bf16.xpose.msra.mxu0 0
        %2152 = vmatprep.subr.bf16.mxu0 0
        %2153 = vmatpush1.bf16.xpose.msra.mxu0 0
        %2154 = vmatprep.subr.bf16.mxu0 0
        %2155 = vmatpush1.bf16.xpose.msra.mxu0 0
        %2156 = vmatprep.subr.bf16.mxu0 0
        %2157 = vmatpush1.bf16.xpose.msra.mxu0 0
        %2158 = vmatprep.subr.bf16.mxu0 0
        %2159 = vmatpush1.bf16.xpose.msra.mxu0 0
        %2160 = vmatprep.subr.bf16.mxu0 0
        %2161 = vmatpush1.bf16.xpose.msra.mxu0 0
        %2162 = vmatprep.subr.bf16.mxu0 0
        %2163 = vmatpush1.bf16.xpose.msra.mxu0 0
        %2164 = vmatprep.subr.bf16.mxu0 0
        %2165 = vmatpush1.bf16.xpose.msra.mxu0 0
        %2166 = vmatprep.subr.bf16.mxu0 0
        %2167 = vmatpush1.bf16.xpose.msra.mxu0 0
        %2168 = vmatprep.subr.bf16.mxu0 0
        %2169 = vmatpush1.bf16.xpose.msra.mxu0 0
        %2170 = vmatprep.subr.bf16.mxu0 0
        %2171 = vmatpush1.bf16.xpose.msra.mxu0 0
        %2172 = vmatprep.subr.bf16.mxu0 0
        %2173 = vmatpush1.bf16.xpose.msra.mxu0 0
        %2174 = vmatprep.subr.bf16.mxu0 0
        %2175 = vmatpush1.bf16.xpose.msra.mxu0 0
        %2176 = vmatprep.subr.bf16.mxu0 0
        %2177 = vmatpush1.bf16.xpose.msra.mxu0 0
        %2178 = vmatprep.mubr.bf16.mxu0 0
        %2179 = vmatmul.mubr.bf16.gmra.mrb[0].mxu0 %v2141
        %v2180 = vpop.f32.mrb[0].mxu0
        %v2181 = vadd.f32 0.0, %v2180
        %v2182 = vpop.f32.mrb[0].mxu0
        %v2183 = vpop.f32.mrb[0].mxu0
        %v2184 = vpop.f32.mrb[0].mxu0
        %2185 = vdwg.mxu0
        %v2186 = vsel %vm1150, %v2181, -inf
        %2187 = vmax.xlane.f32.xlu0 %v2186
        %v2188 = vpop.xlane.xlu0 %2187
        %v2189 = vsub.f32 %v2181, %v2188
        %v2190 = vmul.f32 %v2189, 1.442695
        %v2191 = vpow.pop %v2190
        %v2192 = vsel %vm1150, %v2191, 0.0
        %2193 = vadd.xlane.f32.xlu0 %v2192
        %v2194 = vpop.xlane.xlu0 %2193
        %v2195 = vrcp.pop %v2194
        %v2196 = vmul.f32 %v2191, %v2195
        %v2197 = vpack.c.bf16 %v2196, %v2196
        %v2198 = vpack.c.bf16 %v2117, %v2117
        %v2200 = vsel %vm1150, %v2197, 0
        %v2203 = vsel %vm1167, %v2198, 0
        %2205 = vmatprep.subr.bf16.mxu0 0
        %2206 = vmatpush1.bf16.msra.mxu0 %v2203
        %2207 = vmatprep.subr.bf16.mxu0 0
        %2208 = vmatpush1.bf16.msra.mxu0 0
        %2209 = vmatprep.subr.bf16.mxu0 0
        %2210 = vmatpush1.bf16.msra.mxu0 0
        %2211 = vmatprep.subr.bf16.mxu0 0
        %2212 = vmatpush1.bf16.msra.mxu0 0
        %2213 = vmatprep.subr.bf16.mxu0 0
        %2214 = vmatpush1.bf16.msra.mxu0 0
        %2215 = vmatprep.subr.bf16.mxu0 0
        %2216 = vmatpush1.bf16.msra.mxu0 0
        %2217 = vmatprep.subr.bf16.mxu0 0
        %2218 = vmatpush1.bf16.msra.mxu0 0
        %2219 = vmatprep.subr.bf16.mxu0 0
        %2220 = vmatpush1.bf16.msra.mxu0 0
        %2221 = vmatprep.subr.bf16.mxu0 0
        %2222 = vmatpush1.bf16.msra.mxu0 0
        %2223 = vmatprep.subr.bf16.mxu0 0
        %2224 = vmatpush1.bf16.msra.mxu0 0
        %2225 = vmatprep.subr.bf16.mxu0 0
        %2226 = vmatpush1.bf16.msra.mxu0 0
        %2227 = vmatprep.subr.bf16.mxu0 0
        %2228 = vmatpush1.bf16.msra.mxu0 0
        %2229 = vmatprep.subr.bf16.mxu0 0
        %2230 = vmatpush1.bf16.msra.mxu0 0
        %2231 = vmatprep.subr.bf16.mxu0 0
        %2232 = vmatpush1.bf16.msra.mxu0 0
        %2233 = vmatprep.subr.bf16.mxu0 0
        %2234 = vmatpush1.bf16.msra.mxu0 0
        %2235 = vmatprep.subr.bf16.mxu0 0
        %2236 = vmatpush1.bf16.msra.mxu0 0
        %2237 = vmatprep.mubr.bf16.mxu0 0
        %2238 = vmatmul.mubr.bf16.gmra.mrb[0].mxu0 %v2200
        %v2239 = vpop.f32.mrb[0].mxu0
        %v2240 = vadd.f32 0.0, %v2239
        %v2241 = vpop.f32.mrb[0].mxu0
        %v2242 = vpop.f32.mrb[0].mxu0
        %v2243 = vpop.f32.mrb[0].mxu0
        %2244 = vdwg.mxu0
        %v2245 = vpack.c.bf16 %v2240, %v2240
        %2247 = vrot.lane.b32.xlu0 %v2138, 96
        %v2248 = vpop.permute.xlu0 %2247
        %2250 = vrot.lane.b32.xlu0 %v2139, 96
        %v2251 = vpop.permute.xlu0 %2250
        %v2253 = vsel %vm1103, %v2248, 0
        %v2256 = vsel %vm1103, %v2251, 0
        %2258 = vmatprep.subr.bf16.mxu0 0
        %2259 = vmatpush1.bf16.xpose.msra.mxu0 %v2256
        %2260 = vmatprep.subr.bf16.mxu0 0
        %2261 = vmatpush1.bf16.xpose.msra.mxu0 0
        %2262 = vmatprep.subr.bf16.mxu0 0
        %2263 = vmatpush1.bf16.xpose.msra.mxu0 0
        %2264 = vmatprep.subr.bf16.mxu0 0
        %2265 = vmatpush1.bf16.xpose.msra.mxu0 0
        %2266 = vmatprep.subr.bf16.mxu0 0
        %2267 = vmatpush1.bf16.xpose.msra.mxu0 0
        %2268 = vmatprep.subr.bf16.mxu0 0
        %2269 = vmatpush1.bf16.xpose.msra.mxu0 0
        %2270 = vmatprep.subr.bf16.mxu0 0
        %2271 = vmatpush1.bf16.xpose.msra.mxu0 0
        %2272 = vmatprep.subr.bf16.mxu0 0
        %2273 = vmatpush1.bf16.xpose.msra.mxu0 0
        %2274 = vmatprep.subr.bf16.mxu0 0
        %2275 = vmatpush1.bf16.xpose.msra.mxu0 0
        %2276 = vmatprep.subr.bf16.mxu0 0
        %2277 = vmatpush1.bf16.xpose.msra.mxu0 0
        %2278 = vmatprep.subr.bf16.mxu0 0
        %2279 = vmatpush1.bf16.xpose.msra.mxu0 0
        %2280 = vmatprep.subr.bf16.mxu0 0
        %2281 = vmatpush1.bf16.xpose.msra.mxu0 0
        %2282 = vmatprep.subr.bf16.mxu0 0
        %2283 = vmatpush1.bf16.xpose.msra.mxu0 0
        %2284 = vmatprep.subr.bf16.mxu0 0
        %2285 = vmatpush1.bf16.xpose.msra.mxu0 0
        %2286 = vmatprep.subr.bf16.mxu0 0
        %2287 = vmatpush1.bf16.xpose.msra.mxu0 0
        %2288 = vmatprep.subr.bf16.mxu0 0
        %2289 = vmatpush1.bf16.xpose.msra.mxu0 0
        %2290 = vmatprep.mubr.bf16.mxu0 0
        %2291 = vmatmul.mubr.bf16.gmra.mrb[0].mxu0 %v2253
        %v2292 = vpop.f32.mrb[0].mxu0
        %v2293 = vadd.f32 0.0, %v2292
        %v2294 = vpop.f32.mrb[0].mxu0
        %v2295 = vpop.f32.mrb[0].mxu0
        %v2296 = vpop.f32.mrb[0].mxu0
        %2297 = vdwg.mxu0
        %v2298 = vsel %vm1150, %v2293, -inf
        %2299 = vmax.xlane.f32.xlu0 %v2298
        %v2300 = vpop.xlane.xlu0 %2299
        %v2301 = vsub.f32 %v2293, %v2300
        %v2302 = vmul.f32 %v2301, 1.442695
        %v2303 = vpow.pop %v2302
        %v2304 = vsel %vm1150, %v2303, 0.0
        %2305 = vadd.xlane.f32.xlu0 %v2304
        %v2306 = vpop.xlane.xlu0 %2305
        %v2307 = vrcp.pop %v2306
        %v2308 = vmul.f32 %v2303, %v2307
        %v2309 = vpack.c.bf16 %v2308, %v2308
        %2311 = vrot.lane.b32.xlu0 %v2198, 96
        %v2312 = vpop.permute.xlu0 %2311
        %v2314 = vsel %vm1150, %v2309, 0
        %v2317 = vsel %vm1167, %v2312, 0
        %2319 = vmatprep.subr.bf16.mxu0 0
        %2320 = vmatpush1.bf16.msra.mxu0 %v2317
        %2321 = vmatprep.subr.bf16.mxu0 0
        %2322 = vmatpush1.bf16.msra.mxu0 0
        %2323 = vmatprep.subr.bf16.mxu0 0
        %2324 = vmatpush1.bf16.msra.mxu0 0
        %2325 = vmatprep.subr.bf16.mxu0 0
        %2326 = vmatpush1.bf16.msra.mxu0 0
        %2327 = vmatprep.subr.bf16.mxu0 0
        %2328 = vmatpush1.bf16.msra.mxu0 0
        %2329 = vmatprep.subr.bf16.mxu0 0
        %2330 = vmatpush1.bf16.msra.mxu0 0
        %2331 = vmatprep.subr.bf16.mxu0 0
        %2332 = vmatpush1.bf16.msra.mxu0 0
        %2333 = vmatprep.subr.bf16.mxu0 0
        %2334 = vmatpush1.bf16.msra.mxu0 0
        %2335 = vmatprep.subr.bf16.mxu0 0
        %2336 = vmatpush1.bf16.msra.mxu0 0
        %2337 = vmatprep.subr.bf16.mxu0 0
        %2338 = vmatpush1.bf16.msra.mxu0 0
        %2339 = vmatprep.subr.bf16.mxu0 0
        %2340 = vmatpush1.bf16.msra.mxu0 0
        %2341 = vmatprep.subr.bf16.mxu0 0
        %2342 = vmatpush1.bf16.msra.mxu0 0
        %2343 = vmatprep.subr.bf16.mxu0 0
        %2344 = vmatpush1.bf16.msra.mxu0 0
        %2345 = vmatprep.subr.bf16.mxu0 0
        %2346 = vmatpush1.bf16.msra.mxu0 0
        %2347 = vmatprep.subr.bf16.mxu0 0
        %2348 = vmatpush1.bf16.msra.mxu0 0
        %2349 = vmatprep.subr.bf16.mxu0 0
        %2350 = vmatpush1.bf16.msra.mxu0 0
        %2351 = vmatprep.mubr.bf16.mxu0 0
        %2352 = vmatmul.mubr.bf16.gmra.mrb[0].mxu0 %v2314
        %v2353 = vpop.f32.mrb[0].mxu0
        %v2354 = vadd.f32 0.0, %v2353
        %v2355 = vpop.f32.mrb[0].mxu0
        %v2356 = vpop.f32.mrb[0].mxu0
        %v2357 = vpop.f32.mrb[0].mxu0
        %2358 = vdwg.mxu0
        %v2359 = vpack.c.bf16 %v2354, %v2354
        %v2364 = vunpack.c.l.b16 %v2126
        %v2365 = vunpack.c.l.b16 %v2127
        %v2366 = vunpack.c.l.b16 %v2128
        %v2367 = vunpack.c.l.b16 %v2129
        %v2368 = vpack.c.b16 %v2365, %v2364
        %v2369 = vpack.c.b16 %v2367, %v2366
        %v2373 = vsel %vm1103, %v2359, 0
        %2375 = vmatprep.subr.bf16.mxu0 0
        %2376 = vmatpush1.bf16.msra.mxu0 %v2368
        %2377 = vmatprep.subr.bf16.mxu0 0
        %2378 = vmatpush1.bf16.msra.mxu0 %v2369
        %2379 = vmatprep.subr.bf16.mxu0 0
        %2380 = vmatpush1.bf16.msra.mxu0 0
        %2381 = vmatprep.subr.bf16.mxu0 0
        %2382 = vmatpush1.bf16.msra.mxu0 0
        %2383 = vmatprep.subr.bf16.mxu0 0
        %2384 = vmatpush1.bf16.msra.mxu0 0
        %2385 = vmatprep.subr.bf16.mxu0 0
        %2386 = vmatpush1.bf16.msra.mxu0 0
        %2387 = vmatprep.subr.bf16.mxu0 0
        %2388 = vmatpush1.bf16.msra.mxu0 0
        %2389 = vmatprep.subr.bf16.mxu0 0
        %2390 = vmatpush1.bf16.msra.mxu0 0
        %2391 = vmatprep.subr.bf16.mxu0 0
        %2392 = vmatpush1.bf16.msra.mxu0 0
        %2393 = vmatprep.subr.bf16.mxu0 0
        %2394 = vmatpush1.bf16.msra.mxu0 0
        %2395 = vmatprep.subr.bf16.mxu0 0
        %2396 = vmatpush1.bf16.msra.mxu0 0
        %2397 = vmatprep.subr.bf16.mxu0 0
        %2398 = vmatpush1.bf16.msra.mxu0 0
        %2399 = vmatprep.subr.bf16.mxu0 0
        %2400 = vmatpush1.bf16.msra.mxu0 0
        %2401 = vmatprep.subr.bf16.mxu0 0
        %2402 = vmatpush1.bf16.msra.mxu0 0
        %2403 = vmatprep.subr.bf16.mxu0 0
        %2404 = vmatpush1.bf16.msra.mxu0 0
        %2405 = vmatprep.subr.bf16.mxu0 0
        %2406 = vmatpush1.bf16.msra.mxu0 0
        %2407 = vmatprep.mubr.bf16.mxu0 0
        %2408 = vmatmul.mubr.bf16.gmra.mrb[0].mxu0 %v2373
        %v2409 = vpop.f32.mrb[0].mxu0
        %v2410 = vadd.f32 0.0, %v2409
        %v2411 = vpop.f32.mrb[0].mxu0
        %v2412 = vpop.f32.mrb[0].mxu0
        %v2413 = vpop.f32.mrb[0].mxu0
        %2414 = vdwg.mxu0
        %v2419 = vunpack.c.l.b16 %v2122
        %v2420 = vunpack.c.l.b16 %v2123
        %v2421 = vunpack.c.l.b16 %v2124
        %v2422 = vunpack.c.l.b16 %v2125
        %v2423 = vpack.c.b16 %v2420, %v2419
        %v2424 = vpack.c.b16 %v2422, %v2421
        %v2428 = vsel %vm1103, %v2245, 0
        %2430 = vmatprep.subr.bf16.mxu0 0
        %2431 = vmatpush1.bf16.msra.mxu0 %v2423
        %2432 = vmatprep.subr.bf16.mxu0 0
        %2433 = vmatpush1.bf16.msra.mxu0 %v2424
        %2434 = vmatprep.subr.bf16.mxu0 0
        %2435 = vmatpush1.bf16.msra.mxu0 0
        %2436 = vmatprep.subr.bf16.mxu0 0
        %2437 = vmatpush1.bf16.msra.mxu0 0
        %2438 = vmatprep.subr.bf16.mxu0 0
        %2439 = vmatpush1.bf16.msra.mxu0 0
        %2440 = vmatprep.subr.bf16.mxu0 0
        %2441 = vmatpush1.bf16.msra.mxu0 0
        %2442 = vmatprep.subr.bf16.mxu0 0
        %2443 = vmatpush1.bf16.msra.mxu0 0
        %2444 = vmatprep.subr.bf16.mxu0 0
        %2445 = vmatpush1.bf16.msra.mxu0 0
        %2446 = vmatprep.subr.bf16.mxu0 0
        %2447 = vmatpush1.bf16.msra.mxu0 0
        %2448 = vmatprep.subr.bf16.mxu0 0
        %2449 = vmatpush1.bf16.msra.mxu0 0
        %2450 = vmatprep.subr.bf16.mxu0 0
        %2451 = vmatpush1.bf16.msra.mxu0 0
        %2452 = vmatprep.subr.bf16.mxu0 0
        %2453 = vmatpush1.bf16.msra.mxu0 0
        %2454 = vmatprep.subr.bf16.mxu0 0
        %2455 = vmatpush1.bf16.msra.mxu0 0
        %2456 = vmatprep.subr.bf16.mxu0 0
        %2457 = vmatpush1.bf16.msra.mxu0 0
        %2458 = vmatprep.subr.bf16.mxu0 0
        %2459 = vmatpush1.bf16.msra.mxu0 0
        %2460 = vmatprep.subr.bf16.mxu0 0
        %2461 = vmatpush1.bf16.msra.mxu0 0
        %2462 = vmatprep.mubr.bf16.mxu0 0
        %2463 = vmatmul.mubr.bf16.gmra.mrb[0].mxu0 %v2428
        %v2464 = vpop.f32.mrb[0].mxu0
        %v2465 = vadd.f32 %v2410, %v2464
        %v2466 = vpop.f32.mrb[0].mxu0
        %v2467 = vpop.f32.mrb[0].mxu0
        %v2468 = vpop.f32.mrb[0].mxu0
        %2469 = vdwg.mxu0
        %2470 = vrot.lane.b32.xlu0 %v2138, 64
        %v2471 = vpop.permute.xlu0 %2470
        %2472 = vrot.lane.b32.xlu0 %v2139, 64
        %v2473 = vpop.permute.xlu0 %2472
        %v2475 = vsel %vm1103, %v2471, 0
        %v2478 = vsel %vm1103, %v2473, 0
        %2480 = vmatprep.subr.bf16.mxu0 0
        %2481 = vmatpush1.bf16.xpose.msra.mxu0 %v2478
        %2482 = vmatprep.subr.bf16.mxu0 0
        %2483 = vmatpush1.bf16.xpose.msra.mxu0 0
        %2484 = vmatprep.subr.bf16.mxu0 0
        %2485 = vmatpush1.bf16.xpose.msra.mxu0 0
        %2486 = vmatprep.subr.bf16.mxu0 0
        %2487 = vmatpush1.bf16.xpose.msra.mxu0 0
        %2488 = vmatprep.subr.bf16.mxu0 0
        %2489 = vmatpush1.bf16.xpose.msra.mxu0 0
        %2490 = vmatprep.subr.bf16.mxu0 0
        %2491 = vmatpush1.bf16.xpose.msra.mxu0 0
        %2492 = vmatprep.subr.bf16.mxu0 0
        %2493 = vmatpush1.bf16.xpose.msra.mxu0 0
        %2494 = vmatprep.subr.bf16.mxu0 0
        %2495 = vmatpush1.bf16.xpose.msra.mxu0 0
        %2496 = vmatprep.subr.bf16.mxu0 0
        %2497 = vmatpush1.bf16.xpose.msra.mxu0 0
        %2498 = vmatprep.subr.bf16.mxu0 0
        %2499 = vmatpush1.bf16.xpose.msra.mxu0 0
        %2500 = vmatprep.subr.bf16.mxu0 0
        %2501 = vmatpush1.bf16.xpose.msra.mxu0 0
        %2502 = vmatprep.subr.bf16.mxu0 0
        %2503 = vmatpush1.bf16.xpose.msra.mxu0 0
        %2504 = vmatprep.subr.bf16.mxu0 0
        %2505 = vmatpush1.bf16.xpose.msra.mxu0 0
        %2506 = vmatprep.subr.bf16.mxu0 0
        %2507 = vmatpush1.bf16.xpose.msra.mxu0 0
        %2508 = vmatprep.subr.bf16.mxu0 0
        %2509 = vmatpush1.bf16.xpose.msra.mxu0 0
        %2510 = vmatprep.subr.bf16.mxu0 0
        %2511 = vmatpush1.bf16.xpose.msra.mxu0 0
        %2512 = vmatprep.mubr.bf16.mxu0 0
        %2513 = vmatmul.mubr.bf16.gmra.mrb[0].mxu0 %v2475
        %v2514 = vpop.f32.mrb[0].mxu0
        %v2515 = vadd.f32 0.0, %v2514
        %v2516 = vpop.f32.mrb[0].mxu0
        %v2517 = vpop.f32.mrb[0].mxu0
        %v2518 = vpop.f32.mrb[0].mxu0
        %2519 = vdwg.mxu0
        %v2520 = vsel %vm1150, %v2515, -inf
        %2521 = vmax.xlane.f32.xlu0 %v2520
        %v2522 = vpop.xlane.xlu0 %2521
        %v2523 = vsub.f32 %v2515, %v2522
        %v2524 = vmul.f32 %v2523, 1.442695
        %v2525 = vpow.pop %v2524
        %v2526 = vsel %vm1150, %v2525, 0.0
        %2527 = vadd.xlane.f32.xlu0 %v2526
        %v2528 = vpop.xlane.xlu0 %2527
        %v2529 = vrcp.pop %v2528
        %v2530 = vmul.f32 %v2525, %v2529
        %v2531 = vpack.c.bf16 %v2530, %v2530
        %2532 = vrot.lane.b32.xlu0 %v2198, 64
        %v2533 = vpop.permute.xlu0 %2532
        %v2535 = vsel %vm1150, %v2531, 0
        %v2538 = vsel %vm1167, %v2533, 0
        %2540 = vmatprep.subr.bf16.mxu0 0
        %2541 = vmatpush1.bf16.msra.mxu0 %v2538
        %2542 = vmatprep.subr.bf16.mxu0 0
        %2543 = vmatpush1.bf16.msra.mxu0 0
        %2544 = vmatprep.subr.bf16.mxu0 0
        %2545 = vmatpush1.bf16.msra.mxu0 0
        %2546 = vmatprep.subr.bf16.mxu0 0
        %2547 = vmatpush1.bf16.msra.mxu0 0
        %2548 = vmatprep.subr.bf16.mxu0 0
        %2549 = vmatpush1.bf16.msra.mxu0 0
        %2550 = vmatprep.subr.bf16.mxu0 0
        %2551 = vmatpush1.bf16.msra.mxu0 0
        %2552 = vmatprep.subr.bf16.mxu0 0
        %2553 = vmatpush1.bf16.msra.mxu0 0
        %2554 = vmatprep.subr.bf16.mxu0 0
        %2555 = vmatpush1.bf16.msra.mxu0 0
        %2556 = vmatprep.subr.bf16.mxu0 0
        %2557 = vmatpush1.bf16.msra.mxu0 0
        %2558 = vmatprep.subr.bf16.mxu0 0
        %2559 = vmatpush1.bf16.msra.mxu0 0
        %2560 = vmatprep.subr.bf16.mxu0 0
        %2561 = vmatpush1.bf16.msra.mxu0 0
        %2562 = vmatprep.subr.bf16.mxu0 0
        %2563 = vmatpush1.bf16.msra.mxu0 0
        %2564 = vmatprep.subr.bf16.mxu0 0
        %2565 = vmatpush1.bf16.msra.mxu0 0
        %2566 = vmatprep.subr.bf16.mxu0 0
        %2567 = vmatpush1.bf16.msra.mxu0 0
        %2568 = vmatprep.subr.bf16.mxu0 0
        %2569 = vmatpush1.bf16.msra.mxu0 0
        %2570 = vmatprep.subr.bf16.mxu0 0
        %2571 = vmatpush1.bf16.msra.mxu0 0
        %2572 = vmatprep.mubr.bf16.mxu0 0
        %2573 = vmatmul.mubr.bf16.gmra.mrb[0].mxu0 %v2535
        %v2574 = vpop.f32.mrb[0].mxu0
        %v2575 = vadd.f32 0.0, %v2574
        %v2576 = vpop.f32.mrb[0].mxu0
        %v2577 = vpop.f32.mrb[0].mxu0
        %v2578 = vpop.f32.mrb[0].mxu0
        %2579 = vdwg.mxu0
        %v2580 = vpack.c.bf16 %v2575, %v2575
        %v2585 = vunpack.c.l.b16 %v2130
        %v2586 = vunpack.c.l.b16 %v2131
        %v2587 = vunpack.c.l.b16 %v2132
        %v2588 = vunpack.c.l.b16 %v2133
        %v2589 = vpack.c.b16 %v2586, %v2585
        %v2590 = vpack.c.b16 %v2588, %v2587
        %v2594 = vsel %vm1103, %v2580, 0
        %2596 = vmatprep.subr.bf16.mxu0 0
        %2597 = vmatpush1.bf16.msra.mxu0 %v2589
        %2598 = vmatprep.subr.bf16.mxu0 0
        %2599 = vmatpush1.bf16.msra.mxu0 %v2590
        %2600 = vmatprep.subr.bf16.mxu0 0
        %2601 = vmatpush1.bf16.msra.mxu0 0
        %2602 = vmatprep.subr.bf16.mxu0 0
        %2603 = vmatpush1.bf16.msra.mxu0 0
        %2604 = vmatprep.subr.bf16.mxu0 0
        %2605 = vmatpush1.bf16.msra.mxu0 0
        %2606 = vmatprep.subr.bf16.mxu0 0
        %2607 = vmatpush1.bf16.msra.mxu0 0
        %2608 = vmatprep.subr.bf16.mxu0 0
        %2609 = vmatpush1.bf16.msra.mxu0 0
        %2610 = vmatprep.subr.bf16.mxu0 0
        %2611 = vmatpush1.bf16.msra.mxu0 0
        %2612 = vmatprep.subr.bf16.mxu0 0
        %2613 = vmatpush1.bf16.msra.mxu0 0
        %2614 = vmatprep.subr.bf16.mxu0 0
        %2615 = vmatpush1.bf16.msra.mxu0 0
        %2616 = vmatprep.subr.bf16.mxu0 0
        %2617 = vmatpush1.bf16.msra.mxu0 0
        %2618 = vmatprep.subr.bf16.mxu0 0
        %2619 = vmatpush1.bf16.msra.mxu0 0
        %2620 = vmatprep.subr.bf16.mxu0 0
        %2621 = vmatpush1.bf16.msra.mxu0 0
        %2622 = vmatprep.subr.bf16.mxu0 0
        %2623 = vmatpush1.bf16.msra.mxu0 0
        %2624 = vmatprep.subr.bf16.mxu0 0
        %2625 = vmatpush1.bf16.msra.mxu0 0
        %2626 = vmatprep.subr.bf16.mxu0 0
        %2627 = vmatpush1.bf16.msra.mxu0 0
        %2628 = vmatprep.mubr.bf16.mxu0 0
        %2629 = vmatmul.mubr.bf16.gmra.mrb[0].mxu0 %v2594
        %v2630 = vpop.f32.mrb[0].mxu0
        %v2631 = vadd.f32 0.0, %v2630
        %v2632 = vpop.f32.mrb[0].mxu0
        %v2633 = vpop.f32.mrb[0].mxu0
        %v2634 = vpop.f32.mrb[0].mxu0
        %2635 = vdwg.mxu0
        %v2636 = vadd.f32 %v2465, %v2631
        %2637 = vrot.lane.b32.xlu0 %v2138, 32
        %v2638 = vpop.permute.xlu0 %2637
        %2639 = vrot.lane.b32.xlu0 %v2139, 32
        %v2640 = vpop.permute.xlu0 %2639
        %v2642 = vsel %vm1103, %v2638, 0
        %v2645 = vsel %vm1103, %v2640, 0
        %2647 = vmatprep.subr.bf16.mxu0 0
        %2648 = vmatpush1.bf16.xpose.msra.mxu0 %v2645
        %2649 = vmatprep.subr.bf16.mxu0 0
        %2650 = vmatpush1.bf16.xpose.msra.mxu0 0
        %2651 = vmatprep.subr.bf16.mxu0 0
        %2652 = vmatpush1.bf16.xpose.msra.mxu0 0
        %2653 = vmatprep.subr.bf16.mxu0 0
        %2654 = vmatpush1.bf16.xpose.msra.mxu0 0
        %2655 = vmatprep.subr.bf16.mxu0 0
        %2656 = vmatpush1.bf16.xpose.msra.mxu0 0
        %2657 = vmatprep.subr.bf16.mxu0 0
        %2658 = vmatpush1.bf16.xpose.msra.mxu0 0
        %2659 = vmatprep.subr.bf16.mxu0 0
        %2660 = vmatpush1.bf16.xpose.msra.mxu0 0
        %2661 = vmatprep.subr.bf16.mxu0 0
        %2662 = vmatpush1.bf16.xpose.msra.mxu0 0
        %2663 = vmatprep.subr.bf16.mxu0 0
        %2664 = vmatpush1.bf16.xpose.msra.mxu0 0
        %2665 = vmatprep.subr.bf16.mxu0 0
        %2666 = vmatpush1.bf16.xpose.msra.mxu0 0
        %2667 = vmatprep.subr.bf16.mxu0 0
        %2668 = vmatpush1.bf16.xpose.msra.mxu0 0
        %2669 = vmatprep.subr.bf16.mxu0 0
        %2670 = vmatpush1.bf16.xpose.msra.mxu0 0
        %2671 = vmatprep.subr.bf16.mxu0 0
        %2672 = vmatpush1.bf16.xpose.msra.mxu0 0
        %2673 = vmatprep.subr.bf16.mxu0 0
        %2674 = vmatpush1.bf16.xpose.msra.mxu0 0
        %2675 = vmatprep.subr.bf16.mxu0 0
        %2676 = vmatpush1.bf16.xpose.msra.mxu0 0
        %2677 = vmatprep.subr.bf16.mxu0 0
        %2678 = vmatpush1.bf16.xpose.msra.mxu0 0
        %2679 = vmatprep.mubr.bf16.mxu0 0
        %2680 = vmatmul.mubr.bf16.gmra.mrb[0].mxu0 %v2642
        %v2681 = vpop.f32.mrb[0].mxu0
        %v2682 = vadd.f32 0.0, %v2681
        %v2683 = vpop.f32.mrb[0].mxu0
        %v2684 = vpop.f32.mrb[0].mxu0
        %v2685 = vpop.f32.mrb[0].mxu0
        %2686 = vdwg.mxu0
        %v2687 = vsel %vm1150, %v2682, -inf
        %2688 = vmax.xlane.f32.xlu0 %v2687
        %v2689 = vpop.xlane.xlu0 %2688
        %v2690 = vsub.f32 %v2682, %v2689
        %v2691 = vmul.f32 %v2690, 1.442695
        %v2692 = vpow.pop %v2691
        %v2693 = vsel %vm1150, %v2692, 0.0
        %2694 = vadd.xlane.f32.xlu0 %v2693
        %v2695 = vpop.xlane.xlu0 %2694
        %v2696 = vrcp.pop %v2695
        %v2697 = vmul.f32 %v2692, %v2696
        %v2698 = vpack.c.bf16 %v2697, %v2697
        %2699 = vrot.lane.b32.xlu0 %v2198, 32
        %v2700 = vpop.permute.xlu0 %2699
        %v2702 = vsel %vm1150, %v2698, 0
        %v2705 = vsel %vm1167, %v2700, 0
        %2707 = vmatprep.subr.bf16.mxu0 0
        %2708 = vmatpush1.bf16.msra.mxu0 %v2705
        %2709 = vmatprep.subr.bf16.mxu0 0
        %2710 = vmatpush1.bf16.msra.mxu0 0
        %2711 = vmatprep.subr.bf16.mxu0 0
        %2712 = vmatpush1.bf16.msra.mxu0 0
        %2713 = vmatprep.subr.bf16.mxu0 0
        %2714 = vmatpush1.bf16.msra.mxu0 0
        %2715 = vmatprep.subr.bf16.mxu0 0
        %2716 = vmatpush1.bf16.msra.mxu0 0
        %2717 = vmatprep.subr.bf16.mxu0 0
        %2718 = vmatpush1.bf16.msra.mxu0 0
        %2719 = vmatprep.subr.bf16.mxu0 0
        %2720 = vmatpush1.bf16.msra.mxu0 0
        %2721 = vmatprep.subr.bf16.mxu0 0
        %2722 = vmatpush1.bf16.msra.mxu0 0
        %2723 = vmatprep.subr.bf16.mxu0 0
        %2724 = vmatpush1.bf16.msra.mxu0 0
        %2725 = vmatprep.subr.bf16.mxu0 0
        %2726 = vmatpush1.bf16.msra.mxu0 0
        %2727 = vmatprep.subr.bf16.mxu0 0
        %2728 = vmatpush1.bf16.msra.mxu0 0
        %2729 = vmatprep.subr.bf16.mxu0 0
        %2730 = vmatpush1.bf16.msra.mxu0 0
        %2731 = vmatprep.subr.bf16.mxu0 0
        %2732 = vmatpush1.bf16.msra.mxu0 0
        %2733 = vmatprep.subr.bf16.mxu0 0
        %2734 = vmatpush1.bf16.msra.mxu0 0
        %2735 = vmatprep.subr.bf16.mxu0 0
        %2736 = vmatpush1.bf16.msra.mxu0 0
        %2737 = vmatprep.subr.bf16.mxu0 0
        %2738 = vmatpush1.bf16.msra.mxu0 0
        %2739 = vmatprep.mubr.bf16.mxu0 0
        %2740 = vmatmul.mubr.bf16.gmra.mrb[0].mxu0 %v2702
        %v2741 = vpop.f32.mrb[0].mxu0
        %v2742 = vadd.f32 0.0, %v2741
        %v2743 = vpop.f32.mrb[0].mxu0
        %v2744 = vpop.f32.mrb[0].mxu0
        %v2745 = vpop.f32.mrb[0].mxu0
        %2746 = vdwg.mxu0
        %v2747 = vpack.c.bf16 %v2742, %v2742
        %v2752 = vunpack.c.l.b16 %v2134
        %v2753 = vunpack.c.l.b16 %v2135
        %v2754 = vunpack.c.l.b16 %v2136
        %v2755 = vunpack.c.l.b16 %v2137
        %v2756 = vpack.c.b16 %v2753, %v2752
        %v2757 = vpack.c.b16 %v2755, %v2754
        %v2761 = vsel %vm1103, %v2747, 0
        %2763 = vmatprep.subr.bf16.mxu0 0
        %2764 = vmatpush1.bf16.msra.mxu0 %v2756
        %2765 = vmatprep.subr.bf16.mxu0 0
        %2766 = vmatpush1.bf16.msra.mxu0 %v2757
        %2767 = vmatprep.subr.bf16.mxu0 0
        %2768 = vmatpush1.bf16.msra.mxu0 0
        %2769 = vmatprep.subr.bf16.mxu0 0
        %2770 = vmatpush1.bf16.msra.mxu0 0
        %2771 = vmatprep.subr.bf16.mxu0 0
        %2772 = vmatpush1.bf16.msra.mxu0 0
        %2773 = vmatprep.subr.bf16.mxu0 0
        %2774 = vmatpush1.bf16.msra.mxu0 0
        %2775 = vmatprep.subr.bf16.mxu0 0
        %2776 = vmatpush1.bf16.msra.mxu0 0
        %2777 = vmatprep.subr.bf16.mxu0 0
        %2778 = vmatpush1.bf16.msra.mxu0 0
        %2779 = vmatprep.subr.bf16.mxu0 0
        %2780 = vmatpush1.bf16.msra.mxu0 0
        %2781 = vmatprep.subr.bf16.mxu0 0
        %2782 = vmatpush1.bf16.msra.mxu0 0
        %2783 = vmatprep.subr.bf16.mxu0 0
        %2784 = vmatpush1.bf16.msra.mxu0 0
        %2785 = vmatprep.subr.bf16.mxu0 0
        %2786 = vmatpush1.bf16.msra.mxu0 0
        %2787 = vmatprep.subr.bf16.mxu0 0
        %2788 = vmatpush1.bf16.msra.mxu0 0
        %2789 = vmatprep.subr.bf16.mxu0 0
        %2790 = vmatpush1.bf16.msra.mxu0 0
        %2791 = vmatprep.subr.bf16.mxu0 0
        %2792 = vmatpush1.bf16.msra.mxu0 0
        %2793 = vmatprep.subr.bf16.mxu0 0
        %2794 = vmatpush1.bf16.msra.mxu0 0
        %2795 = vmatprep.mubr.bf16.mxu0 0
        %2796 = vmatmul.mubr.bf16.gmra.mrb[0].mxu0 %v2761
        %v2797 = vpop.f32.mrb[0].mxu0
        %v2798 = vadd.f32 0.0, %v2797
        %v2799 = vpop.f32.mrb[0].mxu0
        %v2800 = vpop.f32.mrb[0].mxu0
        %v2801 = vpop.f32.mrb[0].mxu0
        %2802 = vdwg.mxu0
        %v2803 = vadd.f32 %v2636, %v2798
        %v2804 = vld [vmem:[%s15] sm:$0x1]
        %v2806 = vlaneseq
        %v2807 = vshrl.u32 %v2806, 7
        %v2808 = vsub.s32 0, %v2807
        %v2809 = vrot.slane %v2804, %v2808
        %v2811 = vadd.f32 %v2803, %v2809
        %v2812 = vadd.f32 %v2811, %v1806
        %2813 = vadd.xlane.f32.xlu0 %v2812
        %v2814 = vpop.xlane.xlu0 %2813
        %v2815 = vmul.f32 %v2814, %v1781
        %v2816 = vsub.f32 %v2812, %v2815
        %v2817 = vmul.f32 %v2816, %v2816
        %2818 = vadd.xlane.f32.xlu0 %v2817
        %v2819 = vpop.xlane.xlu0 %2818
        %v2820 = vmul.f32 %v2819, %v1781
        %v2821 = vadd.f32 %v2820, 1e-05
        %v2822 = vrsqrt.pop %v2821
        %v2823 = vmul.f32 %v2816, %v2822
        %v2824 = vld [vmem:[%s16] sm:$0x1]
        %v2826 = vlaneseq
        %v2827 = vshrl.u32 %v2826, 7
        %v2828 = vsub.s32 0, %v2827
        %v2829 = vrot.slane %v2824, %v2828
        %v2831 = vmul.f32 %v2823, %v2829
        %v2832 = vld [vmem:[%s17] sm:$0x1]
        %v2834 = vlaneseq
        %v2835 = vshrl.u32 %v2834, 7
        %v2836 = vsub.s32 0, %v2835
        %v2837 = vrot.slane %v2832, %v2836
        %v2839 = vadd.f32 %v2831, %v2837
        %v2840 = vpack.c.bf16 %v2839, %v2839
        %v2841 = vld [vmem:[%s18] sm:$0xff]
        %v2842 = vld [vmem:[%s18 + $0x8] sm:$0xff]
        %v2843 = vld [vmem:[%s18 + $0x10] sm:$0xff]
        %v2844 = vld [vmem:[%s18 + $0x18] sm:$0xff]
        %v2845 = vld [vmem:[%s18 + $0x20] sm:$0xff]
        %v2846 = vld [vmem:[%s18 + $0x28] sm:$0xff]
        %v2847 = vld [vmem:[%s18 + $0x30] sm:$0xff]
        %v2848 = vld [vmem:[%s18 + $0x38] sm:$0xff]
        %v2849 = vld [vmem:[%s18 + $0x40] sm:$0xff]
        %v2850 = vld [vmem:[%s18 + $0x48] sm:$0xff]
        %v2851 = vld [vmem:[%s18 + $0x50] sm:$0xff]
        %v2852 = vld [vmem:[%s18 + $0x58] sm:$0xff]
        %v2853 = vld [vmem:[%s18 + $0x60] sm:$0xff]
        %v2854 = vld [vmem:[%s18 + $0x68] sm:$0xff]
        %v2855 = vld [vmem:[%s18 + $0x70] sm:$0xff]
        %v2856 = vld [vmem:[%s18 + $0x78] sm:$0xff]
        %v2857 = vld [vmem:[%s18 + $0x80] sm:$0xff]
        %v2858 = vld [vmem:[%s18 + $0x88] sm:$0xff]
        %v2859 = vld [vmem:[%s18 + $0x90] sm:$0xff]
        %v2860 = vld [vmem:[%s18 + $0x98] sm:$0xff]
        %v2861 = vld [vmem:[%s18 + $0xa0] sm:$0xff]
        %v2862 = vld [vmem:[%s18 + $0xa8] sm:$0xff]
        %v2863 = vld [vmem:[%s18 + $0xb0] sm:$0xff]
        %v2864 = vld [vmem:[%s18 + $0xb8] sm:$0xff]
        %v2865 = vld [vmem:[%s18 + $0xc0] sm:$0xff]
        %v2866 = vld [vmem:[%s18 + $0xc8] sm:$0xff]
        %v2867 = vld [vmem:[%s18 + $0xd0] sm:$0xff]
        %v2868 = vld [vmem:[%s18 + $0xd8] sm:$0xff]
        %v2869 = vld [vmem:[%s18 + $0xe0] sm:$0xff]
        %v2870 = vld [vmem:[%s18 + $0xe8] sm:$0xff]
        %v2871 = vld [vmem:[%s18 + $0xf0] sm:$0xff]
        %v2872 = vld [vmem:[%s18 + $0xf8] sm:$0xff]
        %v2873 = vld [vmem:[%s19] sm:$0xf]
        %v2875 = vlaneseq
        %v2876 = vshrl.u32 %v2875, 7
        %v2877 = vsub.s32 0, %v2876
        %v2878 = vrot.slane %v2873, %v2877
        %v2879 = vlaneseq
        %v2880 = vshrl.u32 %v2879, 7
        %v2881 = vsub.s32 1, %v2880
        %v2882 = vrot.slane %v2873, %v2881
        %v2883 = vlaneseq
        %v2884 = vshrl.u32 %v2883, 7
        %v2885 = vsub.s32 2, %v2884
        %v2886 = vrot.slane %v2873, %v2885
        %v2887 = vlaneseq
        %v2888 = vshrl.u32 %v2887, 7
        %v2889 = vsub.s32 3, %v2888
        %v2890 = vrot.slane %v2873, %v2889
        %v2927 = vunpack.c.l.b16 %v2841
        %v2928 = vunpack.c.h.b16 %v2841
        %v2929 = vunpack.c.l.b16 %v2842
        %v2930 = vunpack.c.h.b16 %v2842
        %v2931 = vunpack.c.l.b16 %v2843
        %v2932 = vunpack.c.h.b16 %v2843
        %v2933 = vunpack.c.l.b16 %v2844
        %v2934 = vunpack.c.h.b16 %v2844
        %v2935 = vunpack.c.l.b16 %v2845
        %v2936 = vunpack.c.h.b16 %v2845
        %v2937 = vunpack.c.l.b16 %v2846
        %v2938 = vunpack.c.h.b16 %v2846
        %v2939 = vunpack.c.l.b16 %v2847
        %v2940 = vunpack.c.h.b16 %v2847
        %v2941 = vunpack.c.l.b16 %v2848
        %v2942 = vunpack.c.h.b16 %v2848
        %v2943 = vunpack.c.l.b16 %v2849
        %v2944 = vunpack.c.h.b16 %v2849
        %v2945 = vunpack.c.l.b16 %v2850
        %v2946 = vunpack.c.h.b16 %v2850
        %v2947 = vunpack.c.l.b16 %v2851
        %v2948 = vunpack.c.h.b16 %v2851
        %v2949 = vunpack.c.l.b16 %v2852
        %v2950 = vunpack.c.h.b16 %v2852
        %v2951 = vunpack.c.l.b16 %v2853
        %v2952 = vunpack.c.h.b16 %v2853
        %v2953 = vunpack.c.l.b16 %v2854
        %v2954 = vunpack.c.h.b16 %v2854
        %v2955 = vunpack.c.l.b16 %v2855
        %v2956 = vunpack.c.h.b16 %v2855
        %v2957 = vunpack.c.l.b16 %v2856
        %v2958 = vunpack.c.h.b16 %v2856
        %v2959 = vunpack.c.l.b16 %v2857
        %v2960 = vunpack.c.h.b16 %v2857
        %v2961 = vunpack.c.l.b16 %v2858
        %v2962 = vunpack.c.h.b16 %v2858
        %v2963 = vunpack.c.l.b16 %v2859
        %v2964 = vunpack.c.h.b16 %v2859
        %v2965 = vunpack.c.l.b16 %v2860
        %v2966 = vunpack.c.h.b16 %v2860
        %v2967 = vunpack.c.l.b16 %v2861
        %v2968 = vunpack.c.h.b16 %v2861
        %v2969 = vunpack.c.l.b16 %v2862
        %v2970 = vunpack.c.h.b16 %v2862
        %v2971 = vunpack.c.l.b16 %v2863
        %v2972 = vunpack.c.h.b16 %v2863
        %v2973 = vunpack.c.l.b16 %v2864
        %v2974 = vunpack.c.h.b16 %v2864
        %v2975 = vunpack.c.l.b16 %v2865
        %v2976 = vunpack.c.h.b16 %v2865
        %v2977 = vunpack.c.l.b16 %v2866
        %v2978 = vunpack.c.h.b16 %v2866
        %v2979 = vunpack.c.l.b16 %v2867
        %v2980 = vunpack.c.h.b16 %v2867
        %v2981 = vunpack.c.l.b16 %v2868
        %v2982 = vunpack.c.h.b16 %v2868
        %v2983 = vunpack.c.l.b16 %v2869
        %v2984 = vunpack.c.h.b16 %v2869
        %v2985 = vunpack.c.l.b16 %v2870
        %v2986 = vunpack.c.h.b16 %v2870
        %v2987 = vunpack.c.l.b16 %v2871
        %v2988 = vunpack.c.h.b16 %v2871
        %v2989 = vunpack.c.l.b16 %v2872
        %v2990 = vunpack.c.h.b16 %v2872
        %v2991 = vpack.c.b16 %v2931, %v2927
        %v2992 = vpack.c.b16 %v2932, %v2928
        %v2993 = vpack.c.b16 %v2933, %v2929
        %v2994 = vpack.c.b16 %v2934, %v2930
        %v2995 = vpack.c.b16 %v2939, %v2935
        %v2996 = vpack.c.b16 %v2940, %v2936
        %v2997 = vpack.c.b16 %v2941, %v2937
        %v2998 = vpack.c.b16 %v2942, %v2938
        %v2999 = vpack.c.b16 %v2947, %v2943
        %v3000 = vpack.c.b16 %v2948, %v2944
        %v3001 = vpack.c.b16 %v2949, %v2945
        %v3002 = vpack.c.b16 %v2950, %v2946
        %v3003 = vpack.c.b16 %v2955, %v2951
        %v3004 = vpack.c.b16 %v2956, %v2952
        %v3005 = vpack.c.b16 %v2957, %v2953
        %v3006 = vpack.c.b16 %v2958, %v2954
        %v3007 = vpack.c.b16 %v2963, %v2959
        %v3008 = vpack.c.b16 %v2964, %v2960
        %v3009 = vpack.c.b16 %v2965, %v2961
        %v3010 = vpack.c.b16 %v2966, %v2962
        %v3011 = vpack.c.b16 %v2971, %v2967
        %v3012 = vpack.c.b16 %v2972, %v2968
        %v3013 = vpack.c.b16 %v2973, %v2969
        %v3014 = vpack.c.b16 %v2974, %v2970
        %v3015 = vpack.c.b16 %v2979, %v2975
        %v3016 = vpack.c.b16 %v2980, %v2976
        %v3017 = vpack.c.b16 %v2981, %v2977
        %v3018 = vpack.c.b16 %v2982, %v2978
        %v3019 = vpack.c.b16 %v2987, %v2983
        %v3020 = vpack.c.b16 %v2988, %v2984
        %v3021 = vpack.c.b16 %v2989, %v2985
        %v3022 = vpack.c.b16 %v2990, %v2986
        %3055 = vmatprep.subr.bf16.mxu0 %v2992
        %3056 = vmatpush1.bf16.msra.mxu0 %v2991
        %3057 = vmatprep.subr.bf16.mxu0 %v2996
        %3058 = vmatpush1.bf16.msra.mxu0 %v2995
        %3059 = vmatprep.subr.bf16.mxu0 %v3000
        %3060 = vmatpush1.bf16.msra.mxu0 %v2999
        %3061 = vmatprep.subr.bf16.mxu0 %v3004
        %3062 = vmatpush1.bf16.msra.mxu0 %v3003
        %3063 = vmatprep.subr.bf16.mxu0 %v3008
        %3064 = vmatpush1.bf16.msra.mxu0 %v3007
        %3065 = vmatprep.subr.bf16.mxu0 %v3012
        %3066 = vmatpush1.bf16.msra.mxu0 %v3011
        %3067 = vmatprep.subr.bf16.mxu0 %v3016
        %3068 = vmatpush1.bf16.msra.mxu0 %v3015
        %3069 = vmatprep.subr.bf16.mxu0 %v3020
        %3070 = vmatpush1.bf16.msra.mxu0 %v3019
        %3071 = vmatprep.subr.bf16.mxu0 0
        %3072 = vmatpush1.bf16.msra.mxu0 0
        %3073 = vmatprep.subr.bf16.mxu0 0
        %3074 = vmatpush1.bf16.msra.mxu0 0
        %3075 = vmatprep.subr.bf16.mxu0 0
        %3076 = vmatpush1.bf16.msra.mxu0 0
        %3077 = vmatprep.subr.bf16.mxu0 0
        %3078 = vmatpush1.bf16.msra.mxu0 0
        %3079 = vmatprep.subr.bf16.mxu0 0
        %3080 = vmatpush1.bf16.msra.mxu0 0
        %3081 = vmatprep.subr.bf16.mxu0 0
        %3082 = vmatpush1.bf16.msra.mxu0 0
        %3083 = vmatprep.subr.bf16.mxu0 0
        %3084 = vmatpush1.bf16.msra.mxu0 0
        %3085 = vmatprep.subr.bf16.mxu0 0
        %3086 = vmatpush1.bf16.msra.mxu0 0
        %3087 = vmatprep.mubr.bf16.mxu0 0
        %3088 = vmatmul.mubr.bf16.gmra.mrb[0].mxu0 %v2840
        %v3089 = vpop.f32.mrb[0].mxu0
        %v3090 = vadd.f32 %v2878, %v3089
        %v3091 = vpop.f32.mrb[0].mxu0
        %v3092 = vadd.f32 %v2882, %v3091
        %v3093 = vpop.f32.mrb[0].mxu0
        %v3094 = vpop.f32.mrb[0].mxu0
        %3095 = vdwg.mxu0
        %3096 = vmatprep.subr.bf16.mxu0 %v2994
        %3097 = vmatpush1.bf16.msra.mxu0 %v2993
        %3098 = vmatprep.subr.bf16.mxu0 %v2998
        %3099 = vmatpush1.bf16.msra.mxu0 %v2997
        %3100 = vmatprep.subr.bf16.mxu0 %v3002
        %3101 = vmatpush1.bf16.msra.mxu0 %v3001
        %3102 = vmatprep.subr.bf16.mxu0 %v3006
        %3103 = vmatpush1.bf16.msra.mxu0 %v3005
        %3104 = vmatprep.subr.bf16.mxu0 %v3010
        %3105 = vmatpush1.bf16.msra.mxu0 %v3009
        %3106 = vmatprep.subr.bf16.mxu0 %v3014
        %3107 = vmatpush1.bf16.msra.mxu0 %v3013
        %3108 = vmatprep.subr.bf16.mxu0 %v3018
        %3109 = vmatpush1.bf16.msra.mxu0 %v3017
        %3110 = vmatprep.subr.bf16.mxu0 %v3022
        %3111 = vmatpush1.bf16.msra.mxu0 %v3021
        %3112 = vmatprep.subr.bf16.mxu0 0
        %3113 = vmatpush1.bf16.msra.mxu0 0
        %3114 = vmatprep.subr.bf16.mxu0 0
        %3115 = vmatpush1.bf16.msra.mxu0 0
        %3116 = vmatprep.subr.bf16.mxu0 0
        %3117 = vmatpush1.bf16.msra.mxu0 0
        %3118 = vmatprep.subr.bf16.mxu0 0
        %3119 = vmatpush1.bf16.msra.mxu0 0
        %3120 = vmatprep.subr.bf16.mxu0 0
        %3121 = vmatpush1.bf16.msra.mxu0 0
        %3122 = vmatprep.subr.bf16.mxu0 0
        %3123 = vmatpush1.bf16.msra.mxu0 0
        %3124 = vmatprep.subr.bf16.mxu0 0
        %3125 = vmatpush1.bf16.msra.mxu0 0
        %3126 = vmatprep.subr.bf16.mxu0 0
        %3127 = vmatpush1.bf16.msra.mxu0 0
        %3128 = vmatprep.mubr.bf16.mxu0 0
        %3129 = vmatmul.mubr.bf16.gmra.mrb[0].mxu0 %v2840
        %v3130 = vpop.f32.mrb[0].mxu0
        %v3131 = vadd.f32 %v2886, %v3130
        %v3132 = vpop.f32.mrb[0].mxu0
        %v3133 = vadd.f32 %v2890, %v3132
        %v3134 = vpop.f32.mrb[0].mxu0
        %v3135 = vpop.f32.mrb[0].mxu0
        %3136 = vdwg.mxu0
        %v3137 = vmax.f32 %v3090, 0.0
        %v3138 = vmax.f32 %v3092, 0.0
        %v3139 = vmax.f32 %v3131, 0.0
        %v3140 = vmax.f32 %v3133, 0.0
        %v3141 = vpack.c.bf16 %v3137, %v3137
        %v3142 = vpack.c.bf16 %v3138, %v3138
        %v3143 = vpack.c.bf16 %v3139, %v3139
        %v3144 = vpack.c.bf16 %v3140, %v3140
        %v3145 = vld [vmem:[%s20] sm:$0xf]
        %v3146 = vld [vmem:[%s20 + $0x4] sm:$0xf]
        %v3147 = vld [vmem:[%s20 + $0x8] sm:$0xf]
        %v3148 = vld [vmem:[%s20 + $0xc] sm:$0xf]
        %v3149 = vld [vmem:[%s20 + $0x10] sm:$0xf]
        %v3150 = vld [vmem:[%s20 + $0x14] sm:$0xf]
        %v3151 = vld [vmem:[%s20 + $0x18] sm:$0xf]
        %v3152 = vld [vmem:[%s20 + $0x1c] sm:$0xf]
        %v3153 = vld [vmem:[%s20 + $0x20] sm:$0xf]
        %v3154 = vld [vmem:[%s20 + $0x24] sm:$0xf]
        %v3155 = vld [vmem:[%s20 + $0x28] sm:$0xf]
        %v3156 = vld [vmem:[%s20 + $0x2c] sm:$0xf]
        %v3157 = vld [vmem:[%s20 + $0x30] sm:$0xf]
        %v3158 = vld [vmem:[%s20 + $0x34] sm:$0xf]
        %v3159 = vld [vmem:[%s20 + $0x38] sm:$0xf]
        %v3160 = vld [vmem:[%s20 + $0x3c] sm:$0xf]
        %v3161 = vld [vmem:[%s20 + $0x40] sm:$0xf]
        %v3162 = vld [vmem:[%s20 + $0x44] sm:$0xf]
        %v3163 = vld [vmem:[%s20 + $0x48] sm:$0xf]
        %v3164 = vld [vmem:[%s20 + $0x4c] sm:$0xf]
        %v3165 = vld [vmem:[%s20 + $0x50] sm:$0xf]
        %v3166 = vld [vmem:[%s20 + $0x54] sm:$0xf]
        %v3167 = vld [vmem:[%s20 + $0x58] sm:$0xf]
        %v3168 = vld [vmem:[%s20 + $0x5c] sm:$0xf]
        %v3169 = vld [vmem:[%s20 + $0x60] sm:$0xf]
        %v3170 = vld [vmem:[%s20 + $0x64] sm:$0xf]
        %v3171 = vld [vmem:[%s20 + $0x68] sm:$0xf]
        %v3172 = vld [vmem:[%s20 + $0x6c] sm:$0xf]
        %v3173 = vld [vmem:[%s20 + $0x70] sm:$0xf]
        %v3174 = vld [vmem:[%s20 + $0x74] sm:$0xf]
        %v3175 = vld [vmem:[%s20 + $0x78] sm:$0xf]
        %v3176 = vld [vmem:[%s20 + $0x7c] sm:$0xf]
        %v3177 = vld [vmem:[%s20 + $0x80] sm:$0xf]
        %v3178 = vld [vmem:[%s20 + $0x84] sm:$0xf]
        %v3179 = vld [vmem:[%s20 + $0x88] sm:$0xf]
        %v3180 = vld [vmem:[%s20 + $0x8c] sm:$0xf]
        %v3181 = vld [vmem:[%s20 + $0x90] sm:$0xf]
        %v3182 = vld [vmem:[%s20 + $0x94] sm:$0xf]
        %v3183 = vld [vmem:[%s20 + $0x98] sm:$0xf]
        %v3184 = vld [vmem:[%s20 + $0x9c] sm:$0xf]
        %v3185 = vld [vmem:[%s20 + $0xa0] sm:$0xf]
        %v3186 = vld [vmem:[%s20 + $0xa4] sm:$0xf]
        %v3187 = vld [vmem:[%s20 + $0xa8] sm:$0xf]
        %v3188 = vld [vmem:[%s20 + $0xac] sm:$0xf]
        %v3189 = vld [vmem:[%s20 + $0xb0] sm:$0xf]
        %v3190 = vld [vmem:[%s20 + $0xb4] sm:$0xf]
        %v3191 = vld [vmem:[%s20 + $0xb8] sm:$0xf]
        %v3192 = vld [vmem:[%s20 + $0xbc] sm:$0xf]
        %v3193 = vld [vmem:[%s20 + $0xc0] sm:$0xf]
        %v3194 = vld [vmem:[%s20 + $0xc4] sm:$0xf]
        %v3195 = vld [vmem:[%s20 + $0xc8] sm:$0xf]
        %v3196 = vld [vmem:[%s20 + $0xcc] sm:$0xf]
        %v3197 = vld [vmem:[%s20 + $0xd0] sm:$0xf]
        %v3198 = vld [vmem:[%s20 + $0xd4] sm:$0xf]
        %v3199 = vld [vmem:[%s20 + $0xd8] sm:$0xf]
        %v3200 = vld [vmem:[%s20 + $0xdc] sm:$0xf]
        %v3201 = vld [vmem:[%s20 + $0xe0] sm:$0xf]
        %v3202 = vld [vmem:[%s20 + $0xe4] sm:$0xf]
        %v3203 = vld [vmem:[%s20 + $0xe8] sm:$0xf]
        %v3204 = vld [vmem:[%s20 + $0xec] sm:$0xf]
        %v3205 = vld [vmem:[%s20 + $0xf0] sm:$0xf]
        %v3206 = vld [vmem:[%s20 + $0xf4] sm:$0xf]
        %v3207 = vld [vmem:[%s20 + $0xf8] sm:$0xf]
        %v3208 = vld [vmem:[%s20 + $0xfc] sm:$0xf]
        %v3209 = vld [vmem:[%s21] sm:$0x1]
        %v3211 = vlaneseq
        %v3212 = vshrl.u32 %v3211, 7
        %v3213 = vsub.s32 0, %v3212
        %v3214 = vrot.slane %v3209, %v3213
        %v3280 = vunpack.c.l.b16 %v3145
        %v3281 = vunpack.c.l.b16 %v3146
        %v3282 = vunpack.c.l.b16 %v3147
        %v3283 = vunpack.c.l.b16 %v3148
        %v3284 = vunpack.c.l.b16 %v3149
        %v3285 = vunpack.c.l.b16 %v3150
        %v3286 = vunpack.c.l.b16 %v3151
        %v3287 = vunpack.c.l.b16 %v3152
        %v3288 = vunpack.c.l.b16 %v3153
        %v3289 = vunpack.c.l.b16 %v3154
        %v3290 = vunpack.c.l.b16 %v3155
        %v3291 = vunpack.c.l.b16 %v3156
        %v3292 = vunpack.c.l.b16 %v3157
        %v3293 = vunpack.c.l.b16 %v3158
        %v3294 = vunpack.c.l.b16 %v3159
        %v3295 = vunpack.c.l.b16 %v3160
        %v3296 = vunpack.c.l.b16 %v3161
        %v3297 = vunpack.c.l.b16 %v3162
        %v3298 = vunpack.c.l.b16 %v3163
        %v3299 = vunpack.c.l.b16 %v3164
        %v3300 = vunpack.c.l.b16 %v3165
        %v3301 = vunpack.c.l.b16 %v3166
        %v3302 = vunpack.c.l.b16 %v3167
        %v3303 = vunpack.c.l.b16 %v3168
        %v3304 = vunpack.c.l.b16 %v3169
        %v3305 = vunpack.c.l.b16 %v3170
        %v3306 = vunpack.c.l.b16 %v3171
        %v3307 = vunpack.c.l.b16 %v3172
        %v3308 = vunpack.c.l.b16 %v3173
        %v3309 = vunpack.c.l.b16 %v3174
        %v3310 = vunpack.c.l.b16 %v3175
        %v3311 = vunpack.c.l.b16 %v3176
        %v3312 = vunpack.c.l.b16 %v3177
        %v3313 = vunpack.c.l.b16 %v3178
        %v3314 = vunpack.c.l.b16 %v3179
        %v3315 = vunpack.c.l.b16 %v3180
        %v3316 = vunpack.c.l.b16 %v3181
        %v3317 = vunpack.c.l.b16 %v3182
        %v3318 = vunpack.c.l.b16 %v3183
        %v3319 = vunpack.c.l.b16 %v3184
        %v3320 = vunpack.c.l.b16 %v3185
        %v3321 = vunpack.c.l.b16 %v3186
        %v3322 = vunpack.c.l.b16 %v3187
        %v3323 = vunpack.c.l.b16 %v3188
        %v3324 = vunpack.c.l.b16 %v3189
        %v3325 = vunpack.c.l.b16 %v3190
        %v3326 = vunpack.c.l.b16 %v3191
        %v3327 = vunpack.c.l.b16 %v3192
        %v3328 = vunpack.c.l.b16 %v3193
        %v3329 = vunpack.c.l.b16 %v3194
        %v3330 = vunpack.c.l.b16 %v3195
        %v3331 = vunpack.c.l.b16 %v3196
        %v3332 = vunpack.c.l.b16 %v3197
        %v3333 = vunpack.c.l.b16 %v3198
        %v3334 = vunpack.c.l.b16 %v3199
        %v3335 = vunpack.c.l.b16 %v3200
        %v3336 = vunpack.c.l.b16 %v3201
        %v3337 = vunpack.c.l.b16 %v3202
        %v3338 = vunpack.c.l.b16 %v3203
        %v3339 = vunpack.c.l.b16 %v3204
        %v3340 = vunpack.c.l.b16 %v3205
        %v3341 = vunpack.c.l.b16 %v3206
        %v3342 = vunpack.c.l.b16 %v3207
        %v3343 = vunpack.c.l.b16 %v3208
        %v3344 = vpack.c.b16 %v3281, %v3280
        %v3345 = vpack.c.b16 %v3283, %v3282
        %v3346 = vpack.c.b16 %v3285, %v3284
        %v3347 = vpack.c.b16 %v3287, %v3286
        %v3348 = vpack.c.b16 %v3289, %v3288
        %v3349 = vpack.c.b16 %v3291, %v3290
        %v3350 = vpack.c.b16 %v3293, %v3292
        %v3351 = vpack.c.b16 %v3295, %v3294
        %v3352 = vpack.c.b16 %v3297, %v3296
        %v3353 = vpack.c.b16 %v3299, %v3298
        %v3354 = vpack.c.b16 %v3301, %v3300
        %v3355 = vpack.c.b16 %v3303, %v3302
        %v3356 = vpack.c.b16 %v3305, %v3304
        %v3357 = vpack.c.b16 %v3307, %v3306
        %v3358 = vpack.c.b16 %v3309, %v3308
        %v3359 = vpack.c.b16 %v3311, %v3310
        %v3360 = vpack.c.b16 %v3313, %v3312
        %v3361 = vpack.c.b16 %v3315, %v3314
        %v3362 = vpack.c.b16 %v3317, %v3316
        %v3363 = vpack.c.b16 %v3319, %v3318
        %v3364 = vpack.c.b16 %v3321, %v3320
        %v3365 = vpack.c.b16 %v3323, %v3322
        %v3366 = vpack.c.b16 %v3325, %v3324
        %v3367 = vpack.c.b16 %v3327, %v3326
        %v3368 = vpack.c.b16 %v3329, %v3328
        %v3369 = vpack.c.b16 %v3331, %v3330
        %v3370 = vpack.c.b16 %v3333, %v3332
        %v3371 = vpack.c.b16 %v3335, %v3334
        %v3372 = vpack.c.b16 %v3337, %v3336
        %v3373 = vpack.c.b16 %v3339, %v3338
        %v3374 = vpack.c.b16 %v3341, %v3340
        %v3375 = vpack.c.b16 %v3343, %v3342
        %3408 = vmatprep.subr.bf16.mxu0 0
        %3409 = vmatpush1.bf16.msra.mxu0 %v3344
        %3410 = vmatprep.subr.bf16.mxu0 0
        %3411 = vmatpush1.bf16.msra.mxu0 %v3345
        %3412 = vmatprep.subr.bf16.mxu0 0
        %3413 = vmatpush1.bf16.msra.mxu0 %v3346
        %3414 = vmatprep.subr.bf16.mxu0 0
        %3415 = vmatpush1.bf16.msra.mxu0 %v3347
        %3416 = vmatprep.subr.bf16.mxu0 0
        %3417 = vmatpush1.bf16.msra.mxu0 %v3348
        %3418 = vmatprep.subr.bf16.mxu0 0
        %3419 = vmatpush1.bf16.msra.mxu0 %v3349
        %3420 = vmatprep.subr.bf16.mxu0 0
        %3421 = vmatpush1.bf16.msra.mxu0 %v3350
        %3422 = vmatprep.subr.bf16.mxu0 0
        %3423 = vmatpush1.bf16.msra.mxu0 %v3351
        %3424 = vmatprep.subr.bf16.mxu0 0
        %3425 = vmatpush1.bf16.msra.mxu0 %v3352
        %3426 = vmatprep.subr.bf16.mxu0 0
        %3427 = vmatpush1.bf16.msra.mxu0 %v3353
        %3428 = vmatprep.subr.bf16.mxu0 0
        %3429 = vmatpush1.bf16.msra.mxu0 %v3354
        %3430 = vmatprep.subr.bf16.mxu0 0
        %3431 = vmatpush1.bf16.msra.mxu0 %v3355
        %3432 = vmatprep.subr.bf16.mxu0 0
        %3433 = vmatpush1.bf16.msra.mxu0 %v3356
        %3434 = vmatprep.subr.bf16.mxu0 0
        %3435 = vmatpush1.bf16.msra.mxu0 %v3357
        %3436 = vmatprep.subr.bf16.mxu0 0
        %3437 = vmatpush1.bf16.msra.mxu0 %v3358
        %3438 = vmatprep.subr.bf16.mxu0 0
        %3439 = vmatpush1.bf16.msra.mxu0 %v3359
        %3440 = vmatprep.mubr.bf16.mxu0 %v3142
        %3441 = vmatmul.mubr.bf16.gmra.mrb[0].mxu0 %v3141
        %v3442 = vpop.f32.mrb[0].mxu0
        %v3443 = vadd.f32 %v3214, %v3442
        %v3444 = vpop.f32.mrb[0].mxu0
        %v3445 = vpop.f32.mrb[0].mxu0
        %v3446 = vpop.f32.mrb[0].mxu0
        %3447 = vdwg.mxu0
        %3448 = vmatprep.subr.bf16.mxu0 0
        %3449 = vmatpush1.bf16.msra.mxu0 %v3360
        %3450 = vmatprep.subr.bf16.mxu0 0
        %3451 = vmatpush1.bf16.msra.mxu0 %v3361
        %3452 = vmatprep.subr.bf16.mxu0 0
        %3453 = vmatpush1.bf16.msra.mxu0 %v3362
        %3454 = vmatprep.subr.bf16.mxu0 0
        %3455 = vmatpush1.bf16.msra.mxu0 %v3363
        %3456 = vmatprep.subr.bf16.mxu0 0
        %3457 = vmatpush1.bf16.msra.mxu0 %v3364
        %3458 = vmatprep.subr.bf16.mxu0 0
        %3459 = vmatpush1.bf16.msra.mxu0 %v3365
        %3460 = vmatprep.subr.bf16.mxu0 0
        %3461 = vmatpush1.bf16.msra.mxu0 %v3366
        %3462 = vmatprep.subr.bf16.mxu0 0
        %3463 = vmatpush1.bf16.msra.mxu0 %v3367
        %3464 = vmatprep.subr.bf16.mxu0 0
        %3465 = vmatpush1.bf16.msra.mxu0 %v3368
        %3466 = vmatprep.subr.bf16.mxu0 0
        %3467 = vmatpush1.bf16.msra.mxu0 %v3369
        %3468 = vmatprep.subr.bf16.mxu0 0
        %3469 = vmatpush1.bf16.msra.mxu0 %v3370
        %3470 = vmatprep.subr.bf16.mxu0 0
        %3471 = vmatpush1.bf16.msra.mxu0 %v3371
        %3472 = vmatprep.subr.bf16.mxu0 0
        %3473 = vmatpush1.bf16.msra.mxu0 %v3372
        %3474 = vmatprep.subr.bf16.mxu0 0
        %3475 = vmatpush1.bf16.msra.mxu0 %v3373
        %3476 = vmatprep.subr.bf16.mxu0 0
        %3477 = vmatpush1.bf16.msra.mxu0 %v3374
        %3478 = vmatprep.subr.bf16.mxu0 0
        %3479 = vmatpush1.bf16.msra.mxu0 %v3375
        %3480 = vmatprep.mubr.bf16.mxu0 %v3144
        %3481 = vmatmul.mubr.bf16.gmra.mrb[0].mxu0 %v3143
        %v3482 = vpop.f32.mrb[0].mxu0
        %v3483 = vadd.f32 %v3443, %v3482
        %v3484 = vpop.f32.mrb[0].mxu0
        %v3485 = vpop.f32.mrb[0].mxu0
        %v3486 = vpop.f32.mrb[0].mxu0
        %3487 = vdwg.mxu0
        %v3488 = vadd.f32 %v3483, %v2839
        %3489 = vadd.xlane.f32.xlu0 %v3488
        %v3490 = vpop.xlane.xlu0 %3489
        %v3491 = vmul.f32 %v3490, %v1781
        %v3492 = vsub.f32 %v3488, %v3491
        %v3493 = vmul.f32 %v3492, %v3492
        %3494 = vadd.xlane.f32.xlu0 %v3493
        %v3495 = vpop.xlane.xlu0 %3494
        %v3496 = vmul.f32 %v3495, %v1781
        %v3497 = vadd.f32 %v3496, 1e-05
        %v3498 = vrsqrt.pop %v3497
        %v3499 = vmul.f32 %v3492, %v3498
        %v3500 = vld [vmem:[%s22] sm:$0x1]
        %v3502 = vlaneseq
        %v3503 = vshrl.u32 %v3502, 7
        %v3504 = vsub.s32 0, %v3503
        %v3505 = vrot.slane %v3500, %v3504
        %v3507 = vmul.f32 %v3499, %v3505
        %v3508 = vld [vmem:[%s23] sm:$0x1]
        %v3510 = vlaneseq
        %v3511 = vshrl.u32 %v3510, 7
        %v3512 = vsub.s32 0, %v3511
        %v3513 = vrot.slane %v3508, %v3512
        %v3515 = vadd.f32 %v3507, %v3513
        %3516 = vst [vmem:[%s754] sm:$0xff] %v3515
        %s3517 = sand.u32 %s565, 1
        %s3518 = scalar_lea.sflag [#allocation3], %s3517
        %s3519 = sand.u32 %s565, 1
        %s3520 = smul.addr %s3519, 8
        %s3521 = scalar_lea.vmem [#allocation2], %s3520
        // Predicated region
        $region117: #{decoder_block.1} parent=115 // pred_check
          %p3522 = pneg %p575
        $region118: #{decoder_block.1} parent=115 // pred_check_branch
          %3524 = sbr.rel (%p3522) target = $region120
        $region119: #{decoder_block.1} parent=115 // pred_region
          %s3526 = ssub.s32 128, 128
          %3527 = vsyncadd %s3518, %s3526
          %s3528 = smul.addr %s38, 128
          %s3529 = scalar_lea.hbm %s24, %s3528
          %s3531 = sshll.u32 %s3521, 4
          %s3532 = int_to_ptr.vmem [resolvable:$true] %s3531
          %3534 = dma.vmem_to_hbm [thread:$0]  %s3532, 128, %s3529, %s3518
        $region120: #{decoder_block.1} parent=115 // pred_fallthru
          _
      $region116: #{decoder_block.1} parent=5 // pred_fallthru
        _
      %p3535 = scmp.le.s32.totalorder 2, %s33
      // Predicated region
      $region121: #{decoder_block.1} parent=5 // pred_check
        %p3536 = pneg %p3535
      $region122: #{decoder_block.1} parent=5 // pred_check_branch
        %3538 = sbr.rel (%p3536) target = $region124
      $region123: #{decoder_block.1} parent=5 // pred_region
        %s3539 = ssub.s32 %s33, 2
        // Predicated region
        $region125: #{decoder_block.1} parent=123 // pred_check
          %p3540 = pneg %p581
        $region126: #{decoder_block.1} parent=123 // pred_check_branch
          %3542 = sbr.rel (%p3540) target = $region128
        $region127: #{decoder_block.1} parent=123 // pred_region
          %s3543 = sand.u32 %s566, 1
          %s3544 = scalar_lea.sflag [#allocation3], %s3543
          %s3545 = sand.u32 %s566, 1
          %s3546 = smul.addr %s3545, 8
          %s3547 = scalar_lea.vmem [#allocation2], %s3546
          %3548 = dma.done %s3544, 128
        $region128: #{decoder_block.1} parent=123 // pred_fallthru
          _
      $region124: #{decoder_block.1} parent=5 // pred_fallthru
        _
    $region6: #{decoder_block.1} parent=1 // loop_footer
      %s37 = sadd.s32 1, %s33
    $region7: #{decoder_block.1} parent=1 // loop_footer_branch
      %32 = sbr.rel target = $region3
    $region8: #{decoder_block.1} parent=1 // loop_exit
      _
    %3549 = vsyncpa [#allocation3], 1
    %s3550 = scalar_lea.sflag [#allocation3], 1
    %3551 = vsyncpa %s3550, 1

</llo_original>
